<compile_context>
chip_gen: v7x
topology: tpu7x:2x2x1
jax: 0.10.0
libtpu: 0.0.40
codegen_flags: <defaults>
</compile_context>

<pallas_src>
import numpy as np
import jax
import jax.numpy as jnp
from jax import lax
from jax.experimental import pallas as pl
from jax.experimental.pallas import tpu as pltpu

# ---------------- configuration (matches module __init__) ----------------
DIM = 64
NUM_HEADS = 4
WINDOW_SIZE = (8, 8)
SHIFT_SIZE = (4, 4)
EPS = 1e-5  # InstanceNorm2d default eps


# ============================ Pallas kernel ==============================
def _fused_swin_kernel(q_ref, kvv_ref, wkvv_ref, bkvv_ref, wpt_ref, bp_ref,
                       bm_ref, out_ref):
    """One grid step == one batch element (all nW windows of its padded image).

    q_ref   : (1, nW, N, C)   instance-normed / padded / rolled / windowed Q
    kvv_ref : (1, nW, N, 3C)  raw windows of [K | V_scale | V_shift]
    wkvv_ref: (3C, 3C)        block-diag [Wk^T, Wvs^T, Wvh^T]
    bkvv_ref: (1, 3C)         [bk | bvs | bvh]
    wpt_ref : (C, C)          Wp^T
    bp_ref  : (1, C)          proj bias
    bm_ref  : (nh, nW, N, N)  relative-position bias + shift mask (combined)
    out_ref : (1, nW, N, 2C)  [x_scale || x_shift] per window (pre-unpartition)
    """
    nW, N, C = q_ref.shape[1], q_ref.shape[2], q_ref.shape[3]
    C3 = kvv_ref.shape[3]
    nh = bm_ref.shape[0]
    dh = C // nh
    scale = float(dh) ** -0.5

    # ---- fused K / V_scale / V_shift projection for all nW*N tokens ----
    x = kvv_ref[0].reshape(nW * N, C3)
    kvv = jnp.dot(x, wkvv_ref[...],
                  preferred_element_type=jnp.float32) + bkvv_ref[...]

    # ---- K instance norm (per batch, per channel) -----------------------
    # This grid step covers the whole padded image of one batch, so the
    # nW*N window tokens are exactly the pixels InstanceNorm2d reduces over.
    k = kvv[:, :C]
    mu = jnp.mean(k, axis=0, keepdims=True)
    kc = k - mu
    var = jnp.mean(kc * kc, axis=0, keepdims=True)
    k = kc * lax.rsqrt(var + EPS)

    vs = kvv[:, C:2 * C]
    vh = kvv[:, 2 * C:]
    wpt = wpt_ref[...]
    bp = bp_ref[...]

    # Fold the output projection into per-head value tensors:
    #   (P_h @ V_h) @ Wp^T[h*dh:(h+1)*dh, :] == P_h @ (V_h @ Wp^T[h*dh:, :])
    # -> keeps every matmul / store lane-dense (64 or 128 wide), no head-merge
    #    transpose and no extra HBM round trip for the projection.
    ts = [jnp.dot(vs[:, h * dh:(h + 1) * dh], wpt[h * dh:(h + 1) * dh, :],
                  preferred_element_type=jnp.float32).reshape(nW, N, C)
          for h in range(nh)]
    th = [jnp.dot(vh[:, h * dh:(h + 1) * dh], wpt[h * dh:(h + 1) * dh, :],
                  preferred_element_type=jnp.float32).reshape(nW, N, C)
          for h in range(nh)]

    q = q_ref[0] * scale            # (nW, N, C)
    k = k.reshape(nW, N, C)

    acc_s = jnp.zeros((nW, N, C), jnp.float32)
    acc_h = jnp.zeros((nW, N, C), jnp.float32)
    for h in range(nh):
        hs = slice(h * dh, (h + 1) * dh)
        # scores: batched over windows, contract the head channels
        s = lax.dot_general(q[:, :, hs], k[:, :, hs],
                            (((2,), (2,)), ((0,), (0,))),
                            preferred_element_type=jnp.float32)
        s = s + bm_ref[h]           # (nW, N, N): rel-pos bias + shift mask
        s = s - jnp.max(s, axis=-1, keepdims=True)
        p = jnp.exp(s)
        p = p * pl.reciprocal(jnp.sum(p, axis=-1, keepdims=True), approx=True)
        # TODO(synk): attention_dropout / dropout are 0.0 in this config -> omitted.
        acc_s = acc_s + lax.dot_general(p, ts[h],
                                        (((2,), (1,)), ((0,), (0,))),
                                        preferred_element_type=jnp.float32)
        acc_h = acc_h + lax.dot_general(p, th[h],
                                        (((2,), (1,)), ((0,), (0,))),
                                        preferred_element_type=jnp.float32)

    # lane-dense 128-wide store: [x_scale || x_shift]
    out_ref[0] = jnp.concatenate([acc_s + bp, acc_h + bp], axis=-1)


def pallas_fused_call(q_win, kvv_win, wkvv, bkvv, wpt, bp, bias_mask):
    """q_win: (B, nW, N, C); kvv_win: (B, nW, N, 3C); bias_mask: (nh, nW, N, N)."""
    B, nW, N, C = q_win.shape
    C3 = kvv_win.shape[-1]
    nh = bias_mask.shape[0]
    return pl.pallas_call(
        _fused_swin_kernel,
        grid=(B,),
        in_specs=[
            pl.BlockSpec((1, nW, N, C), lambda b: (b, 0, 0, 0)),
            pl.BlockSpec((1, nW, N, C3), lambda b: (b, 0, 0, 0)),
            pl.BlockSpec((C3, C3), lambda b: (0, 0)),
            pl.BlockSpec((1, C3), lambda b: (0, 0)),
            pl.BlockSpec((C, C), lambda b: (0, 0)),
            pl.BlockSpec((1, C), lambda b: (0, 0)),
            pl.BlockSpec((nh, nW, N, N), lambda b: (0, 0, 0, 0)),
        ],
        out_specs=pl.BlockSpec((1, nW, N, 2 * C), lambda b: (b, 0, 0, 0)),
        out_shape=jax.ShapeDtypeStruct((B, nW, N, 2 * C), jnp.float32),
        compiler_params=pltpu.CompilerParams(
            dimension_semantics=("parallel",)),
    )(q_win, kvv_win, wkvv, bkvv, wpt, bp, bias_mask)


# ============================== JAX glue =================================
def instance_norm_nhwc(x, eps=EPS):
    mean = jnp.mean(x, axis=(1, 2), keepdims=True)
    var = jnp.var(x, axis=(1, 2), keepdims=True)  # biased, matches PyTorch
    return (x - mean) / jnp.sqrt(var + eps)


def window_partition(x, ws):
    B, pH, pW, C = x.shape
    x = x.reshape(B, pH // ws[0], ws[0], pW // ws[1], ws[1], C)
    x = x.transpose(0, 1, 3, 2, 4, 5)
    return x.reshape(B * (pH // ws[0]) * (pW // ws[1]), ws[0] * ws[1], C)


def window_unpartition(x, ws, B, pH, pW):
    C = x.shape[-1]
    x = x.reshape(B, pH // ws[0], pW // ws[1], ws[0], ws[1], C)
    x = x.transpose(0, 1, 3, 2, 4, 5)
    return x.reshape(B, pH, pW, C)


def make_attn_mask(pH, pW, ws, ss):
    m = np.zeros((pH, pW), dtype=np.float32)
    h_slices = ((0, -ws[0]), (-ws[0], -ss[0]), (-ss[0], None))
    w_slices = ((0, -ws[1]), (-ws[1], -ss[1]), (-ss[1], None))
    count = 0
    for h in h_slices:
        for w in w_slices:
            m[h[0]:h[1], w[0]:w[1]] = count
            count += 1
    m = m.reshape(pH // ws[0], ws[0], pW // ws[1], ws[1])
    m = m.transpose(0, 2, 1, 3).reshape(-1, ws[0] * ws[1])   # (nW, N)
    diff = m[:, None, :] - m[:, :, None]
    return np.where(diff != 0, -100.0, 0.0).astype(np.float32)  # (nW, N, N)


def make_relative_position_index(ws):
    coords_h = np.arange(ws[0])
    coords_w = np.arange(ws[1])
    coords = np.stack(np.meshgrid(coords_h, coords_w, indexing='ij'))
    coords_flatten = coords.reshape(2, -1)
    rel = coords_flatten[:, :, None] - coords_flatten[:, None, :]
    rel = rel.transpose(1, 2, 0).astype(np.int64)
    rel[:, :, 0] += ws[0] - 1
    rel[:, :, 1] += ws[1] - 1
    rel[:, :, 0] *= 2 * ws[1] - 1
    return rel.sum(-1).reshape(-1)  # (N*N,)


def relative_position_bias(table, ws, num_heads):
    N = ws[0] * ws[1]
    idx = make_relative_position_index(ws)
    bias = np.asarray(table)[idx].reshape(N, N, num_heads)
    return jnp.asarray(bias.transpose(2, 0, 1))  # (nh, N, N)


def make_bias_mask(rel_bias, pH, pW, ws, ss):
    """Combined rel-pos bias + shift mask, precomputed once: (nh, nW, N, N)."""
    nW = (pH // ws[0]) * (pW // ws[1])
    N = ws[0] * ws[1]
    if sum(ss) > 0:
        mask = make_attn_mask(pH, pW, ws, ss)           # (nW, N, N)
    else:
        mask = np.zeros((nW, N, N), np.float32)
    bm = np.asarray(rel_bias)[:, None, :, :] + mask[None, :, :, :]
    return jnp.asarray(bm, jnp.float32)                  # (nh, nW, N, N)


def block_diag_T(weights):
    """Block-diagonal concat of transposed torch-convention Linear weights."""
    C = weights[0].shape[0]
    n = len(weights)
    out = np.zeros((n * C, n * C), np.float32)
    for i, w in enumerate(weights):
        out[i * C:(i + 1) * C, i * C:(i + 1) * C] = np.asarray(w).T
    return jnp.asarray(out)


# ============================ forward passes ==============================
def forward_pallas(params, input_q, input_k, input_vs, input_vh):
    B, H, W, C = input_q.shape
    ws = list(WINDOW_SIZE)
    ss = list(SHIFT_SIZE)
    pad_r = (ws[1] - W % ws[1]) % ws[1]
    pad_b = (ws[0] - H % ws[0]) % ws[0]

    input_q = instance_norm_nhwc(input_q)          # instance_norm_q (pre-pad)
    kvv = jnp.concatenate([input_k, input_vs, input_vh], axis=-1)

    pad = ((0, 0), (0, pad_b), (0, pad_r), (0, 0))
    input_q = jnp.pad(input_q, pad)
    kvv = jnp.pad(kvv, pad)
    _, pH, pW, _ = input_q.shape
    if ws[0] >= pH:
        ss[0] = 0
    if ws[1] >= pW:
        ss[1] = 0
    if sum(ss) > 0:
        input_q = jnp.roll(input_q, shift=(-ss[0], -ss[1]), axis=(1, 2))
        kvv = jnp.roll(kvv, shift=(-ss[0], -ss[1]), axis=(1, 2))

    nW = (pH // ws[0]) * (pW // ws[1])
    N = ws[0] * ws[1]
    assert params['bias_mask'].shape == (NUM_HEADS, nW, N, N), \
        "precomputed bias_mask does not match this input's padded size"

    q_win = window_partition(input_q, ws).reshape(B, nW, N, C)
    kvv_win = window_partition(kvv, ws).reshape(B, nW, N, 3 * C)

    out = pallas_fused_call(q_win, kvv_win,
                            params['wkvv'], params['bkvv'],
                            params['wpt'], params['bp2d'],
                            params['bias_mask'])       # (B, nW, N, 2C)

    def finish(x):
        x = window_unpartition(x.reshape(B * nW, N, C), ws, B, pH, pW)
        if sum(ss) > 0:
            x = jnp.roll(x, shift=(ss[0], ss[1]), axis=(1, 2))
        return x[:, :H, :W, :]

    return finish(out[..., :C]), finish(out[..., C:])


def forward_reference(params, input_q, input_k, input_vs, input_vh):
    """Pure-JAX mirror of the PyTorch reference flow (for checking only)."""
    B, H, W, C = input_q.shape
    ws = list(WINDOW_SIZE)
    ss = list(SHIFT_SIZE)
    pad_r = (ws[1] - W % ws[1]) % ws[1]
    pad_b = (ws[0] - H % ws[0]) % ws[0]

    input_q = instance_norm_nhwc(input_q)
    pad = ((0, 0), (0, pad_b), (0, pad_r), (0, 0))
    input_q = jnp.pad(input_q, pad)
    input_k = jnp.pad(input_k, pad)
    input_vs = jnp.pad(input_vs, pad)
    input_vh = jnp.pad(input_vh, pad)
    _, pH, pW, _ = input_q.shape
    if ws[0] >= pH:
        ss[0] = 0
    if ws[1] >= pW:
        ss[1] = 0
    if sum(ss) > 0:
        roll = lambda t: jnp.roll(t, shift=(-ss[0], -ss[1]), axis=(1, 2))
        input_q, input_k, input_vs, input_vh = map(
            roll, (input_q, input_k, input_vs, input_vh))

    nW = (pH // ws[0]) * (pW // ws[1])
    N = ws[0] * ws[1]
    BnW = B * nW

    qw = window_partition(input_q, ws)
    kw = window_partition(input_k, ws)
    vsw = window_partition(input_vs, ws)
    vhw = window_partition(input_vh, ws)

    lin = lambda x, w, b: x @ jnp.asarray(w).T + b
    k = lin(kw, params['Wk'], params['bk'])
    vs = lin(vsw, params['Wvs'], params['bvs'])
    vh = lin(vhw, params['Wvh'], params['bvh'])

    k_img = window_unpartition(k, ws, B, pH, pW)
    k_img = instance_norm_nhwc(k_img)
    k = window_partition(k_img, ws)

    dh = C // NUM_HEADS
    split = lambda t: t.reshape(BnW, N, NUM_HEADS, dh).transpose(0, 2, 1, 3)
    q_h, k_h, vs_h, vh_h = map(split, (qw, k, vs, vh))

    attn = jnp.einsum('whnd,whmd->whnm', q_h * float(dh) ** -0.5, k_h)
    attn = attn + params['rel_bias'][None]
    if sum(ss) > 0:
        mask = jnp.asarray(make_attn_mask(pH, pW, ws, ss))
        attn = attn + jnp.tile(mask, (B, 1, 1))[:, None]
    p = jax.nn.softmax(attn, axis=-1)

    merge = lambda t: t.transpose(0, 2, 1, 3).reshape(BnW, N, C)
    xs = lin(merge(jnp.einsum('whnm,whmd->whnd', p, vs_h)),
             params['Wp'], params['bp'])
    xh = lin(merge(jnp.einsum('whnm,whmd->whnd', p, vh_h)),
             params['Wp'], params['bp'])

    def finish(x):
        x = window_unpartition(x, ws, B, pH, pW)
        if sum(ss) > 0:
            x = jnp.roll(x, shift=(ss[0], ss[1]), axis=(1, 2))
        return x[:, :H, :W, :]

    return finish(xs), finish(xh)


# ================================ main ====================================
if __name__ == "__main__":
    key = jax.random.PRNGKey(0)
    ks = jax.random.split(key, 16)

    B, H, W, C = 2, 16, 16, DIM
    ws = list(WINDOW_SIZE)
    ss = list(SHIFT_SIZE)

    def lin_init(kw_, kb_, fan_in):
        bound = 1.0 / np.sqrt(fan_in)
        w = jax.random.uniform(kw_, (C, C), jnp.float32, -bound, bound)
        b = jax.random.uniform(kb_, (C,), jnp.float32, -bound, bound)
        return w, b

    Wk, bk = lin_init(ks[0], ks[1], C)
    Wvs, bvs = lin_init(ks[2], ks[3], C)
    Wvh, bvh = lin_init(ks[4], ks[5], C)
    Wp, bp = lin_init(ks[6], ks[7], C)

    n_rel = (2 * ws[0] - 1) * (2 * ws[1] - 1)
    rel_table = 0.02 * jax.random.normal(ks[8], (n_rel, NUM_HEADS), jnp.float32)
    rel_bias = relative_position_bias(rel_table, WINDOW_SIZE, NUM_HEADS)

    # padded dims / effective shift for this input size (hoisted out of forward)
    pH = H + (ws[0] - H % ws[0]) % ws[0]
    pW = W + (ws[1] - W % ws[1]) % ws[1]
    eff_ss = [0 if ws[0] >= pH else ss[0], 0 if ws[1] >= pW else ss[1]]

    params = dict(
        # raw module parameters (used by the pure-JAX reference)
        Wk=Wk, bk=bk, Wvs=Wvs, bvs=bvs, Wvh=Wvh, bvh=bvh, Wp=Wp, bp=bp,
        rel_bias=rel_bias,
        # fused / precomputed parameters (used by the Pallas path), built once
        wkvv=block_diag_T([Wk, Wvs, Wvh]),                       # (3C, 3C)
        bkvv=jnp.concatenate([bk, bvs, bvh]).reshape(1, 3 * C),  # (1, 3C)
        wpt=jnp.asarray(Wp).T,                                   # (C, C)
        bp2d=jnp.asarray(bp).reshape(1, C),                      # (1, C)
        bias_mask=make_bias_mask(rel_bias, pH, pW, ws, eff_ss),  # (nh,nW,N,N)
    )

    input_q = jax.random.normal(ks[9], (B, H, W, C), jnp.float32)
    input_k = jax.random.normal(ks[10], (B, H, W, C), jnp.float32)
    input_vs = jax.random.normal(ks[11], (B, H, W, C), jnp.float32)
    input_vh = jax.random.normal(ks[12], (B, H, W, C), jnp.float32)

    # Pallas fused forward
    pallas_fwd = jax.jit(forward_pallas)
    xs, xh = pallas_fwd(params, input_q, input_k, input_vs, input_vh)
    xs = jax.block_until_ready(xs)
    xh = jax.block_until_ready(xh)

    # Pure-JAX reference check
    xs_ref, xh_ref = forward_reference(params, input_q, input_k, input_vs, input_vh)
    np.testing.assert_allclose(np.asarray(xs), np.asarray(xs_ref),
                               rtol=1e-2, atol=1e-2)
    np.testing.assert_allclose(np.asarray(xh), np.asarray(xh_ref),
                               rtol=1e-2, atol=1e-2)

    assert xs.shape == (B, H, W, C) and xh.shape == (B, H, W, C)
    print("KERNEL_OK")
</pallas_src>

<mosaic_0001>
module attributes {stable_mosaic.version = 11 : i64} {
  func.func @_fused_swin_kernel(%arg0: i32, %arg1: memref<1x4x64x64xf32, #tpu.memory_space<vmem>>, %arg2: memref<1x4x64x192xf32, #tpu.memory_space<vmem>>, %arg3: memref<192x192xf32, #tpu.memory_space<vmem>>, %arg4: memref<1x192xf32, #tpu.memory_space<vmem>>, %arg5: memref<64x64xf32, #tpu.memory_space<vmem>>, %arg6: memref<1x64xf32, #tpu.memory_space<vmem>>, %arg7: memref<4x4x64x64xf32, #tpu.memory_space<vmem>>, %arg8: memref<1x4x64x128xf32, #tpu.memory_space<vmem>>) attributes {dimension_semantics = [#tpu.dimension_semantics<parallel>], iteration_bounds = array<i64: 2>, scalar_prefetch = 0 : i64, scratch_operands = 0 : i64, tpu.core_type = #tpu.core_type<tc>, window_params = [{transform_indices = @transform_0, window_bounds = array<i64: 1, 4, 64, 64>}, {transform_indices = @transform_1, window_bounds = array<i64: 1, 4, 64, 192>}, {pipeline_mode = #tpu.pipeline_mode<synchronous>, transform_indices = @transform_2, window_bounds = array<i64: 192, 192>}, {pipeline_mode = #tpu.pipeline_mode<synchronous>, transform_indices = @transform_3, window_bounds = array<i64: 1, 192>}, {pipeline_mode = #tpu.pipeline_mode<synchronous>, transform_indices = @transform_4, window_bounds = array<i64: 64, 64>}, {pipeline_mode = #tpu.pipeline_mode<synchronous>, transform_indices = @transform_5, window_bounds = array<i64: 1, 64>}, {pipeline_mode = #tpu.pipeline_mode<synchronous>, transform_indices = @transform_6, window_bounds = array<i64: 4, 4, 64, 64>}, {transform_indices = @transform_7, window_bounds = array<i64: 1, 4, 64, 128>}]} {
    %c0 = arith.constant 0 : index
    %c0_0 = arith.constant 0 : index
    %c0_1 = arith.constant 0 : index
    %c0_2 = arith.constant 0 : index
    %0 = vector.load %arg2[%c0, %c0_0, %c0_1, %c0_2] : memref<1x4x64x192xf32, #tpu.memory_space<vmem>>, vector<1x4x64x192xf32>
    %1 = vector.shape_cast %0 : vector<1x4x64x192xf32> to vector<4x64x192xf32>
    %2 = vector.shape_cast %1 : vector<4x64x192xf32> to vector<256x192xf32>
    %c0_3 = arith.constant 0 : index
    %c0_4 = arith.constant 0 : index
    %3 = vector.load %arg3[%c0_3, %c0_4] : memref<192x192xf32, #tpu.memory_space<vmem>>, vector<192x192xf32>
    %cst = arith.constant dense<0.000000e+00> : vector<256x192xf32>
    %4 = tpu.matmul %2, %3, %cst {dimension_numbers = #tpu.dot_dimension_numbers<[1], [0], [0], [1], [0, 0, 1, 1], [], []>} : vector<256x192xf32>, vector<192x192xf32>, vector<256x192xf32> -> vector<256x192xf32>
    %c0_5 = arith.constant 0 : index
    %c0_6 = arith.constant 0 : index
    %5 = vector.load %arg4[%c0_5, %c0_6] : memref<1x192xf32, #tpu.memory_space<vmem>>, vector<1x192xf32>
    %6 = vector.broadcast %5 : vector<1x192xf32> to vector<256x192xf32>
    %7 = arith.addf %4, %6 : vector<256x192xf32>
    %8 = vector.extract_strided_slice %7 {offsets = [0, 0], sizes = [256, 64], strides = [1, 1]} : vector<256x192xf32> to vector<256x64xf32>
    %cst_7 = arith.constant dense<0.000000e+00> : vector<64xf32>
    %9 = vector.multi_reduction <add>, %8, %cst_7 [0] : vector<256x64xf32> to vector<64xf32>
    %10 = vector.shape_cast %9 : vector<64xf32> to vector<1x64xf32>
    %cst_8 = arith.constant 2.560000e+02 : f32
    %11 = vector.broadcast %cst_8 : f32 to vector<1x64xf32>
    %12 = arith.divf %10, %11 : vector<1x64xf32>
    %13 = vector.broadcast %12 : vector<1x64xf32> to vector<256x64xf32>
    %14 = arith.subf %8, %13 : vector<256x64xf32>
    %15 = arith.mulf %14, %14 : vector<256x64xf32>
    %cst_9 = arith.constant dense<0.000000e+00> : vector<64xf32>
    %16 = vector.multi_reduction <add>, %15, %cst_9 [0] : vector<256x64xf32> to vector<64xf32>
    %17 = vector.shape_cast %16 : vector<64xf32> to vector<1x64xf32>
    %cst_10 = arith.constant 2.560000e+02 : f32
    %18 = vector.broadcast %cst_10 : f32 to vector<1x64xf32>
    %19 = arith.divf %17, %18 : vector<1x64xf32>
    %cst_11 = arith.constant 9.99999974E-6 : f32
    %20 = vector.broadcast %cst_11 : f32 to vector<1x64xf32>
    %21 = arith.addf %19, %20 : vector<1x64xf32>
    %22 = math.rsqrt %21 : vector<1x64xf32>
    %23 = vector.broadcast %22 : vector<1x64xf32> to vector<256x64xf32>
    %24 = arith.mulf %14, %23 : vector<256x64xf32>
    %25 = vector.extract_strided_slice %7 {offsets = [0, 64], sizes = [256, 64], strides = [1, 1]} : vector<256x192xf32> to vector<256x64xf32>
    %26 = vector.extract_strided_slice %7 {offsets = [0, 128], sizes = [256, 64], strides = [1, 1]} : vector<256x192xf32> to vector<256x64xf32>
    %c0_12 = arith.constant 0 : index
    %c0_13 = arith.constant 0 : index
    %27 = vector.load %arg5[%c0_12, %c0_13] : memref<64x64xf32, #tpu.memory_space<vmem>>, vector<64x64xf32>
    %c0_14 = arith.constant 0 : index
    %c0_15 = arith.constant 0 : index
    %28 = vector.load %arg6[%c0_14, %c0_15] : memref<1x64xf32, #tpu.memory_space<vmem>>, vector<1x64xf32>
    %29 = vector.extract_strided_slice %25 {offsets = [0, 0], sizes = [256, 16], strides = [1, 1]} : vector<256x64xf32> to vector<256x16xf32>
    %30 = vector.extract_strided_slice %27 {offsets = [0, 0], sizes = [16, 64], strides = [1, 1]} : vector<64x64xf32> to vector<16x64xf32>
    %cst_16 = arith.constant dense<0.000000e+00> : vector<256x64xf32>
    %31 = tpu.matmul %29, %30, %cst_16 {dimension_numbers = #tpu.dot_dimension_numbers<[1], [0], [0], [1], [0, 0, 1, 1], [], []>} : vector<256x16xf32>, vector<16x64xf32>, vector<256x64xf32> -> vector<256x64xf32>
    %32 = vector.shape_cast %31 : vector<256x64xf32> to vector<4x64x64xf32>
    %33 = vector.extract_strided_slice %25 {offsets = [0, 16], sizes = [256, 16], strides = [1, 1]} : vector<256x64xf32> to vector<256x16xf32>
    %34 = vector.extract_strided_slice %27 {offsets = [16, 0], sizes = [16, 64], strides = [1, 1]} : vector<64x64xf32> to vector<16x64xf32>
    %cst_17 = arith.constant dense<0.000000e+00> : vector<256x64xf32>
    %35 = tpu.matmul %33, %34, %cst_17 {dimension_numbers = #tpu.dot_dimension_numbers<[1], [0], [0], [1], [0, 0, 1, 1], [], []>} : vector<256x16xf32>, vector<16x64xf32>, vector<256x64xf32> -> vector<256x64xf32>
    %36 = vector.shape_cast %35 : vector<256x64xf32> to vector<4x64x64xf32>
    %37 = vector.extract_strided_slice %25 {offsets = [0, 32], sizes = [256, 16], strides = [1, 1]} : vector<256x64xf32> to vector<256x16xf32>
    %38 = vector.extract_strided_slice %27 {offsets = [32, 0], sizes = [16, 64], strides = [1, 1]} : vector<64x64xf32> to vector<16x64xf32>
    %cst_18 = arith.constant dense<0.000000e+00> : vector<256x64xf32>
    %39 = tpu.matmul %37, %38, %cst_18 {dimension_numbers = #tpu.dot_dimension_numbers<[1], [0], [0], [1], [0, 0, 1, 1], [], []>} : vector<256x16xf32>, vector<16x64xf32>, vector<256x64xf32> -> vector<256x64xf32>
    %40 = vector.shape_cast %39 : vector<256x64xf32> to vector<4x64x64xf32>
    %41 = vector.extract_strided_slice %25 {offsets = [0, 48], sizes = [256, 16], strides = [1, 1]} : vector<256x64xf32> to vector<256x16xf32>
    %42 = vector.extract_strided_slice %27 {offsets = [48, 0], sizes = [16, 64], strides = [1, 1]} : vector<64x64xf32> to vector<16x64xf32>
    %cst_19 = arith.constant dense<0.000000e+00> : vector<256x64xf32>
    %43 = tpu.matmul %41, %42, %cst_19 {dimension_numbers = #tpu.dot_dimension_numbers<[1], [0], [0], [1], [0, 0, 1, 1], [], []>} : vector<256x16xf32>, vector<16x64xf32>, vector<256x64xf32> -> vector<256x64xf32>
    %44 = vector.shape_cast %43 : vector<256x64xf32> to vector<4x64x64xf32>
    %45 = vector.extract_strided_slice %26 {offsets = [0, 0], sizes = [256, 16], strides = [1, 1]} : vector<256x64xf32> to vector<256x16xf32>
    %46 = vector.extract_strided_slice %27 {offsets = [0, 0], sizes = [16, 64], strides = [1, 1]} : vector<64x64xf32> to vector<16x64xf32>
    %cst_20 = arith.constant dense<0.000000e+00> : vector<256x64xf32>
    %47 = tpu.matmul %45, %46, %cst_20 {dimension_numbers = #tpu.dot_dimension_numbers<[1], [0], [0], [1], [0, 0, 1, 1], [], []>} : vector<256x16xf32>, vector<16x64xf32>, vector<256x64xf32> -> vector<256x64xf32>
    %48 = vector.shape_cast %47 : vector<256x64xf32> to vector<4x64x64xf32>
    %49 = vector.extract_strided_slice %26 {offsets = [0, 16], sizes = [256, 16], strides = [1, 1]} : vector<256x64xf32> to vector<256x16xf32>
    %50 = vector.extract_strided_slice %27 {offsets = [16, 0], sizes = [16, 64], strides = [1, 1]} : vector<64x64xf32> to vector<16x64xf32>
    %cst_21 = arith.constant dense<0.000000e+00> : vector<256x64xf32>
    %51 = tpu.matmul %49, %50, %cst_21 {dimension_numbers = #tpu.dot_dimension_numbers<[1], [0], [0], [1], [0, 0, 1, 1], [], []>} : vector<256x16xf32>, vector<16x64xf32>, vector<256x64xf32> -> vector<256x64xf32>
    %52 = vector.shape_cast %51 : vector<256x64xf32> to vector<4x64x64xf32>
    %53 = vector.extract_strided_slice %26 {offsets = [0, 32], sizes = [256, 16], strides = [1, 1]} : vector<256x64xf32> to vector<256x16xf32>
    %54 = vector.extract_strided_slice %27 {offsets = [32, 0], sizes = [16, 64], strides = [1, 1]} : vector<64x64xf32> to vector<16x64xf32>
    %cst_22 = arith.constant dense<0.000000e+00> : vector<256x64xf32>
    %55 = tpu.matmul %53, %54, %cst_22 {dimension_numbers = #tpu.dot_dimension_numbers<[1], [0], [0], [1], [0, 0, 1, 1], [], []>} : vector<256x16xf32>, vector<16x64xf32>, vector<256x64xf32> -> vector<256x64xf32>
    %56 = vector.shape_cast %55 : vector<256x64xf32> to vector<4x64x64xf32>
    %57 = vector.extract_strided_slice %26 {offsets = [0, 48], sizes = [256, 16], strides = [1, 1]} : vector<256x64xf32> to vector<256x16xf32>
    %58 = vector.extract_strided_slice %27 {offsets = [48, 0], sizes = [16, 64], strides = [1, 1]} : vector<64x64xf32> to vector<16x64xf32>
    %cst_23 = arith.constant dense<0.000000e+00> : vector<256x64xf32>
    %59 = tpu.matmul %57, %58, %cst_23 {dimension_numbers = #tpu.dot_dimension_numbers<[1], [0], [0], [1], [0, 0, 1, 1], [], []>} : vector<256x16xf32>, vector<16x64xf32>, vector<256x64xf32> -> vector<256x64xf32>
    %60 = vector.shape_cast %59 : vector<256x64xf32> to vector<4x64x64xf32>
    %c0_24 = arith.constant 0 : index
    %c0_25 = arith.constant 0 : index
    %c0_26 = arith.constant 0 : index
    %c0_27 = arith.constant 0 : index
    %61 = vector.load %arg1[%c0_24, %c0_25, %c0_26, %c0_27] : memref<1x4x64x64xf32, #tpu.memory_space<vmem>>, vector<1x4x64x64xf32>
    %62 = vector.shape_cast %61 : vector<1x4x64x64xf32> to vector<4x64x64xf32>
    %cst_28 = arith.constant 2.500000e-01 : f32
    %63 = vector.broadcast %cst_28 : f32 to vector<4x64x64xf32>
    %64 = arith.mulf %62, %63 : vector<4x64x64xf32>
    %65 = vector.shape_cast %24 : vector<256x64xf32> to vector<4x64x64xf32>
    %cst_29 = arith.constant 0.000000e+00 : f32
    %66 = vector.broadcast %cst_29 : f32 to vector<4x64x64xf32>
    %cst_30 = arith.constant 0.000000e+00 : f32
    %67 = vector.broadcast %cst_30 : f32 to vector<4x64x64xf32>
    %68 = vector.extract_strided_slice %64 {offsets = [0, 0, 0], sizes = [4, 64, 16], strides = [1, 1, 1]} : vector<4x64x64xf32> to vector<4x64x16xf32>
    %69 = vector.extract_strided_slice %65 {offsets = [0, 0, 0], sizes = [4, 64, 16], strides = [1, 1, 1]} : vector<4x64x64xf32> to vector<4x64x16xf32>
    %cst_31 = arith.constant dense<0.000000e+00> : vector<4x64x64xf32>
    %70 = tpu.matmul %68, %69, %cst_31 {dimension_numbers = #tpu.dot_dimension_numbers<[2], [2], [1], [1], [0, 0, 0, 1, 1, 1], [0], [0]>} : vector<4x64x16xf32>, vector<4x64x16xf32>, vector<4x64x64xf32> -> vector<4x64x64xf32>
    %c0_32 = arith.constant 0 : index
    %c0_33 = arith.constant 0 : index
    %c0_34 = arith.constant 0 : index
    %c0_35 = arith.constant 0 : index
    %71 = vector.load %arg7[%c0_32, %c0_33, %c0_34, %c0_35] : memref<4x4x64x64xf32, #tpu.memory_space<vmem>>, vector<1x4x64x64xf32>
    %72 = vector.shape_cast %71 : vector<1x4x64x64xf32> to vector<4x64x64xf32>
    %73 = arith.addf %70, %72 : vector<4x64x64xf32>
    %cst_36 = arith.constant dense<0xFF800000> : vector<4x64xf32>
    %74 = vector.multi_reduction <maximumf>, %73, %cst_36 [2] : vector<4x64x64xf32> to vector<4x64xf32>
    %75 = vector.shape_cast %74 : vector<4x64xf32> to vector<4x64x1xf32>
    %76 = vector.broadcast %75 : vector<4x64x1xf32> to vector<4x64x64xf32>
    %77 = arith.subf %73, %76 : vector<4x64x64xf32>
    %78 = math.exp %77 : vector<4x64x64xf32>
    %cst_37 = arith.constant dense<0.000000e+00> : vector<4x64xf32>
    %79 = vector.multi_reduction <add>, %78, %cst_37 [2] : vector<4x64x64xf32> to vector<4x64xf32>
    %80 = vector.shape_cast %79 : vector<4x64xf32> to vector<4x64x1xf32>
    %81 = tpu.reciprocal %80 {approx = true} : vector<4x64x1xf32> -> vector<4x64x1xf32>
    %82 = vector.broadcast %81 : vector<4x64x1xf32> to vector<4x64x64xf32>
    %83 = arith.mulf %78, %82 : vector<4x64x64xf32>
    %cst_38 = arith.constant dense<0.000000e+00> : vector<4x64x64xf32>
    %84 = tpu.matmul %83, %32, %cst_38 {dimension_numbers = #tpu.dot_dimension_numbers<[2], [1], [1], [2], [0, 0, 0, 1, 1, 2], [0], [0]>} : vector<4x64x64xf32>, vector<4x64x64xf32>, vector<4x64x64xf32> -> vector<4x64x64xf32>
    %85 = arith.addf %66, %84 : vector<4x64x64xf32>
    %cst_39 = arith.constant dense<0.000000e+00> : vector<4x64x64xf32>
    %86 = tpu.matmul %83, %48, %cst_39 {dimension_numbers = #tpu.dot_dimension_numbers<[2], [1], [1], [2], [0, 0, 0, 1, 1, 2], [0], [0]>} : vector<4x64x64xf32>, vector<4x64x64xf32>, vector<4x64x64xf32> -> vector<4x64x64xf32>
    %87 = arith.addf %67, %86 : vector<4x64x64xf32>
    %88 = vector.extract_strided_slice %64 {offsets = [0, 0, 16], sizes = [4, 64, 16], strides = [1, 1, 1]} : vector<4x64x64xf32> to vector<4x64x16xf32>
    %89 = vector.extract_strided_slice %65 {offsets = [0, 0, 16], sizes = [4, 64, 16], strides = [1, 1, 1]} : vector<4x64x64xf32> to vector<4x64x16xf32>
    %cst_40 = arith.constant dense<0.000000e+00> : vector<4x64x64xf32>
    %90 = tpu.matmul %88, %89, %cst_40 {dimension_numbers = #tpu.dot_dimension_numbers<[2], [2], [1], [1], [0, 0, 0, 1, 1, 1], [0], [0]>} : vector<4x64x16xf32>, vector<4x64x16xf32>, vector<4x64x64xf32> -> vector<4x64x64xf32>
    %c1 = arith.constant 1 : index
    %c0_41 = arith.constant 0 : index
    %c0_42 = arith.constant 0 : index
    %c0_43 = arith.constant 0 : index
    %91 = vector.load %arg7[%c1, %c0_41, %c0_42, %c0_43] : memref<4x4x64x64xf32, #tpu.memory_space<vmem>>, vector<1x4x64x64xf32>
    %92 = vector.shape_cast %91 : vector<1x4x64x64xf32> to vector<4x64x64xf32>
    %93 = arith.addf %90, %92 : vector<4x64x64xf32>
    %cst_44 = arith.constant dense<0xFF800000> : vector<4x64xf32>
    %94 = vector.multi_reduction <maximumf>, %93, %cst_44 [2] : vector<4x64x64xf32> to vector<4x64xf32>
    %95 = vector.shape_cast %94 : vector<4x64xf32> to vector<4x64x1xf32>
    %96 = vector.broadcast %95 : vector<4x64x1xf32> to vector<4x64x64xf32>
    %97 = arith.subf %93, %96 : vector<4x64x64xf32>
    %98 = math.exp %97 : vector<4x64x64xf32>
    %cst_45 = arith.constant dense<0.000000e+00> : vector<4x64xf32>
    %99 = vector.multi_reduction <add>, %98, %cst_45 [2] : vector<4x64x64xf32> to vector<4x64xf32>
    %100 = vector.shape_cast %99 : vector<4x64xf32> to vector<4x64x1xf32>
    %101 = tpu.reciprocal %100 {approx = true} : vector<4x64x1xf32> -> vector<4x64x1xf32>
    %102 = vector.broadcast %101 : vector<4x64x1xf32> to vector<4x64x64xf32>
    %103 = arith.mulf %98, %102 : vector<4x64x64xf32>
    %cst_46 = arith.constant dense<0.000000e+00> : vector<4x64x64xf32>
    %104 = tpu.matmul %103, %36, %cst_46 {dimension_numbers = #tpu.dot_dimension_numbers<[2], [1], [1], [2], [0, 0, 0, 1, 1, 2], [0], [0]>} : vector<4x64x64xf32>, vector<4x64x64xf32>, vector<4x64x64xf32> -> vector<4x64x64xf32>
    %105 = arith.addf %85, %104 : vector<4x64x64xf32>
    %cst_47 = arith.constant dense<0.000000e+00> : vector<4x64x64xf32>
    %106 = tpu.matmul %103, %52, %cst_47 {dimension_numbers = #tpu.dot_dimension_numbers<[2], [1], [1], [2], [0, 0, 0, 1, 1, 2], [0], [0]>} : vector<4x64x64xf32>, vector<4x64x64xf32>, vector<4x64x64xf32> -> vector<4x64x64xf32>
    %107 = arith.addf %87, %106 : vector<4x64x64xf32>
    %108 = vector.extract_strided_slice %64 {offsets = [0, 0, 32], sizes = [4, 64, 16], strides = [1, 1, 1]} : vector<4x64x64xf32> to vector<4x64x16xf32>
    %109 = vector.extract_strided_slice %65 {offsets = [0, 0, 32], sizes = [4, 64, 16], strides = [1, 1, 1]} : vector<4x64x64xf32> to vector<4x64x16xf32>
    %cst_48 = arith.constant dense<0.000000e+00> : vector<4x64x64xf32>
    %110 = tpu.matmul %108, %109, %cst_48 {dimension_numbers = #tpu.dot_dimension_numbers<[2], [2], [1], [1], [0, 0, 0, 1, 1, 1], [0], [0]>} : vector<4x64x16xf32>, vector<4x64x16xf32>, vector<4x64x64xf32> -> vector<4x64x64xf32>
    %c2 = arith.constant 2 : index
    %c0_49 = arith.constant 0 : index
    %c0_50 = arith.constant 0 : index
    %c0_51 = arith.constant 0 : index
    %111 = vector.load %arg7[%c2, %c0_49, %c0_50, %c0_51] : memref<4x4x64x64xf32, #tpu.memory_space<vmem>>, vector<1x4x64x64xf32>
    %112 = vector.shape_cast %111 : vector<1x4x64x64xf32> to vector<4x64x64xf32>
    %113 = arith.addf %110, %112 : vector<4x64x64xf32>
    %cst_52 = arith.constant dense<0xFF800000> : vector<4x64xf32>
    %114 = vector.multi_reduction <maximumf>, %113, %cst_52 [2] : vector<4x64x64xf32> to vector<4x64xf32>
    %115 = vector.shape_cast %114 : vector<4x64xf32> to vector<4x64x1xf32>
    %116 = vector.broadcast %115 : vector<4x64x1xf32> to vector<4x64x64xf32>
    %117 = arith.subf %113, %116 : vector<4x64x64xf32>
    %118 = math.exp %117 : vector<4x64x64xf32>
    %cst_53 = arith.constant dense<0.000000e+00> : vector<4x64xf32>
    %119 = vector.multi_reduction <add>, %118, %cst_53 [2] : vector<4x64x64xf32> to vector<4x64xf32>
    %120 = vector.shape_cast %119 : vector<4x64xf32> to vector<4x64x1xf32>
    %121 = tpu.reciprocal %120 {approx = true} : vector<4x64x1xf32> -> vector<4x64x1xf32>
    %122 = vector.broadcast %121 : vector<4x64x1xf32> to vector<4x64x64xf32>
    %123 = arith.mulf %118, %122 : vector<4x64x64xf32>
    %cst_54 = arith.constant dense<0.000000e+00> : vector<4x64x64xf32>
    %124 = tpu.matmul %123, %40, %cst_54 {dimension_numbers = #tpu.dot_dimension_numbers<[2], [1], [1], [2], [0, 0, 0, 1, 1, 2], [0], [0]>} : vector<4x64x64xf32>, vector<4x64x64xf32>, vector<4x64x64xf32> -> vector<4x64x64xf32>
    %125 = arith.addf %105, %124 : vector<4x64x64xf32>
    %cst_55 = arith.constant dense<0.000000e+00> : vector<4x64x64xf32>
    %126 = tpu.matmul %123, %56, %cst_55 {dimension_numbers = #tpu.dot_dimension_numbers<[2], [1], [1], [2], [0, 0, 0, 1, 1, 2], [0], [0]>} : vector<4x64x64xf32>, vector<4x64x64xf32>, vector<4x64x64xf32> -> vector<4x64x64xf32>
    %127 = arith.addf %107, %126 : vector<4x64x64xf32>
    %128 = vector.extract_strided_slice %64 {offsets = [0, 0, 48], sizes = [4, 64, 16], strides = [1, 1, 1]} : vector<4x64x64xf32> to vector<4x64x16xf32>
    %129 = vector.extract_strided_slice %65 {offsets = [0, 0, 48], sizes = [4, 64, 16], strides = [1, 1, 1]} : vector<4x64x64xf32> to vector<4x64x16xf32>
    %cst_56 = arith.constant dense<0.000000e+00> : vector<4x64x64xf32>
    %130 = tpu.matmul %128, %129, %cst_56 {dimension_numbers = #tpu.dot_dimension_numbers<[2], [2], [1], [1], [0, 0, 0, 1, 1, 1], [0], [0]>} : vector<4x64x16xf32>, vector<4x64x16xf32>, vector<4x64x64xf32> -> vector<4x64x64xf32>
    %c3 = arith.constant 3 : index
    %c0_57 = arith.constant 0 : index
    %c0_58 = arith.constant 0 : index
    %c0_59 = arith.constant 0 : index
    %131 = vector.load %arg7[%c3, %c0_57, %c0_58, %c0_59] : memref<4x4x64x64xf32, #tpu.memory_space<vmem>>, vector<1x4x64x64xf32>
    %132 = vector.shape_cast %131 : vector<1x4x64x64xf32> to vector<4x64x64xf32>
    %133 = arith.addf %130, %132 : vector<4x64x64xf32>
    %cst_60 = arith.constant dense<0xFF800000> : vector<4x64xf32>
    %134 = vector.multi_reduction <maximumf>, %133, %cst_60 [2] : vector<4x64x64xf32> to vector<4x64xf32>
    %135 = vector.shape_cast %134 : vector<4x64xf32> to vector<4x64x1xf32>
    %136 = vector.broadcast %135 : vector<4x64x1xf32> to vector<4x64x64xf32>
    %137 = arith.subf %133, %136 : vector<4x64x64xf32>
    %138 = math.exp %137 : vector<4x64x64xf32>
    %cst_61 = arith.constant dense<0.000000e+00> : vector<4x64xf32>
    %139 = vector.multi_reduction <add>, %138, %cst_61 [2] : vector<4x64x64xf32> to vector<4x64xf32>
    %140 = vector.shape_cast %139 : vector<4x64xf32> to vector<4x64x1xf32>
    %141 = tpu.reciprocal %140 {approx = true} : vector<4x64x1xf32> -> vector<4x64x1xf32>
    %142 = vector.broadcast %141 : vector<4x64x1xf32> to vector<4x64x64xf32>
    %143 = arith.mulf %138, %142 : vector<4x64x64xf32>
    %cst_62 = arith.constant dense<0.000000e+00> : vector<4x64x64xf32>
    %144 = tpu.matmul %143, %44, %cst_62 {dimension_numbers = #tpu.dot_dimension_numbers<[2], [1], [1], [2], [0, 0, 0, 1, 1, 2], [0], [0]>} : vector<4x64x64xf32>, vector<4x64x64xf32>, vector<4x64x64xf32> -> vector<4x64x64xf32>
    %145 = arith.addf %125, %144 : vector<4x64x64xf32>
    %cst_63 = arith.constant dense<0.000000e+00> : vector<4x64x64xf32>
    %146 = tpu.matmul %143, %60, %cst_63 {dimension_numbers = #tpu.dot_dimension_numbers<[2], [1], [1], [2], [0, 0, 0, 1, 1, 2], [0], [0]>} : vector<4x64x64xf32>, vector<4x64x64xf32>, vector<4x64x64xf32> -> vector<4x64x64xf32>
    %147 = arith.addf %127, %146 : vector<4x64x64xf32>
    %148 = vector.shape_cast %28 : vector<1x64xf32> to vector<1x1x64xf32>
    %149 = vector.broadcast %148 : vector<1x1x64xf32> to vector<4x64x64xf32>
    %150 = arith.addf %145, %149 : vector<4x64x64xf32>
    %151 = vector.shape_cast %28 : vector<1x64xf32> to vector<1x1x64xf32>
    %152 = vector.broadcast %151 : vector<1x1x64xf32> to vector<4x64x64xf32>
    %153 = arith.addf %147, %152 : vector<4x64x64xf32>
    %154 = tpu.concatenate %150, %153 in 2 : vector<4x64x64xf32>, vector<4x64x64xf32> -> vector<4x64x128xf32>
    %c0_64 = arith.constant 0 : index
    %c0_65 = arith.constant 0 : index
    %c0_66 = arith.constant 0 : index
    %c0_67 = arith.constant 0 : index
    %155 = vector.load %arg8[%c0_64, %c0_65, %c0_66, %c0_67] : memref<1x4x64x128xf32, #tpu.memory_space<vmem>>, vector<1x4x64x128xf32>
    %156 = vector.shape_cast %155 : vector<1x4x64x128xf32> to vector<4x64x128xf32>
    %157 = vector.shape_cast %154 : vector<4x64x128xf32> to vector<1x4x64x128xf32>
    tpu.vector_store %arg8[%c0_64, %c0_65, %c0_66, %c0_67], %157 {strides = array<i32>} : memref<1x4x64x128xf32, #tpu.memory_space<vmem>>, vector<1x4x64x128xf32>,
    return
  }
  func.func @transform_0(%arg0: i32) -> (i32, i32, i32, i32) {
    %c0_i32 = arith.constant 0 : i32
    %c0_i32_0 = arith.constant 0 : i32
    %c0_i32_1 = arith.constant 0 : i32
    %c0_i32_2 = arith.constant 0 : i32
    return %arg0, %c0_i32, %c0_i32_0, %c0_i32_1 : i32, i32, i32, i32
  }
  func.func @transform_1(%arg0: i32) -> (i32, i32, i32, i32) {
    %c0_i32 = arith.constant 0 : i32
    %c0_i32_0 = arith.constant 0 : i32
    %c0_i32_1 = arith.constant 0 : i32
    %c0_i32_2 = arith.constant 0 : i32
    return %arg0, %c0_i32, %c0_i32_0, %c0_i32_1 : i32, i32, i32, i32
  }
  func.func @transform_2(%arg0: i32) -> (i32, i32) {
    %c0_i32 = arith.constant 0 : i32
    %c0_i32_0 = arith.constant 0 : i32
    %c0_i32_1 = arith.constant 0 : i32
    return %c0_i32, %c0_i32_0 : i32, i32
  }
  func.func @transform_3(%arg0: i32) -> (i32, i32) {
    %c0_i32 = arith.constant 0 : i32
    %c0_i32_0 = arith.constant 0 : i32
    %c0_i32_1 = arith.constant 0 : i32
    return %c0_i32, %c0_i32_0 : i32, i32
  }
  func.func @transform_4(%arg0: i32) -> (i32, i32) {
    %c0_i32 = arith.constant 0 : i32
    %c0_i32_0 = arith.constant 0 : i32
    %c0_i32_1 = arith.constant 0 : i32
    return %c0_i32, %c0_i32_0 : i32, i32
  }
  func.func @transform_5(%arg0: i32) -> (i32, i32) {
    %c0_i32 = arith.constant 0 : i32
    %c0_i32_0 = arith.constant 0 : i32
    %c0_i32_1 = arith.constant 0 : i32
    return %c0_i32, %c0_i32_0 : i32, i32
  }
  func.func @transform_6(%arg0: i32) -> (i32, i32, i32, i32) {
    %c0_i32 = arith.constant 0 : i32
    %c0_i32_0 = arith.constant 0 : i32
    %c0_i32_1 = arith.constant 0 : i32
    %c0_i32_2 = arith.constant 0 : i32
    %c0_i32_3 = arith.constant 0 : i32
    return %c0_i32, %c0_i32_0, %c0_i32_1, %c0_i32_2 : i32, i32, i32, i32
  }
  func.func @transform_7(%arg0: i32) -> (i32, i32, i32, i32) {
    %c0_i32 = arith.constant 0 : i32
    %c0_i32_0 = arith.constant 0 : i32
    %c0_i32_1 = arith.constant 0 : i32
    %c0_i32_2 = arith.constant 0 : i32
    return %arg0, %c0_i32, %c0_i32_0, %c0_i32_1 : i32, i32, i32, i32
  }
}

</mosaic_0001>

<llo_original>
// kernel: forward_pallas.1
$region0: #{forward_pallas.1}
  #allocation0 [shape = 'u32[]', space=smem, size = 0x4, offset = 0x4, fixed_abs, tag = 'smem constant byte address 0x4 - core index']
  #allocation1 [shape = 'u32[144,128]{1,0:T(1,128)}', space=vmem, size = 0x12000, scoped, tag = 'internal scratch']
  %s0 = inlined_call_operand.vmem [shape: f32[2,4,64,64], index: 0, kind: input, shape index: {}]
  %s1 = inlined_call_operand.vmem [shape: f32[2,4,64,192], index: 1, kind: input, shape index: {}]
  %s2 = inlined_call_operand.vmem [shape: f32[192,192], index: 2, kind: input, shape index: {}]
  %s3 = inlined_call_operand.vmem [shape: f32[1,192], index: 3, kind: input, shape index: {}]
  %s4 = inlined_call_operand.vmem [shape: f32[64,64], index: 4, kind: input, shape index: {}]
  %s5 = inlined_call_operand.vmem [shape: f32[1,64], index: 5, kind: input, shape index: {}]
  %s6 = inlined_call_operand.vmem [shape: f32[4,4,64,64], index: 6, kind: input, shape index: {}]
  %s7 = inlined_call_operand.vmem [shape: f32[2,4,64,128], index: 7, kind: output, shape index: {}]
  %s8 = sld [smem:[#allocation0]]
  $region61: #{forward_pallas.1} parent=0
    _
  %s10 = ssub.s32 1, %s8
  %s11 = scalar_select 0, %s10, %s8
  loop: start=0, step=1, limit=4
  $region2: #{forward_pallas.1} parent=0 // loop_pre_header
    _
  $region3: #{forward_pallas.1} parent=0 // loop_header
    %s13 = sphi 0, %s17
    %p14 = scmp.ge.s32.totalorder %s13, 4
    %s23 = sphi 0, %s25
    %s26 = sphi 0, %s23
    %s27 = sphi 0, %s26
    %s43 = sphi 0, %s27
    %s49 = sphi 0, %s51
    %s52 = sphi 0, %s49
    %s53 = sphi 0, %s52
    %s69 = sphi 0, %s53
    %s73 = sphi 0, %s73
    %s75 = sphi 0, %s73
    %s76 = sphi 0, %s75
    %s90 = sphi 0, %s76
    %s94 = sphi 0, %s94
    %s96 = sphi 0, %s94
    %s97 = sphi 0, %s96
    %s111 = sphi 0, %s97
    %s115 = sphi 0, %s115
    %s117 = sphi 0, %s115
    %s118 = sphi 0, %s117
    %s132 = sphi 0, %s118
    %s136 = sphi 0, %s136
    %s138 = sphi 0, %s136
    %s139 = sphi 0, %s138
    %s153 = sphi 0, %s139
    %s157 = sphi 0, %s157
    %s159 = sphi 0, %s157
    %s160 = sphi 0, %s159
    %s174 = sphi 0, %s160
    %s180 = sphi 0, %s182
    %s183 = sphi 0, %s180
    %s184 = sphi 0, %s183
    %s200 = sphi 0, %s184
  $region4: #{forward_pallas.1} parent=0 // loop_header_branch
    %16 = sbr.rel (%p14) target = $region8
  $region5: #{forward_pallas.1} parent=0 // loop_body
    %s18 = ssub.s32 %s13, 1
    %s19 = ssub.s32 %s13, 2
    %s20 = sadd.s32 %s13, 1
    %s21 = ssub.s32 %s13, %s20
    %p22 = scmp.eq.s32.totalorder %s21, 0
    %s24 = sadd.s32 %s23, 1
    %s25 = scalar_select %p22, %s23, %s24
    %p28 = pneg %p22
    %p29 = scmp.eq.s32.totalorder %s13, 1
    %p30 = por %p28, %p29
    %p31 = scmp.ne.s32.totalorder %s23, %s26
    %p32 = scmp.eq.s32.totalorder %s13, 0
    %p33 = por %p31, %p32
    %p34 = scmp.ne.s32.totalorder %s23, %s26
    %p35 = scmp.eq.s32.totalorder %s18, 1
    %p36 = por %p34, %p35
    %p37 = scmp.ne.s32.totalorder %s26, %s27
    %p38 = scmp.eq.s32.totalorder %s18, 0
    %p39 = por %p37, %p38
    %p40 = scmp.ne.s32.totalorder %s26, %s27
    %p41 = scmp.eq.s32.totalorder %s19, 1
    %p42 = por %p40, %p41
    %p44 = scmp.ne.s32.totalorder %s27, %s43
    %p45 = scmp.eq.s32.totalorder %s19, 0
    %p46 = por %p44, %p45
    %s47 = ssub.s32 %s13, %s20
    %p48 = scmp.eq.s32.totalorder %s47, 0
    %s50 = sadd.s32 %s49, 1
    %s51 = scalar_select %p48, %s49, %s50
    %p54 = pneg %p48
    %p55 = scmp.eq.s32.totalorder %s13, 1
    %p56 = por %p54, %p55
    %p57 = scmp.ne.s32.totalorder %s49, %s52
    %p58 = scmp.eq.s32.totalorder %s13, 0
    %p59 = por %p57, %p58
    %p60 = scmp.ne.s32.totalorder %s49, %s52
    %p61 = scmp.eq.s32.totalorder %s18, 1
    %p62 = por %p60, %p61
    %p63 = scmp.ne.s32.totalorder %s52, %s53
    %p64 = scmp.eq.s32.totalorder %s18, 0
    %p65 = por %p63, %p64
    %p66 = scmp.ne.s32.totalorder %s52, %s53
    %p67 = scmp.eq.s32.totalorder %s19, 1
    %p68 = por %p66, %p67
    %p70 = scmp.ne.s32.totalorder %s53, %s69
    %p71 = scmp.eq.s32.totalorder %s19, 0
    %p72 = por %p70, %p71
    %s74 = sadd.s32 %s73, 1
    %p77 = scmp.eq.s32.totalorder %s13, 1
    %p78 = scmp.ne.s32.totalorder %s73, %s75
    %p79 = scmp.eq.s32.totalorder %s13, 0
    %p80 = por %p78, %p79
    %p81 = scmp.ne.s32.totalorder %s73, %s75
    %p82 = scmp.eq.s32.totalorder %s18, 1
    %p83 = por %p81, %p82
    %p84 = scmp.ne.s32.totalorder %s75, %s76
    %p85 = scmp.eq.s32.totalorder %s18, 0
    %p86 = por %p84, %p85
    %p87 = scmp.ne.s32.totalorder %s75, %s76
    %p88 = scmp.eq.s32.totalorder %s19, 1
    %p89 = por %p87, %p88
    %p91 = scmp.ne.s32.totalorder %s76, %s90
    %p92 = scmp.eq.s32.totalorder %s19, 0
    %p93 = por %p91, %p92
    %s95 = sadd.s32 %s94, 1
    %p98 = scmp.eq.s32.totalorder %s13, 1
    %p99 = scmp.ne.s32.totalorder %s94, %s96
    %p100 = scmp.eq.s32.totalorder %s13, 0
    %p101 = por %p99, %p100
    %p102 = scmp.ne.s32.totalorder %s94, %s96
    %p103 = scmp.eq.s32.totalorder %s18, 1
    %p104 = por %p102, %p103
    %p105 = scmp.ne.s32.totalorder %s96, %s97
    %p106 = scmp.eq.s32.totalorder %s18, 0
    %p107 = por %p105, %p106
    %p108 = scmp.ne.s32.totalorder %s96, %s97
    %p109 = scmp.eq.s32.totalorder %s19, 1
    %p110 = por %p108, %p109
    %p112 = scmp.ne.s32.totalorder %s97, %s111
    %p113 = scmp.eq.s32.totalorder %s19, 0
    %p114 = por %p112, %p113
    %s116 = sadd.s32 %s115, 1
    %p119 = scmp.eq.s32.totalorder %s13, 1
    %p120 = scmp.ne.s32.totalorder %s115, %s117
    %p121 = scmp.eq.s32.totalorder %s13, 0
    %p122 = por %p120, %p121
    %p123 = scmp.ne.s32.totalorder %s115, %s117
    %p124 = scmp.eq.s32.totalorder %s18, 1
    %p125 = por %p123, %p124
    %p126 = scmp.ne.s32.totalorder %s117, %s118
    %p127 = scmp.eq.s32.totalorder %s18, 0
    %p128 = por %p126, %p127
    %p129 = scmp.ne.s32.totalorder %s117, %s118
    %p130 = scmp.eq.s32.totalorder %s19, 1
    %p131 = por %p129, %p130
    %p133 = scmp.ne.s32.totalorder %s118, %s132
    %p134 = scmp.eq.s32.totalorder %s19, 0
    %p135 = por %p133, %p134
    %s137 = sadd.s32 %s136, 1
    %p140 = scmp.eq.s32.totalorder %s13, 1
    %p141 = scmp.ne.s32.totalorder %s136, %s138
    %p142 = scmp.eq.s32.totalorder %s13, 0
    %p143 = por %p141, %p142
    %p144 = scmp.ne.s32.totalorder %s136, %s138
    %p145 = scmp.eq.s32.totalorder %s18, 1
    %p146 = por %p144, %p145
    %p147 = scmp.ne.s32.totalorder %s138, %s139
    %p148 = scmp.eq.s32.totalorder %s18, 0
    %p149 = por %p147, %p148
    %p150 = scmp.ne.s32.totalorder %s138, %s139
    %p151 = scmp.eq.s32.totalorder %s19, 1
    %p152 = por %p150, %p151
    %p154 = scmp.ne.s32.totalorder %s139, %s153
    %p155 = scmp.eq.s32.totalorder %s19, 0
    %p156 = por %p154, %p155
    %s158 = sadd.s32 %s157, 1
    %p161 = scmp.eq.s32.totalorder %s13, 1
    %p162 = scmp.ne.s32.totalorder %s157, %s159
    %p163 = scmp.eq.s32.totalorder %s13, 0
    %p164 = por %p162, %p163
    %p165 = scmp.ne.s32.totalorder %s157, %s159
    %p166 = scmp.eq.s32.totalorder %s18, 1
    %p167 = por %p165, %p166
    %p168 = scmp.ne.s32.totalorder %s159, %s160
    %p169 = scmp.eq.s32.totalorder %s18, 0
    %p170 = por %p168, %p169
    %p171 = scmp.ne.s32.totalorder %s159, %s160
    %p172 = scmp.eq.s32.totalorder %s19, 1
    %p173 = por %p171, %p172
    %p175 = scmp.ne.s32.totalorder %s160, %s174
    %p176 = scmp.eq.s32.totalorder %s19, 0
    %p177 = por %p175, %p176
    %s178 = ssub.s32 %s13, %s20
    %p179 = scmp.eq.s32.totalorder %s178, 0
    %s181 = sadd.s32 %s180, 1
    %s182 = scalar_select %p179, %s180, %s181
    %p185 = pneg %p179
    %p186 = scmp.eq.s32.totalorder %s13, 1
    %p187 = por %p185, %p186
    %p188 = scmp.ne.s32.totalorder %s180, %s183
    %p189 = scmp.eq.s32.totalorder %s13, 0
    %p190 = por %p188, %p189
    %p191 = scmp.ne.s32.totalorder %s180, %s183
    %p192 = scmp.eq.s32.totalorder %s18, 1
    %p193 = por %p191, %p192
    %p194 = scmp.ne.s32.totalorder %s183, %s184
    %p195 = scmp.eq.s32.totalorder %s18, 0
    %p196 = por %p194, %p195
    %p197 = scmp.ne.s32.totalorder %s183, %s184
    %p198 = scmp.eq.s32.totalorder %s19, 1
    %p199 = por %p197, %p198
    %p201 = scmp.ne.s32.totalorder %s184, %s200
    %p202 = scmp.eq.s32.totalorder %s19, 0
    %p203 = por %p201, %p202
    %p204 = scmp.le.s32.totalorder 1, %s13
    %p205 = scmp.lt.s32.totalorder %s13, 3
    %p206 = pnand %p204, %p205
    %p207 = pneg %p206
    // Predicated region
    $region9: #{forward_pallas.1} parent=5 // pred_check
      _
    $region10: #{forward_pallas.1} parent=5 // pred_check_branch
      %209 = sbr.rel (%p206) target = $region12
    $region11: #{forward_pallas.1} parent=5 // pred_region
      %s210 = ssub.s32 %s13, 1
      // Predicated region
      $region13: #{forward_pallas.1} parent=11 // pred_check
        %p211 = pneg %p86
      $region14: #{forward_pallas.1} parent=11 // pred_check_branch
        %213 = sbr.rel (%p211) target = $region16
      $region15: #{forward_pallas.1} parent=11 // pred_region
        _
      $region16: #{forward_pallas.1} parent=11 // pred_fallthru
        _
      // Predicated region
      $region17: #{forward_pallas.1} parent=11 // pred_check
        %p214 = pneg %p107
      $region18: #{forward_pallas.1} parent=11 // pred_check_branch
        %216 = sbr.rel (%p214) target = $region20
      $region19: #{forward_pallas.1} parent=11 // pred_region
        _
      $region20: #{forward_pallas.1} parent=11 // pred_fallthru
        _
      // Predicated region
      $region21: #{forward_pallas.1} parent=11 // pred_check
        %p217 = pneg %p128
      $region22: #{forward_pallas.1} parent=11 // pred_check_branch
        %219 = sbr.rel (%p217) target = $region24
      $region23: #{forward_pallas.1} parent=11 // pred_region
        _
      $region24: #{forward_pallas.1} parent=11 // pred_fallthru
        _
      // Predicated region
      $region25: #{forward_pallas.1} parent=11 // pred_check
        %p220 = pneg %p149
      $region26: #{forward_pallas.1} parent=11 // pred_check_branch
        %222 = sbr.rel (%p220) target = $region28
      $region27: #{forward_pallas.1} parent=11 // pred_region
        _
      $region28: #{forward_pallas.1} parent=11 // pred_fallthru
        _
      // Predicated region
      $region29: #{forward_pallas.1} parent=11 // pred_check
        %p223 = pneg %p170
      $region30: #{forward_pallas.1} parent=11 // pred_check_branch
        %225 = sbr.rel (%p223) target = $region32
      $region31: #{forward_pallas.1} parent=11 // pred_region
        _
      $region32: #{forward_pallas.1} parent=11 // pred_fallthru
        _
    $region12: #{forward_pallas.1} parent=5 // pred_fallthru
      _
    %p226 = scmp.lt.s32.totalorder %s13, 2
    // Predicated region
    $region33: #{forward_pallas.1} parent=5 // pred_check
      %p227 = pneg %p226
    $region34: #{forward_pallas.1} parent=5 // pred_check_branch
      %229 = sbr.rel (%p227) target = $region36
    $region35: #{forward_pallas.1} parent=5 // pred_region
      // Predicated region
      $region37: #{forward_pallas.1} parent=35 // pred_check
        %p230 = pneg %p33
      $region38: #{forward_pallas.1} parent=35 // pred_check_branch
        %232 = sbr.rel (%p230) target = $region40
      $region39: #{forward_pallas.1} parent=35 // pred_region
        %p233 = scmp.lt.s32.totalorder %s13, 1
        %s234 = scalar_select %p233, %s13, 1
        %s235 = smul.addr %s234, 32
        %s236 = smul.addr %s235, 8
        %s237 = scalar_lea.vmem %s0, %s236
      $region40: #{forward_pallas.1} parent=35 // pred_fallthru
        _
      // Predicated region
      $region41: #{forward_pallas.1} parent=35 // pred_check
        %p238 = pneg %p59
      $region42: #{forward_pallas.1} parent=35 // pred_check_branch
        %240 = sbr.rel (%p238) target = $region44
      $region43: #{forward_pallas.1} parent=35 // pred_region
        %p241 = scmp.lt.s32.totalorder %s13, 1
        %s242 = scalar_select %p241, %s13, 1
        %s243 = smul.addr %s242, 64
        %s244 = smul.addr %s243, 8
        %s245 = scalar_lea.vmem %s1, %s244
      $region44: #{forward_pallas.1} parent=35 // pred_fallthru
        _
    $region36: #{forward_pallas.1} parent=5 // pred_fallthru
      _
    %p246 = scmp.le.s32.totalorder 1, %s13
    %p247 = scmp.lt.s32.totalorder %s13, 3
    %p248 = pnand %p246, %p247
    %p249 = pneg %p248
    // Predicated region
    $region45: #{forward_pallas.1} parent=5 // pred_check
      _
    $region46: #{forward_pallas.1} parent=5 // pred_check_branch
      %251 = sbr.rel (%p248) target = $region48
    $region47: #{forward_pallas.1} parent=5 // pred_region
      %s252 = ssub.s32 %s13, 1
      %p253 = scmp.lt.s32.totalorder %s18, 1
      %s254 = scalar_select %p253, %s18, 1
      %s255 = smul.addr %s254, 32
      %s256 = smul.addr %s255, 8
      %s257 = scalar_lea.vmem %s0, %s256
      %p258 = pneg %p39
      %p259 = pneg %p36
      %p260 = scmp.lt.s32.totalorder %s18, 1
      %s261 = scalar_select %p260, %s18, 1
      %s262 = smul.addr %s261, 64
      %s263 = smul.addr %s262, 8
      %s264 = scalar_lea.vmem %s1, %s263
      %p265 = pneg %p65
      %p266 = pneg %p62
      %p267 = pneg %p86
      %p268 = pneg %p83
      %p269 = pneg %p107
      %p270 = pneg %p104
      %p271 = pneg %p128
      %p272 = pneg %p125
      %p273 = pneg %p149
      %p274 = pneg %p146
      %p275 = pneg %p170
      %p276 = pneg %p167
      %p277 = pneg %p196
      %p278 = pneg %p193
      %p279 = scmp.lt.s32.totalorder %s18, 1
      %s280 = scalar_select %p279, %s18, 1
      %s281 = smul.addr %s280, 32
      %s282 = smul.addr %s281, 8
      %s283 = scalar_lea.vmem %s7, %s282
      %p284 = scmp.lt.s32.totalorder %s18, 1
      %s285 = scalar_select %p284, %s18, 1
      %s286 = smul.addr %s285, 32
      %s287 = smul.addr %s286, 8
      %s288 = scalar_lea.vmem %s0, %s287
      %p289 = scmp.lt.s32.totalorder %s18, 1
      %s290 = scalar_select %p289, %s18, 1
      %s291 = smul.addr %s290, 64
      %s292 = smul.addr %s291, 8
      %s293 = scalar_lea.vmem %s1, %s292
      %p294 = scmp.lt.s32.totalorder %s18, 1
      %s295 = scalar_select %p294, %s18, 1
      %s296 = smul.addr %s295, 32
      %s297 = smul.addr %s296, 8
      %s298 = scalar_lea.vmem %s7, %s297
      %v299 = vld [vmem:[%s293] sm:$0xff]
      %v300 = vld [vmem:[%s293 + $0x8] sm:$0xff]
      %v301 = vld [vmem:[%s293 + $0x10] sm:$0xff]
      %v302 = vld [vmem:[%s293 + $0x18] sm:$0xff]
      %v303 = vld [vmem:[%s293 + $0x20] sm:$0xff]
      %v304 = vld [vmem:[%s293 + $0x28] sm:$0xff]
      %v305 = vld [vmem:[%s293 + $0x30] sm:$0xff]
      %v306 = vld [vmem:[%s293 + $0x38] sm:$0xff]
      %v307 = vld [vmem:[%s293 + $0x40] sm:$0xff]
      %v308 = vld [vmem:[%s293 + $0x48] sm:$0xff]
      %v309 = vld [vmem:[%s293 + $0x50] sm:$0xff]
      %v310 = vld [vmem:[%s293 + $0x58] sm:$0xff]
      %v311 = vld [vmem:[%s293 + $0x60] sm:$0xff]
      %v312 = vld [vmem:[%s293 + $0x68] sm:$0xff]
      %v313 = vld [vmem:[%s293 + $0x70] sm:$0xff]
      %v314 = vld [vmem:[%s293 + $0x78] sm:$0xff]
      %v315 = vld [vmem:[%s293 + $0x80] sm:$0xff]
      %v316 = vld [vmem:[%s293 + $0x88] sm:$0xff]
      %v317 = vld [vmem:[%s293 + $0x90] sm:$0xff]
      %v318 = vld [vmem:[%s293 + $0x98] sm:$0xff]
      %v319 = vld [vmem:[%s293 + $0xa0] sm:$0xff]
      %v320 = vld [vmem:[%s293 + $0xa8] sm:$0xff]
      %v321 = vld [vmem:[%s293 + $0xb0] sm:$0xff]
      %v322 = vld [vmem:[%s293 + $0xb8] sm:$0xff]
      %v323 = vld [vmem:[%s293 + $0xc0] sm:$0xff]
      %v324 = vld [vmem:[%s293 + $0xc8] sm:$0xff]
      %v325 = vld [vmem:[%s293 + $0xd0] sm:$0xff]
      %v326 = vld [vmem:[%s293 + $0xd8] sm:$0xff]
      %v327 = vld [vmem:[%s293 + $0xe0] sm:$0xff]
      %v328 = vld [vmem:[%s293 + $0xe8] sm:$0xff]
      %v329 = vld [vmem:[%s293 + $0xf0] sm:$0xff]
      %v330 = vld [vmem:[%s293 + $0xf8] sm:$0xff]
      %v331 = vld [vmem:[%s293 + $0x100] sm:$0xff]
      %v332 = vld [vmem:[%s293 + $0x108] sm:$0xff]
      %v333 = vld [vmem:[%s293 + $0x110] sm:$0xff]
      %v334 = vld [vmem:[%s293 + $0x118] sm:$0xff]
      %v335 = vld [vmem:[%s293 + $0x120] sm:$0xff]
      %v336 = vld [vmem:[%s293 + $0x128] sm:$0xff]
      %v337 = vld [vmem:[%s293 + $0x130] sm:$0xff]
      %v338 = vld [vmem:[%s293 + $0x138] sm:$0xff]
      %v339 = vld [vmem:[%s293 + $0x140] sm:$0xff]
      %v340 = vld [vmem:[%s293 + $0x148] sm:$0xff]
      %v341 = vld [vmem:[%s293 + $0x150] sm:$0xff]
      %v342 = vld [vmem:[%s293 + $0x158] sm:$0xff]
      %v343 = vld [vmem:[%s293 + $0x160] sm:$0xff]
      %v344 = vld [vmem:[%s293 + $0x168] sm:$0xff]
      %v345 = vld [vmem:[%s293 + $0x170] sm:$0xff]
      %v346 = vld [vmem:[%s293 + $0x178] sm:$0xff]
      %v347 = vld [vmem:[%s293 + $0x180] sm:$0xff]
      %v348 = vld [vmem:[%s293 + $0x188] sm:$0xff]
      %v349 = vld [vmem:[%s293 + $0x190] sm:$0xff]
      %v350 = vld [vmem:[%s293 + $0x198] sm:$0xff]
      %v351 = vld [vmem:[%s293 + $0x1a0] sm:$0xff]
      %v352 = vld [vmem:[%s293 + $0x1a8] sm:$0xff]
      %v353 = vld [vmem:[%s293 + $0x1b0] sm:$0xff]
      %v354 = vld [vmem:[%s293 + $0x1b8] sm:$0xff]
      %v355 = vld [vmem:[%s293 + $0x1c0] sm:$0xff]
      %v356 = vld [vmem:[%s293 + $0x1c8] sm:$0xff]
      %v357 = vld [vmem:[%s293 + $0x1d0] sm:$0xff]
      %v358 = vld [vmem:[%s293 + $0x1d8] sm:$0xff]
      %v359 = vld [vmem:[%s293 + $0x1e0] sm:$0xff]
      %v360 = vld [vmem:[%s293 + $0x1e8] sm:$0xff]
      %v361 = vld [vmem:[%s293 + $0x1f0] sm:$0xff]
      %v362 = vld [vmem:[%s293 + $0x1f8] sm:$0xff]
      %v363 = vld [vmem:[%s2] sm:$0xff]
      %v364 = vld [vmem:[%s2 + $0x8] sm:$0xff]
      %v365 = vld [vmem:[%s2 + $0x10] sm:$0xff]
      %v366 = vld [vmem:[%s2 + $0x18] sm:$0xff]
      %v367 = vld [vmem:[%s2 + $0x20] sm:$0xff]
      %v368 = vld [vmem:[%s2 + $0x28] sm:$0xff]
      %v369 = vld [vmem:[%s2 + $0x30] sm:$0xff]
      %v370 = vld [vmem:[%s2 + $0x38] sm:$0xff]
      %v371 = vld [vmem:[%s2 + $0x40] sm:$0xff]
      %v372 = vld [vmem:[%s2 + $0x48] sm:$0xff]
      %v373 = vld [vmem:[%s2 + $0x50] sm:$0xff]
      %v374 = vld [vmem:[%s2 + $0x58] sm:$0xff]
      %v375 = vld [vmem:[%s2 + $0x60] sm:$0xff]
      %v376 = vld [vmem:[%s2 + $0x68] sm:$0xff]
      %v377 = vld [vmem:[%s2 + $0x70] sm:$0xff]
      %v378 = vld [vmem:[%s2 + $0x78] sm:$0xff]
      %v379 = vld [vmem:[%s2 + $0x80] sm:$0xff]
      %v380 = vld [vmem:[%s2 + $0x88] sm:$0xff]
      %v381 = vld [vmem:[%s2 + $0x90] sm:$0xff]
      %v382 = vld [vmem:[%s2 + $0x98] sm:$0xff]
      %v383 = vld [vmem:[%s2 + $0xa0] sm:$0xff]
      %v384 = vld [vmem:[%s2 + $0xa8] sm:$0xff]
      %v385 = vld [vmem:[%s2 + $0xb0] sm:$0xff]
      %v386 = vld [vmem:[%s2 + $0xb8] sm:$0xff]
      %v387 = vld [vmem:[%s2 + $0xc0] sm:$0xff]
      %v388 = vld [vmem:[%s2 + $0xc8] sm:$0xff]
      %v389 = vld [vmem:[%s2 + $0xd0] sm:$0xff]
      %v390 = vld [vmem:[%s2 + $0xd8] sm:$0xff]
      %v391 = vld [vmem:[%s2 + $0xe0] sm:$0xff]
      %v392 = vld [vmem:[%s2 + $0xe8] sm:$0xff]
      %v393 = vld [vmem:[%s2 + $0xf0] sm:$0xff]
      %v394 = vld [vmem:[%s2 + $0xf8] sm:$0xff]
      %v395 = vld [vmem:[%s2 + $0x100] sm:$0xff]
      %v396 = vld [vmem:[%s2 + $0x108] sm:$0xff]
      %v397 = vld [vmem:[%s2 + $0x110] sm:$0xff]
      %v398 = vld [vmem:[%s2 + $0x118] sm:$0xff]
      %v399 = vld [vmem:[%s2 + $0x120] sm:$0xff]
      %v400 = vld [vmem:[%s2 + $0x128] sm:$0xff]
      %v401 = vld [vmem:[%s2 + $0x130] sm:$0xff]
      %v402 = vld [vmem:[%s2 + $0x138] sm:$0xff]
      %v403 = vld [vmem:[%s2 + $0x140] sm:$0xff]
      %v404 = vld [vmem:[%s2 + $0x148] sm:$0xff]
      %v405 = vld [vmem:[%s2 + $0x150] sm:$0xff]
      %v406 = vld [vmem:[%s2 + $0x158] sm:$0xff]
      %v407 = vld [vmem:[%s2 + $0x160] sm:$0xff]
      %v408 = vld [vmem:[%s2 + $0x168] sm:$0xff]
      %v409 = vld [vmem:[%s2 + $0x170] sm:$0xff]
      %v410 = vld [vmem:[%s2 + $0x178] sm:$0xff]
      %v411 = vld [vmem:[%s3] sm:$0x3]
      %v413 = vlaneseq
      %v414 = vshrl.u32 %v413, 7
      %v415 = vsub.s32 0, %v414
      %v416 = vrot.slane %v411, %v415
      %v417 = vlaneseq
      %v418 = vshrl.u32 %v417, 7
      %v419 = vsub.s32 1, %v418
      %v420 = vrot.slane %v411, %v419
      %vm423 = vcmask 523264
      %v425 = vsel %vm423, %v300, 0
      %v428 = vsel %vm423, %v302, 0
      %v431 = vsel %vm423, %v304, 0
      %v434 = vsel %vm423, %v306, 0
      %v437 = vsel %vm423, %v308, 0
      %v440 = vsel %vm423, %v310, 0
      %v443 = vsel %vm423, %v312, 0
      %v446 = vsel %vm423, %v314, 0
      %v449 = vsel %vm423, %v316, 0
      %v452 = vsel %vm423, %v318, 0
      %v455 = vsel %vm423, %v320, 0
      %v458 = vsel %vm423, %v322, 0
      %v461 = vsel %vm423, %v324, 0
      %v464 = vsel %vm423, %v326, 0
      %v467 = vsel %vm423, %v328, 0
      %v470 = vsel %vm423, %v330, 0
      %v473 = vsel %vm423, %v332, 0
      %v476 = vsel %vm423, %v334, 0
      %v479 = vsel %vm423, %v336, 0
      %v482 = vsel %vm423, %v338, 0
      %v485 = vsel %vm423, %v340, 0
      %v488 = vsel %vm423, %v342, 0
      %v491 = vsel %vm423, %v344, 0
      %v494 = vsel %vm423, %v346, 0
      %v497 = vsel %vm423, %v348, 0
      %v500 = vsel %vm423, %v350, 0
      %v503 = vsel %vm423, %v352, 0
      %v506 = vsel %vm423, %v354, 0
      %v509 = vsel %vm423, %v356, 0
      %v512 = vsel %vm423, %v358, 0
      %v515 = vsel %vm423, %v360, 0
      %v518 = vsel %vm423, %v362, 0
      %520 = vmatprep.subr.mxu0 %v364
      %521 = vmatpush1.msra.mxu0 %v363
      %522 = vmatprep.subr.mxu0 %v366
      %523 = vmatpush1.msra.mxu0 %v365
      %524 = vmatprep.subr.mxu0 %v368
      %525 = vmatpush1.msra.mxu0 %v367
      %526 = vmatprep.subr.mxu0 %v370
      %527 = vmatpush1.msra.mxu0 %v369
      %528 = vmatprep.subr.mxu0 %v372
      %529 = vmatpush1.msra.mxu0 %v371
      %530 = vmatprep.subr.mxu0 %v374
      %531 = vmatpush1.msra.mxu0 %v373
      %532 = vmatprep.subr.mxu0 %v376
      %533 = vmatpush1.msra.mxu0 %v375
      %534 = vmatprep.subr.mxu0 %v378
      %535 = vmatpush1.msra.mxu0 %v377
      %536 = vmatprep.subr.mxu0 %v380
      %537 = vmatpush1.msra.mxu0 %v379
      %538 = vmatprep.subr.mxu0 %v382
      %539 = vmatpush1.msra.mxu0 %v381
      %540 = vmatprep.subr.mxu0 %v384
      %541 = vmatpush1.msra.mxu0 %v383
      %542 = vmatprep.subr.mxu0 %v386
      %543 = vmatpush1.msra.mxu0 %v385
      %544 = vmatprep.subr.mxu0 %v388
      %545 = vmatpush1.msra.mxu0 %v387
      %546 = vmatprep.subr.mxu0 %v390
      %547 = vmatpush1.msra.mxu0 %v389
      %548 = vmatprep.subr.mxu0 %v392
      %549 = vmatpush1.msra.mxu0 %v391
      %550 = vmatprep.subr.mxu0 %v394
      %551 = vmatpush1.msra.mxu0 %v393
      %552 = vmatprep.subr.mxu0 %v396
      %553 = vmatpush1.msra.mxu0 %v395
      %554 = vmatprep.subr.mxu0 %v398
      %555 = vmatpush1.msra.mxu0 %v397
      %556 = vmatprep.subr.mxu0 %v400
      %557 = vmatpush1.msra.mxu0 %v399
      %558 = vmatprep.subr.mxu0 %v402
      %559 = vmatpush1.msra.mxu0 %v401
      %560 = vmatprep.subr.mxu0 %v404
      %561 = vmatpush1.msra.mxu0 %v403
      %562 = vmatprep.subr.mxu0 %v406
      %563 = vmatpush1.msra.mxu0 %v405
      %564 = vmatprep.subr.mxu0 %v408
      %565 = vmatpush1.msra.mxu0 %v407
      %566 = vmatprep.subr.mxu0 %v410
      %567 = vmatpush1.msra.mxu0 %v409
      %568 = vmatprep.subr.mxu0 0.0
      %569 = vmatpush1.msra.mxu0 0.0
      %570 = vmatprep.subr.mxu0 0.0
      %571 = vmatpush1.msra.mxu0 0.0
      %572 = vmatprep.subr.mxu0 0.0
      %573 = vmatpush1.msra.mxu0 0.0
      %574 = vmatprep.subr.mxu0 0.0
      %575 = vmatpush1.msra.mxu0 0.0
      %576 = vmatprep.subr.mxu0 0.0
      %577 = vmatpush1.msra.mxu0 0.0
      %578 = vmatprep.subr.mxu0 0.0
      %579 = vmatpush1.msra.mxu0 0.0
      %580 = vmatprep.subr.mxu0 0.0
      %581 = vmatpush1.msra.mxu0 0.0
      %582 = vmatprep.subr.mxu0 0.0
      %583 = vmatpush1.msra.mxu0 0.0
      %584 = vmatprep.mubr.f32.mxu0 %v425
      %585 = vmatmul.mubr.f32.gmra.mrb[0].mxu0 %v299
      %v586 = vpop.f32.mrb[0].mxu0
      %v587 = vadd.f32 %v416, %v586
      %v588 = vpop.f32.mrb[0].mxu0
      %v589 = vadd.f32 %v420, %v588
      %590 = vmatprep.mubr.f32.mxu0 %v428
      %591 = vmatmul.mubr.f32.gmra.mrb[0].mxu0 %v301
      %v592 = vpop.f32.mrb[0].mxu0
      %v593 = vadd.f32 %v416, %v592
      %v594 = vpop.f32.mrb[0].mxu0
      %v595 = vadd.f32 %v420, %v594
      %596 = vmatprep.mubr.f32.mxu0 %v431
      %597 = vmatmul.mubr.f32.gmra.mrb[0].mxu0 %v303
      %v598 = vpop.f32.mrb[0].mxu0
      %v599 = vadd.f32 %v416, %v598
      %v600 = vpop.f32.mrb[0].mxu0
      %v601 = vadd.f32 %v420, %v600
      %602 = vmatprep.mubr.f32.mxu0 %v434
      %603 = vmatmul.mubr.f32.gmra.mrb[0].mxu0 %v305
      %v604 = vpop.f32.mrb[0].mxu0
      %v605 = vadd.f32 %v416, %v604
      %v606 = vpop.f32.mrb[0].mxu0
      %v607 = vadd.f32 %v420, %v606
      %608 = vmatprep.mubr.f32.mxu0 %v437
      %609 = vmatmul.mubr.f32.gmra.mrb[0].mxu0 %v307
      %v610 = vpop.f32.mrb[0].mxu0
      %v611 = vadd.f32 %v416, %v610
      %v612 = vpop.f32.mrb[0].mxu0
      %v613 = vadd.f32 %v420, %v612
      %614 = vmatprep.mubr.f32.mxu0 %v440
      %615 = vmatmul.mubr.f32.gmra.mrb[0].mxu0 %v309
      %v616 = vpop.f32.mrb[0].mxu0
      %v617 = vadd.f32 %v416, %v616
      %v618 = vpop.f32.mrb[0].mxu0
      %v619 = vadd.f32 %v420, %v618
      %620 = vmatprep.mubr.f32.mxu0 %v443
      %621 = vmatmul.mubr.f32.gmra.mrb[0].mxu0 %v311
      %v622 = vpop.f32.mrb[0].mxu0
      %v623 = vadd.f32 %v416, %v622
      %v624 = vpop.f32.mrb[0].mxu0
      %v625 = vadd.f32 %v420, %v624
      %626 = vmatprep.mubr.f32.mxu0 %v446
      %627 = vmatmul.mubr.f32.gmra.mrb[0].mxu0 %v313
      %v628 = vpop.f32.mrb[0].mxu0
      %v629 = vadd.f32 %v416, %v628
      %v630 = vpop.f32.mrb[0].mxu0
      %v631 = vadd.f32 %v420, %v630
      %632 = vmatprep.mubr.f32.mxu0 %v449
      %633 = vmatmul.mubr.f32.gmra.mrb[0].mxu0 %v315
      %v634 = vpop.f32.mrb[0].mxu0
      %v635 = vadd.f32 %v416, %v634
      %v636 = vpop.f32.mrb[0].mxu0
      %v637 = vadd.f32 %v420, %v636
      %638 = vmatprep.mubr.f32.mxu0 %v452
      %639 = vmatmul.mubr.f32.gmra.mrb[0].mxu0 %v317
      %v640 = vpop.f32.mrb[0].mxu0
      %v641 = vadd.f32 %v416, %v640
      %v642 = vpop.f32.mrb[0].mxu0
      %v643 = vadd.f32 %v420, %v642
      %644 = vmatprep.mubr.f32.mxu0 %v455
      %645 = vmatmul.mubr.f32.gmra.mrb[0].mxu0 %v319
      %v646 = vpop.f32.mrb[0].mxu0
      %v647 = vadd.f32 %v416, %v646
      %v648 = vpop.f32.mrb[0].mxu0
      %v649 = vadd.f32 %v420, %v648
      %650 = vmatprep.mubr.f32.mxu0 %v458
      %651 = vmatmul.mubr.f32.gmra.mrb[0].mxu0 %v321
      %v652 = vpop.f32.mrb[0].mxu0
      %v653 = vadd.f32 %v416, %v652
      %v654 = vpop.f32.mrb[0].mxu0
      %v655 = vadd.f32 %v420, %v654
      %656 = vmatprep.mubr.f32.mxu0 %v461
      %657 = vmatmul.mubr.f32.gmra.mrb[0].mxu0 %v323
      %v658 = vpop.f32.mrb[0].mxu0
      %v659 = vadd.f32 %v416, %v658
      %v660 = vpop.f32.mrb[0].mxu0
      %v661 = vadd.f32 %v420, %v660
      %662 = vmatprep.mubr.f32.mxu0 %v464
      %663 = vmatmul.mubr.f32.gmra.mrb[0].mxu0 %v325
      %v664 = vpop.f32.mrb[0].mxu0
      %v665 = vadd.f32 %v416, %v664
      %v666 = vpop.f32.mrb[0].mxu0
      %v667 = vadd.f32 %v420, %v666
      %668 = vmatprep.mubr.f32.mxu0 %v467
      %669 = vmatmul.mubr.f32.gmra.mrb[0].mxu0 %v327
      %v670 = vpop.f32.mrb[0].mxu0
      %v671 = vadd.f32 %v416, %v670
      %v672 = vpop.f32.mrb[0].mxu0
      %v673 = vadd.f32 %v420, %v672
      %674 = vmatprep.mubr.f32.mxu0 %v470
      %675 = vmatmul.mubr.f32.gmra.mrb[0].mxu0 %v329
      %v676 = vpop.f32.mrb[0].mxu0
      %v677 = vadd.f32 %v416, %v676
      %v678 = vpop.f32.mrb[0].mxu0
      %v679 = vadd.f32 %v420, %v678
      %680 = vmatprep.mubr.f32.mxu0 %v473
      %681 = vmatmul.mubr.f32.gmra.mrb[0].mxu0 %v331
      %v682 = vpop.f32.mrb[0].mxu0
      %v683 = vadd.f32 %v416, %v682
      %v684 = vpop.f32.mrb[0].mxu0
      %v685 = vadd.f32 %v420, %v684
      %686 = vmatprep.mubr.f32.mxu0 %v476
      %687 = vmatmul.mubr.f32.gmra.mrb[0].mxu0 %v333
      %v688 = vpop.f32.mrb[0].mxu0
      %v689 = vadd.f32 %v416, %v688
      %v690 = vpop.f32.mrb[0].mxu0
      %v691 = vadd.f32 %v420, %v690
      %692 = vmatprep.mubr.f32.mxu0 %v479
      %693 = vmatmul.mubr.f32.gmra.mrb[0].mxu0 %v335
      %v694 = vpop.f32.mrb[0].mxu0
      %v695 = vadd.f32 %v416, %v694
      %v696 = vpop.f32.mrb[0].mxu0
      %v697 = vadd.f32 %v420, %v696
      %698 = vmatprep.mubr.f32.mxu0 %v482
      %699 = vmatmul.mubr.f32.gmra.mrb[0].mxu0 %v337
      %v700 = vpop.f32.mrb[0].mxu0
      %v701 = vadd.f32 %v416, %v700
      %v702 = vpop.f32.mrb[0].mxu0
      %v703 = vadd.f32 %v420, %v702
      %704 = vmatprep.mubr.f32.mxu0 %v485
      %705 = vmatmul.mubr.f32.gmra.mrb[0].mxu0 %v339
      %v706 = vpop.f32.mrb[0].mxu0
      %v707 = vadd.f32 %v416, %v706
      %v708 = vpop.f32.mrb[0].mxu0
      %v709 = vadd.f32 %v420, %v708
      %710 = vmatprep.mubr.f32.mxu0 %v488
      %711 = vmatmul.mubr.f32.gmra.mrb[0].mxu0 %v341
      %v712 = vpop.f32.mrb[0].mxu0
      %v713 = vadd.f32 %v416, %v712
      %v714 = vpop.f32.mrb[0].mxu0
      %v715 = vadd.f32 %v420, %v714
      %716 = vmatprep.mubr.f32.mxu0 %v491
      %717 = vmatmul.mubr.f32.gmra.mrb[0].mxu0 %v343
      %v718 = vpop.f32.mrb[0].mxu0
      %v719 = vadd.f32 %v416, %v718
      %v720 = vpop.f32.mrb[0].mxu0
      %v721 = vadd.f32 %v420, %v720
      %722 = vmatprep.mubr.f32.mxu0 %v494
      %723 = vmatmul.mubr.f32.gmra.mrb[0].mxu0 %v345
      %v724 = vpop.f32.mrb[0].mxu0
      %v725 = vadd.f32 %v416, %v724
      %v726 = vpop.f32.mrb[0].mxu0
      %v727 = vadd.f32 %v420, %v726
      %728 = vmatprep.mubr.f32.mxu0 %v497
      %729 = vmatmul.mubr.f32.gmra.mrb[0].mxu0 %v347
      %v730 = vpop.f32.mrb[0].mxu0
      %v731 = vadd.f32 %v416, %v730
      %v732 = vpop.f32.mrb[0].mxu0
      %v733 = vadd.f32 %v420, %v732
      %734 = vmatprep.mubr.f32.mxu0 %v500
      %735 = vmatmul.mubr.f32.gmra.mrb[0].mxu0 %v349
      %v736 = vpop.f32.mrb[0].mxu0
      %v737 = vadd.f32 %v416, %v736
      %v738 = vpop.f32.mrb[0].mxu0
      %v739 = vadd.f32 %v420, %v738
      %740 = vmatprep.mubr.f32.mxu0 %v503
      %741 = vmatmul.mubr.f32.gmra.mrb[0].mxu0 %v351
      %v742 = vpop.f32.mrb[0].mxu0
      %v743 = vadd.f32 %v416, %v742
      %v744 = vpop.f32.mrb[0].mxu0
      %v745 = vadd.f32 %v420, %v744
      %746 = vmatprep.mubr.f32.mxu0 %v506
      %747 = vmatmul.mubr.f32.gmra.mrb[0].mxu0 %v353
      %v748 = vpop.f32.mrb[0].mxu0
      %v749 = vadd.f32 %v416, %v748
      %v750 = vpop.f32.mrb[0].mxu0
      %v751 = vadd.f32 %v420, %v750
      %752 = vmatprep.mubr.f32.mxu0 %v509
      %753 = vmatmul.mubr.f32.gmra.mrb[0].mxu0 %v355
      %v754 = vpop.f32.mrb[0].mxu0
      %v755 = vadd.f32 %v416, %v754
      %v756 = vpop.f32.mrb[0].mxu0
      %v757 = vadd.f32 %v420, %v756
      %758 = vmatprep.mubr.f32.mxu0 %v512
      %759 = vmatmul.mubr.f32.gmra.mrb[0].mxu0 %v357
      %v760 = vpop.f32.mrb[0].mxu0
      %v761 = vadd.f32 %v416, %v760
      %v762 = vpop.f32.mrb[0].mxu0
      %v763 = vadd.f32 %v420, %v762
      %764 = vmatprep.mubr.f32.mxu0 %v515
      %765 = vmatmul.mubr.f32.gmra.mrb[0].mxu0 %v359
      %v766 = vpop.f32.mrb[0].mxu0
      %v767 = vadd.f32 %v416, %v766
      %v768 = vpop.f32.mrb[0].mxu0
      %v769 = vadd.f32 %v420, %v768
      %770 = vmatprep.mubr.f32.mxu0 %v518
      %771 = vmatmul.mubr.f32.gmra.mrb[0].mxu0 %v361
      %v772 = vpop.f32.mrb[0].mxu0
      %v773 = vadd.f32 %v416, %v772
      %v774 = vpop.f32.mrb[0].mxu0
      %v775 = vadd.f32 %v420, %v774
      %776 = vdwg.mxu0
      %v777 = vsel %vm423, %v587, 0.0
      %v778 = vsel %vm423, %v593, 0.0
      %v779 = vadd.f32 %v777, %v778
      %v780 = vsel %vm423, %v599, 0.0
      %v781 = vadd.f32 %v779, %v780
      %v782 = vsel %vm423, %v605, 0.0
      %v783 = vadd.f32 %v781, %v782
      %v784 = vsel %vm423, %v611, 0.0
      %v785 = vadd.f32 %v783, %v784
      %v786 = vsel %vm423, %v617, 0.0
      %v787 = vadd.f32 %v785, %v786
      %v788 = vsel %vm423, %v623, 0.0
      %v789 = vadd.f32 %v787, %v788
      %v790 = vsel %vm423, %v629, 0.0
      %v791 = vadd.f32 %v789, %v790
      %v792 = vsel %vm423, %v635, 0.0
      %v793 = vadd.f32 %v791, %v792
      %v794 = vsel %vm423, %v641, 0.0
      %v795 = vadd.f32 %v793, %v794
      %v796 = vsel %vm423, %v647, 0.0
      %v797 = vadd.f32 %v795, %v796
      %v798 = vsel %vm423, %v653, 0.0
      %v799 = vadd.f32 %v797, %v798
      %v800 = vsel %vm423, %v659, 0.0
      %v801 = vadd.f32 %v799, %v800
      %v802 = vsel %vm423, %v665, 0.0
      %v803 = vadd.f32 %v801, %v802
      %v804 = vsel %vm423, %v671, 0.0
      %v805 = vadd.f32 %v803, %v804
      %v806 = vsel %vm423, %v677, 0.0
      %v807 = vadd.f32 %v805, %v806
      %v808 = vsel %vm423, %v683, 0.0
      %v809 = vadd.f32 %v807, %v808
      %v810 = vsel %vm423, %v689, 0.0
      %v811 = vadd.f32 %v809, %v810
      %v812 = vsel %vm423, %v695, 0.0
      %v813 = vadd.f32 %v811, %v812
      %v814 = vsel %vm423, %v701, 0.0
      %v815 = vadd.f32 %v813, %v814
      %v816 = vsel %vm423, %v707, 0.0
      %v817 = vadd.f32 %v815, %v816
      %v818 = vsel %vm423, %v713, 0.0
      %v819 = vadd.f32 %v817, %v818
      %v820 = vsel %vm423, %v719, 0.0
      %v821 = vadd.f32 %v819, %v820
      %v822 = vsel %vm423, %v725, 0.0
      %v823 = vadd.f32 %v821, %v822
      %v824 = vsel %vm423, %v731, 0.0
      %v825 = vadd.f32 %v823, %v824
      %v826 = vsel %vm423, %v737, 0.0
      %v827 = vadd.f32 %v825, %v826
      %v828 = vsel %vm423, %v743, 0.0
      %v829 = vadd.f32 %v827, %v828
      %v830 = vsel %vm423, %v749, 0.0
      %v831 = vadd.f32 %v829, %v830
      %v832 = vsel %vm423, %v755, 0.0
      %v833 = vadd.f32 %v831, %v832
      %v834 = vsel %vm423, %v761, 0.0
      %v835 = vadd.f32 %v833, %v834
      %v836 = vsel %vm423, %v767, 0.0
      %v837 = vadd.f32 %v835, %v836
      %v838 = vsel %vm423, %v773, 0.0
      %v839 = vadd.f32 %v837, %v838
      %v840 = vrot.slane %v839, 4
      %v841 = vadd.f32 %v839, %v840
      %v842 = vrot.slane %v841, 2
      %v843 = vadd.f32 %v841, %v842
      %v844 = vrot.slane %v843, 1
      %v845 = vadd.f32 %v843, %v844
      %v846 = vrcp.pop 256.0
      %v847 = vmul.f32 %v845, %v846
      %v848 = vsub.f32 %v587, %v847
      %v849 = vsub.f32 %v593, %v847
      %v850 = vsub.f32 %v599, %v847
      %v851 = vsub.f32 %v605, %v847
      %v852 = vsub.f32 %v611, %v847
      %v853 = vsub.f32 %v617, %v847
      %v854 = vsub.f32 %v623, %v847
      %v855 = vsub.f32 %v629, %v847
      %v856 = vsub.f32 %v635, %v847
      %v857 = vsub.f32 %v641, %v847
      %v858 = vsub.f32 %v647, %v847
      %v859 = vsub.f32 %v653, %v847
      %v860 = vsub.f32 %v659, %v847
      %v861 = vsub.f32 %v665, %v847
      %v862 = vsub.f32 %v671, %v847
      %v863 = vsub.f32 %v677, %v847
      %v864 = vsub.f32 %v683, %v847
      %v865 = vsub.f32 %v689, %v847
      %v866 = vsub.f32 %v695, %v847
      %v867 = vsub.f32 %v701, %v847
      %v868 = vsub.f32 %v707, %v847
      %v869 = vsub.f32 %v713, %v847
      %v870 = vsub.f32 %v719, %v847
      %v871 = vsub.f32 %v725, %v847
      %v872 = vsub.f32 %v731, %v847
      %v873 = vsub.f32 %v737, %v847
      %v874 = vsub.f32 %v743, %v847
      %v875 = vsub.f32 %v749, %v847
      %v876 = vsub.f32 %v755, %v847
      %v877 = vsub.f32 %v761, %v847
      %v878 = vsub.f32 %v767, %v847
      %v879 = vsub.f32 %v773, %v847
      %v880 = vmul.f32 %v848, %v848
      %v881 = vmul.f32 %v849, %v849
      %v882 = vmul.f32 %v850, %v850
      %v883 = vmul.f32 %v851, %v851
      %v884 = vmul.f32 %v852, %v852
      %v885 = vmul.f32 %v853, %v853
      %v886 = vmul.f32 %v854, %v854
      %v887 = vmul.f32 %v855, %v855
      %v888 = vmul.f32 %v856, %v856
      %v889 = vmul.f32 %v857, %v857
      %v890 = vmul.f32 %v858, %v858
      %v891 = vmul.f32 %v859, %v859
      %v892 = vmul.f32 %v860, %v860
      %v893 = vmul.f32 %v861, %v861
      %v894 = vmul.f32 %v862, %v862
      %v895 = vmul.f32 %v863, %v863
      %v896 = vmul.f32 %v864, %v864
      %v897 = vmul.f32 %v865, %v865
      %v898 = vmul.f32 %v866, %v866
      %v899 = vmul.f32 %v867, %v867
      %v900 = vmul.f32 %v868, %v868
      %v901 = vmul.f32 %v869, %v869
      %v902 = vmul.f32 %v870, %v870
      %v903 = vmul.f32 %v871, %v871
      %v904 = vmul.f32 %v872, %v872
      %v905 = vmul.f32 %v873, %v873
      %v906 = vmul.f32 %v874, %v874
      %v907 = vmul.f32 %v875, %v875
      %v908 = vmul.f32 %v876, %v876
      %v909 = vmul.f32 %v877, %v877
      %v910 = vmul.f32 %v878, %v878
      %v911 = vmul.f32 %v879, %v879
      %v912 = vsel %vm423, %v880, 0.0
      %v913 = vsel %vm423, %v881, 0.0
      %v914 = vadd.f32 %v912, %v913
      %v915 = vsel %vm423, %v882, 0.0
      %v916 = vadd.f32 %v914, %v915
      %v917 = vsel %vm423, %v883, 0.0
      %v918 = vadd.f32 %v916, %v917
      %v919 = vsel %vm423, %v884, 0.0
      %v920 = vadd.f32 %v918, %v919
      %v921 = vsel %vm423, %v885, 0.0
      %v922 = vadd.f32 %v920, %v921
      %v923 = vsel %vm423, %v886, 0.0
      %v924 = vadd.f32 %v922, %v923
      %v925 = vsel %vm423, %v887, 0.0
      %v926 = vadd.f32 %v924, %v925
      %v927 = vsel %vm423, %v888, 0.0
      %v928 = vadd.f32 %v926, %v927
      %v929 = vsel %vm423, %v889, 0.0
      %v930 = vadd.f32 %v928, %v929
      %v931 = vsel %vm423, %v890, 0.0
      %v932 = vadd.f32 %v930, %v931
      %v933 = vsel %vm423, %v891, 0.0
      %v934 = vadd.f32 %v932, %v933
      %v935 = vsel %vm423, %v892, 0.0
      %v936 = vadd.f32 %v934, %v935
      %v937 = vsel %vm423, %v893, 0.0
      %v938 = vadd.f32 %v936, %v937
      %v939 = vsel %vm423, %v894, 0.0
      %v940 = vadd.f32 %v938, %v939
      %v941 = vsel %vm423, %v895, 0.0
      %v942 = vadd.f32 %v940, %v941
      %v943 = vsel %vm423, %v896, 0.0
      %v944 = vadd.f32 %v942, %v943
      %v945 = vsel %vm423, %v897, 0.0
      %v946 = vadd.f32 %v944, %v945
      %v947 = vsel %vm423, %v898, 0.0
      %v948 = vadd.f32 %v946, %v947
      %v949 = vsel %vm423, %v899, 0.0
      %v950 = vadd.f32 %v948, %v949
      %v951 = vsel %vm423, %v900, 0.0
      %v952 = vadd.f32 %v950, %v951
      %v953 = vsel %vm423, %v901, 0.0
      %v954 = vadd.f32 %v952, %v953
      %v955 = vsel %vm423, %v902, 0.0
      %v956 = vadd.f32 %v954, %v955
      %v957 = vsel %vm423, %v903, 0.0
      %v958 = vadd.f32 %v956, %v957
      %v959 = vsel %vm423, %v904, 0.0
      %v960 = vadd.f32 %v958, %v959
      %v961 = vsel %vm423, %v905, 0.0
      %v962 = vadd.f32 %v960, %v961
      %v963 = vsel %vm423, %v906, 0.0
      %v964 = vadd.f32 %v962, %v963
      %v965 = vsel %vm423, %v907, 0.0
      %v966 = vadd.f32 %v964, %v965
      %v967 = vsel %vm423, %v908, 0.0
      %v968 = vadd.f32 %v966, %v967
      %v969 = vsel %vm423, %v909, 0.0
      %v970 = vadd.f32 %v968, %v969
      %v971 = vsel %vm423, %v910, 0.0
      %v972 = vadd.f32 %v970, %v971
      %v973 = vsel %vm423, %v911, 0.0
      %v974 = vadd.f32 %v972, %v973
      %v975 = vrot.slane %v974, 4
      %v976 = vadd.f32 %v974, %v975
      %v977 = vrot.slane %v976, 2
      %v978 = vadd.f32 %v976, %v977
      %v979 = vrot.slane %v978, 1
      %v980 = vadd.f32 %v978, %v979
      %v981 = vmul.f32 %v980, %v846
      %v982 = vadd.f32 %v981, 1e-05
      %v983 = vrsqrt.pop %v982
      %v984 = vmul.f32 %v848, %v983
      %v985 = vmul.f32 %v849, %v983
      %v986 = vmul.f32 %v850, %v983
      %v987 = vmul.f32 %v851, %v983
      %v988 = vmul.f32 %v852, %v983
      %v989 = vmul.f32 %v853, %v983
      %v990 = vmul.f32 %v854, %v983
      %v991 = vmul.f32 %v855, %v983
      %v992 = vmul.f32 %v856, %v983
      %v993 = vmul.f32 %v857, %v983
      %v994 = vmul.f32 %v858, %v983
      %v995 = vmul.f32 %v859, %v983
      %v996 = vmul.f32 %v860, %v983
      %v997 = vmul.f32 %v861, %v983
      %v998 = vmul.f32 %v862, %v983
      %v999 = vmul.f32 %v863, %v983
      %v1000 = vmul.f32 %v864, %v983
      %v1001 = vmul.f32 %v865, %v983
      %v1002 = vmul.f32 %v866, %v983
      %v1003 = vmul.f32 %v867, %v983
      %v1004 = vmul.f32 %v868, %v983
      %v1005 = vmul.f32 %v869, %v983
      %v1006 = vmul.f32 %v870, %v983
      %v1007 = vmul.f32 %v871, %v983
      %v1008 = vmul.f32 %v872, %v983
      %v1009 = vmul.f32 %v873, %v983
      %v1010 = vmul.f32 %v874, %v983
      %v1011 = vmul.f32 %v875, %v983
      %v1012 = vmul.f32 %v876, %v983
      %v1013 = vmul.f32 %v877, %v983
      %v1014 = vmul.f32 %v878, %v983
      %v1015 = vmul.f32 %v879, %v983
      %v1016 = vld [vmem:[%s4] sm:$0xff]
      %v1017 = vld [vmem:[%s4 + $0x8] sm:$0xff]
      %v1018 = vld [vmem:[%s4 + $0x10] sm:$0xff]
      %v1019 = vld [vmem:[%s4 + $0x18] sm:$0xff]
      %v1020 = vld [vmem:[%s4 + $0x20] sm:$0xff]
      %v1021 = vld [vmem:[%s4 + $0x28] sm:$0xff]
      %v1022 = vld [vmem:[%s4 + $0x30] sm:$0xff]
      %v1023 = vld [vmem:[%s4 + $0x38] sm:$0xff]
      %v1024 = vld [vmem:[%s5] sm:$0x1]
      %1057 = vrot.lane.b32.xlu0 %v587, 64
      %v1058 = vpop.permute.xlu0 %1057
      %1059 = vrot.lane.b32.xlu0 %v593, 64
      %v1060 = vpop.permute.xlu0 %1059
      %1061 = vrot.lane.b32.xlu0 %v599, 64
      %v1062 = vpop.permute.xlu0 %1061
      %1063 = vrot.lane.b32.xlu0 %v605, 64
      %v1064 = vpop.permute.xlu0 %1063
      %1065 = vrot.lane.b32.xlu0 %v611, 64
      %v1066 = vpop.permute.xlu0 %1065
      %1067 = vrot.lane.b32.xlu0 %v617, 64
      %v1068 = vpop.permute.xlu0 %1067
      %1069 = vrot.lane.b32.xlu0 %v623, 64
      %v1070 = vpop.permute.xlu0 %1069
      %1071 = vrot.lane.b32.xlu0 %v629, 64
      %v1072 = vpop.permute.xlu0 %1071
      %1073 = vrot.lane.b32.xlu0 %v635, 64
      %v1074 = vpop.permute.xlu0 %1073
      %1075 = vrot.lane.b32.xlu0 %v641, 64
      %v1076 = vpop.permute.xlu0 %1075
      %1077 = vrot.lane.b32.xlu0 %v647, 64
      %v1078 = vpop.permute.xlu0 %1077
      %1079 = vrot.lane.b32.xlu0 %v653, 64
      %v1080 = vpop.permute.xlu0 %1079
      %1081 = vrot.lane.b32.xlu0 %v659, 64
      %v1082 = vpop.permute.xlu0 %1081
      %1083 = vrot.lane.b32.xlu0 %v665, 64
      %v1084 = vpop.permute.xlu0 %1083
      %1085 = vrot.lane.b32.xlu0 %v671, 64
      %v1086 = vpop.permute.xlu0 %1085
      %1087 = vrot.lane.b32.xlu0 %v677, 64
      %v1088 = vpop.permute.xlu0 %1087
      %1089 = vrot.lane.b32.xlu0 %v683, 64
      %v1090 = vpop.permute.xlu0 %1089
      %1091 = vrot.lane.b32.xlu0 %v689, 64
      %v1092 = vpop.permute.xlu0 %1091
      %1093 = vrot.lane.b32.xlu0 %v695, 64
      %v1094 = vpop.permute.xlu0 %1093
      %1095 = vrot.lane.b32.xlu0 %v701, 64
      %v1096 = vpop.permute.xlu0 %1095
      %1097 = vrot.lane.b32.xlu0 %v707, 64
      %v1098 = vpop.permute.xlu0 %1097
      %1099 = vrot.lane.b32.xlu0 %v713, 64
      %v1100 = vpop.permute.xlu0 %1099
      %1101 = vrot.lane.b32.xlu0 %v719, 64
      %v1102 = vpop.permute.xlu0 %1101
      %1103 = vrot.lane.b32.xlu0 %v725, 64
      %v1104 = vpop.permute.xlu0 %1103
      %1105 = vrot.lane.b32.xlu0 %v731, 64
      %v1106 = vpop.permute.xlu0 %1105
      %1107 = vrot.lane.b32.xlu0 %v737, 64
      %v1108 = vpop.permute.xlu0 %1107
      %1109 = vrot.lane.b32.xlu0 %v743, 64
      %v1110 = vpop.permute.xlu0 %1109
      %1111 = vrot.lane.b32.xlu0 %v749, 64
      %v1112 = vpop.permute.xlu0 %1111
      %1113 = vrot.lane.b32.xlu0 %v755, 64
      %v1114 = vpop.permute.xlu0 %1113
      %1115 = vrot.lane.b32.xlu0 %v761, 64
      %v1116 = vpop.permute.xlu0 %1115
      %1117 = vrot.lane.b32.xlu0 %v767, 64
      %v1118 = vpop.permute.xlu0 %1117
      %1119 = vrot.lane.b32.xlu0 %v773, 64
      %v1120 = vpop.permute.xlu0 %1119
      %vm1121 = vcmask 130048
      %v1122 = vsel %vm1121, %v1058, 0
      %v1124 = vsel %vm1121, %v1060, 0
      %v1126 = vsel %vm1121, %v1062, 0
      %v1128 = vsel %vm1121, %v1064, 0
      %v1130 = vsel %vm1121, %v1066, 0
      %v1132 = vsel %vm1121, %v1068, 0
      %v1134 = vsel %vm1121, %v1070, 0
      %v1136 = vsel %vm1121, %v1072, 0
      %v1138 = vsel %vm1121, %v1074, 0
      %v1140 = vsel %vm1121, %v1076, 0
      %v1142 = vsel %vm1121, %v1078, 0
      %v1144 = vsel %vm1121, %v1080, 0
      %v1146 = vsel %vm1121, %v1082, 0
      %v1148 = vsel %vm1121, %v1084, 0
      %v1150 = vsel %vm1121, %v1086, 0
      %v1152 = vsel %vm1121, %v1088, 0
      %v1154 = vsel %vm1121, %v1090, 0
      %v1156 = vsel %vm1121, %v1092, 0
      %v1158 = vsel %vm1121, %v1094, 0
      %v1160 = vsel %vm1121, %v1096, 0
      %v1162 = vsel %vm1121, %v1098, 0
      %v1164 = vsel %vm1121, %v1100, 0
      %v1166 = vsel %vm1121, %v1102, 0
      %v1168 = vsel %vm1121, %v1104, 0
      %v1170 = vsel %vm1121, %v1106, 0
      %v1172 = vsel %vm1121, %v1108, 0
      %v1174 = vsel %vm1121, %v1110, 0
      %v1176 = vsel %vm1121, %v1112, 0
      %v1178 = vsel %vm1121, %v1114, 0
      %v1180 = vsel %vm1121, %v1116, 0
      %v1182 = vsel %vm1121, %v1118, 0
      %v1184 = vsel %vm1121, %v1120, 0
      %1186 = vmatprep.subr.mxu0 0.0
      %1187 = vmatpush1.msra.mxu0 %v1016
      %1188 = vmatprep.subr.mxu0 0.0
      %1189 = vmatpush1.msra.mxu0 %v1017
      %1190 = vmatprep.subr.mxu0 0.0
      %1191 = vmatpush1.msra.mxu0 0.0
      %1192 = vmatprep.subr.mxu0 0.0
      %1193 = vmatpush1.msra.mxu0 0.0
      %1194 = vmatprep.subr.mxu0 0.0
      %1195 = vmatpush1.msra.mxu0 0.0
      %1196 = vmatprep.subr.mxu0 0.0
      %1197 = vmatpush1.msra.mxu0 0.0
      %1198 = vmatprep.subr.mxu0 0.0
      %1199 = vmatpush1.msra.mxu0 0.0
      %1200 = vmatprep.subr.mxu0 0.0
      %1201 = vmatpush1.msra.mxu0 0.0
      %1202 = vmatprep.subr.mxu0 0.0
      %1203 = vmatpush1.msra.mxu0 0.0
      %1204 = vmatprep.subr.mxu0 0.0
      %1205 = vmatpush1.msra.mxu0 0.0
      %1206 = vmatprep.subr.mxu0 0.0
      %1207 = vmatpush1.msra.mxu0 0.0
      %1208 = vmatprep.subr.mxu0 0.0
      %1209 = vmatpush1.msra.mxu0 0.0
      %1210 = vmatprep.subr.mxu0 0.0
      %1211 = vmatpush1.msra.mxu0 0.0
      %1212 = vmatprep.subr.mxu0 0.0
      %1213 = vmatpush1.msra.mxu0 0.0
      %1214 = vmatprep.subr.mxu0 0.0
      %1215 = vmatpush1.msra.mxu0 0.0
      %1216 = vmatprep.subr.mxu0 0.0
      %1217 = vmatpush1.msra.mxu0 0.0
      %1218 = vmatprep.subr.mxu0 0.0
      %1219 = vmatpush1.msra.mxu0 0.0
      %1220 = vmatprep.subr.mxu0 0.0
      %1221 = vmatpush1.msra.mxu0 0.0
      %1222 = vmatprep.subr.mxu0 0.0
      %1223 = vmatpush1.msra.mxu0 0.0
      %1224 = vmatprep.subr.mxu0 0.0
      %1225 = vmatpush1.msra.mxu0 0.0
      %1226 = vmatprep.subr.mxu0 0.0
      %1227 = vmatpush1.msra.mxu0 0.0
      %1228 = vmatprep.subr.mxu0 0.0
      %1229 = vmatpush1.msra.mxu0 0.0
      %1230 = vmatprep.subr.mxu0 0.0
      %1231 = vmatpush1.msra.mxu0 0.0
      %1232 = vmatprep.subr.mxu0 0.0
      %1233 = vmatpush1.msra.mxu0 0.0
      %1234 = vmatprep.subr.mxu0 0.0
      %1235 = vmatpush1.msra.mxu0 0.0
      %1236 = vmatprep.subr.mxu0 0.0
      %1237 = vmatpush1.msra.mxu0 0.0
      %1238 = vmatprep.subr.mxu0 0.0
      %1239 = vmatpush1.msra.mxu0 0.0
      %1240 = vmatprep.subr.mxu0 0.0
      %1241 = vmatpush1.msra.mxu0 0.0
      %1242 = vmatprep.subr.mxu0 0.0
      %1243 = vmatpush1.msra.mxu0 0.0
      %1244 = vmatprep.subr.mxu0 0.0
      %1245 = vmatpush1.msra.mxu0 0.0
      %1246 = vmatprep.subr.mxu0 0.0
      %1247 = vmatpush1.msra.mxu0 0.0
      %1248 = vmatprep.subr.mxu0 0.0
      %1249 = vmatpush1.msra.mxu0 0.0
      %1250 = vmatprep.mubr.f32.mxu0 0.0
      %1251 = vmatmul.mubr.f32.gmra.mrb[0].mxu0 %v1122
      %v1252 = vpop.f32.mrb[0].mxu0
      %v1253 = vadd.f32 0.0, %v1252
      %v1254 = vpop.f32.mrb[0].mxu0
      %1255 = vmatprep.mubr.f32.mxu0 0.0
      %1256 = vmatmul.mubr.f32.gmra.mrb[0].mxu0 %v1124
      %v1257 = vpop.f32.mrb[0].mxu0
      %v1258 = vadd.f32 0.0, %v1257
      %v1259 = vpop.f32.mrb[0].mxu0
      %1260 = vmatprep.mubr.f32.mxu0 0.0
      %1261 = vmatmul.mubr.f32.gmra.mrb[0].mxu0 %v1126
      %v1262 = vpop.f32.mrb[0].mxu0
      %v1263 = vadd.f32 0.0, %v1262
      %v1264 = vpop.f32.mrb[0].mxu0
      %1265 = vmatprep.mubr.f32.mxu0 0.0
      %1266 = vmatmul.mubr.f32.gmra.mrb[0].mxu0 %v1128
      %v1267 = vpop.f32.mrb[0].mxu0
      %v1268 = vadd.f32 0.0, %v1267
      %v1269 = vpop.f32.mrb[0].mxu0
      %1270 = vmatprep.mubr.f32.mxu0 0.0
      %1271 = vmatmul.mubr.f32.gmra.mrb[0].mxu0 %v1130
      %v1272 = vpop.f32.mrb[0].mxu0
      %v1273 = vadd.f32 0.0, %v1272
      %v1274 = vpop.f32.mrb[0].mxu0
      %1275 = vmatprep.mubr.f32.mxu0 0.0
      %1276 = vmatmul.mubr.f32.gmra.mrb[0].mxu0 %v1132
      %v1277 = vpop.f32.mrb[0].mxu0
      %v1278 = vadd.f32 0.0, %v1277
      %v1279 = vpop.f32.mrb[0].mxu0
      %1280 = vmatprep.mubr.f32.mxu0 0.0
      %1281 = vmatmul.mubr.f32.gmra.mrb[0].mxu0 %v1134
      %v1282 = vpop.f32.mrb[0].mxu0
      %v1283 = vadd.f32 0.0, %v1282
      %v1284 = vpop.f32.mrb[0].mxu0
      %1285 = vmatprep.mubr.f32.mxu0 0.0
      %1286 = vmatmul.mubr.f32.gmra.mrb[0].mxu0 %v1136
      %v1287 = vpop.f32.mrb[0].mxu0
      %v1288 = vadd.f32 0.0, %v1287
      %v1289 = vpop.f32.mrb[0].mxu0
      %1290 = vmatprep.mubr.f32.mxu0 0.0
      %1291 = vmatmul.mubr.f32.gmra.mrb[0].mxu0 %v1138
      %v1292 = vpop.f32.mrb[0].mxu0
      %v1293 = vadd.f32 0.0, %v1292
      %v1294 = vpop.f32.mrb[0].mxu0
      %1295 = vmatprep.mubr.f32.mxu0 0.0
      %1296 = vmatmul.mubr.f32.gmra.mrb[0].mxu0 %v1140
      %v1297 = vpop.f32.mrb[0].mxu0
      %v1298 = vadd.f32 0.0, %v1297
      %v1299 = vpop.f32.mrb[0].mxu0
      %1300 = vmatprep.mubr.f32.mxu0 0.0
      %1301 = vmatmul.mubr.f32.gmra.mrb[0].mxu0 %v1142
      %v1302 = vpop.f32.mrb[0].mxu0
      %v1303 = vadd.f32 0.0, %v1302
      %v1304 = vpop.f32.mrb[0].mxu0
      %1305 = vmatprep.mubr.f32.mxu0 0.0
      %1306 = vmatmul.mubr.f32.gmra.mrb[0].mxu0 %v1144
      %v1307 = vpop.f32.mrb[0].mxu0
      %v1308 = vadd.f32 0.0, %v1307
      %v1309 = vpop.f32.mrb[0].mxu0
      %1310 = vmatprep.mubr.f32.mxu0 0.0
      %1311 = vmatmul.mubr.f32.gmra.mrb[0].mxu0 %v1146
      %v1312 = vpop.f32.mrb[0].mxu0
      %v1313 = vadd.f32 0.0, %v1312
      %v1314 = vpop.f32.mrb[0].mxu0
      %1315 = vmatprep.mubr.f32.mxu0 0.0
      %1316 = vmatmul.mubr.f32.gmra.mrb[0].mxu0 %v1148
      %v1317 = vpop.f32.mrb[0].mxu0
      %v1318 = vadd.f32 0.0, %v1317
      %v1319 = vpop.f32.mrb[0].mxu0
      %1320 = vmatprep.mubr.f32.mxu0 0.0
      %1321 = vmatmul.mubr.f32.gmra.mrb[0].mxu0 %v1150
      %v1322 = vpop.f32.mrb[0].mxu0
      %v1323 = vadd.f32 0.0, %v1322
      %v1324 = vpop.f32.mrb[0].mxu0
      %1325 = vmatprep.mubr.f32.mxu0 0.0
      %1326 = vmatmul.mubr.f32.gmra.mrb[0].mxu0 %v1152
      %v1327 = vpop.f32.mrb[0].mxu0
      %v1328 = vadd.f32 0.0, %v1327
      %v1329 = vpop.f32.mrb[0].mxu0
      %1330 = vmatprep.mubr.f32.mxu0 0.0
      %1331 = vmatmul.mubr.f32.gmra.mrb[0].mxu0 %v1154
      %v1332 = vpop.f32.mrb[0].mxu0
      %v1333 = vadd.f32 0.0, %v1332
      %v1334 = vpop.f32.mrb[0].mxu0
      %1335 = vmatprep.mubr.f32.mxu0 0.0
      %1336 = vmatmul.mubr.f32.gmra.mrb[0].mxu0 %v1156
      %v1337 = vpop.f32.mrb[0].mxu0
      %v1338 = vadd.f32 0.0, %v1337
      %v1339 = vpop.f32.mrb[0].mxu0
      %1340 = vmatprep.mubr.f32.mxu0 0.0
      %1341 = vmatmul.mubr.f32.gmra.mrb[0].mxu0 %v1158
      %v1342 = vpop.f32.mrb[0].mxu0
      %v1343 = vadd.f32 0.0, %v1342
      %v1344 = vpop.f32.mrb[0].mxu0
      %1345 = vmatprep.mubr.f32.mxu0 0.0
      %1346 = vmatmul.mubr.f32.gmra.mrb[0].mxu0 %v1160
      %v1347 = vpop.f32.mrb[0].mxu0
      %v1348 = vadd.f32 0.0, %v1347
      %v1349 = vpop.f32.mrb[0].mxu0
      %1350 = vmatprep.mubr.f32.mxu0 0.0
      %1351 = vmatmul.mubr.f32.gmra.mrb[0].mxu0 %v1162
      %v1352 = vpop.f32.mrb[0].mxu0
      %v1353 = vadd.f32 0.0, %v1352
      %v1354 = vpop.f32.mrb[0].mxu0
      %1355 = vmatprep.mubr.f32.mxu0 0.0
      %1356 = vmatmul.mubr.f32.gmra.mrb[0].mxu0 %v1164
      %v1357 = vpop.f32.mrb[0].mxu0
      %v1358 = vadd.f32 0.0, %v1357
      %v1359 = vpop.f32.mrb[0].mxu0
      %1360 = vmatprep.mubr.f32.mxu0 0.0
      %1361 = vmatmul.mubr.f32.gmra.mrb[0].mxu0 %v1166
      %v1362 = vpop.f32.mrb[0].mxu0
      %v1363 = vadd.f32 0.0, %v1362
      %v1364 = vpop.f32.mrb[0].mxu0
      %1365 = vmatprep.mubr.f32.mxu0 0.0
      %1366 = vmatmul.mubr.f32.gmra.mrb[0].mxu0 %v1168
      %v1367 = vpop.f32.mrb[0].mxu0
      %v1368 = vadd.f32 0.0, %v1367
      %v1369 = vpop.f32.mrb[0].mxu0
      %1370 = vmatprep.mubr.f32.mxu0 0.0
      %1371 = vmatmul.mubr.f32.gmra.mrb[0].mxu0 %v1170
      %v1372 = vpop.f32.mrb[0].mxu0
      %v1373 = vadd.f32 0.0, %v1372
      %v1374 = vpop.f32.mrb[0].mxu0
      %1375 = vmatprep.mubr.f32.mxu0 0.0
      %1376 = vmatmul.mubr.f32.gmra.mrb[0].mxu0 %v1172
      %v1377 = vpop.f32.mrb[0].mxu0
      %v1378 = vadd.f32 0.0, %v1377
      %v1379 = vpop.f32.mrb[0].mxu0
      %1380 = vmatprep.mubr.f32.mxu0 0.0
      %1381 = vmatmul.mubr.f32.gmra.mrb[0].mxu0 %v1174
      %v1382 = vpop.f32.mrb[0].mxu0
      %v1383 = vadd.f32 0.0, %v1382
      %v1384 = vpop.f32.mrb[0].mxu0
      %1385 = vmatprep.mubr.f32.mxu0 0.0
      %1386 = vmatmul.mubr.f32.gmra.mrb[0].mxu0 %v1176
      %v1387 = vpop.f32.mrb[0].mxu0
      %v1388 = vadd.f32 0.0, %v1387
      %v1389 = vpop.f32.mrb[0].mxu0
      %1390 = vmatprep.mubr.f32.mxu0 0.0
      %1391 = vmatmul.mubr.f32.gmra.mrb[0].mxu0 %v1178
      %v1392 = vpop.f32.mrb[0].mxu0
      %v1393 = vadd.f32 0.0, %v1392
      %v1394 = vpop.f32.mrb[0].mxu0
      %1395 = vmatprep.mubr.f32.mxu0 0.0
      %1396 = vmatmul.mubr.f32.gmra.mrb[0].mxu0 %v1180
      %v1397 = vpop.f32.mrb[0].mxu0
      %v1398 = vadd.f32 0.0, %v1397
      %v1399 = vpop.f32.mrb[0].mxu0
      %1400 = vmatprep.mubr.f32.mxu0 0.0
      %1401 = vmatmul.mubr.f32.gmra.mrb[0].mxu0 %v1182
      %v1402 = vpop.f32.mrb[0].mxu0
      %v1403 = vadd.f32 0.0, %v1402
      %v1404 = vpop.f32.mrb[0].mxu0
      %1405 = vmatprep.mubr.f32.mxu0 0.0
      %1406 = vmatmul.mubr.f32.gmra.mrb[0].mxu0 %v1184
      %v1407 = vpop.f32.mrb[0].mxu0
      %v1408 = vadd.f32 0.0, %v1407
      %v1409 = vpop.f32.mrb[0].mxu0
      %1410 = vdwg.mxu0
      %1411 = vrot.lane.b32.xlu0 %v587, 48
      %v1412 = vpop.permute.xlu0 %1411
      %1413 = vrot.lane.b32.xlu0 %v593, 48
      %v1414 = vpop.permute.xlu0 %1413
      %1415 = vrot.lane.b32.xlu0 %v599, 48
      %v1416 = vpop.permute.xlu0 %1415
      %1417 = vrot.lane.b32.xlu0 %v605, 48
      %v1418 = vpop.permute.xlu0 %1417
      %1419 = vrot.lane.b32.xlu0 %v611, 48
      %v1420 = vpop.permute.xlu0 %1419
      %1421 = vrot.lane.b32.xlu0 %v617, 48
      %v1422 = vpop.permute.xlu0 %1421
      %1423 = vrot.lane.b32.xlu0 %v623, 48
      %v1424 = vpop.permute.xlu0 %1423
      %1425 = vrot.lane.b32.xlu0 %v629, 48
      %v1426 = vpop.permute.xlu0 %1425
      %1427 = vrot.lane.b32.xlu0 %v635, 48
      %v1428 = vpop.permute.xlu0 %1427
      %1429 = vrot.lane.b32.xlu0 %v641, 48
      %v1430 = vpop.permute.xlu0 %1429
      %1431 = vrot.lane.b32.xlu0 %v647, 48
      %v1432 = vpop.permute.xlu0 %1431
      %1433 = vrot.lane.b32.xlu0 %v653, 48
      %v1434 = vpop.permute.xlu0 %1433
      %1435 = vrot.lane.b32.xlu0 %v659, 48
      %v1436 = vpop.permute.xlu0 %1435
      %1437 = vrot.lane.b32.xlu0 %v665, 48
      %v1438 = vpop.permute.xlu0 %1437
      %1439 = vrot.lane.b32.xlu0 %v671, 48
      %v1440 = vpop.permute.xlu0 %1439
      %1441 = vrot.lane.b32.xlu0 %v677, 48
      %v1442 = vpop.permute.xlu0 %1441
      %1443 = vrot.lane.b32.xlu0 %v683, 48
      %v1444 = vpop.permute.xlu0 %1443
      %1445 = vrot.lane.b32.xlu0 %v689, 48
      %v1446 = vpop.permute.xlu0 %1445
      %1447 = vrot.lane.b32.xlu0 %v695, 48
      %v1448 = vpop.permute.xlu0 %1447
      %1449 = vrot.lane.b32.xlu0 %v701, 48
      %v1450 = vpop.permute.xlu0 %1449
      %1451 = vrot.lane.b32.xlu0 %v707, 48
      %v1452 = vpop.permute.xlu0 %1451
      %1453 = vrot.lane.b32.xlu0 %v713, 48
      %v1454 = vpop.permute.xlu0 %1453
      %1455 = vrot.lane.b32.xlu0 %v719, 48
      %v1456 = vpop.permute.xlu0 %1455
      %1457 = vrot.lane.b32.xlu0 %v725, 48
      %v1458 = vpop.permute.xlu0 %1457
      %1459 = vrot.lane.b32.xlu0 %v731, 48
      %v1460 = vpop.permute.xlu0 %1459
      %1461 = vrot.lane.b32.xlu0 %v737, 48
      %v1462 = vpop.permute.xlu0 %1461
      %1463 = vrot.lane.b32.xlu0 %v743, 48
      %v1464 = vpop.permute.xlu0 %1463
      %1465 = vrot.lane.b32.xlu0 %v749, 48
      %v1466 = vpop.permute.xlu0 %1465
      %1467 = vrot.lane.b32.xlu0 %v755, 48
      %v1468 = vpop.permute.xlu0 %1467
      %1469 = vrot.lane.b32.xlu0 %v761, 48
      %v1470 = vpop.permute.xlu0 %1469
      %1471 = vrot.lane.b32.xlu0 %v767, 48
      %v1472 = vpop.permute.xlu0 %1471
      %1473 = vrot.lane.b32.xlu0 %v773, 48
      %v1474 = vpop.permute.xlu0 %1473
      %v1475 = vsel %vm1121, %v1412, 0
      %v1477 = vsel %vm1121, %v1414, 0
      %v1479 = vsel %vm1121, %v1416, 0
      %v1481 = vsel %vm1121, %v1418, 0
      %v1483 = vsel %vm1121, %v1420, 0
      %v1485 = vsel %vm1121, %v1422, 0
      %v1487 = vsel %vm1121, %v1424, 0
      %v1489 = vsel %vm1121, %v1426, 0
      %v1491 = vsel %vm1121, %v1428, 0
      %v1493 = vsel %vm1121, %v1430, 0
      %v1495 = vsel %vm1121, %v1432, 0
      %v1497 = vsel %vm1121, %v1434, 0
      %v1499 = vsel %vm1121, %v1436, 0
      %v1501 = vsel %vm1121, %v1438, 0
      %v1503 = vsel %vm1121, %v1440, 0
      %v1505 = vsel %vm1121, %v1442, 0
      %v1507 = vsel %vm1121, %v1444, 0
      %v1509 = vsel %vm1121, %v1446, 0
      %v1511 = vsel %vm1121, %v1448, 0
      %v1513 = vsel %vm1121, %v1450, 0
      %v1515 = vsel %vm1121, %v1452, 0
      %v1517 = vsel %vm1121, %v1454, 0
      %v1519 = vsel %vm1121, %v1456, 0
      %v1521 = vsel %vm1121, %v1458, 0
      %v1523 = vsel %vm1121, %v1460, 0
      %v1525 = vsel %vm1121, %v1462, 0
      %v1527 = vsel %vm1121, %v1464, 0
      %v1529 = vsel %vm1121, %v1466, 0
      %v1531 = vsel %vm1121, %v1468, 0
      %v1533 = vsel %vm1121, %v1470, 0
      %v1535 = vsel %vm1121, %v1472, 0
      %v1537 = vsel %vm1121, %v1474, 0
      %1539 = vmatprep.subr.mxu0 0.0
      %1540 = vmatpush1.msra.mxu0 %v1018
      %1541 = vmatprep.subr.mxu0 0.0
      %1542 = vmatpush1.msra.mxu0 %v1019
      %1543 = vmatprep.subr.mxu0 0.0
      %1544 = vmatpush1.msra.mxu0 0.0
      %1545 = vmatprep.subr.mxu0 0.0
      %1546 = vmatpush1.msra.mxu0 0.0
      %1547 = vmatprep.subr.mxu0 0.0
      %1548 = vmatpush1.msra.mxu0 0.0
      %1549 = vmatprep.subr.mxu0 0.0
      %1550 = vmatpush1.msra.mxu0 0.0
      %1551 = vmatprep.subr.mxu0 0.0
      %1552 = vmatpush1.msra.mxu0 0.0
      %1553 = vmatprep.subr.mxu0 0.0
      %1554 = vmatpush1.msra.mxu0 0.0
      %1555 = vmatprep.subr.mxu0 0.0
      %1556 = vmatpush1.msra.mxu0 0.0
      %1557 = vmatprep.subr.mxu0 0.0
      %1558 = vmatpush1.msra.mxu0 0.0
      %1559 = vmatprep.subr.mxu0 0.0
      %1560 = vmatpush1.msra.mxu0 0.0
      %1561 = vmatprep.subr.mxu0 0.0
      %1562 = vmatpush1.msra.mxu0 0.0
      %1563 = vmatprep.subr.mxu0 0.0
      %1564 = vmatpush1.msra.mxu0 0.0
      %1565 = vmatprep.subr.mxu0 0.0
      %1566 = vmatpush1.msra.mxu0 0.0
      %1567 = vmatprep.subr.mxu0 0.0
      %1568 = vmatpush1.msra.mxu0 0.0
      %1569 = vmatprep.subr.mxu0 0.0
      %1570 = vmatpush1.msra.mxu0 0.0
      %1571 = vmatprep.subr.mxu0 0.0
      %1572 = vmatpush1.msra.mxu0 0.0
      %1573 = vmatprep.subr.mxu0 0.0
      %1574 = vmatpush1.msra.mxu0 0.0
      %1575 = vmatprep.subr.mxu0 0.0
      %1576 = vmatpush1.msra.mxu0 0.0
      %1577 = vmatprep.subr.mxu0 0.0
      %1578 = vmatpush1.msra.mxu0 0.0
      %1579 = vmatprep.subr.mxu0 0.0
      %1580 = vmatpush1.msra.mxu0 0.0
      %1581 = vmatprep.subr.mxu0 0.0
      %1582 = vmatpush1.msra.mxu0 0.0
      %1583 = vmatprep.subr.mxu0 0.0
      %1584 = vmatpush1.msra.mxu0 0.0
      %1585 = vmatprep.subr.mxu0 0.0
      %1586 = vmatpush1.msra.mxu0 0.0
      %1587 = vmatprep.subr.mxu0 0.0
      %1588 = vmatpush1.msra.mxu0 0.0
      %1589 = vmatprep.subr.mxu0 0.0
      %1590 = vmatpush1.msra.mxu0 0.0
      %1591 = vmatprep.subr.mxu0 0.0
      %1592 = vmatpush1.msra.mxu0 0.0
      %1593 = vmatprep.subr.mxu0 0.0
      %1594 = vmatpush1.msra.mxu0 0.0
      %1595 = vmatprep.subr.mxu0 0.0
      %1596 = vmatpush1.msra.mxu0 0.0
      %1597 = vmatprep.subr.mxu0 0.0
      %1598 = vmatpush1.msra.mxu0 0.0
      %1599 = vmatprep.subr.mxu0 0.0
      %1600 = vmatpush1.msra.mxu0 0.0
      %1601 = vmatprep.subr.mxu0 0.0
      %1602 = vmatpush1.msra.mxu0 0.0
      %1603 = vmatprep.mubr.f32.mxu0 0.0
      %1604 = vmatmul.mubr.f32.gmra.mrb[0].mxu0 %v1475
      %v1605 = vpop.f32.mrb[0].mxu0
      %v1606 = vadd.f32 0.0, %v1605
      %v1607 = vpop.f32.mrb[0].mxu0
      %1608 = vmatprep.mubr.f32.mxu0 0.0
      %1609 = vmatmul.mubr.f32.gmra.mrb[0].mxu0 %v1477
      %v1610 = vpop.f32.mrb[0].mxu0
      %v1611 = vadd.f32 0.0, %v1610
      %v1612 = vpop.f32.mrb[0].mxu0
      %1613 = vmatprep.mubr.f32.mxu0 0.0
      %1614 = vmatmul.mubr.f32.gmra.mrb[0].mxu0 %v1479
      %v1615 = vpop.f32.mrb[0].mxu0
      %v1616 = vadd.f32 0.0, %v1615
      %v1617 = vpop.f32.mrb[0].mxu0
      %1618 = vmatprep.mubr.f32.mxu0 0.0
      %1619 = vmatmul.mubr.f32.gmra.mrb[0].mxu0 %v1481
      %v1620 = vpop.f32.mrb[0].mxu0
      %v1621 = vadd.f32 0.0, %v1620
      %v1622 = vpop.f32.mrb[0].mxu0
      %1623 = vmatprep.mubr.f32.mxu0 0.0
      %1624 = vmatmul.mubr.f32.gmra.mrb[0].mxu0 %v1483
      %v1625 = vpop.f32.mrb[0].mxu0
      %v1626 = vadd.f32 0.0, %v1625
      %v1627 = vpop.f32.mrb[0].mxu0
      %1628 = vmatprep.mubr.f32.mxu0 0.0
      %1629 = vmatmul.mubr.f32.gmra.mrb[0].mxu0 %v1485
      %v1630 = vpop.f32.mrb[0].mxu0
      %v1631 = vadd.f32 0.0, %v1630
      %v1632 = vpop.f32.mrb[0].mxu0
      %1633 = vmatprep.mubr.f32.mxu0 0.0
      %1634 = vmatmul.mubr.f32.gmra.mrb[0].mxu0 %v1487
      %v1635 = vpop.f32.mrb[0].mxu0
      %v1636 = vadd.f32 0.0, %v1635
      %v1637 = vpop.f32.mrb[0].mxu0
      %1638 = vmatprep.mubr.f32.mxu0 0.0
      %1639 = vmatmul.mubr.f32.gmra.mrb[0].mxu0 %v1489
      %v1640 = vpop.f32.mrb[0].mxu0
      %v1641 = vadd.f32 0.0, %v1640
      %v1642 = vpop.f32.mrb[0].mxu0
      %1643 = vmatprep.mubr.f32.mxu0 0.0
      %1644 = vmatmul.mubr.f32.gmra.mrb[0].mxu0 %v1491
      %v1645 = vpop.f32.mrb[0].mxu0
      %v1646 = vadd.f32 0.0, %v1645
      %v1647 = vpop.f32.mrb[0].mxu0
      %1648 = vmatprep.mubr.f32.mxu0 0.0
      %1649 = vmatmul.mubr.f32.gmra.mrb[0].mxu0 %v1493
      %v1650 = vpop.f32.mrb[0].mxu0
      %v1651 = vadd.f32 0.0, %v1650
      %v1652 = vpop.f32.mrb[0].mxu0
      %1653 = vmatprep.mubr.f32.mxu0 0.0
      %1654 = vmatmul.mubr.f32.gmra.mrb[0].mxu0 %v1495
      %v1655 = vpop.f32.mrb[0].mxu0
      %v1656 = vadd.f32 0.0, %v1655
      %v1657 = vpop.f32.mrb[0].mxu0
      %1658 = vmatprep.mubr.f32.mxu0 0.0
      %1659 = vmatmul.mubr.f32.gmra.mrb[0].mxu0 %v1497
      %v1660 = vpop.f32.mrb[0].mxu0
      %v1661 = vadd.f32 0.0, %v1660
      %v1662 = vpop.f32.mrb[0].mxu0
      %1663 = vmatprep.mubr.f32.mxu0 0.0
      %1664 = vmatmul.mubr.f32.gmra.mrb[0].mxu0 %v1499
      %v1665 = vpop.f32.mrb[0].mxu0
      %v1666 = vadd.f32 0.0, %v1665
      %v1667 = vpop.f32.mrb[0].mxu0
      %1668 = vmatprep.mubr.f32.mxu0 0.0
      %1669 = vmatmul.mubr.f32.gmra.mrb[0].mxu0 %v1501
      %v1670 = vpop.f32.mrb[0].mxu0
      %v1671 = vadd.f32 0.0, %v1670
      %v1672 = vpop.f32.mrb[0].mxu0
      %1673 = vmatprep.mubr.f32.mxu0 0.0
      %1674 = vmatmul.mubr.f32.gmra.mrb[0].mxu0 %v1503
      %v1675 = vpop.f32.mrb[0].mxu0
      %v1676 = vadd.f32 0.0, %v1675
      %v1677 = vpop.f32.mrb[0].mxu0
      %1678 = vmatprep.mubr.f32.mxu0 0.0
      %1679 = vmatmul.mubr.f32.gmra.mrb[0].mxu0 %v1505
      %v1680 = vpop.f32.mrb[0].mxu0
      %v1681 = vadd.f32 0.0, %v1680
      %v1682 = vpop.f32.mrb[0].mxu0
      %1683 = vmatprep.mubr.f32.mxu0 0.0
      %1684 = vmatmul.mubr.f32.gmra.mrb[0].mxu0 %v1507
      %v1685 = vpop.f32.mrb[0].mxu0
      %v1686 = vadd.f32 0.0, %v1685
      %v1687 = vpop.f32.mrb[0].mxu0
      %1688 = vmatprep.mubr.f32.mxu0 0.0
      %1689 = vmatmul.mubr.f32.gmra.mrb[0].mxu0 %v1509
      %v1690 = vpop.f32.mrb[0].mxu0
      %v1691 = vadd.f32 0.0, %v1690
      %v1692 = vpop.f32.mrb[0].mxu0
      %1693 = vmatprep.mubr.f32.mxu0 0.0
      %1694 = vmatmul.mubr.f32.gmra.mrb[0].mxu0 %v1511
      %v1695 = vpop.f32.mrb[0].mxu0
      %v1696 = vadd.f32 0.0, %v1695
      %v1697 = vpop.f32.mrb[0].mxu0
      %1698 = vmatprep.mubr.f32.mxu0 0.0
      %1699 = vmatmul.mubr.f32.gmra.mrb[0].mxu0 %v1513
      %v1700 = vpop.f32.mrb[0].mxu0
      %v1701 = vadd.f32 0.0, %v1700
      %v1702 = vpop.f32.mrb[0].mxu0
      %1703 = vmatprep.mubr.f32.mxu0 0.0
      %1704 = vmatmul.mubr.f32.gmra.mrb[0].mxu0 %v1515
      %v1705 = vpop.f32.mrb[0].mxu0
      %v1706 = vadd.f32 0.0, %v1705
      %v1707 = vpop.f32.mrb[0].mxu0
      %1708 = vmatprep.mubr.f32.mxu0 0.0
      %1709 = vmatmul.mubr.f32.gmra.mrb[0].mxu0 %v1517
      %v1710 = vpop.f32.mrb[0].mxu0
      %v1711 = vadd.f32 0.0, %v1710
      %v1712 = vpop.f32.mrb[0].mxu0
      %1713 = vmatprep.mubr.f32.mxu0 0.0
      %1714 = vmatmul.mubr.f32.gmra.mrb[0].mxu0 %v1519
      %v1715 = vpop.f32.mrb[0].mxu0
      %v1716 = vadd.f32 0.0, %v1715
      %v1717 = vpop.f32.mrb[0].mxu0
      %1718 = vmatprep.mubr.f32.mxu0 0.0
      %1719 = vmatmul.mubr.f32.gmra.mrb[0].mxu0 %v1521
      %v1720 = vpop.f32.mrb[0].mxu0
      %v1721 = vadd.f32 0.0, %v1720
      %v1722 = vpop.f32.mrb[0].mxu0
      %1723 = vmatprep.mubr.f32.mxu0 0.0
      %1724 = vmatmul.mubr.f32.gmra.mrb[0].mxu0 %v1523
      %v1725 = vpop.f32.mrb[0].mxu0
      %v1726 = vadd.f32 0.0, %v1725
      %v1727 = vpop.f32.mrb[0].mxu0
      %1728 = vmatprep.mubr.f32.mxu0 0.0
      %1729 = vmatmul.mubr.f32.gmra.mrb[0].mxu0 %v1525
      %v1730 = vpop.f32.mrb[0].mxu0
      %v1731 = vadd.f32 0.0, %v1730
      %v1732 = vpop.f32.mrb[0].mxu0
      %1733 = vmatprep.mubr.f32.mxu0 0.0
      %1734 = vmatmul.mubr.f32.gmra.mrb[0].mxu0 %v1527
      %v1735 = vpop.f32.mrb[0].mxu0
      %v1736 = vadd.f32 0.0, %v1735
      %v1737 = vpop.f32.mrb[0].mxu0
      %1738 = vmatprep.mubr.f32.mxu0 0.0
      %1739 = vmatmul.mubr.f32.gmra.mrb[0].mxu0 %v1529
      %v1740 = vpop.f32.mrb[0].mxu0
      %v1741 = vadd.f32 0.0, %v1740
      %v1742 = vpop.f32.mrb[0].mxu0
      %1743 = vmatprep.mubr.f32.mxu0 0.0
      %1744 = vmatmul.mubr.f32.gmra.mrb[0].mxu0 %v1531
      %v1745 = vpop.f32.mrb[0].mxu0
      %v1746 = vadd.f32 0.0, %v1745
      %v1747 = vpop.f32.mrb[0].mxu0
      %1748 = vmatprep.mubr.f32.mxu0 0.0
      %1749 = vmatmul.mubr.f32.gmra.mrb[0].mxu0 %v1533
      %v1750 = vpop.f32.mrb[0].mxu0
      %v1751 = vadd.f32 0.0, %v1750
      %v1752 = vpop.f32.mrb[0].mxu0
      %1753 = vmatprep.mubr.f32.mxu0 0.0
      %1754 = vmatmul.mubr.f32.gmra.mrb[0].mxu0 %v1535
      %v1755 = vpop.f32.mrb[0].mxu0
      %v1756 = vadd.f32 0.0, %v1755
      %v1757 = vpop.f32.mrb[0].mxu0
      %1758 = vmatprep.mubr.f32.mxu0 0.0
      %1759 = vmatmul.mubr.f32.gmra.mrb[0].mxu0 %v1537
      %v1760 = vpop.f32.mrb[0].mxu0
      %v1761 = vadd.f32 0.0, %v1760
      %v1762 = vpop.f32.mrb[0].mxu0
      %1763 = vdwg.mxu0
      %1764 = vrot.lane.b32.xlu0 %v587, 32
      %v1765 = vpop.permute.xlu0 %1764
      %1766 = vrot.lane.b32.xlu0 %v593, 32
      %v1767 = vpop.permute.xlu0 %1766
      %1768 = vrot.lane.b32.xlu0 %v599, 32
      %v1769 = vpop.permute.xlu0 %1768
      %1770 = vrot.lane.b32.xlu0 %v605, 32
      %v1771 = vpop.permute.xlu0 %1770
      %1772 = vrot.lane.b32.xlu0 %v611, 32
      %v1773 = vpop.permute.xlu0 %1772
      %1774 = vrot.lane.b32.xlu0 %v617, 32
      %v1775 = vpop.permute.xlu0 %1774
      %1776 = vrot.lane.b32.xlu0 %v623, 32
      %v1777 = vpop.permute.xlu0 %1776
      %1778 = vrot.lane.b32.xlu0 %v629, 32
      %v1779 = vpop.permute.xlu0 %1778
      %1780 = vrot.lane.b32.xlu0 %v635, 32
      %v1781 = vpop.permute.xlu0 %1780
      %1782 = vrot.lane.b32.xlu0 %v641, 32
      %v1783 = vpop.permute.xlu0 %1782
      %1784 = vrot.lane.b32.xlu0 %v647, 32
      %v1785 = vpop.permute.xlu0 %1784
      %1786 = vrot.lane.b32.xlu0 %v653, 32
      %v1787 = vpop.permute.xlu0 %1786
      %1788 = vrot.lane.b32.xlu0 %v659, 32
      %v1789 = vpop.permute.xlu0 %1788
      %1790 = vrot.lane.b32.xlu0 %v665, 32
      %v1791 = vpop.permute.xlu0 %1790
      %1792 = vrot.lane.b32.xlu0 %v671, 32
      %v1793 = vpop.permute.xlu0 %1792
      %1794 = vrot.lane.b32.xlu0 %v677, 32
      %v1795 = vpop.permute.xlu0 %1794
      %1796 = vrot.lane.b32.xlu0 %v683, 32
      %v1797 = vpop.permute.xlu0 %1796
      %1798 = vrot.lane.b32.xlu0 %v689, 32
      %v1799 = vpop.permute.xlu0 %1798
      %1800 = vrot.lane.b32.xlu0 %v695, 32
      %v1801 = vpop.permute.xlu0 %1800
      %1802 = vrot.lane.b32.xlu0 %v701, 32
      %v1803 = vpop.permute.xlu0 %1802
      %1804 = vrot.lane.b32.xlu0 %v707, 32
      %v1805 = vpop.permute.xlu0 %1804
      %1806 = vrot.lane.b32.xlu0 %v713, 32
      %v1807 = vpop.permute.xlu0 %1806
      %1808 = vrot.lane.b32.xlu0 %v719, 32
      %v1809 = vpop.permute.xlu0 %1808
      %1810 = vrot.lane.b32.xlu0 %v725, 32
      %v1811 = vpop.permute.xlu0 %1810
      %1812 = vrot.lane.b32.xlu0 %v731, 32
      %v1813 = vpop.permute.xlu0 %1812
      %1814 = vrot.lane.b32.xlu0 %v737, 32
      %v1815 = vpop.permute.xlu0 %1814
      %1816 = vrot.lane.b32.xlu0 %v743, 32
      %v1817 = vpop.permute.xlu0 %1816
      %1818 = vrot.lane.b32.xlu0 %v749, 32
      %v1819 = vpop.permute.xlu0 %1818
      %1820 = vrot.lane.b32.xlu0 %v755, 32
      %v1821 = vpop.permute.xlu0 %1820
      %1822 = vrot.lane.b32.xlu0 %v761, 32
      %v1823 = vpop.permute.xlu0 %1822
      %1824 = vrot.lane.b32.xlu0 %v767, 32
      %v1825 = vpop.permute.xlu0 %1824
      %1826 = vrot.lane.b32.xlu0 %v773, 32
      %v1827 = vpop.permute.xlu0 %1826
      %v1828 = vsel %vm1121, %v1765, 0
      %v1830 = vsel %vm1121, %v1767, 0
      %v1832 = vsel %vm1121, %v1769, 0
      %v1834 = vsel %vm1121, %v1771, 0
      %v1836 = vsel %vm1121, %v1773, 0
      %v1838 = vsel %vm1121, %v1775, 0
      %v1840 = vsel %vm1121, %v1777, 0
      %v1842 = vsel %vm1121, %v1779, 0
      %v1844 = vsel %vm1121, %v1781, 0
      %v1846 = vsel %vm1121, %v1783, 0
      %v1848 = vsel %vm1121, %v1785, 0
      %v1850 = vsel %vm1121, %v1787, 0
      %v1852 = vsel %vm1121, %v1789, 0
      %v1854 = vsel %vm1121, %v1791, 0
      %v1856 = vsel %vm1121, %v1793, 0
      %v1858 = vsel %vm1121, %v1795, 0
      %v1860 = vsel %vm1121, %v1797, 0
      %v1862 = vsel %vm1121, %v1799, 0
      %v1864 = vsel %vm1121, %v1801, 0
      %v1866 = vsel %vm1121, %v1803, 0
      %v1868 = vsel %vm1121, %v1805, 0
      %v1870 = vsel %vm1121, %v1807, 0
      %v1872 = vsel %vm1121, %v1809, 0
      %v1874 = vsel %vm1121, %v1811, 0
      %v1876 = vsel %vm1121, %v1813, 0
      %v1878 = vsel %vm1121, %v1815, 0
      %v1880 = vsel %vm1121, %v1817, 0
      %v1882 = vsel %vm1121, %v1819, 0
      %v1884 = vsel %vm1121, %v1821, 0
      %v1886 = vsel %vm1121, %v1823, 0
      %v1888 = vsel %vm1121, %v1825, 0
      %v1890 = vsel %vm1121, %v1827, 0
      %1892 = vmatprep.subr.mxu0 0.0
      %1893 = vmatpush1.msra.mxu0 %v1020
      %1894 = vmatprep.subr.mxu0 0.0
      %1895 = vmatpush1.msra.mxu0 %v1021
      %1896 = vmatprep.subr.mxu0 0.0
      %1897 = vmatpush1.msra.mxu0 0.0
      %1898 = vmatprep.subr.mxu0 0.0
      %1899 = vmatpush1.msra.mxu0 0.0
      %1900 = vmatprep.subr.mxu0 0.0
      %1901 = vmatpush1.msra.mxu0 0.0
      %1902 = vmatprep.subr.mxu0 0.0
      %1903 = vmatpush1.msra.mxu0 0.0
      %1904 = vmatprep.subr.mxu0 0.0
      %1905 = vmatpush1.msra.mxu0 0.0
      %1906 = vmatprep.subr.mxu0 0.0
      %1907 = vmatpush1.msra.mxu0 0.0
      %1908 = vmatprep.subr.mxu0 0.0
      %1909 = vmatpush1.msra.mxu0 0.0
      %1910 = vmatprep.subr.mxu0 0.0
      %1911 = vmatpush1.msra.mxu0 0.0
      %1912 = vmatprep.subr.mxu0 0.0
      %1913 = vmatpush1.msra.mxu0 0.0
      %1914 = vmatprep.subr.mxu0 0.0
      %1915 = vmatpush1.msra.mxu0 0.0
      %1916 = vmatprep.subr.mxu0 0.0
      %1917 = vmatpush1.msra.mxu0 0.0
      %1918 = vmatprep.subr.mxu0 0.0
      %1919 = vmatpush1.msra.mxu0 0.0
      %1920 = vmatprep.subr.mxu0 0.0
      %1921 = vmatpush1.msra.mxu0 0.0
      %1922 = vmatprep.subr.mxu0 0.0
      %1923 = vmatpush1.msra.mxu0 0.0
      %1924 = vmatprep.subr.mxu0 0.0
      %1925 = vmatpush1.msra.mxu0 0.0
      %1926 = vmatprep.subr.mxu0 0.0
      %1927 = vmatpush1.msra.mxu0 0.0
      %1928 = vmatprep.subr.mxu0 0.0
      %1929 = vmatpush1.msra.mxu0 0.0
      %1930 = vmatprep.subr.mxu0 0.0
      %1931 = vmatpush1.msra.mxu0 0.0
      %1932 = vmatprep.subr.mxu0 0.0
      %1933 = vmatpush1.msra.mxu0 0.0
      %1934 = vmatprep.subr.mxu0 0.0
      %1935 = vmatpush1.msra.mxu0 0.0
      %1936 = vmatprep.subr.mxu0 0.0
      %1937 = vmatpush1.msra.mxu0 0.0
      %1938 = vmatprep.subr.mxu0 0.0
      %1939 = vmatpush1.msra.mxu0 0.0
      %1940 = vmatprep.subr.mxu0 0.0
      %1941 = vmatpush1.msra.mxu0 0.0
      %1942 = vmatprep.subr.mxu0 0.0
      %1943 = vmatpush1.msra.mxu0 0.0
      %1944 = vmatprep.subr.mxu0 0.0
      %1945 = vmatpush1.msra.mxu0 0.0
      %1946 = vmatprep.subr.mxu0 0.0
      %1947 = vmatpush1.msra.mxu0 0.0
      %1948 = vmatprep.subr.mxu0 0.0
      %1949 = vmatpush1.msra.mxu0 0.0
      %1950 = vmatprep.subr.mxu0 0.0
      %1951 = vmatpush1.msra.mxu0 0.0
      %1952 = vmatprep.subr.mxu0 0.0
      %1953 = vmatpush1.msra.mxu0 0.0
      %1954 = vmatprep.subr.mxu0 0.0
      %1955 = vmatpush1.msra.mxu0 0.0
      %1956 = vmatprep.mubr.f32.mxu0 0.0
      %1957 = vmatmul.mubr.f32.gmra.mrb[0].mxu0 %v1828
      %v1958 = vpop.f32.mrb[0].mxu0
      %v1959 = vadd.f32 0.0, %v1958
      %v1960 = vpop.f32.mrb[0].mxu0
      %1961 = vmatprep.mubr.f32.mxu0 0.0
      %1962 = vmatmul.mubr.f32.gmra.mrb[0].mxu0 %v1830
      %v1963 = vpop.f32.mrb[0].mxu0
      %v1964 = vadd.f32 0.0, %v1963
      %v1965 = vpop.f32.mrb[0].mxu0
      %1966 = vmatprep.mubr.f32.mxu0 0.0
      %1967 = vmatmul.mubr.f32.gmra.mrb[0].mxu0 %v1832
      %v1968 = vpop.f32.mrb[0].mxu0
      %v1969 = vadd.f32 0.0, %v1968
      %v1970 = vpop.f32.mrb[0].mxu0
      %1971 = vmatprep.mubr.f32.mxu0 0.0
      %1972 = vmatmul.mubr.f32.gmra.mrb[0].mxu0 %v1834
      %v1973 = vpop.f32.mrb[0].mxu0
      %v1974 = vadd.f32 0.0, %v1973
      %v1975 = vpop.f32.mrb[0].mxu0
      %1976 = vmatprep.mubr.f32.mxu0 0.0
      %1977 = vmatmul.mubr.f32.gmra.mrb[0].mxu0 %v1836
      %v1978 = vpop.f32.mrb[0].mxu0
      %v1979 = vadd.f32 0.0, %v1978
      %v1980 = vpop.f32.mrb[0].mxu0
      %1981 = vmatprep.mubr.f32.mxu0 0.0
      %1982 = vmatmul.mubr.f32.gmra.mrb[0].mxu0 %v1838
      %v1983 = vpop.f32.mrb[0].mxu0
      %v1984 = vadd.f32 0.0, %v1983
      %v1985 = vpop.f32.mrb[0].mxu0
      %1986 = vmatprep.mubr.f32.mxu0 0.0
      %1987 = vmatmul.mubr.f32.gmra.mrb[0].mxu0 %v1840
      %v1988 = vpop.f32.mrb[0].mxu0
      %v1989 = vadd.f32 0.0, %v1988
      %v1990 = vpop.f32.mrb[0].mxu0
      %1991 = vmatprep.mubr.f32.mxu0 0.0
      %1992 = vmatmul.mubr.f32.gmra.mrb[0].mxu0 %v1842
      %v1993 = vpop.f32.mrb[0].mxu0
      %v1994 = vadd.f32 0.0, %v1993
      %v1995 = vpop.f32.mrb[0].mxu0
      %1996 = vmatprep.mubr.f32.mxu0 0.0
      %1997 = vmatmul.mubr.f32.gmra.mrb[0].mxu0 %v1844
      %v1998 = vpop.f32.mrb[0].mxu0
      %v1999 = vadd.f32 0.0, %v1998
      %v2000 = vpop.f32.mrb[0].mxu0
      %2001 = vmatprep.mubr.f32.mxu0 0.0
      %2002 = vmatmul.mubr.f32.gmra.mrb[0].mxu0 %v1846
      %v2003 = vpop.f32.mrb[0].mxu0
      %v2004 = vadd.f32 0.0, %v2003
      %v2005 = vpop.f32.mrb[0].mxu0
      %2006 = vmatprep.mubr.f32.mxu0 0.0
      %2007 = vmatmul.mubr.f32.gmra.mrb[0].mxu0 %v1848
      %v2008 = vpop.f32.mrb[0].mxu0
      %v2009 = vadd.f32 0.0, %v2008
      %v2010 = vpop.f32.mrb[0].mxu0
      %2011 = vmatprep.mubr.f32.mxu0 0.0
      %2012 = vmatmul.mubr.f32.gmra.mrb[0].mxu0 %v1850
      %v2013 = vpop.f32.mrb[0].mxu0
      %v2014 = vadd.f32 0.0, %v2013
      %v2015 = vpop.f32.mrb[0].mxu0
      %2016 = vmatprep.mubr.f32.mxu0 0.0
      %2017 = vmatmul.mubr.f32.gmra.mrb[0].mxu0 %v1852
      %v2018 = vpop.f32.mrb[0].mxu0
      %v2019 = vadd.f32 0.0, %v2018
      %v2020 = vpop.f32.mrb[0].mxu0
      %2021 = vmatprep.mubr.f32.mxu0 0.0
      %2022 = vmatmul.mubr.f32.gmra.mrb[0].mxu0 %v1854
      %v2023 = vpop.f32.mrb[0].mxu0
      %v2024 = vadd.f32 0.0, %v2023
      %v2025 = vpop.f32.mrb[0].mxu0
      %2026 = vmatprep.mubr.f32.mxu0 0.0
      %2027 = vmatmul.mubr.f32.gmra.mrb[0].mxu0 %v1856
      %v2028 = vpop.f32.mrb[0].mxu0
      %v2029 = vadd.f32 0.0, %v2028
      %v2030 = vpop.f32.mrb[0].mxu0
      %2031 = vmatprep.mubr.f32.mxu0 0.0
      %2032 = vmatmul.mubr.f32.gmra.mrb[0].mxu0 %v1858
      %v2033 = vpop.f32.mrb[0].mxu0
      %v2034 = vadd.f32 0.0, %v2033
      %v2035 = vpop.f32.mrb[0].mxu0
      %2036 = vmatprep.mubr.f32.mxu0 0.0
      %2037 = vmatmul.mubr.f32.gmra.mrb[0].mxu0 %v1860
      %v2038 = vpop.f32.mrb[0].mxu0
      %v2039 = vadd.f32 0.0, %v2038
      %v2040 = vpop.f32.mrb[0].mxu0
      %2041 = vmatprep.mubr.f32.mxu0 0.0
      %2042 = vmatmul.mubr.f32.gmra.mrb[0].mxu0 %v1862
      %v2043 = vpop.f32.mrb[0].mxu0
      %v2044 = vadd.f32 0.0, %v2043
      %v2045 = vpop.f32.mrb[0].mxu0
      %2046 = vmatprep.mubr.f32.mxu0 0.0
      %2047 = vmatmul.mubr.f32.gmra.mrb[0].mxu0 %v1864
      %v2048 = vpop.f32.mrb[0].mxu0
      %v2049 = vadd.f32 0.0, %v2048
      %v2050 = vpop.f32.mrb[0].mxu0
      %2051 = vmatprep.mubr.f32.mxu0 0.0
      %2052 = vmatmul.mubr.f32.gmra.mrb[0].mxu0 %v1866
      %v2053 = vpop.f32.mrb[0].mxu0
      %v2054 = vadd.f32 0.0, %v2053
      %v2055 = vpop.f32.mrb[0].mxu0
      %2056 = vmatprep.mubr.f32.mxu0 0.0
      %2057 = vmatmul.mubr.f32.gmra.mrb[0].mxu0 %v1868
      %v2058 = vpop.f32.mrb[0].mxu0
      %v2059 = vadd.f32 0.0, %v2058
      %v2060 = vpop.f32.mrb[0].mxu0
      %2061 = vmatprep.mubr.f32.mxu0 0.0
      %2062 = vmatmul.mubr.f32.gmra.mrb[0].mxu0 %v1870
      %v2063 = vpop.f32.mrb[0].mxu0
      %v2064 = vadd.f32 0.0, %v2063
      %v2065 = vpop.f32.mrb[0].mxu0
      %2066 = vmatprep.mubr.f32.mxu0 0.0
      %2067 = vmatmul.mubr.f32.gmra.mrb[0].mxu0 %v1872
      %v2068 = vpop.f32.mrb[0].mxu0
      %v2069 = vadd.f32 0.0, %v2068
      %v2070 = vpop.f32.mrb[0].mxu0
      %2071 = vmatprep.mubr.f32.mxu0 0.0
      %2072 = vmatmul.mubr.f32.gmra.mrb[0].mxu0 %v1874
      %v2073 = vpop.f32.mrb[0].mxu0
      %v2074 = vadd.f32 0.0, %v2073
      %v2075 = vpop.f32.mrb[0].mxu0
      %2076 = vmatprep.mubr.f32.mxu0 0.0
      %2077 = vmatmul.mubr.f32.gmra.mrb[0].mxu0 %v1876
      %v2078 = vpop.f32.mrb[0].mxu0
      %v2079 = vadd.f32 0.0, %v2078
      %v2080 = vpop.f32.mrb[0].mxu0
      %2081 = vmatprep.mubr.f32.mxu0 0.0
      %2082 = vmatmul.mubr.f32.gmra.mrb[0].mxu0 %v1878
      %v2083 = vpop.f32.mrb[0].mxu0
      %v2084 = vadd.f32 0.0, %v2083
      %v2085 = vpop.f32.mrb[0].mxu0
      %2086 = vmatprep.mubr.f32.mxu0 0.0
      %2087 = vmatmul.mubr.f32.gmra.mrb[0].mxu0 %v1880
      %v2088 = vpop.f32.mrb[0].mxu0
      %v2089 = vadd.f32 0.0, %v2088
      %v2090 = vpop.f32.mrb[0].mxu0
      %2091 = vmatprep.mubr.f32.mxu0 0.0
      %2092 = vmatmul.mubr.f32.gmra.mrb[0].mxu0 %v1882
      %v2093 = vpop.f32.mrb[0].mxu0
      %v2094 = vadd.f32 0.0, %v2093
      %v2095 = vpop.f32.mrb[0].mxu0
      %2096 = vmatprep.mubr.f32.mxu0 0.0
      %2097 = vmatmul.mubr.f32.gmra.mrb[0].mxu0 %v1884
      %v2098 = vpop.f32.mrb[0].mxu0
      %v2099 = vadd.f32 0.0, %v2098
      %v2100 = vpop.f32.mrb[0].mxu0
      %2101 = vmatprep.mubr.f32.mxu0 0.0
      %2102 = vmatmul.mubr.f32.gmra.mrb[0].mxu0 %v1886
      %v2103 = vpop.f32.mrb[0].mxu0
      %v2104 = vadd.f32 0.0, %v2103
      %v2105 = vpop.f32.mrb[0].mxu0
      %2106 = vmatprep.mubr.f32.mxu0 0.0
      %2107 = vmatmul.mubr.f32.gmra.mrb[0].mxu0 %v1888
      %v2108 = vpop.f32.mrb[0].mxu0
      %v2109 = vadd.f32 0.0, %v2108
      %v2110 = vpop.f32.mrb[0].mxu0
      %2111 = vmatprep.mubr.f32.mxu0 0.0
      %2112 = vmatmul.mubr.f32.gmra.mrb[0].mxu0 %v1890
      %v2113 = vpop.f32.mrb[0].mxu0
      %v2114 = vadd.f32 0.0, %v2113
      %v2115 = vpop.f32.mrb[0].mxu0
      %2116 = vdwg.mxu0
      %2117 = vrot.lane.b32.xlu0 %v587, 16
      %v2118 = vpop.permute.xlu0 %2117
      %2119 = vrot.lane.b32.xlu0 %v593, 16
      %v2120 = vpop.permute.xlu0 %2119
      %2121 = vrot.lane.b32.xlu0 %v599, 16
      %v2122 = vpop.permute.xlu0 %2121
      %2123 = vrot.lane.b32.xlu0 %v605, 16
      %v2124 = vpop.permute.xlu0 %2123
      %2125 = vrot.lane.b32.xlu0 %v611, 16
      %v2126 = vpop.permute.xlu0 %2125
      %2127 = vrot.lane.b32.xlu0 %v617, 16
      %v2128 = vpop.permute.xlu0 %2127
      %2129 = vrot.lane.b32.xlu0 %v623, 16
      %v2130 = vpop.permute.xlu0 %2129
      %2131 = vrot.lane.b32.xlu0 %v629, 16
      %v2132 = vpop.permute.xlu0 %2131
      %2133 = vrot.lane.b32.xlu0 %v635, 16
      %v2134 = vpop.permute.xlu0 %2133
      %2135 = vrot.lane.b32.xlu0 %v641, 16
      %v2136 = vpop.permute.xlu0 %2135
      %2137 = vrot.lane.b32.xlu0 %v647, 16
      %v2138 = vpop.permute.xlu0 %2137
      %2139 = vrot.lane.b32.xlu0 %v653, 16
      %v2140 = vpop.permute.xlu0 %2139
      %2141 = vrot.lane.b32.xlu0 %v659, 16
      %v2142 = vpop.permute.xlu0 %2141
      %2143 = vrot.lane.b32.xlu0 %v665, 16
      %v2144 = vpop.permute.xlu0 %2143
      %2145 = vrot.lane.b32.xlu0 %v671, 16
      %v2146 = vpop.permute.xlu0 %2145
      %2147 = vrot.lane.b32.xlu0 %v677, 16
      %v2148 = vpop.permute.xlu0 %2147
      %2149 = vrot.lane.b32.xlu0 %v683, 16
      %v2150 = vpop.permute.xlu0 %2149
      %2151 = vrot.lane.b32.xlu0 %v689, 16
      %v2152 = vpop.permute.xlu0 %2151
      %2153 = vrot.lane.b32.xlu0 %v695, 16
      %v2154 = vpop.permute.xlu0 %2153
      %2155 = vrot.lane.b32.xlu0 %v701, 16
      %v2156 = vpop.permute.xlu0 %2155
      %2157 = vrot.lane.b32.xlu0 %v707, 16
      %v2158 = vpop.permute.xlu0 %2157
      %2159 = vrot.lane.b32.xlu0 %v713, 16
      %v2160 = vpop.permute.xlu0 %2159
      %2161 = vrot.lane.b32.xlu0 %v719, 16
      %v2162 = vpop.permute.xlu0 %2161
      %2163 = vrot.lane.b32.xlu0 %v725, 16
      %v2164 = vpop.permute.xlu0 %2163
      %2165 = vrot.lane.b32.xlu0 %v731, 16
      %v2166 = vpop.permute.xlu0 %2165
      %2167 = vrot.lane.b32.xlu0 %v737, 16
      %v2168 = vpop.permute.xlu0 %2167
      %2169 = vrot.lane.b32.xlu0 %v743, 16
      %v2170 = vpop.permute.xlu0 %2169
      %2171 = vrot.lane.b32.xlu0 %v749, 16
      %v2172 = vpop.permute.xlu0 %2171
      %2173 = vrot.lane.b32.xlu0 %v755, 16
      %v2174 = vpop.permute.xlu0 %2173
      %2175 = vrot.lane.b32.xlu0 %v761, 16
      %v2176 = vpop.permute.xlu0 %2175
      %2177 = vrot.lane.b32.xlu0 %v767, 16
      %v2178 = vpop.permute.xlu0 %2177
      %2179 = vrot.lane.b32.xlu0 %v773, 16
      %v2180 = vpop.permute.xlu0 %2179
      %v2181 = vsel %vm1121, %v2118, 0
      %v2183 = vsel %vm1121, %v2120, 0
      %v2185 = vsel %vm1121, %v2122, 0
      %v2187 = vsel %vm1121, %v2124, 0
      %v2189 = vsel %vm1121, %v2126, 0
      %v2191 = vsel %vm1121, %v2128, 0
      %v2193 = vsel %vm1121, %v2130, 0
      %v2195 = vsel %vm1121, %v2132, 0
      %v2197 = vsel %vm1121, %v2134, 0
      %v2199 = vsel %vm1121, %v2136, 0
      %v2201 = vsel %vm1121, %v2138, 0
      %v2203 = vsel %vm1121, %v2140, 0
      %v2205 = vsel %vm1121, %v2142, 0
      %v2207 = vsel %vm1121, %v2144, 0
      %v2209 = vsel %vm1121, %v2146, 0
      %v2211 = vsel %vm1121, %v2148, 0
      %v2213 = vsel %vm1121, %v2150, 0
      %v2215 = vsel %vm1121, %v2152, 0
      %v2217 = vsel %vm1121, %v2154, 0
      %v2219 = vsel %vm1121, %v2156, 0
      %v2221 = vsel %vm1121, %v2158, 0
      %v2223 = vsel %vm1121, %v2160, 0
      %v2225 = vsel %vm1121, %v2162, 0
      %v2227 = vsel %vm1121, %v2164, 0
      %v2229 = vsel %vm1121, %v2166, 0
      %v2231 = vsel %vm1121, %v2168, 0
      %v2233 = vsel %vm1121, %v2170, 0
      %v2235 = vsel %vm1121, %v2172, 0
      %v2237 = vsel %vm1121, %v2174, 0
      %v2239 = vsel %vm1121, %v2176, 0
      %v2241 = vsel %vm1121, %v2178, 0
      %v2243 = vsel %vm1121, %v2180, 0
      %2245 = vmatprep.subr.mxu0 0.0
      %2246 = vmatpush1.msra.mxu0 %v1022
      %2247 = vmatprep.subr.mxu0 0.0
      %2248 = vmatpush1.msra.mxu0 %v1023
      %2249 = vmatprep.subr.mxu0 0.0
      %2250 = vmatpush1.msra.mxu0 0.0
      %2251 = vmatprep.subr.mxu0 0.0
      %2252 = vmatpush1.msra.mxu0 0.0
      %2253 = vmatprep.subr.mxu0 0.0
      %2254 = vmatpush1.msra.mxu0 0.0
      %2255 = vmatprep.subr.mxu0 0.0
      %2256 = vmatpush1.msra.mxu0 0.0
      %2257 = vmatprep.subr.mxu0 0.0
      %2258 = vmatpush1.msra.mxu0 0.0
      %2259 = vmatprep.subr.mxu0 0.0
      %2260 = vmatpush1.msra.mxu0 0.0
      %2261 = vmatprep.subr.mxu0 0.0
      %2262 = vmatpush1.msra.mxu0 0.0
      %2263 = vmatprep.subr.mxu0 0.0
      %2264 = vmatpush1.msra.mxu0 0.0
      %2265 = vmatprep.subr.mxu0 0.0
      %2266 = vmatpush1.msra.mxu0 0.0
      %2267 = vmatprep.subr.mxu0 0.0
      %2268 = vmatpush1.msra.mxu0 0.0
      %2269 = vmatprep.subr.mxu0 0.0
      %2270 = vmatpush1.msra.mxu0 0.0
      %2271 = vmatprep.subr.mxu0 0.0
      %2272 = vmatpush1.msra.mxu0 0.0
      %2273 = vmatprep.subr.mxu0 0.0
      %2274 = vmatpush1.msra.mxu0 0.0
      %2275 = vmatprep.subr.mxu0 0.0
      %2276 = vmatpush1.msra.mxu0 0.0
      %2277 = vmatprep.subr.mxu0 0.0
      %2278 = vmatpush1.msra.mxu0 0.0
      %2279 = vmatprep.subr.mxu0 0.0
      %2280 = vmatpush1.msra.mxu0 0.0
      %2281 = vmatprep.subr.mxu0 0.0
      %2282 = vmatpush1.msra.mxu0 0.0
      %2283 = vmatprep.subr.mxu0 0.0
      %2284 = vmatpush1.msra.mxu0 0.0
      %2285 = vmatprep.subr.mxu0 0.0
      %2286 = vmatpush1.msra.mxu0 0.0
      %2287 = vmatprep.subr.mxu0 0.0
      %2288 = vmatpush1.msra.mxu0 0.0
      %2289 = vmatprep.subr.mxu0 0.0
      %2290 = vmatpush1.msra.mxu0 0.0
      %2291 = vmatprep.subr.mxu0 0.0
      %2292 = vmatpush1.msra.mxu0 0.0
      %2293 = vmatprep.subr.mxu0 0.0
      %2294 = vmatpush1.msra.mxu0 0.0
      %2295 = vmatprep.subr.mxu0 0.0
      %2296 = vmatpush1.msra.mxu0 0.0
      %2297 = vmatprep.subr.mxu0 0.0
      %2298 = vmatpush1.msra.mxu0 0.0
      %2299 = vmatprep.subr.mxu0 0.0
      %2300 = vmatpush1.msra.mxu0 0.0
      %2301 = vmatprep.subr.mxu0 0.0
      %2302 = vmatpush1.msra.mxu0 0.0
      %2303 = vmatprep.subr.mxu0 0.0
      %2304 = vmatpush1.msra.mxu0 0.0
      %2305 = vmatprep.subr.mxu0 0.0
      %2306 = vmatpush1.msra.mxu0 0.0
      %2307 = vmatprep.subr.mxu0 0.0
      %2308 = vmatpush1.msra.mxu0 0.0
      %2309 = vmatprep.mubr.f32.mxu0 0.0
      %2310 = vmatmul.mubr.f32.gmra.mrb[0].mxu0 %v2181
      %v2311 = vpop.f32.mrb[0].mxu0
      %v2312 = vadd.f32 0.0, %v2311
      %v2313 = vpop.f32.mrb[0].mxu0
      %2314 = vmatprep.mubr.f32.mxu0 0.0
      %2315 = vmatmul.mubr.f32.gmra.mrb[0].mxu0 %v2183
      %v2316 = vpop.f32.mrb[0].mxu0
      %v2317 = vadd.f32 0.0, %v2316
      %v2318 = vpop.f32.mrb[0].mxu0
      %2319 = vmatprep.mubr.f32.mxu0 0.0
      %2320 = vmatmul.mubr.f32.gmra.mrb[0].mxu0 %v2185
      %v2321 = vpop.f32.mrb[0].mxu0
      %v2322 = vadd.f32 0.0, %v2321
      %v2323 = vpop.f32.mrb[0].mxu0
      %2324 = vmatprep.mubr.f32.mxu0 0.0
      %2325 = vmatmul.mubr.f32.gmra.mrb[0].mxu0 %v2187
      %v2326 = vpop.f32.mrb[0].mxu0
      %v2327 = vadd.f32 0.0, %v2326
      %v2328 = vpop.f32.mrb[0].mxu0
      %2329 = vmatprep.mubr.f32.mxu0 0.0
      %2330 = vmatmul.mubr.f32.gmra.mrb[0].mxu0 %v2189
      %v2331 = vpop.f32.mrb[0].mxu0
      %v2332 = vadd.f32 0.0, %v2331
      %v2333 = vpop.f32.mrb[0].mxu0
      %2334 = vmatprep.mubr.f32.mxu0 0.0
      %2335 = vmatmul.mubr.f32.gmra.mrb[0].mxu0 %v2191
      %v2336 = vpop.f32.mrb[0].mxu0
      %v2337 = vadd.f32 0.0, %v2336
      %v2338 = vpop.f32.mrb[0].mxu0
      %2339 = vmatprep.mubr.f32.mxu0 0.0
      %2340 = vmatmul.mubr.f32.gmra.mrb[0].mxu0 %v2193
      %v2341 = vpop.f32.mrb[0].mxu0
      %v2342 = vadd.f32 0.0, %v2341
      %v2343 = vpop.f32.mrb[0].mxu0
      %2344 = vmatprep.mubr.f32.mxu0 0.0
      %2345 = vmatmul.mubr.f32.gmra.mrb[0].mxu0 %v2195
      %v2346 = vpop.f32.mrb[0].mxu0
      %v2347 = vadd.f32 0.0, %v2346
      %v2348 = vpop.f32.mrb[0].mxu0
      %2349 = vmatprep.mubr.f32.mxu0 0.0
      %2350 = vmatmul.mubr.f32.gmra.mrb[0].mxu0 %v2197
      %v2351 = vpop.f32.mrb[0].mxu0
      %v2352 = vadd.f32 0.0, %v2351
      %v2353 = vpop.f32.mrb[0].mxu0
      %2354 = vmatprep.mubr.f32.mxu0 0.0
      %2355 = vmatmul.mubr.f32.gmra.mrb[0].mxu0 %v2199
      %v2356 = vpop.f32.mrb[0].mxu0
      %v2357 = vadd.f32 0.0, %v2356
      %v2358 = vpop.f32.mrb[0].mxu0
      %2359 = vmatprep.mubr.f32.mxu0 0.0
      %2360 = vmatmul.mubr.f32.gmra.mrb[0].mxu0 %v2201
      %v2361 = vpop.f32.mrb[0].mxu0
      %v2362 = vadd.f32 0.0, %v2361
      %v2363 = vpop.f32.mrb[0].mxu0
      %2364 = vmatprep.mubr.f32.mxu0 0.0
      %2365 = vmatmul.mubr.f32.gmra.mrb[0].mxu0 %v2203
      %v2366 = vpop.f32.mrb[0].mxu0
      %v2367 = vadd.f32 0.0, %v2366
      %v2368 = vpop.f32.mrb[0].mxu0
      %2369 = vmatprep.mubr.f32.mxu0 0.0
      %2370 = vmatmul.mubr.f32.gmra.mrb[0].mxu0 %v2205
      %v2371 = vpop.f32.mrb[0].mxu0
      %v2372 = vadd.f32 0.0, %v2371
      %v2373 = vpop.f32.mrb[0].mxu0
      %2374 = vmatprep.mubr.f32.mxu0 0.0
      %2375 = vmatmul.mubr.f32.gmra.mrb[0].mxu0 %v2207
      %v2376 = vpop.f32.mrb[0].mxu0
      %v2377 = vadd.f32 0.0, %v2376
      %v2378 = vpop.f32.mrb[0].mxu0
      %2379 = vmatprep.mubr.f32.mxu0 0.0
      %2380 = vmatmul.mubr.f32.gmra.mrb[0].mxu0 %v2209
      %v2381 = vpop.f32.mrb[0].mxu0
      %v2382 = vadd.f32 0.0, %v2381
      %v2383 = vpop.f32.mrb[0].mxu0
      %2384 = vmatprep.mubr.f32.mxu0 0.0
      %2385 = vmatmul.mubr.f32.gmra.mrb[0].mxu0 %v2211
      %v2386 = vpop.f32.mrb[0].mxu0
      %v2387 = vadd.f32 0.0, %v2386
      %v2388 = vpop.f32.mrb[0].mxu0
      %2389 = vmatprep.mubr.f32.mxu0 0.0
      %2390 = vmatmul.mubr.f32.gmra.mrb[0].mxu0 %v2213
      %v2391 = vpop.f32.mrb[0].mxu0
      %v2392 = vadd.f32 0.0, %v2391
      %v2393 = vpop.f32.mrb[0].mxu0
      %2394 = vmatprep.mubr.f32.mxu0 0.0
      %2395 = vmatmul.mubr.f32.gmra.mrb[0].mxu0 %v2215
      %v2396 = vpop.f32.mrb[0].mxu0
      %v2397 = vadd.f32 0.0, %v2396
      %v2398 = vpop.f32.mrb[0].mxu0
      %2399 = vmatprep.mubr.f32.mxu0 0.0
      %2400 = vmatmul.mubr.f32.gmra.mrb[0].mxu0 %v2217
      %v2401 = vpop.f32.mrb[0].mxu0
      %v2402 = vadd.f32 0.0, %v2401
      %v2403 = vpop.f32.mrb[0].mxu0
      %2404 = vmatprep.mubr.f32.mxu0 0.0
      %2405 = vmatmul.mubr.f32.gmra.mrb[0].mxu0 %v2219
      %v2406 = vpop.f32.mrb[0].mxu0
      %v2407 = vadd.f32 0.0, %v2406
      %v2408 = vpop.f32.mrb[0].mxu0
      %2409 = vmatprep.mubr.f32.mxu0 0.0
      %2410 = vmatmul.mubr.f32.gmra.mrb[0].mxu0 %v2221
      %v2411 = vpop.f32.mrb[0].mxu0
      %v2412 = vadd.f32 0.0, %v2411
      %v2413 = vpop.f32.mrb[0].mxu0
      %2414 = vmatprep.mubr.f32.mxu0 0.0
      %2415 = vmatmul.mubr.f32.gmra.mrb[0].mxu0 %v2223
      %v2416 = vpop.f32.mrb[0].mxu0
      %v2417 = vadd.f32 0.0, %v2416
      %v2418 = vpop.f32.mrb[0].mxu0
      %2419 = vmatprep.mubr.f32.mxu0 0.0
      %2420 = vmatmul.mubr.f32.gmra.mrb[0].mxu0 %v2225
      %v2421 = vpop.f32.mrb[0].mxu0
      %v2422 = vadd.f32 0.0, %v2421
      %v2423 = vpop.f32.mrb[0].mxu0
      %2424 = vmatprep.mubr.f32.mxu0 0.0
      %2425 = vmatmul.mubr.f32.gmra.mrb[0].mxu0 %v2227
      %v2426 = vpop.f32.mrb[0].mxu0
      %v2427 = vadd.f32 0.0, %v2426
      %v2428 = vpop.f32.mrb[0].mxu0
      %2429 = vmatprep.mubr.f32.mxu0 0.0
      %2430 = vmatmul.mubr.f32.gmra.mrb[0].mxu0 %v2229
      %v2431 = vpop.f32.mrb[0].mxu0
      %v2432 = vadd.f32 0.0, %v2431
      %v2433 = vpop.f32.mrb[0].mxu0
      %2434 = vmatprep.mubr.f32.mxu0 0.0
      %2435 = vmatmul.mubr.f32.gmra.mrb[0].mxu0 %v2231
      %v2436 = vpop.f32.mrb[0].mxu0
      %v2437 = vadd.f32 0.0, %v2436
      %v2438 = vpop.f32.mrb[0].mxu0
      %2439 = vmatprep.mubr.f32.mxu0 0.0
      %2440 = vmatmul.mubr.f32.gmra.mrb[0].mxu0 %v2233
      %v2441 = vpop.f32.mrb[0].mxu0
      %v2442 = vadd.f32 0.0, %v2441
      %v2443 = vpop.f32.mrb[0].mxu0
      %2444 = vmatprep.mubr.f32.mxu0 0.0
      %2445 = vmatmul.mubr.f32.gmra.mrb[0].mxu0 %v2235
      %v2446 = vpop.f32.mrb[0].mxu0
      %v2447 = vadd.f32 0.0, %v2446
      %v2448 = vpop.f32.mrb[0].mxu0
      %2449 = vmatprep.mubr.f32.mxu0 0.0
      %2450 = vmatmul.mubr.f32.gmra.mrb[0].mxu0 %v2237
      %v2451 = vpop.f32.mrb[0].mxu0
      %v2452 = vadd.f32 0.0, %v2451
      %v2453 = vpop.f32.mrb[0].mxu0
      %2454 = vmatprep.mubr.f32.mxu0 0.0
      %2455 = vmatmul.mubr.f32.gmra.mrb[0].mxu0 %v2239
      %v2456 = vpop.f32.mrb[0].mxu0
      %v2457 = vadd.f32 0.0, %v2456
      %v2458 = vpop.f32.mrb[0].mxu0
      %2459 = vmatprep.mubr.f32.mxu0 0.0
      %2460 = vmatmul.mubr.f32.gmra.mrb[0].mxu0 %v2241
      %v2461 = vpop.f32.mrb[0].mxu0
      %v2462 = vadd.f32 0.0, %v2461
      %v2463 = vpop.f32.mrb[0].mxu0
      %2464 = vmatprep.mubr.f32.mxu0 0.0
      %2465 = vmatmul.mubr.f32.gmra.mrb[0].mxu0 %v2243
      %v2466 = vpop.f32.mrb[0].mxu0
      %v2467 = vadd.f32 0.0, %v2466
      %v2468 = vpop.f32.mrb[0].mxu0
      %2469 = vdwg.mxu0
      %v2471 = vsel %vm1121, %v589, 0
      %v2474 = vsel %vm1121, %v595, 0
      %v2477 = vsel %vm1121, %v601, 0
      %v2480 = vsel %vm1121, %v607, 0
      %v2483 = vsel %vm1121, %v613, 0
      %v2486 = vsel %vm1121, %v619, 0
      %v2489 = vsel %vm1121, %v625, 0
      %v2492 = vsel %vm1121, %v631, 0
      %v2495 = vsel %vm1121, %v637, 0
      %v2498 = vsel %vm1121, %v643, 0
      %v2501 = vsel %vm1121, %v649, 0
      %v2504 = vsel %vm1121, %v655, 0
      %v2507 = vsel %vm1121, %v661, 0
      %v2510 = vsel %vm1121, %v667, 0
      %v2513 = vsel %vm1121, %v673, 0
      %v2516 = vsel %vm1121, %v679, 0
      %v2519 = vsel %vm1121, %v685, 0
      %v2522 = vsel %vm1121, %v691, 0
      %v2525 = vsel %vm1121, %v697, 0
      %v2528 = vsel %vm1121, %v703, 0
      %v2531 = vsel %vm1121, %v709, 0
      %v2534 = vsel %vm1121, %v715, 0
      %v2537 = vsel %vm1121, %v721, 0
      %v2540 = vsel %vm1121, %v727, 0
      %v2543 = vsel %vm1121, %v733, 0
      %v2546 = vsel %vm1121, %v739, 0
      %v2549 = vsel %vm1121, %v745, 0
      %v2552 = vsel %vm1121, %v751, 0
      %v2555 = vsel %vm1121, %v757, 0
      %v2558 = vsel %vm1121, %v763, 0
      %v2561 = vsel %vm1121, %v769, 0
      %v2564 = vsel %vm1121, %v775, 0
      %2566 = vmatprep.subr.mxu0 0.0
      %2567 = vmatpush1.msra.mxu0 %v1016
      %2568 = vmatprep.subr.mxu0 0.0
      %2569 = vmatpush1.msra.mxu0 %v1017
      %2570 = vmatprep.subr.mxu0 0.0
      %2571 = vmatpush1.msra.mxu0 0.0
      %2572 = vmatprep.subr.mxu0 0.0
      %2573 = vmatpush1.msra.mxu0 0.0
      %2574 = vmatprep.subr.mxu0 0.0
      %2575 = vmatpush1.msra.mxu0 0.0
      %2576 = vmatprep.subr.mxu0 0.0
      %2577 = vmatpush1.msra.mxu0 0.0
      %2578 = vmatprep.subr.mxu0 0.0
      %2579 = vmatpush1.msra.mxu0 0.0
      %2580 = vmatprep.subr.mxu0 0.0
      %2581 = vmatpush1.msra.mxu0 0.0
      %2582 = vmatprep.subr.mxu0 0.0
      %2583 = vmatpush1.msra.mxu0 0.0
      %2584 = vmatprep.subr.mxu0 0.0
      %2585 = vmatpush1.msra.mxu0 0.0
      %2586 = vmatprep.subr.mxu0 0.0
      %2587 = vmatpush1.msra.mxu0 0.0
      %2588 = vmatprep.subr.mxu0 0.0
      %2589 = vmatpush1.msra.mxu0 0.0
      %2590 = vmatprep.subr.mxu0 0.0
      %2591 = vmatpush1.msra.mxu0 0.0
      %2592 = vmatprep.subr.mxu0 0.0
      %2593 = vmatpush1.msra.mxu0 0.0
      %2594 = vmatprep.subr.mxu0 0.0
      %2595 = vmatpush1.msra.mxu0 0.0
      %2596 = vmatprep.subr.mxu0 0.0
      %2597 = vmatpush1.msra.mxu0 0.0
      %2598 = vmatprep.subr.mxu0 0.0
      %2599 = vmatpush1.msra.mxu0 0.0
      %2600 = vmatprep.subr.mxu0 0.0
      %2601 = vmatpush1.msra.mxu0 0.0
      %2602 = vmatprep.subr.mxu0 0.0
      %2603 = vmatpush1.msra.mxu0 0.0
      %2604 = vmatprep.subr.mxu0 0.0
      %2605 = vmatpush1.msra.mxu0 0.0
      %2606 = vmatprep.subr.mxu0 0.0
      %2607 = vmatpush1.msra.mxu0 0.0
      %2608 = vmatprep.subr.mxu0 0.0
      %2609 = vmatpush1.msra.mxu0 0.0
      %2610 = vmatprep.subr.mxu0 0.0
      %2611 = vmatpush1.msra.mxu0 0.0
      %2612 = vmatprep.subr.mxu0 0.0
      %2613 = vmatpush1.msra.mxu0 0.0
      %2614 = vmatprep.subr.mxu0 0.0
      %2615 = vmatpush1.msra.mxu0 0.0
      %2616 = vmatprep.subr.mxu0 0.0
      %2617 = vmatpush1.msra.mxu0 0.0
      %2618 = vmatprep.subr.mxu0 0.0
      %2619 = vmatpush1.msra.mxu0 0.0
      %2620 = vmatprep.subr.mxu0 0.0
      %2621 = vmatpush1.msra.mxu0 0.0
      %2622 = vmatprep.subr.mxu0 0.0
      %2623 = vmatpush1.msra.mxu0 0.0
      %2624 = vmatprep.subr.mxu0 0.0
      %2625 = vmatpush1.msra.mxu0 0.0
      %2626 = vmatprep.subr.mxu0 0.0
      %2627 = vmatpush1.msra.mxu0 0.0
      %2628 = vmatprep.subr.mxu0 0.0
      %2629 = vmatpush1.msra.mxu0 0.0
      %2630 = vmatprep.mubr.f32.mxu0 0.0
      %2631 = vmatmul.mubr.f32.gmra.mrb[0].mxu0 %v2471
      %v2632 = vpop.f32.mrb[0].mxu0
      %v2633 = vadd.f32 0.0, %v2632
      %v2634 = vpop.f32.mrb[0].mxu0
      %2635 = vmatprep.mubr.f32.mxu0 0.0
      %2636 = vmatmul.mubr.f32.gmra.mrb[0].mxu0 %v2474
      %v2637 = vpop.f32.mrb[0].mxu0
      %v2638 = vadd.f32 0.0, %v2637
      %v2639 = vpop.f32.mrb[0].mxu0
      %2640 = vmatprep.mubr.f32.mxu0 0.0
      %2641 = vmatmul.mubr.f32.gmra.mrb[0].mxu0 %v2477
      %v2642 = vpop.f32.mrb[0].mxu0
      %v2643 = vadd.f32 0.0, %v2642
      %v2644 = vpop.f32.mrb[0].mxu0
      %2645 = vmatprep.mubr.f32.mxu0 0.0
      %2646 = vmatmul.mubr.f32.gmra.mrb[0].mxu0 %v2480
      %v2647 = vpop.f32.mrb[0].mxu0
      %v2648 = vadd.f32 0.0, %v2647
      %v2649 = vpop.f32.mrb[0].mxu0
      %2650 = vmatprep.mubr.f32.mxu0 0.0
      %2651 = vmatmul.mubr.f32.gmra.mrb[0].mxu0 %v2483
      %v2652 = vpop.f32.mrb[0].mxu0
      %v2653 = vadd.f32 0.0, %v2652
      %v2654 = vpop.f32.mrb[0].mxu0
      %2655 = vmatprep.mubr.f32.mxu0 0.0
      %2656 = vmatmul.mubr.f32.gmra.mrb[0].mxu0 %v2486
      %v2657 = vpop.f32.mrb[0].mxu0
      %v2658 = vadd.f32 0.0, %v2657
      %v2659 = vpop.f32.mrb[0].mxu0
      %2660 = vmatprep.mubr.f32.mxu0 0.0
      %2661 = vmatmul.mubr.f32.gmra.mrb[0].mxu0 %v2489
      %v2662 = vpop.f32.mrb[0].mxu0
      %v2663 = vadd.f32 0.0, %v2662
      %v2664 = vpop.f32.mrb[0].mxu0
      %2665 = vmatprep.mubr.f32.mxu0 0.0
      %2666 = vmatmul.mubr.f32.gmra.mrb[0].mxu0 %v2492
      %v2667 = vpop.f32.mrb[0].mxu0
      %v2668 = vadd.f32 0.0, %v2667
      %v2669 = vpop.f32.mrb[0].mxu0
      %2670 = vmatprep.mubr.f32.mxu0 0.0
      %2671 = vmatmul.mubr.f32.gmra.mrb[0].mxu0 %v2495
      %v2672 = vpop.f32.mrb[0].mxu0
      %v2673 = vadd.f32 0.0, %v2672
      %v2674 = vpop.f32.mrb[0].mxu0
      %2675 = vmatprep.mubr.f32.mxu0 0.0
      %2676 = vmatmul.mubr.f32.gmra.mrb[0].mxu0 %v2498
      %v2677 = vpop.f32.mrb[0].mxu0
      %v2678 = vadd.f32 0.0, %v2677
      %v2679 = vpop.f32.mrb[0].mxu0
      %2680 = vmatprep.mubr.f32.mxu0 0.0
      %2681 = vmatmul.mubr.f32.gmra.mrb[0].mxu0 %v2501
      %v2682 = vpop.f32.mrb[0].mxu0
      %v2683 = vadd.f32 0.0, %v2682
      %v2684 = vpop.f32.mrb[0].mxu0
      %2685 = vmatprep.mubr.f32.mxu0 0.0
      %2686 = vmatmul.mubr.f32.gmra.mrb[0].mxu0 %v2504
      %v2687 = vpop.f32.mrb[0].mxu0
      %v2688 = vadd.f32 0.0, %v2687
      %v2689 = vpop.f32.mrb[0].mxu0
      %2690 = vmatprep.mubr.f32.mxu0 0.0
      %2691 = vmatmul.mubr.f32.gmra.mrb[0].mxu0 %v2507
      %v2692 = vpop.f32.mrb[0].mxu0
      %v2693 = vadd.f32 0.0, %v2692
      %v2694 = vpop.f32.mrb[0].mxu0
      %2695 = vmatprep.mubr.f32.mxu0 0.0
      %2696 = vmatmul.mubr.f32.gmra.mrb[0].mxu0 %v2510
      %v2697 = vpop.f32.mrb[0].mxu0
      %v2698 = vadd.f32 0.0, %v2697
      %v2699 = vpop.f32.mrb[0].mxu0
      %2700 = vmatprep.mubr.f32.mxu0 0.0
      %2701 = vmatmul.mubr.f32.gmra.mrb[0].mxu0 %v2513
      %v2702 = vpop.f32.mrb[0].mxu0
      %v2703 = vadd.f32 0.0, %v2702
      %v2704 = vpop.f32.mrb[0].mxu0
      %2705 = vmatprep.mubr.f32.mxu0 0.0
      %2706 = vmatmul.mubr.f32.gmra.mrb[0].mxu0 %v2516
      %v2707 = vpop.f32.mrb[0].mxu0
      %v2708 = vadd.f32 0.0, %v2707
      %v2709 = vpop.f32.mrb[0].mxu0
      %2710 = vmatprep.mubr.f32.mxu0 0.0
      %2711 = vmatmul.mubr.f32.gmra.mrb[0].mxu0 %v2519
      %v2712 = vpop.f32.mrb[0].mxu0
      %v2713 = vadd.f32 0.0, %v2712
      %v2714 = vpop.f32.mrb[0].mxu0
      %2715 = vmatprep.mubr.f32.mxu0 0.0
      %2716 = vmatmul.mubr.f32.gmra.mrb[0].mxu0 %v2522
      %v2717 = vpop.f32.mrb[0].mxu0
      %v2718 = vadd.f32 0.0, %v2717
      %v2719 = vpop.f32.mrb[0].mxu0
      %2720 = vmatprep.mubr.f32.mxu0 0.0
      %2721 = vmatmul.mubr.f32.gmra.mrb[0].mxu0 %v2525
      %v2722 = vpop.f32.mrb[0].mxu0
      %v2723 = vadd.f32 0.0, %v2722
      %v2724 = vpop.f32.mrb[0].mxu0
      %2725 = vmatprep.mubr.f32.mxu0 0.0
      %2726 = vmatmul.mubr.f32.gmra.mrb[0].mxu0 %v2528
      %v2727 = vpop.f32.mrb[0].mxu0
      %v2728 = vadd.f32 0.0, %v2727
      %v2729 = vpop.f32.mrb[0].mxu0
      %2730 = vmatprep.mubr.f32.mxu0 0.0
      %2731 = vmatmul.mubr.f32.gmra.mrb[0].mxu0 %v2531
      %v2732 = vpop.f32.mrb[0].mxu0
      %v2733 = vadd.f32 0.0, %v2732
      %v2734 = vpop.f32.mrb[0].mxu0
      %2735 = vmatprep.mubr.f32.mxu0 0.0
      %2736 = vmatmul.mubr.f32.gmra.mrb[0].mxu0 %v2534
      %v2737 = vpop.f32.mrb[0].mxu0
      %v2738 = vadd.f32 0.0, %v2737
      %v2739 = vpop.f32.mrb[0].mxu0
      %2740 = vmatprep.mubr.f32.mxu0 0.0
      %2741 = vmatmul.mubr.f32.gmra.mrb[0].mxu0 %v2537
      %v2742 = vpop.f32.mrb[0].mxu0
      %v2743 = vadd.f32 0.0, %v2742
      %v2744 = vpop.f32.mrb[0].mxu0
      %2745 = vmatprep.mubr.f32.mxu0 0.0
      %2746 = vmatmul.mubr.f32.gmra.mrb[0].mxu0 %v2540
      %v2747 = vpop.f32.mrb[0].mxu0
      %v2748 = vadd.f32 0.0, %v2747
      %v2749 = vpop.f32.mrb[0].mxu0
      %2750 = vmatprep.mubr.f32.mxu0 0.0
      %2751 = vmatmul.mubr.f32.gmra.mrb[0].mxu0 %v2543
      %v2752 = vpop.f32.mrb[0].mxu0
      %v2753 = vadd.f32 0.0, %v2752
      %v2754 = vpop.f32.mrb[0].mxu0
      %2755 = vmatprep.mubr.f32.mxu0 0.0
      %2756 = vmatmul.mubr.f32.gmra.mrb[0].mxu0 %v2546
      %v2757 = vpop.f32.mrb[0].mxu0
      %v2758 = vadd.f32 0.0, %v2757
      %v2759 = vpop.f32.mrb[0].mxu0
      %2760 = vmatprep.mubr.f32.mxu0 0.0
      %2761 = vmatmul.mubr.f32.gmra.mrb[0].mxu0 %v2549
      %v2762 = vpop.f32.mrb[0].mxu0
      %v2763 = vadd.f32 0.0, %v2762
      %v2764 = vpop.f32.mrb[0].mxu0
      %2765 = vmatprep.mubr.f32.mxu0 0.0
      %2766 = vmatmul.mubr.f32.gmra.mrb[0].mxu0 %v2552
      %v2767 = vpop.f32.mrb[0].mxu0
      %v2768 = vadd.f32 0.0, %v2767
      %v2769 = vpop.f32.mrb[0].mxu0
      %2770 = vmatprep.mubr.f32.mxu0 0.0
      %2771 = vmatmul.mubr.f32.gmra.mrb[0].mxu0 %v2555
      %v2772 = vpop.f32.mrb[0].mxu0
      %v2773 = vadd.f32 0.0, %v2772
      %v2774 = vpop.f32.mrb[0].mxu0
      %2775 = vmatprep.mubr.f32.mxu0 0.0
      %2776 = vmatmul.mubr.f32.gmra.mrb[0].mxu0 %v2558
      %v2777 = vpop.f32.mrb[0].mxu0
      %v2778 = vadd.f32 0.0, %v2777
      %v2779 = vpop.f32.mrb[0].mxu0
      %2780 = vmatprep.mubr.f32.mxu0 0.0
      %2781 = vmatmul.mubr.f32.gmra.mrb[0].mxu0 %v2561
      %v2782 = vpop.f32.mrb[0].mxu0
      %v2783 = vadd.f32 0.0, %v2782
      %v2784 = vpop.f32.mrb[0].mxu0
      %2785 = vmatprep.mubr.f32.mxu0 0.0
      %2786 = vmatmul.mubr.f32.gmra.mrb[0].mxu0 %v2564
      %v2787 = vpop.f32.mrb[0].mxu0
      %v2788 = vadd.f32 0.0, %v2787
      %v2789 = vpop.f32.mrb[0].mxu0
      %2790 = vdwg.mxu0
      %2791 = vrot.lane.b32.xlu0 %v589, 112
      %v2792 = vpop.permute.xlu0 %2791
      %2793 = vrot.lane.b32.xlu0 %v595, 112
      %v2794 = vpop.permute.xlu0 %2793
      %2795 = vrot.lane.b32.xlu0 %v601, 112
      %v2796 = vpop.permute.xlu0 %2795
      %2797 = vrot.lane.b32.xlu0 %v607, 112
      %v2798 = vpop.permute.xlu0 %2797
      %2799 = vrot.lane.b32.xlu0 %v613, 112
      %v2800 = vpop.permute.xlu0 %2799
      %2801 = vrot.lane.b32.xlu0 %v619, 112
      %v2802 = vpop.permute.xlu0 %2801
      %2803 = vrot.lane.b32.xlu0 %v625, 112
      %v2804 = vpop.permute.xlu0 %2803
      %2805 = vrot.lane.b32.xlu0 %v631, 112
      %v2806 = vpop.permute.xlu0 %2805
      %2807 = vrot.lane.b32.xlu0 %v637, 112
      %v2808 = vpop.permute.xlu0 %2807
      %2809 = vrot.lane.b32.xlu0 %v643, 112
      %v2810 = vpop.permute.xlu0 %2809
      %2811 = vrot.lane.b32.xlu0 %v649, 112
      %v2812 = vpop.permute.xlu0 %2811
      %2813 = vrot.lane.b32.xlu0 %v655, 112
      %v2814 = vpop.permute.xlu0 %2813
      %2815 = vrot.lane.b32.xlu0 %v661, 112
      %v2816 = vpop.permute.xlu0 %2815
      %2817 = vrot.lane.b32.xlu0 %v667, 112
      %v2818 = vpop.permute.xlu0 %2817
      %2819 = vrot.lane.b32.xlu0 %v673, 112
      %v2820 = vpop.permute.xlu0 %2819
      %2821 = vrot.lane.b32.xlu0 %v679, 112
      %v2822 = vpop.permute.xlu0 %2821
      %2823 = vrot.lane.b32.xlu0 %v685, 112
      %v2824 = vpop.permute.xlu0 %2823
      %2825 = vrot.lane.b32.xlu0 %v691, 112
      %v2826 = vpop.permute.xlu0 %2825
      %2827 = vrot.lane.b32.xlu0 %v697, 112
      %v2828 = vpop.permute.xlu0 %2827
      %2829 = vrot.lane.b32.xlu0 %v703, 112
      %v2830 = vpop.permute.xlu0 %2829
      %2831 = vrot.lane.b32.xlu0 %v709, 112
      %v2832 = vpop.permute.xlu0 %2831
      %2833 = vrot.lane.b32.xlu0 %v715, 112
      %v2834 = vpop.permute.xlu0 %2833
      %2835 = vrot.lane.b32.xlu0 %v721, 112
      %v2836 = vpop.permute.xlu0 %2835
      %2837 = vrot.lane.b32.xlu0 %v727, 112
      %v2838 = vpop.permute.xlu0 %2837
      %2839 = vrot.lane.b32.xlu0 %v733, 112
      %v2840 = vpop.permute.xlu0 %2839
      %2841 = vrot.lane.b32.xlu0 %v739, 112
      %v2842 = vpop.permute.xlu0 %2841
      %2843 = vrot.lane.b32.xlu0 %v745, 112
      %v2844 = vpop.permute.xlu0 %2843
      %2845 = vrot.lane.b32.xlu0 %v751, 112
      %v2846 = vpop.permute.xlu0 %2845
      %2847 = vrot.lane.b32.xlu0 %v757, 112
      %v2848 = vpop.permute.xlu0 %2847
      %2849 = vrot.lane.b32.xlu0 %v763, 112
      %v2850 = vpop.permute.xlu0 %2849
      %2851 = vrot.lane.b32.xlu0 %v769, 112
      %v2852 = vpop.permute.xlu0 %2851
      %2853 = vrot.lane.b32.xlu0 %v775, 112
      %v2854 = vpop.permute.xlu0 %2853
      %v2855 = vsel %vm1121, %v2792, 0
      %v2857 = vsel %vm1121, %v2794, 0
      %v2859 = vsel %vm1121, %v2796, 0
      %v2861 = vsel %vm1121, %v2798, 0
      %v2863 = vsel %vm1121, %v2800, 0
      %v2865 = vsel %vm1121, %v2802, 0
      %v2867 = vsel %vm1121, %v2804, 0
      %v2869 = vsel %vm1121, %v2806, 0
      %v2871 = vsel %vm1121, %v2808, 0
      %v2873 = vsel %vm1121, %v2810, 0
      %v2875 = vsel %vm1121, %v2812, 0
      %v2877 = vsel %vm1121, %v2814, 0
      %v2879 = vsel %vm1121, %v2816, 0
      %v2881 = vsel %vm1121, %v2818, 0
      %v2883 = vsel %vm1121, %v2820, 0
      %v2885 = vsel %vm1121, %v2822, 0
      %v2887 = vsel %vm1121, %v2824, 0
      %v2889 = vsel %vm1121, %v2826, 0
      %v2891 = vsel %vm1121, %v2828, 0
      %v2893 = vsel %vm1121, %v2830, 0
      %v2895 = vsel %vm1121, %v2832, 0
      %v2897 = vsel %vm1121, %v2834, 0
      %v2899 = vsel %vm1121, %v2836, 0
      %v2901 = vsel %vm1121, %v2838, 0
      %v2903 = vsel %vm1121, %v2840, 0
      %v2905 = vsel %vm1121, %v2842, 0
      %v2907 = vsel %vm1121, %v2844, 0
      %v2909 = vsel %vm1121, %v2846, 0
      %v2911 = vsel %vm1121, %v2848, 0
      %v2913 = vsel %vm1121, %v2850, 0
      %v2915 = vsel %vm1121, %v2852, 0
      %v2917 = vsel %vm1121, %v2854, 0
      %2919 = vmatprep.subr.mxu0 0.0
      %2920 = vmatpush1.msra.mxu0 %v1018
      %2921 = vmatprep.subr.mxu0 0.0
      %2922 = vmatpush1.msra.mxu0 %v1019
      %2923 = vmatprep.subr.mxu0 0.0
      %2924 = vmatpush1.msra.mxu0 0.0
      %2925 = vmatprep.subr.mxu0 0.0
      %2926 = vmatpush1.msra.mxu0 0.0
      %2927 = vmatprep.subr.mxu0 0.0
      %2928 = vmatpush1.msra.mxu0 0.0
      %2929 = vmatprep.subr.mxu0 0.0
      %2930 = vmatpush1.msra.mxu0 0.0
      %2931 = vmatprep.subr.mxu0 0.0
      %2932 = vmatpush1.msra.mxu0 0.0
      %2933 = vmatprep.subr.mxu0 0.0
      %2934 = vmatpush1.msra.mxu0 0.0
      %2935 = vmatprep.subr.mxu0 0.0
      %2936 = vmatpush1.msra.mxu0 0.0
      %2937 = vmatprep.subr.mxu0 0.0
      %2938 = vmatpush1.msra.mxu0 0.0
      %2939 = vmatprep.subr.mxu0 0.0
      %2940 = vmatpush1.msra.mxu0 0.0
      %2941 = vmatprep.subr.mxu0 0.0
      %2942 = vmatpush1.msra.mxu0 0.0
      %2943 = vmatprep.subr.mxu0 0.0
      %2944 = vmatpush1.msra.mxu0 0.0
      %2945 = vmatprep.subr.mxu0 0.0
      %2946 = vmatpush1.msra.mxu0 0.0
      %2947 = vmatprep.subr.mxu0 0.0
      %2948 = vmatpush1.msra.mxu0 0.0
      %2949 = vmatprep.subr.mxu0 0.0
      %2950 = vmatpush1.msra.mxu0 0.0
      %2951 = vmatprep.subr.mxu0 0.0
      %2952 = vmatpush1.msra.mxu0 0.0
      %2953 = vmatprep.subr.mxu0 0.0
      %2954 = vmatpush1.msra.mxu0 0.0
      %2955 = vmatprep.subr.mxu0 0.0
      %2956 = vmatpush1.msra.mxu0 0.0
      %2957 = vmatprep.subr.mxu0 0.0
      %2958 = vmatpush1.msra.mxu0 0.0
      %2959 = vmatprep.subr.mxu0 0.0
      %2960 = vmatpush1.msra.mxu0 0.0
      %2961 = vmatprep.subr.mxu0 0.0
      %2962 = vmatpush1.msra.mxu0 0.0
      %2963 = vmatprep.subr.mxu0 0.0
      %2964 = vmatpush1.msra.mxu0 0.0
      %2965 = vmatprep.subr.mxu0 0.0
      %2966 = vmatpush1.msra.mxu0 0.0
      %2967 = vmatprep.subr.mxu0 0.0
      %2968 = vmatpush1.msra.mxu0 0.0
      %2969 = vmatprep.subr.mxu0 0.0
      %2970 = vmatpush1.msra.mxu0 0.0
      %2971 = vmatprep.subr.mxu0 0.0
      %2972 = vmatpush1.msra.mxu0 0.0
      %2973 = vmatprep.subr.mxu0 0.0
      %2974 = vmatpush1.msra.mxu0 0.0
      %2975 = vmatprep.subr.mxu0 0.0
      %2976 = vmatpush1.msra.mxu0 0.0
      %2977 = vmatprep.subr.mxu0 0.0
      %2978 = vmatpush1.msra.mxu0 0.0
      %2979 = vmatprep.subr.mxu0 0.0
      %2980 = vmatpush1.msra.mxu0 0.0
      %2981 = vmatprep.subr.mxu0 0.0
      %2982 = vmatpush1.msra.mxu0 0.0
      %2983 = vmatprep.mubr.f32.mxu0 0.0
      %2984 = vmatmul.mubr.f32.gmra.mrb[0].mxu0 %v2855
      %v2985 = vpop.f32.mrb[0].mxu0
      %v2986 = vadd.f32 0.0, %v2985
      %v2987 = vpop.f32.mrb[0].mxu0
      %2988 = vmatprep.mubr.f32.mxu0 0.0
      %2989 = vmatmul.mubr.f32.gmra.mrb[0].mxu0 %v2857
      %v2990 = vpop.f32.mrb[0].mxu0
      %v2991 = vadd.f32 0.0, %v2990
      %v2992 = vpop.f32.mrb[0].mxu0
      %2993 = vmatprep.mubr.f32.mxu0 0.0
      %2994 = vmatmul.mubr.f32.gmra.mrb[0].mxu0 %v2859
      %v2995 = vpop.f32.mrb[0].mxu0
      %v2996 = vadd.f32 0.0, %v2995
      %v2997 = vpop.f32.mrb[0].mxu0
      %2998 = vmatprep.mubr.f32.mxu0 0.0
      %2999 = vmatmul.mubr.f32.gmra.mrb[0].mxu0 %v2861
      %v3000 = vpop.f32.mrb[0].mxu0
      %v3001 = vadd.f32 0.0, %v3000
      %v3002 = vpop.f32.mrb[0].mxu0
      %3003 = vmatprep.mubr.f32.mxu0 0.0
      %3004 = vmatmul.mubr.f32.gmra.mrb[0].mxu0 %v2863
      %v3005 = vpop.f32.mrb[0].mxu0
      %v3006 = vadd.f32 0.0, %v3005
      %v3007 = vpop.f32.mrb[0].mxu0
      %3008 = vmatprep.mubr.f32.mxu0 0.0
      %3009 = vmatmul.mubr.f32.gmra.mrb[0].mxu0 %v2865
      %v3010 = vpop.f32.mrb[0].mxu0
      %v3011 = vadd.f32 0.0, %v3010
      %v3012 = vpop.f32.mrb[0].mxu0
      %3013 = vmatprep.mubr.f32.mxu0 0.0
      %3014 = vmatmul.mubr.f32.gmra.mrb[0].mxu0 %v2867
      %v3015 = vpop.f32.mrb[0].mxu0
      %v3016 = vadd.f32 0.0, %v3015
      %v3017 = vpop.f32.mrb[0].mxu0
      %3018 = vmatprep.mubr.f32.mxu0 0.0
      %3019 = vmatmul.mubr.f32.gmra.mrb[0].mxu0 %v2869
      %v3020 = vpop.f32.mrb[0].mxu0
      %v3021 = vadd.f32 0.0, %v3020
      %v3022 = vpop.f32.mrb[0].mxu0
      %3023 = vmatprep.mubr.f32.mxu0 0.0
      %3024 = vmatmul.mubr.f32.gmra.mrb[0].mxu0 %v2871
      %v3025 = vpop.f32.mrb[0].mxu0
      %v3026 = vadd.f32 0.0, %v3025
      %v3027 = vpop.f32.mrb[0].mxu0
      %3028 = vmatprep.mubr.f32.mxu0 0.0
      %3029 = vmatmul.mubr.f32.gmra.mrb[0].mxu0 %v2873
      %v3030 = vpop.f32.mrb[0].mxu0
      %v3031 = vadd.f32 0.0, %v3030
      %v3032 = vpop.f32.mrb[0].mxu0
      %3033 = vmatprep.mubr.f32.mxu0 0.0
      %3034 = vmatmul.mubr.f32.gmra.mrb[0].mxu0 %v2875
      %v3035 = vpop.f32.mrb[0].mxu0
      %v3036 = vadd.f32 0.0, %v3035
      %v3037 = vpop.f32.mrb[0].mxu0
      %3038 = vmatprep.mubr.f32.mxu0 0.0
      %3039 = vmatmul.mubr.f32.gmra.mrb[0].mxu0 %v2877
      %v3040 = vpop.f32.mrb[0].mxu0
      %v3041 = vadd.f32 0.0, %v3040
      %v3042 = vpop.f32.mrb[0].mxu0
      %3043 = vmatprep.mubr.f32.mxu0 0.0
      %3044 = vmatmul.mubr.f32.gmra.mrb[0].mxu0 %v2879
      %v3045 = vpop.f32.mrb[0].mxu0
      %v3046 = vadd.f32 0.0, %v3045
      %v3047 = vpop.f32.mrb[0].mxu0
      %3048 = vmatprep.mubr.f32.mxu0 0.0
      %3049 = vmatmul.mubr.f32.gmra.mrb[0].mxu0 %v2881
      %v3050 = vpop.f32.mrb[0].mxu0
      %v3051 = vadd.f32 0.0, %v3050
      %v3052 = vpop.f32.mrb[0].mxu0
      %3053 = vmatprep.mubr.f32.mxu0 0.0
      %3054 = vmatmul.mubr.f32.gmra.mrb[0].mxu0 %v2883
      %v3055 = vpop.f32.mrb[0].mxu0
      %v3056 = vadd.f32 0.0, %v3055
      %v3057 = vpop.f32.mrb[0].mxu0
      %3058 = vmatprep.mubr.f32.mxu0 0.0
      %3059 = vmatmul.mubr.f32.gmra.mrb[0].mxu0 %v2885
      %v3060 = vpop.f32.mrb[0].mxu0
      %v3061 = vadd.f32 0.0, %v3060
      %v3062 = vpop.f32.mrb[0].mxu0
      %3063 = vmatprep.mubr.f32.mxu0 0.0
      %3064 = vmatmul.mubr.f32.gmra.mrb[0].mxu0 %v2887
      %v3065 = vpop.f32.mrb[0].mxu0
      %v3066 = vadd.f32 0.0, %v3065
      %v3067 = vpop.f32.mrb[0].mxu0
      %3068 = vmatprep.mubr.f32.mxu0 0.0
      %3069 = vmatmul.mubr.f32.gmra.mrb[0].mxu0 %v2889
      %v3070 = vpop.f32.mrb[0].mxu0
      %v3071 = vadd.f32 0.0, %v3070
      %v3072 = vpop.f32.mrb[0].mxu0
      %3073 = vmatprep.mubr.f32.mxu0 0.0
      %3074 = vmatmul.mubr.f32.gmra.mrb[0].mxu0 %v2891
      %v3075 = vpop.f32.mrb[0].mxu0
      %v3076 = vadd.f32 0.0, %v3075
      %v3077 = vpop.f32.mrb[0].mxu0
      %3078 = vmatprep.mubr.f32.mxu0 0.0
      %3079 = vmatmul.mubr.f32.gmra.mrb[0].mxu0 %v2893
      %v3080 = vpop.f32.mrb[0].mxu0
      %v3081 = vadd.f32 0.0, %v3080
      %v3082 = vpop.f32.mrb[0].mxu0
      %3083 = vmatprep.mubr.f32.mxu0 0.0
      %3084 = vmatmul.mubr.f32.gmra.mrb[0].mxu0 %v2895
      %v3085 = vpop.f32.mrb[0].mxu0
      %v3086 = vadd.f32 0.0, %v3085
      %v3087 = vpop.f32.mrb[0].mxu0
      %3088 = vmatprep.mubr.f32.mxu0 0.0
      %3089 = vmatmul.mubr.f32.gmra.mrb[0].mxu0 %v2897
      %v3090 = vpop.f32.mrb[0].mxu0
      %v3091 = vadd.f32 0.0, %v3090
      %v3092 = vpop.f32.mrb[0].mxu0
      %3093 = vmatprep.mubr.f32.mxu0 0.0
      %3094 = vmatmul.mubr.f32.gmra.mrb[0].mxu0 %v2899
      %v3095 = vpop.f32.mrb[0].mxu0
      %v3096 = vadd.f32 0.0, %v3095
      %v3097 = vpop.f32.mrb[0].mxu0
      %3098 = vmatprep.mubr.f32.mxu0 0.0
      %3099 = vmatmul.mubr.f32.gmra.mrb[0].mxu0 %v2901
      %v3100 = vpop.f32.mrb[0].mxu0
      %v3101 = vadd.f32 0.0, %v3100
      %v3102 = vpop.f32.mrb[0].mxu0
      %3103 = vmatprep.mubr.f32.mxu0 0.0
      %3104 = vmatmul.mubr.f32.gmra.mrb[0].mxu0 %v2903
      %v3105 = vpop.f32.mrb[0].mxu0
      %v3106 = vadd.f32 0.0, %v3105
      %v3107 = vpop.f32.mrb[0].mxu0
      %3108 = vmatprep.mubr.f32.mxu0 0.0
      %3109 = vmatmul.mubr.f32.gmra.mrb[0].mxu0 %v2905
      %v3110 = vpop.f32.mrb[0].mxu0
      %v3111 = vadd.f32 0.0, %v3110
      %v3112 = vpop.f32.mrb[0].mxu0
      %3113 = vmatprep.mubr.f32.mxu0 0.0
      %3114 = vmatmul.mubr.f32.gmra.mrb[0].mxu0 %v2907
      %v3115 = vpop.f32.mrb[0].mxu0
      %v3116 = vadd.f32 0.0, %v3115
      %v3117 = vpop.f32.mrb[0].mxu0
      %3118 = vmatprep.mubr.f32.mxu0 0.0
      %3119 = vmatmul.mubr.f32.gmra.mrb[0].mxu0 %v2909
      %v3120 = vpop.f32.mrb[0].mxu0
      %v3121 = vadd.f32 0.0, %v3120
      %v3122 = vpop.f32.mrb[0].mxu0
      %3123 = vmatprep.mubr.f32.mxu0 0.0
      %3124 = vmatmul.mubr.f32.gmra.mrb[0].mxu0 %v2911
      %v3125 = vpop.f32.mrb[0].mxu0
      %v3126 = vadd.f32 0.0, %v3125
      %v3127 = vpop.f32.mrb[0].mxu0
      %3128 = vmatprep.mubr.f32.mxu0 0.0
      %3129 = vmatmul.mubr.f32.gmra.mrb[0].mxu0 %v2913
      %v3130 = vpop.f32.mrb[0].mxu0
      %v3131 = vadd.f32 0.0, %v3130
      %v3132 = vpop.f32.mrb[0].mxu0
      %3133 = vmatprep.mubr.f32.mxu0 0.0
      %3134 = vmatmul.mubr.f32.gmra.mrb[0].mxu0 %v2915
      %v3135 = vpop.f32.mrb[0].mxu0
      %v3136 = vadd.f32 0.0, %v3135
      %v3137 = vpop.f32.mrb[0].mxu0
      %3138 = vmatprep.mubr.f32.mxu0 0.0
      %3139 = vmatmul.mubr.f32.gmra.mrb[0].mxu0 %v2917
      %v3140 = vpop.f32.mrb[0].mxu0
      %v3141 = vadd.f32 0.0, %v3140
      %v3142 = vpop.f32.mrb[0].mxu0
      %3143 = vdwg.mxu0
      %3144 = vrot.lane.b32.xlu0 %v589, 96
      %v3145 = vpop.permute.xlu0 %3144
      %3146 = vrot.lane.b32.xlu0 %v595, 96
      %v3147 = vpop.permute.xlu0 %3146
      %3148 = vrot.lane.b32.xlu0 %v601, 96
      %v3149 = vpop.permute.xlu0 %3148
      %3150 = vrot.lane.b32.xlu0 %v607, 96
      %v3151 = vpop.permute.xlu0 %3150
      %3152 = vrot.lane.b32.xlu0 %v613, 96
      %v3153 = vpop.permute.xlu0 %3152
      %3154 = vrot.lane.b32.xlu0 %v619, 96
      %v3155 = vpop.permute.xlu0 %3154
      %3156 = vrot.lane.b32.xlu0 %v625, 96
      %v3157 = vpop.permute.xlu0 %3156
      %3158 = vrot.lane.b32.xlu0 %v631, 96
      %v3159 = vpop.permute.xlu0 %3158
      %3160 = vrot.lane.b32.xlu0 %v637, 96
      %v3161 = vpop.permute.xlu0 %3160
      %3162 = vrot.lane.b32.xlu0 %v643, 96
      %v3163 = vpop.permute.xlu0 %3162
      %3164 = vrot.lane.b32.xlu0 %v649, 96
      %v3165 = vpop.permute.xlu0 %3164
      %3166 = vrot.lane.b32.xlu0 %v655, 96
      %v3167 = vpop.permute.xlu0 %3166
      %3168 = vrot.lane.b32.xlu0 %v661, 96
      %v3169 = vpop.permute.xlu0 %3168
      %3170 = vrot.lane.b32.xlu0 %v667, 96
      %v3171 = vpop.permute.xlu0 %3170
      %3172 = vrot.lane.b32.xlu0 %v673, 96
      %v3173 = vpop.permute.xlu0 %3172
      %3174 = vrot.lane.b32.xlu0 %v679, 96
      %v3175 = vpop.permute.xlu0 %3174
      %3176 = vrot.lane.b32.xlu0 %v685, 96
      %v3177 = vpop.permute.xlu0 %3176
      %3178 = vrot.lane.b32.xlu0 %v691, 96
      %v3179 = vpop.permute.xlu0 %3178
      %3180 = vrot.lane.b32.xlu0 %v697, 96
      %v3181 = vpop.permute.xlu0 %3180
      %3182 = vrot.lane.b32.xlu0 %v703, 96
      %v3183 = vpop.permute.xlu0 %3182
      %3184 = vrot.lane.b32.xlu0 %v709, 96
      %v3185 = vpop.permute.xlu0 %3184
      %3186 = vrot.lane.b32.xlu0 %v715, 96
      %v3187 = vpop.permute.xlu0 %3186
      %3188 = vrot.lane.b32.xlu0 %v721, 96
      %v3189 = vpop.permute.xlu0 %3188
      %3190 = vrot.lane.b32.xlu0 %v727, 96
      %v3191 = vpop.permute.xlu0 %3190
      %3192 = vrot.lane.b32.xlu0 %v733, 96
      %v3193 = vpop.permute.xlu0 %3192
      %3194 = vrot.lane.b32.xlu0 %v739, 96
      %v3195 = vpop.permute.xlu0 %3194
      %3196 = vrot.lane.b32.xlu0 %v745, 96
      %v3197 = vpop.permute.xlu0 %3196
      %3198 = vrot.lane.b32.xlu0 %v751, 96
      %v3199 = vpop.permute.xlu0 %3198
      %3200 = vrot.lane.b32.xlu0 %v757, 96
      %v3201 = vpop.permute.xlu0 %3200
      %3202 = vrot.lane.b32.xlu0 %v763, 96
      %v3203 = vpop.permute.xlu0 %3202
      %3204 = vrot.lane.b32.xlu0 %v769, 96
      %v3205 = vpop.permute.xlu0 %3204
      %3206 = vrot.lane.b32.xlu0 %v775, 96
      %v3207 = vpop.permute.xlu0 %3206
      %v3208 = vsel %vm1121, %v3145, 0
      %v3210 = vsel %vm1121, %v3147, 0
      %v3212 = vsel %vm1121, %v3149, 0
      %v3214 = vsel %vm1121, %v3151, 0
      %v3216 = vsel %vm1121, %v3153, 0
      %v3218 = vsel %vm1121, %v3155, 0
      %v3220 = vsel %vm1121, %v3157, 0
      %v3222 = vsel %vm1121, %v3159, 0
      %v3224 = vsel %vm1121, %v3161, 0
      %v3226 = vsel %vm1121, %v3163, 0
      %v3228 = vsel %vm1121, %v3165, 0
      %v3230 = vsel %vm1121, %v3167, 0
      %v3232 = vsel %vm1121, %v3169, 0
      %v3234 = vsel %vm1121, %v3171, 0
      %v3236 = vsel %vm1121, %v3173, 0
      %v3238 = vsel %vm1121, %v3175, 0
      %v3240 = vsel %vm1121, %v3177, 0
      %v3242 = vsel %vm1121, %v3179, 0
      %v3244 = vsel %vm1121, %v3181, 0
      %v3246 = vsel %vm1121, %v3183, 0
      %v3248 = vsel %vm1121, %v3185, 0
      %v3250 = vsel %vm1121, %v3187, 0
      %v3252 = vsel %vm1121, %v3189, 0
      %v3254 = vsel %vm1121, %v3191, 0
      %v3256 = vsel %vm1121, %v3193, 0
      %v3258 = vsel %vm1121, %v3195, 0
      %v3260 = vsel %vm1121, %v3197, 0
      %v3262 = vsel %vm1121, %v3199, 0
      %v3264 = vsel %vm1121, %v3201, 0
      %v3266 = vsel %vm1121, %v3203, 0
      %v3268 = vsel %vm1121, %v3205, 0
      %v3270 = vsel %vm1121, %v3207, 0
      %3272 = vmatprep.subr.mxu0 0.0
      %3273 = vmatpush1.msra.mxu0 %v1020
      %3274 = vmatprep.subr.mxu0 0.0
      %3275 = vmatpush1.msra.mxu0 %v1021
      %3276 = vmatprep.subr.mxu0 0.0
      %3277 = vmatpush1.msra.mxu0 0.0
      %3278 = vmatprep.subr.mxu0 0.0
      %3279 = vmatpush1.msra.mxu0 0.0
      %3280 = vmatprep.subr.mxu0 0.0
      %3281 = vmatpush1.msra.mxu0 0.0
      %3282 = vmatprep.subr.mxu0 0.0
      %3283 = vmatpush1.msra.mxu0 0.0
      %3284 = vmatprep.subr.mxu0 0.0
      %3285 = vmatpush1.msra.mxu0 0.0
      %3286 = vmatprep.subr.mxu0 0.0
      %3287 = vmatpush1.msra.mxu0 0.0
      %3288 = vmatprep.subr.mxu0 0.0
      %3289 = vmatpush1.msra.mxu0 0.0
      %3290 = vmatprep.subr.mxu0 0.0
      %3291 = vmatpush1.msra.mxu0 0.0
      %3292 = vmatprep.subr.mxu0 0.0
      %3293 = vmatpush1.msra.mxu0 0.0
      %3294 = vmatprep.subr.mxu0 0.0
      %3295 = vmatpush1.msra.mxu0 0.0
      %3296 = vmatprep.subr.mxu0 0.0
      %3297 = vmatpush1.msra.mxu0 0.0
      %3298 = vmatprep.subr.mxu0 0.0
      %3299 = vmatpush1.msra.mxu0 0.0
      %3300 = vmatprep.subr.mxu0 0.0
      %3301 = vmatpush1.msra.mxu0 0.0
      %3302 = vmatprep.subr.mxu0 0.0
      %3303 = vmatpush1.msra.mxu0 0.0
      %3304 = vmatprep.subr.mxu0 0.0
      %3305 = vmatpush1.msra.mxu0 0.0
      %3306 = vmatprep.subr.mxu0 0.0
      %3307 = vmatpush1.msra.mxu0 0.0
      %3308 = vmatprep.subr.mxu0 0.0
      %3309 = vmatpush1.msra.mxu0 0.0
      %3310 = vmatprep.subr.mxu0 0.0
      %3311 = vmatpush1.msra.mxu0 0.0
      %3312 = vmatprep.subr.mxu0 0.0
      %3313 = vmatpush1.msra.mxu0 0.0
      %3314 = vmatprep.subr.mxu0 0.0
      %3315 = vmatpush1.msra.mxu0 0.0
      %3316 = vmatprep.subr.mxu0 0.0
      %3317 = vmatpush1.msra.mxu0 0.0
      %3318 = vmatprep.subr.mxu0 0.0
      %3319 = vmatpush1.msra.mxu0 0.0
      %3320 = vmatprep.subr.mxu0 0.0
      %3321 = vmatpush1.msra.mxu0 0.0
      %3322 = vmatprep.subr.mxu0 0.0
      %3323 = vmatpush1.msra.mxu0 0.0
      %3324 = vmatprep.subr.mxu0 0.0
      %3325 = vmatpush1.msra.mxu0 0.0
      %3326 = vmatprep.subr.mxu0 0.0
      %3327 = vmatpush1.msra.mxu0 0.0
      %3328 = vmatprep.subr.mxu0 0.0
      %3329 = vmatpush1.msra.mxu0 0.0
      %3330 = vmatprep.subr.mxu0 0.0
      %3331 = vmatpush1.msra.mxu0 0.0
      %3332 = vmatprep.subr.mxu0 0.0
      %3333 = vmatpush1.msra.mxu0 0.0
      %3334 = vmatprep.subr.mxu0 0.0
      %3335 = vmatpush1.msra.mxu0 0.0
      %3336 = vmatprep.mubr.f32.mxu0 0.0
      %3337 = vmatmul.mubr.f32.gmra.mrb[0].mxu0 %v3208
      %v3338 = vpop.f32.mrb[0].mxu0
      %v3339 = vadd.f32 0.0, %v3338
      %v3340 = vpop.f32.mrb[0].mxu0
      %3341 = vmatprep.mubr.f32.mxu0 0.0
      %3342 = vmatmul.mubr.f32.gmra.mrb[0].mxu0 %v3210
      %v3343 = vpop.f32.mrb[0].mxu0
      %v3344 = vadd.f32 0.0, %v3343
      %v3345 = vpop.f32.mrb[0].mxu0
      %3346 = vmatprep.mubr.f32.mxu0 0.0
      %3347 = vmatmul.mubr.f32.gmra.mrb[0].mxu0 %v3212
      %v3348 = vpop.f32.mrb[0].mxu0
      %v3349 = vadd.f32 0.0, %v3348
      %v3350 = vpop.f32.mrb[0].mxu0
      %3351 = vmatprep.mubr.f32.mxu0 0.0
      %3352 = vmatmul.mubr.f32.gmra.mrb[0].mxu0 %v3214
      %v3353 = vpop.f32.mrb[0].mxu0
      %v3354 = vadd.f32 0.0, %v3353
      %v3355 = vpop.f32.mrb[0].mxu0
      %3356 = vmatprep.mubr.f32.mxu0 0.0
      %3357 = vmatmul.mubr.f32.gmra.mrb[0].mxu0 %v3216
      %v3358 = vpop.f32.mrb[0].mxu0
      %v3359 = vadd.f32 0.0, %v3358
      %v3360 = vpop.f32.mrb[0].mxu0
      %3361 = vmatprep.mubr.f32.mxu0 0.0
      %3362 = vmatmul.mubr.f32.gmra.mrb[0].mxu0 %v3218
      %v3363 = vpop.f32.mrb[0].mxu0
      %v3364 = vadd.f32 0.0, %v3363
      %v3365 = vpop.f32.mrb[0].mxu0
      %3366 = vmatprep.mubr.f32.mxu0 0.0
      %3367 = vmatmul.mubr.f32.gmra.mrb[0].mxu0 %v3220
      %v3368 = vpop.f32.mrb[0].mxu0
      %v3369 = vadd.f32 0.0, %v3368
      %v3370 = vpop.f32.mrb[0].mxu0
      %3371 = vmatprep.mubr.f32.mxu0 0.0
      %3372 = vmatmul.mubr.f32.gmra.mrb[0].mxu0 %v3222
      %v3373 = vpop.f32.mrb[0].mxu0
      %v3374 = vadd.f32 0.0, %v3373
      %v3375 = vpop.f32.mrb[0].mxu0
      %3376 = vmatprep.mubr.f32.mxu0 0.0
      %3377 = vmatmul.mubr.f32.gmra.mrb[0].mxu0 %v3224
      %v3378 = vpop.f32.mrb[0].mxu0
      %v3379 = vadd.f32 0.0, %v3378
      %v3380 = vpop.f32.mrb[0].mxu0
      %3381 = vmatprep.mubr.f32.mxu0 0.0
      %3382 = vmatmul.mubr.f32.gmra.mrb[0].mxu0 %v3226
      %v3383 = vpop.f32.mrb[0].mxu0
      %v3384 = vadd.f32 0.0, %v3383
      %v3385 = vpop.f32.mrb[0].mxu0
      %3386 = vmatprep.mubr.f32.mxu0 0.0
      %3387 = vmatmul.mubr.f32.gmra.mrb[0].mxu0 %v3228
      %v3388 = vpop.f32.mrb[0].mxu0
      %v3389 = vadd.f32 0.0, %v3388
      %v3390 = vpop.f32.mrb[0].mxu0
      %3391 = vmatprep.mubr.f32.mxu0 0.0
      %3392 = vmatmul.mubr.f32.gmra.mrb[0].mxu0 %v3230
      %v3393 = vpop.f32.mrb[0].mxu0
      %v3394 = vadd.f32 0.0, %v3393
      %v3395 = vpop.f32.mrb[0].mxu0
      %3396 = vmatprep.mubr.f32.mxu0 0.0
      %3397 = vmatmul.mubr.f32.gmra.mrb[0].mxu0 %v3232
      %v3398 = vpop.f32.mrb[0].mxu0
      %v3399 = vadd.f32 0.0, %v3398
      %v3400 = vpop.f32.mrb[0].mxu0
      %3401 = vmatprep.mubr.f32.mxu0 0.0
      %3402 = vmatmul.mubr.f32.gmra.mrb[0].mxu0 %v3234
      %v3403 = vpop.f32.mrb[0].mxu0
      %v3404 = vadd.f32 0.0, %v3403
      %v3405 = vpop.f32.mrb[0].mxu0
      %3406 = vmatprep.mubr.f32.mxu0 0.0
      %3407 = vmatmul.mubr.f32.gmra.mrb[0].mxu0 %v3236
      %v3408 = vpop.f32.mrb[0].mxu0
      %v3409 = vadd.f32 0.0, %v3408
      %v3410 = vpop.f32.mrb[0].mxu0
      %3411 = vmatprep.mubr.f32.mxu0 0.0
      %3412 = vmatmul.mubr.f32.gmra.mrb[0].mxu0 %v3238
      %v3413 = vpop.f32.mrb[0].mxu0
      %v3414 = vadd.f32 0.0, %v3413
      %v3415 = vpop.f32.mrb[0].mxu0
      %3416 = vmatprep.mubr.f32.mxu0 0.0
      %3417 = vmatmul.mubr.f32.gmra.mrb[0].mxu0 %v3240
      %v3418 = vpop.f32.mrb[0].mxu0
      %v3419 = vadd.f32 0.0, %v3418
      %v3420 = vpop.f32.mrb[0].mxu0
      %3421 = vmatprep.mubr.f32.mxu0 0.0
      %3422 = vmatmul.mubr.f32.gmra.mrb[0].mxu0 %v3242
      %v3423 = vpop.f32.mrb[0].mxu0
      %v3424 = vadd.f32 0.0, %v3423
      %v3425 = vpop.f32.mrb[0].mxu0
      %3426 = vmatprep.mubr.f32.mxu0 0.0
      %3427 = vmatmul.mubr.f32.gmra.mrb[0].mxu0 %v3244
      %v3428 = vpop.f32.mrb[0].mxu0
      %v3429 = vadd.f32 0.0, %v3428
      %v3430 = vpop.f32.mrb[0].mxu0
      %3431 = vmatprep.mubr.f32.mxu0 0.0
      %3432 = vmatmul.mubr.f32.gmra.mrb[0].mxu0 %v3246
      %v3433 = vpop.f32.mrb[0].mxu0
      %v3434 = vadd.f32 0.0, %v3433
      %v3435 = vpop.f32.mrb[0].mxu0
      %3436 = vmatprep.mubr.f32.mxu0 0.0
      %3437 = vmatmul.mubr.f32.gmra.mrb[0].mxu0 %v3248
      %v3438 = vpop.f32.mrb[0].mxu0
      %v3439 = vadd.f32 0.0, %v3438
      %v3440 = vpop.f32.mrb[0].mxu0
      %3441 = vmatprep.mubr.f32.mxu0 0.0
      %3442 = vmatmul.mubr.f32.gmra.mrb[0].mxu0 %v3250
      %v3443 = vpop.f32.mrb[0].mxu0
      %v3444 = vadd.f32 0.0, %v3443
      %v3445 = vpop.f32.mrb[0].mxu0
      %3446 = vmatprep.mubr.f32.mxu0 0.0
      %3447 = vmatmul.mubr.f32.gmra.mrb[0].mxu0 %v3252
      %v3448 = vpop.f32.mrb[0].mxu0
      %v3449 = vadd.f32 0.0, %v3448
      %v3450 = vpop.f32.mrb[0].mxu0
      %3451 = vmatprep.mubr.f32.mxu0 0.0
      %3452 = vmatmul.mubr.f32.gmra.mrb[0].mxu0 %v3254
      %v3453 = vpop.f32.mrb[0].mxu0
      %v3454 = vadd.f32 0.0, %v3453
      %v3455 = vpop.f32.mrb[0].mxu0
      %3456 = vmatprep.mubr.f32.mxu0 0.0
      %3457 = vmatmul.mubr.f32.gmra.mrb[0].mxu0 %v3256
      %v3458 = vpop.f32.mrb[0].mxu0
      %v3459 = vadd.f32 0.0, %v3458
      %v3460 = vpop.f32.mrb[0].mxu0
      %3461 = vmatprep.mubr.f32.mxu0 0.0
      %3462 = vmatmul.mubr.f32.gmra.mrb[0].mxu0 %v3258
      %v3463 = vpop.f32.mrb[0].mxu0
      %v3464 = vadd.f32 0.0, %v3463
      %v3465 = vpop.f32.mrb[0].mxu0
      %3466 = vmatprep.mubr.f32.mxu0 0.0
      %3467 = vmatmul.mubr.f32.gmra.mrb[0].mxu0 %v3260
      %v3468 = vpop.f32.mrb[0].mxu0
      %v3469 = vadd.f32 0.0, %v3468
      %v3470 = vpop.f32.mrb[0].mxu0
      %3471 = vmatprep.mubr.f32.mxu0 0.0
      %3472 = vmatmul.mubr.f32.gmra.mrb[0].mxu0 %v3262
      %v3473 = vpop.f32.mrb[0].mxu0
      %v3474 = vadd.f32 0.0, %v3473
      %v3475 = vpop.f32.mrb[0].mxu0
      %3476 = vmatprep.mubr.f32.mxu0 0.0
      %3477 = vmatmul.mubr.f32.gmra.mrb[0].mxu0 %v3264
      %v3478 = vpop.f32.mrb[0].mxu0
      %v3479 = vadd.f32 0.0, %v3478
      %v3480 = vpop.f32.mrb[0].mxu0
      %3481 = vmatprep.mubr.f32.mxu0 0.0
      %3482 = vmatmul.mubr.f32.gmra.mrb[0].mxu0 %v3266
      %v3483 = vpop.f32.mrb[0].mxu0
      %v3484 = vadd.f32 0.0, %v3483
      %v3485 = vpop.f32.mrb[0].mxu0
      %3486 = vmatprep.mubr.f32.mxu0 0.0
      %3487 = vmatmul.mubr.f32.gmra.mrb[0].mxu0 %v3268
      %v3488 = vpop.f32.mrb[0].mxu0
      %v3489 = vadd.f32 0.0, %v3488
      %v3490 = vpop.f32.mrb[0].mxu0
      %3491 = vmatprep.mubr.f32.mxu0 0.0
      %3492 = vmatmul.mubr.f32.gmra.mrb[0].mxu0 %v3270
      %v3493 = vpop.f32.mrb[0].mxu0
      %v3494 = vadd.f32 0.0, %v3493
      %v3495 = vpop.f32.mrb[0].mxu0
      %3496 = vdwg.mxu0
      %3497 = vrot.lane.b32.xlu0 %v589, 80
      %v3498 = vpop.permute.xlu0 %3497
      %3499 = vrot.lane.b32.xlu0 %v595, 80
      %v3500 = vpop.permute.xlu0 %3499
      %3501 = vrot.lane.b32.xlu0 %v601, 80
      %v3502 = vpop.permute.xlu0 %3501
      %3503 = vrot.lane.b32.xlu0 %v607, 80
      %v3504 = vpop.permute.xlu0 %3503
      %3505 = vrot.lane.b32.xlu0 %v613, 80
      %v3506 = vpop.permute.xlu0 %3505
      %3507 = vrot.lane.b32.xlu0 %v619, 80
      %v3508 = vpop.permute.xlu0 %3507
      %3509 = vrot.lane.b32.xlu0 %v625, 80
      %v3510 = vpop.permute.xlu0 %3509
      %3511 = vrot.lane.b32.xlu0 %v631, 80
      %v3512 = vpop.permute.xlu0 %3511
      %3513 = vrot.lane.b32.xlu0 %v637, 80
      %v3514 = vpop.permute.xlu0 %3513
      %3515 = vrot.lane.b32.xlu0 %v643, 80
      %v3516 = vpop.permute.xlu0 %3515
      %3517 = vrot.lane.b32.xlu0 %v649, 80
      %v3518 = vpop.permute.xlu0 %3517
      %3519 = vrot.lane.b32.xlu0 %v655, 80
      %v3520 = vpop.permute.xlu0 %3519
      %3521 = vrot.lane.b32.xlu0 %v661, 80
      %v3522 = vpop.permute.xlu0 %3521
      %3523 = vrot.lane.b32.xlu0 %v667, 80
      %v3524 = vpop.permute.xlu0 %3523
      %3525 = vrot.lane.b32.xlu0 %v673, 80
      %v3526 = vpop.permute.xlu0 %3525
      %3527 = vrot.lane.b32.xlu0 %v679, 80
      %v3528 = vpop.permute.xlu0 %3527
      %3529 = vrot.lane.b32.xlu0 %v685, 80
      %v3530 = vpop.permute.xlu0 %3529
      %3531 = vrot.lane.b32.xlu0 %v691, 80
      %v3532 = vpop.permute.xlu0 %3531
      %3533 = vrot.lane.b32.xlu0 %v697, 80
      %v3534 = vpop.permute.xlu0 %3533
      %3535 = vrot.lane.b32.xlu0 %v703, 80
      %v3536 = vpop.permute.xlu0 %3535
      %3537 = vrot.lane.b32.xlu0 %v709, 80
      %v3538 = vpop.permute.xlu0 %3537
      %3539 = vrot.lane.b32.xlu0 %v715, 80
      %v3540 = vpop.permute.xlu0 %3539
      %3541 = vrot.lane.b32.xlu0 %v721, 80
      %v3542 = vpop.permute.xlu0 %3541
      %3543 = vrot.lane.b32.xlu0 %v727, 80
      %v3544 = vpop.permute.xlu0 %3543
      %3545 = vrot.lane.b32.xlu0 %v733, 80
      %v3546 = vpop.permute.xlu0 %3545
      %3547 = vrot.lane.b32.xlu0 %v739, 80
      %v3548 = vpop.permute.xlu0 %3547
      %3549 = vrot.lane.b32.xlu0 %v745, 80
      %v3550 = vpop.permute.xlu0 %3549
      %3551 = vrot.lane.b32.xlu0 %v751, 80
      %v3552 = vpop.permute.xlu0 %3551
      %3553 = vrot.lane.b32.xlu0 %v757, 80
      %v3554 = vpop.permute.xlu0 %3553
      %3555 = vrot.lane.b32.xlu0 %v763, 80
      %v3556 = vpop.permute.xlu0 %3555
      %3557 = vrot.lane.b32.xlu0 %v769, 80
      %v3558 = vpop.permute.xlu0 %3557
      %3559 = vrot.lane.b32.xlu0 %v775, 80
      %v3560 = vpop.permute.xlu0 %3559
      %v3561 = vsel %vm1121, %v3498, 0
      %v3563 = vsel %vm1121, %v3500, 0
      %v3565 = vsel %vm1121, %v3502, 0
      %v3567 = vsel %vm1121, %v3504, 0
      %v3569 = vsel %vm1121, %v3506, 0
      %v3571 = vsel %vm1121, %v3508, 0
      %v3573 = vsel %vm1121, %v3510, 0
      %v3575 = vsel %vm1121, %v3512, 0
      %v3577 = vsel %vm1121, %v3514, 0
      %v3579 = vsel %vm1121, %v3516, 0
      %v3581 = vsel %vm1121, %v3518, 0
      %v3583 = vsel %vm1121, %v3520, 0
      %v3585 = vsel %vm1121, %v3522, 0
      %v3587 = vsel %vm1121, %v3524, 0
      %v3589 = vsel %vm1121, %v3526, 0
      %v3591 = vsel %vm1121, %v3528, 0
      %v3593 = vsel %vm1121, %v3530, 0
      %v3595 = vsel %vm1121, %v3532, 0
      %v3597 = vsel %vm1121, %v3534, 0
      %v3599 = vsel %vm1121, %v3536, 0
      %v3601 = vsel %vm1121, %v3538, 0
      %v3603 = vsel %vm1121, %v3540, 0
      %v3605 = vsel %vm1121, %v3542, 0
      %v3607 = vsel %vm1121, %v3544, 0
      %v3609 = vsel %vm1121, %v3546, 0
      %v3611 = vsel %vm1121, %v3548, 0
      %v3613 = vsel %vm1121, %v3550, 0
      %v3615 = vsel %vm1121, %v3552, 0
      %v3617 = vsel %vm1121, %v3554, 0
      %v3619 = vsel %vm1121, %v3556, 0
      %v3621 = vsel %vm1121, %v3558, 0
      %v3623 = vsel %vm1121, %v3560, 0
      %3625 = vmatprep.subr.mxu0 0.0
      %3626 = vmatpush1.msra.mxu0 %v1022
      %3627 = vmatprep.subr.mxu0 0.0
      %3628 = vmatpush1.msra.mxu0 %v1023
      %3629 = vmatprep.subr.mxu0 0.0
      %3630 = vmatpush1.msra.mxu0 0.0
      %3631 = vmatprep.subr.mxu0 0.0
      %3632 = vmatpush1.msra.mxu0 0.0
      %3633 = vmatprep.subr.mxu0 0.0
      %3634 = vmatpush1.msra.mxu0 0.0
      %3635 = vmatprep.subr.mxu0 0.0
      %3636 = vmatpush1.msra.mxu0 0.0
      %3637 = vmatprep.subr.mxu0 0.0
      %3638 = vmatpush1.msra.mxu0 0.0
      %3639 = vmatprep.subr.mxu0 0.0
      %3640 = vmatpush1.msra.mxu0 0.0
      %3641 = vmatprep.subr.mxu0 0.0
      %3642 = vmatpush1.msra.mxu0 0.0
      %3643 = vmatprep.subr.mxu0 0.0
      %3644 = vmatpush1.msra.mxu0 0.0
      %3645 = vmatprep.subr.mxu0 0.0
      %3646 = vmatpush1.msra.mxu0 0.0
      %3647 = vmatprep.subr.mxu0 0.0
      %3648 = vmatpush1.msra.mxu0 0.0
      %3649 = vmatprep.subr.mxu0 0.0
      %3650 = vmatpush1.msra.mxu0 0.0
      %3651 = vmatprep.subr.mxu0 0.0
      %3652 = vmatpush1.msra.mxu0 0.0
      %3653 = vmatprep.subr.mxu0 0.0
      %3654 = vmatpush1.msra.mxu0 0.0
      %3655 = vmatprep.subr.mxu0 0.0
      %3656 = vmatpush1.msra.mxu0 0.0
      %3657 = vmatprep.subr.mxu0 0.0
      %3658 = vmatpush1.msra.mxu0 0.0
      %3659 = vmatprep.subr.mxu0 0.0
      %3660 = vmatpush1.msra.mxu0 0.0
      %3661 = vmatprep.subr.mxu0 0.0
      %3662 = vmatpush1.msra.mxu0 0.0
      %3663 = vmatprep.subr.mxu0 0.0
      %3664 = vmatpush1.msra.mxu0 0.0
      %3665 = vmatprep.subr.mxu0 0.0
      %3666 = vmatpush1.msra.mxu0 0.0
      %3667 = vmatprep.subr.mxu0 0.0
      %3668 = vmatpush1.msra.mxu0 0.0
      %3669 = vmatprep.subr.mxu0 0.0
      %3670 = vmatpush1.msra.mxu0 0.0
      %3671 = vmatprep.subr.mxu0 0.0
      %3672 = vmatpush1.msra.mxu0 0.0
      %3673 = vmatprep.subr.mxu0 0.0
      %3674 = vmatpush1.msra.mxu0 0.0
      %3675 = vmatprep.subr.mxu0 0.0
      %3676 = vmatpush1.msra.mxu0 0.0
      %3677 = vmatprep.subr.mxu0 0.0
      %3678 = vmatpush1.msra.mxu0 0.0
      %3679 = vmatprep.subr.mxu0 0.0
      %3680 = vmatpush1.msra.mxu0 0.0
      %3681 = vmatprep.subr.mxu0 0.0
      %3682 = vmatpush1.msra.mxu0 0.0
      %3683 = vmatprep.subr.mxu0 0.0
      %3684 = vmatpush1.msra.mxu0 0.0
      %3685 = vmatprep.subr.mxu0 0.0
      %3686 = vmatpush1.msra.mxu0 0.0
      %3687 = vmatprep.subr.mxu0 0.0
      %3688 = vmatpush1.msra.mxu0 0.0
      %3689 = vmatprep.mubr.f32.mxu0 0.0
      %3690 = vmatmul.mubr.f32.gmra.mrb[0].mxu0 %v3561
      %v3691 = vpop.f32.mrb[0].mxu0
      %v3692 = vadd.f32 0.0, %v3691
      %v3693 = vpop.f32.mrb[0].mxu0
      %3694 = vmatprep.mubr.f32.mxu0 0.0
      %3695 = vmatmul.mubr.f32.gmra.mrb[0].mxu0 %v3563
      %v3696 = vpop.f32.mrb[0].mxu0
      %v3697 = vadd.f32 0.0, %v3696
      %v3698 = vpop.f32.mrb[0].mxu0
      %3699 = vmatprep.mubr.f32.mxu0 0.0
      %3700 = vmatmul.mubr.f32.gmra.mrb[0].mxu0 %v3565
      %v3701 = vpop.f32.mrb[0].mxu0
      %v3702 = vadd.f32 0.0, %v3701
      %v3703 = vpop.f32.mrb[0].mxu0
      %3704 = vmatprep.mubr.f32.mxu0 0.0
      %3705 = vmatmul.mubr.f32.gmra.mrb[0].mxu0 %v3567
      %v3706 = vpop.f32.mrb[0].mxu0
      %v3707 = vadd.f32 0.0, %v3706
      %v3708 = vpop.f32.mrb[0].mxu0
      %3709 = vmatprep.mubr.f32.mxu0 0.0
      %3710 = vmatmul.mubr.f32.gmra.mrb[0].mxu0 %v3569
      %v3711 = vpop.f32.mrb[0].mxu0
      %v3712 = vadd.f32 0.0, %v3711
      %v3713 = vpop.f32.mrb[0].mxu0
      %3714 = vmatprep.mubr.f32.mxu0 0.0
      %3715 = vmatmul.mubr.f32.gmra.mrb[0].mxu0 %v3571
      %v3716 = vpop.f32.mrb[0].mxu0
      %v3717 = vadd.f32 0.0, %v3716
      %v3718 = vpop.f32.mrb[0].mxu0
      %3719 = vmatprep.mubr.f32.mxu0 0.0
      %3720 = vmatmul.mubr.f32.gmra.mrb[0].mxu0 %v3573
      %v3721 = vpop.f32.mrb[0].mxu0
      %v3722 = vadd.f32 0.0, %v3721
      %v3723 = vpop.f32.mrb[0].mxu0
      %3724 = vmatprep.mubr.f32.mxu0 0.0
      %3725 = vmatmul.mubr.f32.gmra.mrb[0].mxu0 %v3575
      %v3726 = vpop.f32.mrb[0].mxu0
      %v3727 = vadd.f32 0.0, %v3726
      %v3728 = vpop.f32.mrb[0].mxu0
      %3729 = vmatprep.mubr.f32.mxu0 0.0
      %3730 = vmatmul.mubr.f32.gmra.mrb[0].mxu0 %v3577
      %v3731 = vpop.f32.mrb[0].mxu0
      %v3732 = vadd.f32 0.0, %v3731
      %v3733 = vpop.f32.mrb[0].mxu0
      %3734 = vmatprep.mubr.f32.mxu0 0.0
      %3735 = vmatmul.mubr.f32.gmra.mrb[0].mxu0 %v3579
      %v3736 = vpop.f32.mrb[0].mxu0
      %v3737 = vadd.f32 0.0, %v3736
      %v3738 = vpop.f32.mrb[0].mxu0
      %3739 = vmatprep.mubr.f32.mxu0 0.0
      %3740 = vmatmul.mubr.f32.gmra.mrb[0].mxu0 %v3581
      %v3741 = vpop.f32.mrb[0].mxu0
      %v3742 = vadd.f32 0.0, %v3741
      %v3743 = vpop.f32.mrb[0].mxu0
      %3744 = vmatprep.mubr.f32.mxu0 0.0
      %3745 = vmatmul.mubr.f32.gmra.mrb[0].mxu0 %v3583
      %v3746 = vpop.f32.mrb[0].mxu0
      %v3747 = vadd.f32 0.0, %v3746
      %v3748 = vpop.f32.mrb[0].mxu0
      %3749 = vmatprep.mubr.f32.mxu0 0.0
      %3750 = vmatmul.mubr.f32.gmra.mrb[0].mxu0 %v3585
      %v3751 = vpop.f32.mrb[0].mxu0
      %v3752 = vadd.f32 0.0, %v3751
      %v3753 = vpop.f32.mrb[0].mxu0
      %3754 = vmatprep.mubr.f32.mxu0 0.0
      %3755 = vmatmul.mubr.f32.gmra.mrb[0].mxu0 %v3587
      %v3756 = vpop.f32.mrb[0].mxu0
      %v3757 = vadd.f32 0.0, %v3756
      %v3758 = vpop.f32.mrb[0].mxu0
      %3759 = vmatprep.mubr.f32.mxu0 0.0
      %3760 = vmatmul.mubr.f32.gmra.mrb[0].mxu0 %v3589
      %v3761 = vpop.f32.mrb[0].mxu0
      %v3762 = vadd.f32 0.0, %v3761
      %v3763 = vpop.f32.mrb[0].mxu0
      %3764 = vmatprep.mubr.f32.mxu0 0.0
      %3765 = vmatmul.mubr.f32.gmra.mrb[0].mxu0 %v3591
      %v3766 = vpop.f32.mrb[0].mxu0
      %v3767 = vadd.f32 0.0, %v3766
      %v3768 = vpop.f32.mrb[0].mxu0
      %3769 = vmatprep.mubr.f32.mxu0 0.0
      %3770 = vmatmul.mubr.f32.gmra.mrb[0].mxu0 %v3593
      %v3771 = vpop.f32.mrb[0].mxu0
      %v3772 = vadd.f32 0.0, %v3771
      %v3773 = vpop.f32.mrb[0].mxu0
      %3774 = vmatprep.mubr.f32.mxu0 0.0
      %3775 = vmatmul.mubr.f32.gmra.mrb[0].mxu0 %v3595
      %v3776 = vpop.f32.mrb[0].mxu0
      %v3777 = vadd.f32 0.0, %v3776
      %v3778 = vpop.f32.mrb[0].mxu0
      %3779 = vmatprep.mubr.f32.mxu0 0.0
      %3780 = vmatmul.mubr.f32.gmra.mrb[0].mxu0 %v3597
      %v3781 = vpop.f32.mrb[0].mxu0
      %v3782 = vadd.f32 0.0, %v3781
      %v3783 = vpop.f32.mrb[0].mxu0
      %3784 = vmatprep.mubr.f32.mxu0 0.0
      %3785 = vmatmul.mubr.f32.gmra.mrb[0].mxu0 %v3599
      %v3786 = vpop.f32.mrb[0].mxu0
      %v3787 = vadd.f32 0.0, %v3786
      %v3788 = vpop.f32.mrb[0].mxu0
      %3789 = vmatprep.mubr.f32.mxu0 0.0
      %3790 = vmatmul.mubr.f32.gmra.mrb[0].mxu0 %v3601
      %v3791 = vpop.f32.mrb[0].mxu0
      %v3792 = vadd.f32 0.0, %v3791
      %v3793 = vpop.f32.mrb[0].mxu0
      %3794 = vmatprep.mubr.f32.mxu0 0.0
      %3795 = vmatmul.mubr.f32.gmra.mrb[0].mxu0 %v3603
      %v3796 = vpop.f32.mrb[0].mxu0
      %v3797 = vadd.f32 0.0, %v3796
      %v3798 = vpop.f32.mrb[0].mxu0
      %3799 = vmatprep.mubr.f32.mxu0 0.0
      %3800 = vmatmul.mubr.f32.gmra.mrb[0].mxu0 %v3605
      %v3801 = vpop.f32.mrb[0].mxu0
      %v3802 = vadd.f32 0.0, %v3801
      %v3803 = vpop.f32.mrb[0].mxu0
      %3804 = vmatprep.mubr.f32.mxu0 0.0
      %3805 = vmatmul.mubr.f32.gmra.mrb[0].mxu0 %v3607
      %v3806 = vpop.f32.mrb[0].mxu0
      %v3807 = vadd.f32 0.0, %v3806
      %v3808 = vpop.f32.mrb[0].mxu0
      %3809 = vmatprep.mubr.f32.mxu0 0.0
      %3810 = vmatmul.mubr.f32.gmra.mrb[0].mxu0 %v3609
      %v3811 = vpop.f32.mrb[0].mxu0
      %v3812 = vadd.f32 0.0, %v3811
      %v3813 = vpop.f32.mrb[0].mxu0
      %3814 = vmatprep.mubr.f32.mxu0 0.0
      %3815 = vmatmul.mubr.f32.gmra.mrb[0].mxu0 %v3611
      %v3816 = vpop.f32.mrb[0].mxu0
      %v3817 = vadd.f32 0.0, %v3816
      %v3818 = vpop.f32.mrb[0].mxu0
      %3819 = vmatprep.mubr.f32.mxu0 0.0
      %3820 = vmatmul.mubr.f32.gmra.mrb[0].mxu0 %v3613
      %v3821 = vpop.f32.mrb[0].mxu0
      %v3822 = vadd.f32 0.0, %v3821
      %v3823 = vpop.f32.mrb[0].mxu0
      %3824 = vmatprep.mubr.f32.mxu0 0.0
      %3825 = vmatmul.mubr.f32.gmra.mrb[0].mxu0 %v3615
      %v3826 = vpop.f32.mrb[0].mxu0
      %v3827 = vadd.f32 0.0, %v3826
      %v3828 = vpop.f32.mrb[0].mxu0
      %3829 = vmatprep.mubr.f32.mxu0 0.0
      %3830 = vmatmul.mubr.f32.gmra.mrb[0].mxu0 %v3617
      %v3831 = vpop.f32.mrb[0].mxu0
      %v3832 = vadd.f32 0.0, %v3831
      %v3833 = vpop.f32.mrb[0].mxu0
      %3834 = vmatprep.mubr.f32.mxu0 0.0
      %3835 = vmatmul.mubr.f32.gmra.mrb[0].mxu0 %v3619
      %v3836 = vpop.f32.mrb[0].mxu0
      %v3837 = vadd.f32 0.0, %v3836
      %v3838 = vpop.f32.mrb[0].mxu0
      %3839 = vmatprep.mubr.f32.mxu0 0.0
      %3840 = vmatmul.mubr.f32.gmra.mrb[0].mxu0 %v3621
      %v3841 = vpop.f32.mrb[0].mxu0
      %v3842 = vadd.f32 0.0, %v3841
      %v3843 = vpop.f32.mrb[0].mxu0
      %3844 = vmatprep.mubr.f32.mxu0 0.0
      %3845 = vmatmul.mubr.f32.gmra.mrb[0].mxu0 %v3623
      %v3846 = vpop.f32.mrb[0].mxu0
      %v3847 = vadd.f32 0.0, %v3846
      %v3848 = vpop.f32.mrb[0].mxu0
      %3849 = vdwg.mxu0
      %v3850 = vld [vmem:[%s288] sm:$0xff]
      %v3851 = vld [vmem:[%s288 + $0x8] sm:$0xff]
      %v3852 = vld [vmem:[%s288 + $0x10] sm:$0xff]
      %v3853 = vld [vmem:[%s288 + $0x18] sm:$0xff]
      %v3854 = vld [vmem:[%s288 + $0x20] sm:$0xff]
      %v3855 = vld [vmem:[%s288 + $0x28] sm:$0xff]
      %v3856 = vld [vmem:[%s288 + $0x30] sm:$0xff]
      %v3857 = vld [vmem:[%s288 + $0x38] sm:$0xff]
      %v3858 = vld [vmem:[%s288 + $0x40] sm:$0xff]
      %v3859 = vld [vmem:[%s288 + $0x48] sm:$0xff]
      %v3860 = vld [vmem:[%s288 + $0x50] sm:$0xff]
      %v3861 = vld [vmem:[%s288 + $0x58] sm:$0xff]
      %v3862 = vld [vmem:[%s288 + $0x60] sm:$0xff]
      %v3863 = vld [vmem:[%s288 + $0x68] sm:$0xff]
      %v3864 = vld [vmem:[%s288 + $0x70] sm:$0xff]
      %v3865 = vld [vmem:[%s288 + $0x78] sm:$0xff]
      %v3866 = vld [vmem:[%s288 + $0x80] sm:$0xff]
      %v3867 = vld [vmem:[%s288 + $0x88] sm:$0xff]
      %v3868 = vld [vmem:[%s288 + $0x90] sm:$0xff]
      %v3869 = vld [vmem:[%s288 + $0x98] sm:$0xff]
      %v3870 = vld [vmem:[%s288 + $0xa0] sm:$0xff]
      %v3871 = vld [vmem:[%s288 + $0xa8] sm:$0xff]
      %v3872 = vld [vmem:[%s288 + $0xb0] sm:$0xff]
      %v3873 = vld [vmem:[%s288 + $0xb8] sm:$0xff]
      %v3874 = vld [vmem:[%s288 + $0xc0] sm:$0xff]
      %v3875 = vld [vmem:[%s288 + $0xc8] sm:$0xff]
      %v3876 = vld [vmem:[%s288 + $0xd0] sm:$0xff]
      %v3877 = vld [vmem:[%s288 + $0xd8] sm:$0xff]
      %v3878 = vld [vmem:[%s288 + $0xe0] sm:$0xff]
      %v3879 = vld [vmem:[%s288 + $0xe8] sm:$0xff]
      %v3880 = vld [vmem:[%s288 + $0xf0] sm:$0xff]
      %v3881 = vld [vmem:[%s288 + $0xf8] sm:$0xff]
      %v3882 = vmul.f32 %v3850, 0.25
      %v3883 = vmul.f32 %v3851, 0.25
      %v3884 = vmul.f32 %v3852, 0.25
      %v3885 = vmul.f32 %v3853, 0.25
      %v3886 = vmul.f32 %v3854, 0.25
      %v3887 = vmul.f32 %v3855, 0.25
      %v3888 = vmul.f32 %v3856, 0.25
      %v3889 = vmul.f32 %v3857, 0.25
      %v3890 = vmul.f32 %v3858, 0.25
      %v3891 = vmul.f32 %v3859, 0.25
      %v3892 = vmul.f32 %v3860, 0.25
      %v3893 = vmul.f32 %v3861, 0.25
      %v3894 = vmul.f32 %v3862, 0.25
      %v3895 = vmul.f32 %v3863, 0.25
      %v3896 = vmul.f32 %v3864, 0.25
      %v3897 = vmul.f32 %v3865, 0.25
      %v3898 = vmul.f32 %v3866, 0.25
      %v3899 = vmul.f32 %v3867, 0.25
      %v3900 = vmul.f32 %v3868, 0.25
      %v3901 = vmul.f32 %v3869, 0.25
      %v3902 = vmul.f32 %v3870, 0.25
      %v3903 = vmul.f32 %v3871, 0.25
      %v3904 = vmul.f32 %v3872, 0.25
      %v3905 = vmul.f32 %v3873, 0.25
      %v3906 = vmul.f32 %v3874, 0.25
      %v3907 = vmul.f32 %v3875, 0.25
      %v3908 = vmul.f32 %v3876, 0.25
      %v3909 = vmul.f32 %v3877, 0.25
      %v3910 = vmul.f32 %v3878, 0.25
      %v3911 = vmul.f32 %v3879, 0.25
      %v3912 = vmul.f32 %v3880, 0.25
      %v3913 = vmul.f32 %v3881, 0.25
      %v3914 = vld [vmem:[%s6] sm:$0xff]
      %v3915 = vld [vmem:[%s6 + $0x8] sm:$0xff]
      %v3916 = vld [vmem:[%s6 + $0x10] sm:$0xff]
      %v3917 = vld [vmem:[%s6 + $0x18] sm:$0xff]
      %v3918 = vld [vmem:[%s6 + $0x20] sm:$0xff]
      %v3919 = vld [vmem:[%s6 + $0x28] sm:$0xff]
      %v3920 = vld [vmem:[%s6 + $0x30] sm:$0xff]
      %v3921 = vld [vmem:[%s6 + $0x38] sm:$0xff]
      %v3922 = vld [vmem:[%s6 + $0x40] sm:$0xff]
      %v3923 = vld [vmem:[%s6 + $0x48] sm:$0xff]
      %v3924 = vld [vmem:[%s6 + $0x50] sm:$0xff]
      %v3925 = vld [vmem:[%s6 + $0x58] sm:$0xff]
      %v3926 = vld [vmem:[%s6 + $0x60] sm:$0xff]
      %v3927 = vld [vmem:[%s6 + $0x68] sm:$0xff]
      %v3928 = vld [vmem:[%s6 + $0x70] sm:$0xff]
      %v3929 = vld [vmem:[%s6 + $0x78] sm:$0xff]
      %v3930 = vld [vmem:[%s6 + $0x80] sm:$0xff]
      %v3931 = vld [vmem:[%s6 + $0x88] sm:$0xff]
      %v3932 = vld [vmem:[%s6 + $0x90] sm:$0xff]
      %v3933 = vld [vmem:[%s6 + $0x98] sm:$0xff]
      %v3934 = vld [vmem:[%s6 + $0xa0] sm:$0xff]
      %v3935 = vld [vmem:[%s6 + $0xa8] sm:$0xff]
      %v3936 = vld [vmem:[%s6 + $0xb0] sm:$0xff]
      %v3937 = vld [vmem:[%s6 + $0xb8] sm:$0xff]
      %v3938 = vld [vmem:[%s6 + $0xc0] sm:$0xff]
      %v3939 = vld [vmem:[%s6 + $0xc8] sm:$0xff]
      %v3940 = vld [vmem:[%s6 + $0xd0] sm:$0xff]
      %v3941 = vld [vmem:[%s6 + $0xd8] sm:$0xff]
      %v3942 = vld [vmem:[%s6 + $0xe0] sm:$0xff]
      %v3943 = vld [vmem:[%s6 + $0xe8] sm:$0xff]
      %v3944 = vld [vmem:[%s6 + $0xf0] sm:$0xff]
      %v3945 = vld [vmem:[%s6 + $0xf8] sm:$0xff]
      %v3947 = vsel %vm1121, %v3882, 0
      %v3950 = vsel %vm1121, %v3883, 0
      %v3953 = vsel %vm1121, %v3884, 0
      %v3956 = vsel %vm1121, %v3885, 0
      %v3959 = vsel %vm1121, %v3886, 0
      %v3962 = vsel %vm1121, %v3887, 0
      %v3965 = vsel %vm1121, %v3888, 0
      %v3968 = vsel %vm1121, %v3889, 0
      %v3971 = vsel %vm1121, %v984, 0
      %v3974 = vsel %vm1121, %v985, 0
      %v3977 = vsel %vm1121, %v986, 0
      %v3980 = vsel %vm1121, %v987, 0
      %v3983 = vsel %vm1121, %v988, 0
      %v3986 = vsel %vm1121, %v989, 0
      %v3989 = vsel %vm1121, %v990, 0
      %v3992 = vsel %vm1121, %v991, 0
      %3994 = vmatprep.subr.mxu0 0.0
      %3995 = vmatpush1.xpose.msra.mxu0 %v3971
      %3996 = vmatprep.subr.mxu0 0.0
      %3997 = vmatpush1.xpose.msra.mxu0 %v3974
      %3998 = vmatprep.subr.mxu0 0.0
      %3999 = vmatpush1.xpose.msra.mxu0 %v3977
      %4000 = vmatprep.subr.mxu0 0.0
      %4001 = vmatpush1.xpose.msra.mxu0 %v3980
      %4002 = vmatprep.subr.mxu0 0.0
      %4003 = vmatpush1.xpose.msra.mxu0 %v3983
      %4004 = vmatprep.subr.mxu0 0.0
      %4005 = vmatpush1.xpose.msra.mxu0 %v3986
      %4006 = vmatprep.subr.mxu0 0.0
      %4007 = vmatpush1.xpose.msra.mxu0 %v3989
      %4008 = vmatprep.subr.mxu0 0.0
      %4009 = vmatpush1.xpose.msra.mxu0 %v3992
      %4010 = vmatprep.subr.mxu0 0.0
      %4011 = vmatpush1.xpose.msra.mxu0 0.0
      %4012 = vmatprep.subr.mxu0 0.0
      %4013 = vmatpush1.xpose.msra.mxu0 0.0
      %4014 = vmatprep.subr.mxu0 0.0
      %4015 = vmatpush1.xpose.msra.mxu0 0.0
      %4016 = vmatprep.subr.mxu0 0.0
      %4017 = vmatpush1.xpose.msra.mxu0 0.0
      %4018 = vmatprep.subr.mxu0 0.0
      %4019 = vmatpush1.xpose.msra.mxu0 0.0
      %4020 = vmatprep.subr.mxu0 0.0
      %4021 = vmatpush1.xpose.msra.mxu0 0.0
      %4022 = vmatprep.subr.mxu0 0.0
      %4023 = vmatpush1.xpose.msra.mxu0 0.0
      %4024 = vmatprep.subr.mxu0 0.0
      %4025 = vmatpush1.xpose.msra.mxu0 0.0
      %4026 = vmatprep.subr.mxu0 0.0
      %4027 = vmatpush1.xpose.msra.mxu0 0.0
      %4028 = vmatprep.subr.mxu0 0.0
      %4029 = vmatpush1.xpose.msra.mxu0 0.0
      %4030 = vmatprep.subr.mxu0 0.0
      %4031 = vmatpush1.xpose.msra.mxu0 0.0
      %4032 = vmatprep.subr.mxu0 0.0
      %4033 = vmatpush1.xpose.msra.mxu0 0.0
      %4034 = vmatprep.subr.mxu0 0.0
      %4035 = vmatpush1.xpose.msra.mxu0 0.0
      %4036 = vmatprep.subr.mxu0 0.0
      %4037 = vmatpush1.xpose.msra.mxu0 0.0
      %4038 = vmatprep.subr.mxu0 0.0
      %4039 = vmatpush1.xpose.msra.mxu0 0.0
      %4040 = vmatprep.subr.mxu0 0.0
      %4041 = vmatpush1.xpose.msra.mxu0 0.0
      %4042 = vmatprep.subr.mxu0 0.0
      %4043 = vmatpush1.xpose.msra.mxu0 0.0
      %4044 = vmatprep.subr.mxu0 0.0
      %4045 = vmatpush1.xpose.msra.mxu0 0.0
      %4046 = vmatprep.subr.mxu0 0.0
      %4047 = vmatpush1.xpose.msra.mxu0 0.0
      %4048 = vmatprep.subr.mxu0 0.0
      %4049 = vmatpush1.xpose.msra.mxu0 0.0
      %4050 = vmatprep.subr.mxu0 0.0
      %4051 = vmatpush1.xpose.msra.mxu0 0.0
      %4052 = vmatprep.subr.mxu0 0.0
      %4053 = vmatpush1.xpose.msra.mxu0 0.0
      %4054 = vmatprep.subr.mxu0 0.0
      %4055 = vmatpush1.xpose.msra.mxu0 0.0
      %4056 = vmatprep.subr.mxu0 0.0
      %4057 = vmatpush1.xpose.msra.mxu0 0.0
      %4058 = vmatprep.mubr.f32.mxu0 0.0
      %4059 = vmatmul.mubr.f32.gmra.mrb[0].mxu0 %v3947
      %v4060 = vpop.f32.mrb[0].mxu0
      %v4061 = vadd.f32 %v3914, %v4060
      %v4062 = vpop.f32.mrb[0].mxu0
      %4063 = vmatprep.mubr.f32.mxu0 0.0
      %4064 = vmatmul.mubr.f32.gmra.mrb[0].mxu0 %v3950
      %v4065 = vpop.f32.mrb[0].mxu0
      %v4066 = vadd.f32 %v3915, %v4065
      %v4067 = vpop.f32.mrb[0].mxu0
      %4068 = vmatprep.mubr.f32.mxu0 0.0
      %4069 = vmatmul.mubr.f32.gmra.mrb[0].mxu0 %v3953
      %v4070 = vpop.f32.mrb[0].mxu0
      %v4071 = vadd.f32 %v3916, %v4070
      %v4072 = vpop.f32.mrb[0].mxu0
      %4073 = vmatprep.mubr.f32.mxu0 0.0
      %4074 = vmatmul.mubr.f32.gmra.mrb[0].mxu0 %v3956
      %v4075 = vpop.f32.mrb[0].mxu0
      %v4076 = vadd.f32 %v3917, %v4075
      %v4077 = vpop.f32.mrb[0].mxu0
      %4078 = vmatprep.mubr.f32.mxu0 0.0
      %4079 = vmatmul.mubr.f32.gmra.mrb[0].mxu0 %v3959
      %v4080 = vpop.f32.mrb[0].mxu0
      %v4081 = vadd.f32 %v3918, %v4080
      %v4082 = vpop.f32.mrb[0].mxu0
      %4083 = vmatprep.mubr.f32.mxu0 0.0
      %4084 = vmatmul.mubr.f32.gmra.mrb[0].mxu0 %v3962
      %v4085 = vpop.f32.mrb[0].mxu0
      %v4086 = vadd.f32 %v3919, %v4085
      %v4087 = vpop.f32.mrb[0].mxu0
      %4088 = vmatprep.mubr.f32.mxu0 0.0
      %4089 = vmatmul.mubr.f32.gmra.mrb[0].mxu0 %v3965
      %v4090 = vpop.f32.mrb[0].mxu0
      %v4091 = vadd.f32 %v3920, %v4090
      %v4092 = vpop.f32.mrb[0].mxu0
      %4093 = vmatprep.mubr.f32.mxu0 0.0
      %4094 = vmatmul.mubr.f32.gmra.mrb[0].mxu0 %v3968
      %v4095 = vpop.f32.mrb[0].mxu0
      %v4096 = vadd.f32 %v3921, %v4095
      %v4097 = vpop.f32.mrb[0].mxu0
      %4098 = vdwg.mxu0
      %v4100 = vsel %vm1121, %v3890, 0
      %v4103 = vsel %vm1121, %v3891, 0
      %v4106 = vsel %vm1121, %v3892, 0
      %v4109 = vsel %vm1121, %v3893, 0
      %v4112 = vsel %vm1121, %v3894, 0
      %v4115 = vsel %vm1121, %v3895, 0
      %v4118 = vsel %vm1121, %v3896, 0
      %v4121 = vsel %vm1121, %v3897, 0
      %v4124 = vsel %vm1121, %v992, 0
      %v4127 = vsel %vm1121, %v993, 0
      %v4130 = vsel %vm1121, %v994, 0
      %v4133 = vsel %vm1121, %v995, 0
      %v4136 = vsel %vm1121, %v996, 0
      %v4139 = vsel %vm1121, %v997, 0
      %v4142 = vsel %vm1121, %v998, 0
      %v4145 = vsel %vm1121, %v999, 0
      %4147 = vmatprep.subr.mxu0 0.0
      %4148 = vmatpush1.xpose.msra.mxu0 %v4124
      %4149 = vmatprep.subr.mxu0 0.0
      %4150 = vmatpush1.xpose.msra.mxu0 %v4127
      %4151 = vmatprep.subr.mxu0 0.0
      %4152 = vmatpush1.xpose.msra.mxu0 %v4130
      %4153 = vmatprep.subr.mxu0 0.0
      %4154 = vmatpush1.xpose.msra.mxu0 %v4133
      %4155 = vmatprep.subr.mxu0 0.0
      %4156 = vmatpush1.xpose.msra.mxu0 %v4136
      %4157 = vmatprep.subr.mxu0 0.0
      %4158 = vmatpush1.xpose.msra.mxu0 %v4139
      %4159 = vmatprep.subr.mxu0 0.0
      %4160 = vmatpush1.xpose.msra.mxu0 %v4142
      %4161 = vmatprep.subr.mxu0 0.0
      %4162 = vmatpush1.xpose.msra.mxu0 %v4145
      %4163 = vmatprep.subr.mxu0 0.0
      %4164 = vmatpush1.xpose.msra.mxu0 0.0
      %4165 = vmatprep.subr.mxu0 0.0
      %4166 = vmatpush1.xpose.msra.mxu0 0.0
      %4167 = vmatprep.subr.mxu0 0.0
      %4168 = vmatpush1.xpose.msra.mxu0 0.0
      %4169 = vmatprep.subr.mxu0 0.0
      %4170 = vmatpush1.xpose.msra.mxu0 0.0
      %4171 = vmatprep.subr.mxu0 0.0
      %4172 = vmatpush1.xpose.msra.mxu0 0.0
      %4173 = vmatprep.subr.mxu0 0.0
      %4174 = vmatpush1.xpose.msra.mxu0 0.0
      %4175 = vmatprep.subr.mxu0 0.0
      %4176 = vmatpush1.xpose.msra.mxu0 0.0
      %4177 = vmatprep.subr.mxu0 0.0
      %4178 = vmatpush1.xpose.msra.mxu0 0.0
      %4179 = vmatprep.subr.mxu0 0.0
      %4180 = vmatpush1.xpose.msra.mxu0 0.0
      %4181 = vmatprep.subr.mxu0 0.0
      %4182 = vmatpush1.xpose.msra.mxu0 0.0
      %4183 = vmatprep.subr.mxu0 0.0
      %4184 = vmatpush1.xpose.msra.mxu0 0.0
      %4185 = vmatprep.subr.mxu0 0.0
      %4186 = vmatpush1.xpose.msra.mxu0 0.0
      %4187 = vmatprep.subr.mxu0 0.0
      %4188 = vmatpush1.xpose.msra.mxu0 0.0
      %4189 = vmatprep.subr.mxu0 0.0
      %4190 = vmatpush1.xpose.msra.mxu0 0.0
      %4191 = vmatprep.subr.mxu0 0.0
      %4192 = vmatpush1.xpose.msra.mxu0 0.0
      %4193 = vmatprep.subr.mxu0 0.0
      %4194 = vmatpush1.xpose.msra.mxu0 0.0
      %4195 = vmatprep.subr.mxu0 0.0
      %4196 = vmatpush1.xpose.msra.mxu0 0.0
      %4197 = vmatprep.subr.mxu0 0.0
      %4198 = vmatpush1.xpose.msra.mxu0 0.0
      %4199 = vmatprep.subr.mxu0 0.0
      %4200 = vmatpush1.xpose.msra.mxu0 0.0
      %4201 = vmatprep.subr.mxu0 0.0
      %4202 = vmatpush1.xpose.msra.mxu0 0.0
      %4203 = vmatprep.subr.mxu0 0.0
      %4204 = vmatpush1.xpose.msra.mxu0 0.0
      %4205 = vmatprep.subr.mxu0 0.0
      %4206 = vmatpush1.xpose.msra.mxu0 0.0
      %4207 = vmatprep.subr.mxu0 0.0
      %4208 = vmatpush1.xpose.msra.mxu0 0.0
      %4209 = vmatprep.subr.mxu0 0.0
      %4210 = vmatpush1.xpose.msra.mxu0 0.0
      %4211 = vmatprep.mubr.f32.mxu0 0.0
      %4212 = vmatmul.mubr.f32.gmra.mrb[0].mxu0 %v4100
      %v4213 = vpop.f32.mrb[0].mxu0
      %v4214 = vadd.f32 %v3922, %v4213
      %v4215 = vpop.f32.mrb[0].mxu0
      %4216 = vmatprep.mubr.f32.mxu0 0.0
      %4217 = vmatmul.mubr.f32.gmra.mrb[0].mxu0 %v4103
      %v4218 = vpop.f32.mrb[0].mxu0
      %v4219 = vadd.f32 %v3923, %v4218
      %v4220 = vpop.f32.mrb[0].mxu0
      %4221 = vmatprep.mubr.f32.mxu0 0.0
      %4222 = vmatmul.mubr.f32.gmra.mrb[0].mxu0 %v4106
      %v4223 = vpop.f32.mrb[0].mxu0
      %v4224 = vadd.f32 %v3924, %v4223
      %v4225 = vpop.f32.mrb[0].mxu0
      %4226 = vmatprep.mubr.f32.mxu0 0.0
      %4227 = vmatmul.mubr.f32.gmra.mrb[0].mxu0 %v4109
      %v4228 = vpop.f32.mrb[0].mxu0
      %v4229 = vadd.f32 %v3925, %v4228
      %v4230 = vpop.f32.mrb[0].mxu0
      %4231 = vmatprep.mubr.f32.mxu0 0.0
      %4232 = vmatmul.mubr.f32.gmra.mrb[0].mxu0 %v4112
      %v4233 = vpop.f32.mrb[0].mxu0
      %v4234 = vadd.f32 %v3926, %v4233
      %v4235 = vpop.f32.mrb[0].mxu0
      %4236 = vmatprep.mubr.f32.mxu0 0.0
      %4237 = vmatmul.mubr.f32.gmra.mrb[0].mxu0 %v4115
      %v4238 = vpop.f32.mrb[0].mxu0
      %v4239 = vadd.f32 %v3927, %v4238
      %v4240 = vpop.f32.mrb[0].mxu0
      %4241 = vmatprep.mubr.f32.mxu0 0.0
      %4242 = vmatmul.mubr.f32.gmra.mrb[0].mxu0 %v4118
      %v4243 = vpop.f32.mrb[0].mxu0
      %v4244 = vadd.f32 %v3928, %v4243
      %v4245 = vpop.f32.mrb[0].mxu0
      %4246 = vmatprep.mubr.f32.mxu0 0.0
      %4247 = vmatmul.mubr.f32.gmra.mrb[0].mxu0 %v4121
      %v4248 = vpop.f32.mrb[0].mxu0
      %v4249 = vadd.f32 %v3929, %v4248
      %v4250 = vpop.f32.mrb[0].mxu0
      %4251 = vdwg.mxu0
      %v4253 = vsel %vm1121, %v3898, 0
      %v4256 = vsel %vm1121, %v3899, 0
      %v4259 = vsel %vm1121, %v3900, 0
      %v4262 = vsel %vm1121, %v3901, 0
      %v4265 = vsel %vm1121, %v3902, 0
      %v4268 = vsel %vm1121, %v3903, 0
      %v4271 = vsel %vm1121, %v3904, 0
      %v4274 = vsel %vm1121, %v3905, 0
      %v4277 = vsel %vm1121, %v1000, 0
      %v4280 = vsel %vm1121, %v1001, 0
      %v4283 = vsel %vm1121, %v1002, 0
      %v4286 = vsel %vm1121, %v1003, 0
      %v4289 = vsel %vm1121, %v1004, 0
      %v4292 = vsel %vm1121, %v1005, 0
      %v4295 = vsel %vm1121, %v1006, 0
      %v4298 = vsel %vm1121, %v1007, 0
      %4300 = vmatprep.subr.mxu0 0.0
      %4301 = vmatpush1.xpose.msra.mxu0 %v4277
      %4302 = vmatprep.subr.mxu0 0.0
      %4303 = vmatpush1.xpose.msra.mxu0 %v4280
      %4304 = vmatprep.subr.mxu0 0.0
      %4305 = vmatpush1.xpose.msra.mxu0 %v4283
      %4306 = vmatprep.subr.mxu0 0.0
      %4307 = vmatpush1.xpose.msra.mxu0 %v4286
      %4308 = vmatprep.subr.mxu0 0.0
      %4309 = vmatpush1.xpose.msra.mxu0 %v4289
      %4310 = vmatprep.subr.mxu0 0.0
      %4311 = vmatpush1.xpose.msra.mxu0 %v4292
      %4312 = vmatprep.subr.mxu0 0.0
      %4313 = vmatpush1.xpose.msra.mxu0 %v4295
      %4314 = vmatprep.subr.mxu0 0.0
      %4315 = vmatpush1.xpose.msra.mxu0 %v4298
      %4316 = vmatprep.subr.mxu0 0.0
      %4317 = vmatpush1.xpose.msra.mxu0 0.0
      %4318 = vmatprep.subr.mxu0 0.0
      %4319 = vmatpush1.xpose.msra.mxu0 0.0
      %4320 = vmatprep.subr.mxu0 0.0
      %4321 = vmatpush1.xpose.msra.mxu0 0.0
      %4322 = vmatprep.subr.mxu0 0.0
      %4323 = vmatpush1.xpose.msra.mxu0 0.0
      %4324 = vmatprep.subr.mxu0 0.0
      %4325 = vmatpush1.xpose.msra.mxu0 0.0
      %4326 = vmatprep.subr.mxu0 0.0
      %4327 = vmatpush1.xpose.msra.mxu0 0.0
      %4328 = vmatprep.subr.mxu0 0.0
      %4329 = vmatpush1.xpose.msra.mxu0 0.0
      %4330 = vmatprep.subr.mxu0 0.0
      %4331 = vmatpush1.xpose.msra.mxu0 0.0
      %4332 = vmatprep.subr.mxu0 0.0
      %4333 = vmatpush1.xpose.msra.mxu0 0.0
      %4334 = vmatprep.subr.mxu0 0.0
      %4335 = vmatpush1.xpose.msra.mxu0 0.0
      %4336 = vmatprep.subr.mxu0 0.0
      %4337 = vmatpush1.xpose.msra.mxu0 0.0
      %4338 = vmatprep.subr.mxu0 0.0
      %4339 = vmatpush1.xpose.msra.mxu0 0.0
      %4340 = vmatprep.subr.mxu0 0.0
      %4341 = vmatpush1.xpose.msra.mxu0 0.0
      %4342 = vmatprep.subr.mxu0 0.0
      %4343 = vmatpush1.xpose.msra.mxu0 0.0
      %4344 = vmatprep.subr.mxu0 0.0
      %4345 = vmatpush1.xpose.msra.mxu0 0.0
      %4346 = vmatprep.subr.mxu0 0.0
      %4347 = vmatpush1.xpose.msra.mxu0 0.0
      %4348 = vmatprep.subr.mxu0 0.0
      %4349 = vmatpush1.xpose.msra.mxu0 0.0
      %4350 = vmatprep.subr.mxu0 0.0
      %4351 = vmatpush1.xpose.msra.mxu0 0.0
      %4352 = vmatprep.subr.mxu0 0.0
      %4353 = vmatpush1.xpose.msra.mxu0 0.0
      %4354 = vmatprep.subr.mxu0 0.0
      %4355 = vmatpush1.xpose.msra.mxu0 0.0
      %4356 = vmatprep.subr.mxu0 0.0
      %4357 = vmatpush1.xpose.msra.mxu0 0.0
      %4358 = vmatprep.subr.mxu0 0.0
      %4359 = vmatpush1.xpose.msra.mxu0 0.0
      %4360 = vmatprep.subr.mxu0 0.0
      %4361 = vmatpush1.xpose.msra.mxu0 0.0
      %4362 = vmatprep.subr.mxu0 0.0
      %4363 = vmatpush1.xpose.msra.mxu0 0.0
      %4364 = vmatprep.mubr.f32.mxu0 0.0
      %4365 = vmatmul.mubr.f32.gmra.mrb[0].mxu0 %v4253
      %v4366 = vpop.f32.mrb[0].mxu0
      %v4367 = vadd.f32 %v3930, %v4366
      %v4368 = vpop.f32.mrb[0].mxu0
      %4369 = vmatprep.mubr.f32.mxu0 0.0
      %4370 = vmatmul.mubr.f32.gmra.mrb[0].mxu0 %v4256
      %v4371 = vpop.f32.mrb[0].mxu0
      %v4372 = vadd.f32 %v3931, %v4371
      %v4373 = vpop.f32.mrb[0].mxu0
      %4374 = vmatprep.mubr.f32.mxu0 0.0
      %4375 = vmatmul.mubr.f32.gmra.mrb[0].mxu0 %v4259
      %v4376 = vpop.f32.mrb[0].mxu0
      %v4377 = vadd.f32 %v3932, %v4376
      %v4378 = vpop.f32.mrb[0].mxu0
      %4379 = vmatprep.mubr.f32.mxu0 0.0
      %4380 = vmatmul.mubr.f32.gmra.mrb[0].mxu0 %v4262
      %v4381 = vpop.f32.mrb[0].mxu0
      %v4382 = vadd.f32 %v3933, %v4381
      %v4383 = vpop.f32.mrb[0].mxu0
      %4384 = vmatprep.mubr.f32.mxu0 0.0
      %4385 = vmatmul.mubr.f32.gmra.mrb[0].mxu0 %v4265
      %v4386 = vpop.f32.mrb[0].mxu0
      %v4387 = vadd.f32 %v3934, %v4386
      %v4388 = vpop.f32.mrb[0].mxu0
      %4389 = vmatprep.mubr.f32.mxu0 0.0
      %4390 = vmatmul.mubr.f32.gmra.mrb[0].mxu0 %v4268
      %v4391 = vpop.f32.mrb[0].mxu0
      %v4392 = vadd.f32 %v3935, %v4391
      %v4393 = vpop.f32.mrb[0].mxu0
      %4394 = vmatprep.mubr.f32.mxu0 0.0
      %4395 = vmatmul.mubr.f32.gmra.mrb[0].mxu0 %v4271
      %v4396 = vpop.f32.mrb[0].mxu0
      %v4397 = vadd.f32 %v3936, %v4396
      %v4398 = vpop.f32.mrb[0].mxu0
      %4399 = vmatprep.mubr.f32.mxu0 0.0
      %4400 = vmatmul.mubr.f32.gmra.mrb[0].mxu0 %v4274
      %v4401 = vpop.f32.mrb[0].mxu0
      %v4402 = vadd.f32 %v3937, %v4401
      %v4403 = vpop.f32.mrb[0].mxu0
      %4404 = vdwg.mxu0
      %v4406 = vsel %vm1121, %v3906, 0
      %v4409 = vsel %vm1121, %v3907, 0
      %v4412 = vsel %vm1121, %v3908, 0
      %v4415 = vsel %vm1121, %v3909, 0
      %v4418 = vsel %vm1121, %v3910, 0
      %v4421 = vsel %vm1121, %v3911, 0
      %v4424 = vsel %vm1121, %v3912, 0
      %v4427 = vsel %vm1121, %v3913, 0
      %v4430 = vsel %vm1121, %v1008, 0
      %v4433 = vsel %vm1121, %v1009, 0
      %v4436 = vsel %vm1121, %v1010, 0
      %v4439 = vsel %vm1121, %v1011, 0
      %v4442 = vsel %vm1121, %v1012, 0
      %v4445 = vsel %vm1121, %v1013, 0
      %v4448 = vsel %vm1121, %v1014, 0
      %v4451 = vsel %vm1121, %v1015, 0
      %4453 = vmatprep.subr.mxu0 0.0
      %4454 = vmatpush1.xpose.msra.mxu0 %v4430
      %4455 = vmatprep.subr.mxu0 0.0
      %4456 = vmatpush1.xpose.msra.mxu0 %v4433
      %4457 = vmatprep.subr.mxu0 0.0
      %4458 = vmatpush1.xpose.msra.mxu0 %v4436
      %4459 = vmatprep.subr.mxu0 0.0
      %4460 = vmatpush1.xpose.msra.mxu0 %v4439
      %4461 = vmatprep.subr.mxu0 0.0
      %4462 = vmatpush1.xpose.msra.mxu0 %v4442
      %4463 = vmatprep.subr.mxu0 0.0
      %4464 = vmatpush1.xpose.msra.mxu0 %v4445
      %4465 = vmatprep.subr.mxu0 0.0
      %4466 = vmatpush1.xpose.msra.mxu0 %v4448
      %4467 = vmatprep.subr.mxu0 0.0
      %4468 = vmatpush1.xpose.msra.mxu0 %v4451
      %4469 = vmatprep.subr.mxu0 0.0
      %4470 = vmatpush1.xpose.msra.mxu0 0.0
      %4471 = vmatprep.subr.mxu0 0.0
      %4472 = vmatpush1.xpose.msra.mxu0 0.0
      %4473 = vmatprep.subr.mxu0 0.0
      %4474 = vmatpush1.xpose.msra.mxu0 0.0
      %4475 = vmatprep.subr.mxu0 0.0
      %4476 = vmatpush1.xpose.msra.mxu0 0.0
      %4477 = vmatprep.subr.mxu0 0.0
      %4478 = vmatpush1.xpose.msra.mxu0 0.0
      %4479 = vmatprep.subr.mxu0 0.0
      %4480 = vmatpush1.xpose.msra.mxu0 0.0
      %4481 = vmatprep.subr.mxu0 0.0
      %4482 = vmatpush1.xpose.msra.mxu0 0.0
      %4483 = vmatprep.subr.mxu0 0.0
      %4484 = vmatpush1.xpose.msra.mxu0 0.0
      %4485 = vmatprep.subr.mxu0 0.0
      %4486 = vmatpush1.xpose.msra.mxu0 0.0
      %4487 = vmatprep.subr.mxu0 0.0
      %4488 = vmatpush1.xpose.msra.mxu0 0.0
      %4489 = vmatprep.subr.mxu0 0.0
      %4490 = vmatpush1.xpose.msra.mxu0 0.0
      %4491 = vmatprep.subr.mxu0 0.0
      %4492 = vmatpush1.xpose.msra.mxu0 0.0
      %4493 = vmatprep.subr.mxu0 0.0
      %4494 = vmatpush1.xpose.msra.mxu0 0.0
      %4495 = vmatprep.subr.mxu0 0.0
      %4496 = vmatpush1.xpose.msra.mxu0 0.0
      %4497 = vmatprep.subr.mxu0 0.0
      %4498 = vmatpush1.xpose.msra.mxu0 0.0
      %4499 = vmatprep.subr.mxu0 0.0
      %4500 = vmatpush1.xpose.msra.mxu0 0.0
      %4501 = vmatprep.subr.mxu0 0.0
      %4502 = vmatpush1.xpose.msra.mxu0 0.0
      %4503 = vmatprep.subr.mxu0 0.0
      %4504 = vmatpush1.xpose.msra.mxu0 0.0
      %4505 = vmatprep.subr.mxu0 0.0
      %4506 = vmatpush1.xpose.msra.mxu0 0.0
      %4507 = vmatprep.subr.mxu0 0.0
      %4508 = vmatpush1.xpose.msra.mxu0 0.0
      %4509 = vmatprep.subr.mxu0 0.0
      %4510 = vmatpush1.xpose.msra.mxu0 0.0
      %4511 = vmatprep.subr.mxu0 0.0
      %4512 = vmatpush1.xpose.msra.mxu0 0.0
      %4513 = vmatprep.subr.mxu0 0.0
      %4514 = vmatpush1.xpose.msra.mxu0 0.0
      %4515 = vmatprep.subr.mxu0 0.0
      %4516 = vmatpush1.xpose.msra.mxu0 0.0
      %4517 = vmatprep.mubr.f32.mxu0 0.0
      %4518 = vmatmul.mubr.f32.gmra.mrb[0].mxu0 %v4406
      %v4519 = vpop.f32.mrb[0].mxu0
      %v4520 = vadd.f32 %v3938, %v4519
      %v4521 = vpop.f32.mrb[0].mxu0
      %4522 = vmatprep.mubr.f32.mxu0 0.0
      %4523 = vmatmul.mubr.f32.gmra.mrb[0].mxu0 %v4409
      %v4524 = vpop.f32.mrb[0].mxu0
      %v4525 = vadd.f32 %v3939, %v4524
      %v4526 = vpop.f32.mrb[0].mxu0
      %4527 = vmatprep.mubr.f32.mxu0 0.0
      %4528 = vmatmul.mubr.f32.gmra.mrb[0].mxu0 %v4412
      %v4529 = vpop.f32.mrb[0].mxu0
      %v4530 = vadd.f32 %v3940, %v4529
      %v4531 = vpop.f32.mrb[0].mxu0
      %4532 = vmatprep.mubr.f32.mxu0 0.0
      %4533 = vmatmul.mubr.f32.gmra.mrb[0].mxu0 %v4415
      %v4534 = vpop.f32.mrb[0].mxu0
      %v4535 = vadd.f32 %v3941, %v4534
      %v4536 = vpop.f32.mrb[0].mxu0
      %4537 = vmatprep.mubr.f32.mxu0 0.0
      %4538 = vmatmul.mubr.f32.gmra.mrb[0].mxu0 %v4418
      %v4539 = vpop.f32.mrb[0].mxu0
      %v4540 = vadd.f32 %v3942, %v4539
      %v4541 = vpop.f32.mrb[0].mxu0
      %4542 = vmatprep.mubr.f32.mxu0 0.0
      %4543 = vmatmul.mubr.f32.gmra.mrb[0].mxu0 %v4421
      %v4544 = vpop.f32.mrb[0].mxu0
      %v4545 = vadd.f32 %v3943, %v4544
      %v4546 = vpop.f32.mrb[0].mxu0
      %4547 = vmatprep.mubr.f32.mxu0 0.0
      %4548 = vmatmul.mubr.f32.gmra.mrb[0].mxu0 %v4424
      %v4549 = vpop.f32.mrb[0].mxu0
      %v4550 = vadd.f32 %v3944, %v4549
      %v4551 = vpop.f32.mrb[0].mxu0
      %4552 = vmatprep.mubr.f32.mxu0 0.0
      %4553 = vmatmul.mubr.f32.gmra.mrb[0].mxu0 %v4427
      %v4554 = vpop.f32.mrb[0].mxu0
      %v4555 = vadd.f32 %v3945, %v4554
      %v4556 = vpop.f32.mrb[0].mxu0
      %4557 = vdwg.mxu0
      %v4558 = vsel %vm423, %v4061, -inf
      %4559 = vmax.xlane.f32.xlu0 %v4558
      %v4560 = vpop.xlane.xlu0 %4559
      %v4561 = vsel %vm423, %v4066, -inf
      %4562 = vmax.xlane.f32.xlu0 %v4561
      %v4563 = vpop.xlane.xlu0 %4562
      %v4564 = vsel %vm423, %v4071, -inf
      %4565 = vmax.xlane.f32.xlu0 %v4564
      %v4566 = vpop.xlane.xlu0 %4565
      %v4567 = vsel %vm423, %v4076, -inf
      %4568 = vmax.xlane.f32.xlu0 %v4567
      %v4569 = vpop.xlane.xlu0 %4568
      %v4570 = vsel %vm423, %v4081, -inf
      %4571 = vmax.xlane.f32.xlu0 %v4570
      %v4572 = vpop.xlane.xlu0 %4571
      %v4573 = vsel %vm423, %v4086, -inf
      %4574 = vmax.xlane.f32.xlu0 %v4573
      %v4575 = vpop.xlane.xlu0 %4574
      %v4576 = vsel %vm423, %v4091, -inf
      %4577 = vmax.xlane.f32.xlu0 %v4576
      %v4578 = vpop.xlane.xlu0 %4577
      %v4579 = vsel %vm423, %v4096, -inf
      %4580 = vmax.xlane.f32.xlu0 %v4579
      %v4581 = vpop.xlane.xlu0 %4580
      %v4582 = vsel %vm423, %v4214, -inf
      %4583 = vmax.xlane.f32.xlu0 %v4582
      %v4584 = vpop.xlane.xlu0 %4583
      %v4585 = vsel %vm423, %v4219, -inf
      %4586 = vmax.xlane.f32.xlu0 %v4585
      %v4587 = vpop.xlane.xlu0 %4586
      %v4588 = vsel %vm423, %v4224, -inf
      %4589 = vmax.xlane.f32.xlu0 %v4588
      %v4590 = vpop.xlane.xlu0 %4589
      %v4591 = vsel %vm423, %v4229, -inf
      %4592 = vmax.xlane.f32.xlu0 %v4591
      %v4593 = vpop.xlane.xlu0 %4592
      %v4594 = vsel %vm423, %v4234, -inf
      %4595 = vmax.xlane.f32.xlu0 %v4594
      %v4596 = vpop.xlane.xlu0 %4595
      %v4597 = vsel %vm423, %v4239, -inf
      %4598 = vmax.xlane.f32.xlu0 %v4597
      %v4599 = vpop.xlane.xlu0 %4598
      %v4600 = vsel %vm423, %v4244, -inf
      %4601 = vmax.xlane.f32.xlu0 %v4600
      %v4602 = vpop.xlane.xlu0 %4601
      %v4603 = vsel %vm423, %v4249, -inf
      %4604 = vmax.xlane.f32.xlu0 %v4603
      %v4605 = vpop.xlane.xlu0 %4604
      %v4606 = vsel %vm423, %v4367, -inf
      %4607 = vmax.xlane.f32.xlu0 %v4606
      %v4608 = vpop.xlane.xlu0 %4607
      %v4609 = vsel %vm423, %v4372, -inf
      %4610 = vmax.xlane.f32.xlu0 %v4609
      %v4611 = vpop.xlane.xlu0 %4610
      %v4612 = vsel %vm423, %v4377, -inf
      %4613 = vmax.xlane.f32.xlu0 %v4612
      %v4614 = vpop.xlane.xlu0 %4613
      %v4615 = vsel %vm423, %v4382, -inf
      %4616 = vmax.xlane.f32.xlu0 %v4615
      %v4617 = vpop.xlane.xlu0 %4616
      %v4618 = vsel %vm423, %v4387, -inf
      %4619 = vmax.xlane.f32.xlu0 %v4618
      %v4620 = vpop.xlane.xlu0 %4619
      %v4621 = vsel %vm423, %v4392, -inf
      %4622 = vmax.xlane.f32.xlu0 %v4621
      %v4623 = vpop.xlane.xlu0 %4622
      %v4624 = vsel %vm423, %v4397, -inf
      %4625 = vmax.xlane.f32.xlu0 %v4624
      %v4626 = vpop.xlane.xlu0 %4625
      %v4627 = vsel %vm423, %v4402, -inf
      %4628 = vmax.xlane.f32.xlu0 %v4627
      %v4629 = vpop.xlane.xlu0 %4628
      %v4630 = vsel %vm423, %v4520, -inf
      %4631 = vmax.xlane.f32.xlu0 %v4630
      %v4632 = vpop.xlane.xlu0 %4631
      %v4633 = vsel %vm423, %v4525, -inf
      %4634 = vmax.xlane.f32.xlu0 %v4633
      %v4635 = vpop.xlane.xlu0 %4634
      %v4636 = vsel %vm423, %v4530, -inf
      %4637 = vmax.xlane.f32.xlu0 %v4636
      %v4638 = vpop.xlane.xlu0 %4637
      %v4639 = vsel %vm423, %v4535, -inf
      %4640 = vmax.xlane.f32.xlu0 %v4639
      %v4641 = vpop.xlane.xlu0 %4640
      %v4642 = vsel %vm423, %v4540, -inf
      %4643 = vmax.xlane.f32.xlu0 %v4642
      %v4644 = vpop.xlane.xlu0 %4643
      %v4645 = vsel %vm423, %v4545, -inf
      %4646 = vmax.xlane.f32.xlu0 %v4645
      %v4647 = vpop.xlane.xlu0 %4646
      %v4648 = vsel %vm423, %v4550, -inf
      %4649 = vmax.xlane.f32.xlu0 %v4648
      %v4650 = vpop.xlane.xlu0 %4649
      %v4651 = vsel %vm423, %v4555, -inf
      %4652 = vmax.xlane.f32.xlu0 %v4651
      %v4653 = vpop.xlane.xlu0 %4652
      %v4654 = vsub.f32 %v4061, %v4560
      %v4655 = vsub.f32 %v4066, %v4563
      %v4656 = vsub.f32 %v4071, %v4566
      %v4657 = vsub.f32 %v4076, %v4569
      %v4658 = vsub.f32 %v4081, %v4572
      %v4659 = vsub.f32 %v4086, %v4575
      %v4660 = vsub.f32 %v4091, %v4578
      %v4661 = vsub.f32 %v4096, %v4581
      %v4662 = vsub.f32 %v4214, %v4584
      %v4663 = vsub.f32 %v4219, %v4587
      %v4664 = vsub.f32 %v4224, %v4590
      %v4665 = vsub.f32 %v4229, %v4593
      %v4666 = vsub.f32 %v4234, %v4596
      %v4667 = vsub.f32 %v4239, %v4599
      %v4668 = vsub.f32 %v4244, %v4602
      %v4669 = vsub.f32 %v4249, %v4605
      %v4670 = vsub.f32 %v4367, %v4608
      %v4671 = vsub.f32 %v4372, %v4611
      %v4672 = vsub.f32 %v4377, %v4614
      %v4673 = vsub.f32 %v4382, %v4617
      %v4674 = vsub.f32 %v4387, %v4620
      %v4675 = vsub.f32 %v4392, %v4623
      %v4676 = vsub.f32 %v4397, %v4626
      %v4677 = vsub.f32 %v4402, %v4629
      %v4678 = vsub.f32 %v4520, %v4632
      %v4679 = vsub.f32 %v4525, %v4635
      %v4680 = vsub.f32 %v4530, %v4638
      %v4681 = vsub.f32 %v4535, %v4641
      %v4682 = vsub.f32 %v4540, %v4644
      %v4683 = vsub.f32 %v4545, %v4647
      %v4684 = vsub.f32 %v4550, %v4650
      %v4685 = vsub.f32 %v4555, %v4653
      %v4686 = vmul.f32 %v4654, 1.442695
      %v4687 = vpow.pop %v4686
      %v4688 = vmul.f32 %v4655, 1.442695
      %v4689 = vpow.pop %v4688
      %v4690 = vmul.f32 %v4656, 1.442695
      %v4691 = vpow.pop %v4690
      %v4692 = vmul.f32 %v4657, 1.442695
      %v4693 = vpow.pop %v4692
      %v4694 = vmul.f32 %v4658, 1.442695
      %v4695 = vpow.pop %v4694
      %v4696 = vmul.f32 %v4659, 1.442695
      %v4697 = vpow.pop %v4696
      %v4698 = vmul.f32 %v4660, 1.442695
      %v4699 = vpow.pop %v4698
      %v4700 = vmul.f32 %v4661, 1.442695
      %v4701 = vpow.pop %v4700
      %v4702 = vmul.f32 %v4662, 1.442695
      %v4703 = vpow.pop %v4702
      %v4704 = vmul.f32 %v4663, 1.442695
      %v4705 = vpow.pop %v4704
      %v4706 = vmul.f32 %v4664, 1.442695
      %v4707 = vpow.pop %v4706
      %v4708 = vmul.f32 %v4665, 1.442695
      %v4709 = vpow.pop %v4708
      %v4710 = vmul.f32 %v4666, 1.442695
      %v4711 = vpow.pop %v4710
      %v4712 = vmul.f32 %v4667, 1.442695
      %v4713 = vpow.pop %v4712
      %v4714 = vmul.f32 %v4668, 1.442695
      %v4715 = vpow.pop %v4714
      %v4716 = vmul.f32 %v4669, 1.442695
      %v4717 = vpow.pop %v4716
      %v4718 = vmul.f32 %v4670, 1.442695
      %v4719 = vpow.pop %v4718
      %v4720 = vmul.f32 %v4671, 1.442695
      %v4721 = vpow.pop %v4720
      %v4722 = vmul.f32 %v4672, 1.442695
      %v4723 = vpow.pop %v4722
      %v4724 = vmul.f32 %v4673, 1.442695
      %v4725 = vpow.pop %v4724
      %v4726 = vmul.f32 %v4674, 1.442695
      %v4727 = vpow.pop %v4726
      %v4728 = vmul.f32 %v4675, 1.442695
      %v4729 = vpow.pop %v4728
      %v4730 = vmul.f32 %v4676, 1.442695
      %v4731 = vpow.pop %v4730
      %v4732 = vmul.f32 %v4677, 1.442695
      %v4733 = vpow.pop %v4732
      %v4734 = vmul.f32 %v4678, 1.442695
      %v4735 = vpow.pop %v4734
      %v4736 = vmul.f32 %v4679, 1.442695
      %v4737 = vpow.pop %v4736
      %v4738 = vmul.f32 %v4680, 1.442695
      %v4739 = vpow.pop %v4738
      %v4740 = vmul.f32 %v4681, 1.442695
      %v4741 = vpow.pop %v4740
      %v4742 = vmul.f32 %v4682, 1.442695
      %v4743 = vpow.pop %v4742
      %v4744 = vmul.f32 %v4683, 1.442695
      %v4745 = vpow.pop %v4744
      %v4746 = vmul.f32 %v4684, 1.442695
      %v4747 = vpow.pop %v4746
      %v4748 = vmul.f32 %v4685, 1.442695
      %v4749 = vpow.pop %v4748
      %v4750 = vsel %vm423, %v4687, 0.0
      %4751 = vadd.xlane.f32.xlu0 %v4750
      %v4752 = vpop.xlane.xlu0 %4751
      %v4753 = vsel %vm423, %v4689, 0.0
      %4754 = vadd.xlane.f32.xlu0 %v4753
      %v4755 = vpop.xlane.xlu0 %4754
      %v4756 = vsel %vm423, %v4691, 0.0
      %4757 = vadd.xlane.f32.xlu0 %v4756
      %v4758 = vpop.xlane.xlu0 %4757
      %v4759 = vsel %vm423, %v4693, 0.0
      %4760 = vadd.xlane.f32.xlu0 %v4759
      %v4761 = vpop.xlane.xlu0 %4760
      %v4762 = vsel %vm423, %v4695, 0.0
      %4763 = vadd.xlane.f32.xlu0 %v4762
      %v4764 = vpop.xlane.xlu0 %4763
      %v4765 = vsel %vm423, %v4697, 0.0
      %4766 = vadd.xlane.f32.xlu0 %v4765
      %v4767 = vpop.xlane.xlu0 %4766
      %v4768 = vsel %vm423, %v4699, 0.0
      %4769 = vadd.xlane.f32.xlu0 %v4768
      %v4770 = vpop.xlane.xlu0 %4769
      %v4771 = vsel %vm423, %v4701, 0.0
      %4772 = vadd.xlane.f32.xlu0 %v4771
      %v4773 = vpop.xlane.xlu0 %4772
      %v4774 = vsel %vm423, %v4703, 0.0
      %4775 = vadd.xlane.f32.xlu0 %v4774
      %v4776 = vpop.xlane.xlu0 %4775
      %v4777 = vsel %vm423, %v4705, 0.0
      %4778 = vadd.xlane.f32.xlu0 %v4777
      %v4779 = vpop.xlane.xlu0 %4778
      %v4780 = vsel %vm423, %v4707, 0.0
      %4781 = vadd.xlane.f32.xlu0 %v4780
      %v4782 = vpop.xlane.xlu0 %4781
      %v4783 = vsel %vm423, %v4709, 0.0
      %4784 = vadd.xlane.f32.xlu0 %v4783
      %v4785 = vpop.xlane.xlu0 %4784
      %v4786 = vsel %vm423, %v4711, 0.0
      %4787 = vadd.xlane.f32.xlu0 %v4786
      %v4788 = vpop.xlane.xlu0 %4787
      %v4789 = vsel %vm423, %v4713, 0.0
      %4790 = vadd.xlane.f32.xlu0 %v4789
      %v4791 = vpop.xlane.xlu0 %4790
      %v4792 = vsel %vm423, %v4715, 0.0
      %4793 = vadd.xlane.f32.xlu0 %v4792
      %v4794 = vpop.xlane.xlu0 %4793
      %v4795 = vsel %vm423, %v4717, 0.0
      %4796 = vadd.xlane.f32.xlu0 %v4795
      %v4797 = vpop.xlane.xlu0 %4796
      %v4798 = vsel %vm423, %v4719, 0.0
      %4799 = vadd.xlane.f32.xlu0 %v4798
      %v4800 = vpop.xlane.xlu0 %4799
      %v4801 = vsel %vm423, %v4721, 0.0
      %4802 = vadd.xlane.f32.xlu0 %v4801
      %v4803 = vpop.xlane.xlu0 %4802
      %v4804 = vsel %vm423, %v4723, 0.0
      %4805 = vadd.xlane.f32.xlu0 %v4804
      %v4806 = vpop.xlane.xlu0 %4805
      %v4807 = vsel %vm423, %v4725, 0.0
      %4808 = vadd.xlane.f32.xlu0 %v4807
      %v4809 = vpop.xlane.xlu0 %4808
      %v4810 = vsel %vm423, %v4727, 0.0
      %4811 = vadd.xlane.f32.xlu0 %v4810
      %v4812 = vpop.xlane.xlu0 %4811
      %v4813 = vsel %vm423, %v4729, 0.0
      %4814 = vadd.xlane.f32.xlu0 %v4813
      %v4815 = vpop.xlane.xlu0 %4814
      %v4816 = vsel %vm423, %v4731, 0.0
      %4817 = vadd.xlane.f32.xlu0 %v4816
      %v4818 = vpop.xlane.xlu0 %4817
      %v4819 = vsel %vm423, %v4733, 0.0
      %4820 = vadd.xlane.f32.xlu0 %v4819
      %v4821 = vpop.xlane.xlu0 %4820
      %v4822 = vsel %vm423, %v4735, 0.0
      %4823 = vadd.xlane.f32.xlu0 %v4822
      %v4824 = vpop.xlane.xlu0 %4823
      %v4825 = vsel %vm423, %v4737, 0.0
      %4826 = vadd.xlane.f32.xlu0 %v4825
      %v4827 = vpop.xlane.xlu0 %4826
      %v4828 = vsel %vm423, %v4739, 0.0
      %4829 = vadd.xlane.f32.xlu0 %v4828
      %v4830 = vpop.xlane.xlu0 %4829
      %v4831 = vsel %vm423, %v4741, 0.0
      %4832 = vadd.xlane.f32.xlu0 %v4831
      %v4833 = vpop.xlane.xlu0 %4832
      %v4834 = vsel %vm423, %v4743, 0.0
      %4835 = vadd.xlane.f32.xlu0 %v4834
      %v4836 = vpop.xlane.xlu0 %4835
      %v4837 = vsel %vm423, %v4745, 0.0
      %4838 = vadd.xlane.f32.xlu0 %v4837
      %v4839 = vpop.xlane.xlu0 %4838
      %v4840 = vsel %vm423, %v4747, 0.0
      %4841 = vadd.xlane.f32.xlu0 %v4840
      %v4842 = vpop.xlane.xlu0 %4841
      %v4843 = vsel %vm423, %v4749, 0.0
      %4844 = vadd.xlane.f32.xlu0 %v4843
      %v4845 = vpop.xlane.xlu0 %4844
      %v4846 = vrcp.pop %v4752
      %v4847 = vrcp.pop %v4755
      %v4848 = vrcp.pop %v4758
      %v4849 = vrcp.pop %v4761
      %v4850 = vrcp.pop %v4764
      %v4851 = vrcp.pop %v4767
      %v4852 = vrcp.pop %v4770
      %v4853 = vrcp.pop %v4773
      %v4854 = vrcp.pop %v4776
      %v4855 = vrcp.pop %v4779
      %v4856 = vrcp.pop %v4782
      %v4857 = vrcp.pop %v4785
      %v4858 = vrcp.pop %v4788
      %v4859 = vrcp.pop %v4791
      %v4860 = vrcp.pop %v4794
      %v4861 = vrcp.pop %v4797
      %v4862 = vrcp.pop %v4800
      %v4863 = vrcp.pop %v4803
      %v4864 = vrcp.pop %v4806
      %v4865 = vrcp.pop %v4809
      %v4866 = vrcp.pop %v4812
      %v4867 = vrcp.pop %v4815
      %v4868 = vrcp.pop %v4818
      %v4869 = vrcp.pop %v4821
      %v4870 = vrcp.pop %v4824
      %v4871 = vrcp.pop %v4827
      %v4872 = vrcp.pop %v4830
      %v4873 = vrcp.pop %v4833
      %v4874 = vrcp.pop %v4836
      %v4875 = vrcp.pop %v4839
      %v4876 = vrcp.pop %v4842
      %v4877 = vrcp.pop %v4845
      %v4878 = vmul.f32 %v4687, %v4846
      %v4879 = vmul.f32 %v4689, %v4847
      %v4880 = vmul.f32 %v4691, %v4848
      %v4881 = vmul.f32 %v4693, %v4849
      %v4882 = vmul.f32 %v4695, %v4850
      %v4883 = vmul.f32 %v4697, %v4851
      %v4884 = vmul.f32 %v4699, %v4852
      %v4885 = vmul.f32 %v4701, %v4853
      %v4886 = vmul.f32 %v4703, %v4854
      %v4887 = vmul.f32 %v4705, %v4855
      %v4888 = vmul.f32 %v4707, %v4856
      %v4889 = vmul.f32 %v4709, %v4857
      %v4890 = vmul.f32 %v4711, %v4858
      %v4891 = vmul.f32 %v4713, %v4859
      %v4892 = vmul.f32 %v4715, %v4860
      %v4893 = vmul.f32 %v4717, %v4861
      %v4894 = vmul.f32 %v4719, %v4862
      %v4895 = vmul.f32 %v4721, %v4863
      %v4896 = vmul.f32 %v4723, %v4864
      %v4897 = vmul.f32 %v4725, %v4865
      %v4898 = vmul.f32 %v4727, %v4866
      %v4899 = vmul.f32 %v4729, %v4867
      %v4900 = vmul.f32 %v4731, %v4868
      %v4901 = vmul.f32 %v4733, %v4869
      %v4902 = vmul.f32 %v4735, %v4870
      %v4903 = vmul.f32 %v4737, %v4871
      %v4904 = vmul.f32 %v4739, %v4872
      %v4905 = vmul.f32 %v4741, %v4873
      %v4906 = vmul.f32 %v4743, %v4874
      %v4907 = vmul.f32 %v4745, %v4875
      %v4908 = vmul.f32 %v4747, %v4876
      %v4909 = vmul.f32 %v4749, %v4877
      %s4910 = scalar_lea.vmem %s6, 256
      %v4911 = vld [vmem:[%s4910] sm:$0xff]
      %v4912 = vld [vmem:[%s4910 + $0x8] sm:$0xff]
      %v4913 = vld [vmem:[%s4910 + $0x10] sm:$0xff]
      %v4914 = vld [vmem:[%s4910 + $0x18] sm:$0xff]
      %v4915 = vld [vmem:[%s4910 + $0x20] sm:$0xff]
      %v4916 = vld [vmem:[%s4910 + $0x28] sm:$0xff]
      %v4917 = vld [vmem:[%s4910 + $0x30] sm:$0xff]
      %v4918 = vld [vmem:[%s4910 + $0x38] sm:$0xff]
      %v4919 = vld [vmem:[%s4910 + $0x40] sm:$0xff]
      %v4920 = vld [vmem:[%s4910 + $0x48] sm:$0xff]
      %v4921 = vld [vmem:[%s4910 + $0x50] sm:$0xff]
      %v4922 = vld [vmem:[%s4910 + $0x58] sm:$0xff]
      %v4923 = vld [vmem:[%s4910 + $0x60] sm:$0xff]
      %v4924 = vld [vmem:[%s4910 + $0x68] sm:$0xff]
      %v4925 = vld [vmem:[%s4910 + $0x70] sm:$0xff]
      %v4926 = vld [vmem:[%s4910 + $0x78] sm:$0xff]
      %v4927 = vld [vmem:[%s4910 + $0x80] sm:$0xff]
      %v4928 = vld [vmem:[%s4910 + $0x88] sm:$0xff]
      %v4929 = vld [vmem:[%s4910 + $0x90] sm:$0xff]
      %v4930 = vld [vmem:[%s4910 + $0x98] sm:$0xff]
      %v4931 = vld [vmem:[%s4910 + $0xa0] sm:$0xff]
      %v4932 = vld [vmem:[%s4910 + $0xa8] sm:$0xff]
      %v4933 = vld [vmem:[%s4910 + $0xb0] sm:$0xff]
      %v4934 = vld [vmem:[%s4910 + $0xb8] sm:$0xff]
      %v4935 = vld [vmem:[%s4910 + $0xc0] sm:$0xff]
      %v4936 = vld [vmem:[%s4910 + $0xc8] sm:$0xff]
      %v4937 = vld [vmem:[%s4910 + $0xd0] sm:$0xff]
      %v4938 = vld [vmem:[%s4910 + $0xd8] sm:$0xff]
      %v4939 = vld [vmem:[%s4910 + $0xe0] sm:$0xff]
      %v4940 = vld [vmem:[%s4910 + $0xe8] sm:$0xff]
      %v4941 = vld [vmem:[%s4910 + $0xf0] sm:$0xff]
      %v4942 = vld [vmem:[%s4910 + $0xf8] sm:$0xff]
      %4943 = vrot.lane.b32.xlu0 %v3882, 112
      %v4944 = vpop.permute.xlu0 %4943
      %4945 = vrot.lane.b32.xlu0 %v3883, 112
      %v4946 = vpop.permute.xlu0 %4945
      %4947 = vrot.lane.b32.xlu0 %v3884, 112
      %v4948 = vpop.permute.xlu0 %4947
      %4949 = vrot.lane.b32.xlu0 %v3885, 112
      %v4950 = vpop.permute.xlu0 %4949
      %4951 = vrot.lane.b32.xlu0 %v3886, 112
      %v4952 = vpop.permute.xlu0 %4951
      %4953 = vrot.lane.b32.xlu0 %v3887, 112
      %v4954 = vpop.permute.xlu0 %4953
      %4955 = vrot.lane.b32.xlu0 %v3888, 112
      %v4956 = vpop.permute.xlu0 %4955
      %4957 = vrot.lane.b32.xlu0 %v3889, 112
      %v4958 = vpop.permute.xlu0 %4957
      %4959 = vrot.lane.b32.xlu0 %v984, 112
      %v4960 = vpop.permute.xlu0 %4959
      %4961 = vrot.lane.b32.xlu0 %v985, 112
      %v4962 = vpop.permute.xlu0 %4961
      %4963 = vrot.lane.b32.xlu0 %v986, 112
      %v4964 = vpop.permute.xlu0 %4963
      %4965 = vrot.lane.b32.xlu0 %v987, 112
      %v4966 = vpop.permute.xlu0 %4965
      %4967 = vrot.lane.b32.xlu0 %v988, 112
      %v4968 = vpop.permute.xlu0 %4967
      %4969 = vrot.lane.b32.xlu0 %v989, 112
      %v4970 = vpop.permute.xlu0 %4969
      %4971 = vrot.lane.b32.xlu0 %v990, 112
      %v4972 = vpop.permute.xlu0 %4971
      %4973 = vrot.lane.b32.xlu0 %v991, 112
      %v4974 = vpop.permute.xlu0 %4973
      %v4975 = vsel %vm1121, %v4944, 0
      %v4977 = vsel %vm1121, %v4946, 0
      %v4979 = vsel %vm1121, %v4948, 0
      %v4981 = vsel %vm1121, %v4950, 0
      %v4983 = vsel %vm1121, %v4952, 0
      %v4985 = vsel %vm1121, %v4954, 0
      %v4987 = vsel %vm1121, %v4956, 0
      %v4989 = vsel %vm1121, %v4958, 0
      %v4991 = vsel %vm1121, %v4960, 0
      %v4993 = vsel %vm1121, %v4962, 0
      %v4995 = vsel %vm1121, %v4964, 0
      %v4997 = vsel %vm1121, %v4966, 0
      %v4999 = vsel %vm1121, %v4968, 0
      %v5001 = vsel %vm1121, %v4970, 0
      %v5003 = vsel %vm1121, %v4972, 0
      %v5005 = vsel %vm1121, %v4974, 0
      %5007 = vmatprep.subr.mxu0 0.0
      %5008 = vmatpush1.xpose.msra.mxu0 %v4991
      %5009 = vmatprep.subr.mxu0 0.0
      %5010 = vmatpush1.xpose.msra.mxu0 %v4993
      %5011 = vmatprep.subr.mxu0 0.0
      %5012 = vmatpush1.xpose.msra.mxu0 %v4995
      %5013 = vmatprep.subr.mxu0 0.0
      %5014 = vmatpush1.xpose.msra.mxu0 %v4997
      %5015 = vmatprep.subr.mxu0 0.0
      %5016 = vmatpush1.xpose.msra.mxu0 %v4999
      %5017 = vmatprep.subr.mxu0 0.0
      %5018 = vmatpush1.xpose.msra.mxu0 %v5001
      %5019 = vmatprep.subr.mxu0 0.0
      %5020 = vmatpush1.xpose.msra.mxu0 %v5003
      %5021 = vmatprep.subr.mxu0 0.0
      %5022 = vmatpush1.xpose.msra.mxu0 %v5005
      %5023 = vmatprep.subr.mxu0 0.0
      %5024 = vmatpush1.xpose.msra.mxu0 0.0
      %5025 = vmatprep.subr.mxu0 0.0
      %5026 = vmatpush1.xpose.msra.mxu0 0.0
      %5027 = vmatprep.subr.mxu0 0.0
      %5028 = vmatpush1.xpose.msra.mxu0 0.0
      %5029 = vmatprep.subr.mxu0 0.0
      %5030 = vmatpush1.xpose.msra.mxu0 0.0
      %5031 = vmatprep.subr.mxu0 0.0
      %5032 = vmatpush1.xpose.msra.mxu0 0.0
      %5033 = vmatprep.subr.mxu0 0.0
      %5034 = vmatpush1.xpose.msra.mxu0 0.0
      %5035 = vmatprep.subr.mxu0 0.0
      %5036 = vmatpush1.xpose.msra.mxu0 0.0
      %5037 = vmatprep.subr.mxu0 0.0
      %5038 = vmatpush1.xpose.msra.mxu0 0.0
      %5039 = vmatprep.subr.mxu0 0.0
      %5040 = vmatpush1.xpose.msra.mxu0 0.0
      %5041 = vmatprep.subr.mxu0 0.0
      %5042 = vmatpush1.xpose.msra.mxu0 0.0
      %5043 = vmatprep.subr.mxu0 0.0
      %5044 = vmatpush1.xpose.msra.mxu0 0.0
      %5045 = vmatprep.subr.mxu0 0.0
      %5046 = vmatpush1.xpose.msra.mxu0 0.0
      %5047 = vmatprep.subr.mxu0 0.0
      %5048 = vmatpush1.xpose.msra.mxu0 0.0
      %5049 = vmatprep.subr.mxu0 0.0
      %5050 = vmatpush1.xpose.msra.mxu0 0.0
      %5051 = vmatprep.subr.mxu0 0.0
      %5052 = vmatpush1.xpose.msra.mxu0 0.0
      %5053 = vmatprep.subr.mxu0 0.0
      %5054 = vmatpush1.xpose.msra.mxu0 0.0
      %5055 = vmatprep.subr.mxu0 0.0
      %5056 = vmatpush1.xpose.msra.mxu0 0.0
      %5057 = vmatprep.subr.mxu0 0.0
      %5058 = vmatpush1.xpose.msra.mxu0 0.0
      %5059 = vmatprep.subr.mxu0 0.0
      %5060 = vmatpush1.xpose.msra.mxu0 0.0
      %5061 = vmatprep.subr.mxu0 0.0
      %5062 = vmatpush1.xpose.msra.mxu0 0.0
      %5063 = vmatprep.subr.mxu0 0.0
      %5064 = vmatpush1.xpose.msra.mxu0 0.0
      %5065 = vmatprep.subr.mxu0 0.0
      %5066 = vmatpush1.xpose.msra.mxu0 0.0
      %5067 = vmatprep.subr.mxu0 0.0
      %5068 = vmatpush1.xpose.msra.mxu0 0.0
      %5069 = vmatprep.subr.mxu0 0.0
      %5070 = vmatpush1.xpose.msra.mxu0 0.0
      %5071 = vmatprep.mubr.f32.mxu0 0.0
      %5072 = vmatmul.mubr.f32.gmra.mrb[0].mxu0 %v4975
      %v5073 = vpop.f32.mrb[0].mxu0
      %v5074 = vadd.f32 %v4911, %v5073
      %v5075 = vpop.f32.mrb[0].mxu0
      %5076 = vmatprep.mubr.f32.mxu0 0.0
      %5077 = vmatmul.mubr.f32.gmra.mrb[0].mxu0 %v4977
      %v5078 = vpop.f32.mrb[0].mxu0
      %v5079 = vadd.f32 %v4912, %v5078
      %v5080 = vpop.f32.mrb[0].mxu0
      %5081 = vmatprep.mubr.f32.mxu0 0.0
      %5082 = vmatmul.mubr.f32.gmra.mrb[0].mxu0 %v4979
      %v5083 = vpop.f32.mrb[0].mxu0
      %v5084 = vadd.f32 %v4913, %v5083
      %v5085 = vpop.f32.mrb[0].mxu0
      %5086 = vmatprep.mubr.f32.mxu0 0.0
      %5087 = vmatmul.mubr.f32.gmra.mrb[0].mxu0 %v4981
      %v5088 = vpop.f32.mrb[0].mxu0
      %v5089 = vadd.f32 %v4914, %v5088
      %v5090 = vpop.f32.mrb[0].mxu0
      %5091 = vmatprep.mubr.f32.mxu0 0.0
      %5092 = vmatmul.mubr.f32.gmra.mrb[0].mxu0 %v4983
      %v5093 = vpop.f32.mrb[0].mxu0
      %v5094 = vadd.f32 %v4915, %v5093
      %v5095 = vpop.f32.mrb[0].mxu0
      %5096 = vmatprep.mubr.f32.mxu0 0.0
      %5097 = vmatmul.mubr.f32.gmra.mrb[0].mxu0 %v4985
      %v5098 = vpop.f32.mrb[0].mxu0
      %v5099 = vadd.f32 %v4916, %v5098
      %v5100 = vpop.f32.mrb[0].mxu0
      %5101 = vmatprep.mubr.f32.mxu0 0.0
      %5102 = vmatmul.mubr.f32.gmra.mrb[0].mxu0 %v4987
      %v5103 = vpop.f32.mrb[0].mxu0
      %v5104 = vadd.f32 %v4917, %v5103
      %v5105 = vpop.f32.mrb[0].mxu0
      %5106 = vmatprep.mubr.f32.mxu0 0.0
      %5107 = vmatmul.mubr.f32.gmra.mrb[0].mxu0 %v4989
      %v5108 = vpop.f32.mrb[0].mxu0
      %v5109 = vadd.f32 %v4918, %v5108
      %v5110 = vpop.f32.mrb[0].mxu0
      %5111 = vdwg.mxu0
      %5112 = vrot.lane.b32.xlu0 %v3890, 112
      %v5113 = vpop.permute.xlu0 %5112
      %5114 = vrot.lane.b32.xlu0 %v3891, 112
      %v5115 = vpop.permute.xlu0 %5114
      %5116 = vrot.lane.b32.xlu0 %v3892, 112
      %v5117 = vpop.permute.xlu0 %5116
      %5118 = vrot.lane.b32.xlu0 %v3893, 112
      %v5119 = vpop.permute.xlu0 %5118
      %5120 = vrot.lane.b32.xlu0 %v3894, 112
      %v5121 = vpop.permute.xlu0 %5120
      %5122 = vrot.lane.b32.xlu0 %v3895, 112
      %v5123 = vpop.permute.xlu0 %5122
      %5124 = vrot.lane.b32.xlu0 %v3896, 112
      %v5125 = vpop.permute.xlu0 %5124
      %5126 = vrot.lane.b32.xlu0 %v3897, 112
      %v5127 = vpop.permute.xlu0 %5126
      %5128 = vrot.lane.b32.xlu0 %v992, 112
      %v5129 = vpop.permute.xlu0 %5128
      %5130 = vrot.lane.b32.xlu0 %v993, 112
      %v5131 = vpop.permute.xlu0 %5130
      %5132 = vrot.lane.b32.xlu0 %v994, 112
      %v5133 = vpop.permute.xlu0 %5132
      %5134 = vrot.lane.b32.xlu0 %v995, 112
      %v5135 = vpop.permute.xlu0 %5134
      %5136 = vrot.lane.b32.xlu0 %v996, 112
      %v5137 = vpop.permute.xlu0 %5136
      %5138 = vrot.lane.b32.xlu0 %v997, 112
      %v5139 = vpop.permute.xlu0 %5138
      %5140 = vrot.lane.b32.xlu0 %v998, 112
      %v5141 = vpop.permute.xlu0 %5140
      %5142 = vrot.lane.b32.xlu0 %v999, 112
      %v5143 = vpop.permute.xlu0 %5142
      %v5144 = vsel %vm1121, %v5113, 0
      %v5146 = vsel %vm1121, %v5115, 0
      %v5148 = vsel %vm1121, %v5117, 0
      %v5150 = vsel %vm1121, %v5119, 0
      %v5152 = vsel %vm1121, %v5121, 0
      %v5154 = vsel %vm1121, %v5123, 0
      %v5156 = vsel %vm1121, %v5125, 0
      %v5158 = vsel %vm1121, %v5127, 0
      %v5160 = vsel %vm1121, %v5129, 0
      %v5162 = vsel %vm1121, %v5131, 0
      %v5164 = vsel %vm1121, %v5133, 0
      %v5166 = vsel %vm1121, %v5135, 0
      %v5168 = vsel %vm1121, %v5137, 0
      %v5170 = vsel %vm1121, %v5139, 0
      %v5172 = vsel %vm1121, %v5141, 0
      %v5174 = vsel %vm1121, %v5143, 0
      %5176 = vmatprep.subr.mxu0 0.0
      %5177 = vmatpush1.xpose.msra.mxu0 %v5160
      %5178 = vmatprep.subr.mxu0 0.0
      %5179 = vmatpush1.xpose.msra.mxu0 %v5162
      %5180 = vmatprep.subr.mxu0 0.0
      %5181 = vmatpush1.xpose.msra.mxu0 %v5164
      %5182 = vmatprep.subr.mxu0 0.0
      %5183 = vmatpush1.xpose.msra.mxu0 %v5166
      %5184 = vmatprep.subr.mxu0 0.0
      %5185 = vmatpush1.xpose.msra.mxu0 %v5168
      %5186 = vmatprep.subr.mxu0 0.0
      %5187 = vmatpush1.xpose.msra.mxu0 %v5170
      %5188 = vmatprep.subr.mxu0 0.0
      %5189 = vmatpush1.xpose.msra.mxu0 %v5172
      %5190 = vmatprep.subr.mxu0 0.0
      %5191 = vmatpush1.xpose.msra.mxu0 %v5174
      %5192 = vmatprep.subr.mxu0 0.0
      %5193 = vmatpush1.xpose.msra.mxu0 0.0
      %5194 = vmatprep.subr.mxu0 0.0
      %5195 = vmatpush1.xpose.msra.mxu0 0.0
      %5196 = vmatprep.subr.mxu0 0.0
      %5197 = vmatpush1.xpose.msra.mxu0 0.0
      %5198 = vmatprep.subr.mxu0 0.0
      %5199 = vmatpush1.xpose.msra.mxu0 0.0
      %5200 = vmatprep.subr.mxu0 0.0
      %5201 = vmatpush1.xpose.msra.mxu0 0.0
      %5202 = vmatprep.subr.mxu0 0.0
      %5203 = vmatpush1.xpose.msra.mxu0 0.0
      %5204 = vmatprep.subr.mxu0 0.0
      %5205 = vmatpush1.xpose.msra.mxu0 0.0
      %5206 = vmatprep.subr.mxu0 0.0
      %5207 = vmatpush1.xpose.msra.mxu0 0.0
      %5208 = vmatprep.subr.mxu0 0.0
      %5209 = vmatpush1.xpose.msra.mxu0 0.0
      %5210 = vmatprep.subr.mxu0 0.0
      %5211 = vmatpush1.xpose.msra.mxu0 0.0
      %5212 = vmatprep.subr.mxu0 0.0
      %5213 = vmatpush1.xpose.msra.mxu0 0.0
      %5214 = vmatprep.subr.mxu0 0.0
      %5215 = vmatpush1.xpose.msra.mxu0 0.0
      %5216 = vmatprep.subr.mxu0 0.0
      %5217 = vmatpush1.xpose.msra.mxu0 0.0
      %5218 = vmatprep.subr.mxu0 0.0
      %5219 = vmatpush1.xpose.msra.mxu0 0.0
      %5220 = vmatprep.subr.mxu0 0.0
      %5221 = vmatpush1.xpose.msra.mxu0 0.0
      %5222 = vmatprep.subr.mxu0 0.0
      %5223 = vmatpush1.xpose.msra.mxu0 0.0
      %5224 = vmatprep.subr.mxu0 0.0
      %5225 = vmatpush1.xpose.msra.mxu0 0.0
      %5226 = vmatprep.subr.mxu0 0.0
      %5227 = vmatpush1.xpose.msra.mxu0 0.0
      %5228 = vmatprep.subr.mxu0 0.0
      %5229 = vmatpush1.xpose.msra.mxu0 0.0
      %5230 = vmatprep.subr.mxu0 0.0
      %5231 = vmatpush1.xpose.msra.mxu0 0.0
      %5232 = vmatprep.subr.mxu0 0.0
      %5233 = vmatpush1.xpose.msra.mxu0 0.0
      %5234 = vmatprep.subr.mxu0 0.0
      %5235 = vmatpush1.xpose.msra.mxu0 0.0
      %5236 = vmatprep.subr.mxu0 0.0
      %5237 = vmatpush1.xpose.msra.mxu0 0.0
      %5238 = vmatprep.subr.mxu0 0.0
      %5239 = vmatpush1.xpose.msra.mxu0 0.0
      %5240 = vmatprep.mubr.f32.mxu0 0.0
      %5241 = vmatmul.mubr.f32.gmra.mrb[0].mxu0 %v5144
      %v5242 = vpop.f32.mrb[0].mxu0
      %v5243 = vadd.f32 %v4919, %v5242
      %v5244 = vpop.f32.mrb[0].mxu0
      %5245 = vmatprep.mubr.f32.mxu0 0.0
      %5246 = vmatmul.mubr.f32.gmra.mrb[0].mxu0 %v5146
      %v5247 = vpop.f32.mrb[0].mxu0
      %v5248 = vadd.f32 %v4920, %v5247
      %v5249 = vpop.f32.mrb[0].mxu0
      %5250 = vmatprep.mubr.f32.mxu0 0.0
      %5251 = vmatmul.mubr.f32.gmra.mrb[0].mxu0 %v5148
      %v5252 = vpop.f32.mrb[0].mxu0
      %v5253 = vadd.f32 %v4921, %v5252
      %v5254 = vpop.f32.mrb[0].mxu0
      %5255 = vmatprep.mubr.f32.mxu0 0.0
      %5256 = vmatmul.mubr.f32.gmra.mrb[0].mxu0 %v5150
      %v5257 = vpop.f32.mrb[0].mxu0
      %v5258 = vadd.f32 %v4922, %v5257
      %v5259 = vpop.f32.mrb[0].mxu0
      %5260 = vmatprep.mubr.f32.mxu0 0.0
      %5261 = vmatmul.mubr.f32.gmra.mrb[0].mxu0 %v5152
      %v5262 = vpop.f32.mrb[0].mxu0
      %v5263 = vadd.f32 %v4923, %v5262
      %v5264 = vpop.f32.mrb[0].mxu0
      %5265 = vmatprep.mubr.f32.mxu0 0.0
      %5266 = vmatmul.mubr.f32.gmra.mrb[0].mxu0 %v5154
      %v5267 = vpop.f32.mrb[0].mxu0
      %v5268 = vadd.f32 %v4924, %v5267
      %v5269 = vpop.f32.mrb[0].mxu0
      %5270 = vmatprep.mubr.f32.mxu0 0.0
      %5271 = vmatmul.mubr.f32.gmra.mrb[0].mxu0 %v5156
      %v5272 = vpop.f32.mrb[0].mxu0
      %v5273 = vadd.f32 %v4925, %v5272
      %v5274 = vpop.f32.mrb[0].mxu0
      %5275 = vmatprep.mubr.f32.mxu0 0.0
      %5276 = vmatmul.mubr.f32.gmra.mrb[0].mxu0 %v5158
      %v5277 = vpop.f32.mrb[0].mxu0
      %v5278 = vadd.f32 %v4926, %v5277
      %v5279 = vpop.f32.mrb[0].mxu0
      %5280 = vdwg.mxu0
      %5281 = vrot.lane.b32.xlu0 %v3898, 112
      %v5282 = vpop.permute.xlu0 %5281
      %5283 = vrot.lane.b32.xlu0 %v3899, 112
      %v5284 = vpop.permute.xlu0 %5283
      %5285 = vrot.lane.b32.xlu0 %v3900, 112
      %v5286 = vpop.permute.xlu0 %5285
      %5287 = vrot.lane.b32.xlu0 %v3901, 112
      %v5288 = vpop.permute.xlu0 %5287
      %5289 = vrot.lane.b32.xlu0 %v3902, 112
      %v5290 = vpop.permute.xlu0 %5289
      %5291 = vrot.lane.b32.xlu0 %v3903, 112
      %v5292 = vpop.permute.xlu0 %5291
      %5293 = vrot.lane.b32.xlu0 %v3904, 112
      %v5294 = vpop.permute.xlu0 %5293
      %5295 = vrot.lane.b32.xlu0 %v3905, 112
      %v5296 = vpop.permute.xlu0 %5295
      %5297 = vrot.lane.b32.xlu0 %v1000, 112
      %v5298 = vpop.permute.xlu0 %5297
      %5299 = vrot.lane.b32.xlu0 %v1001, 112
      %v5300 = vpop.permute.xlu0 %5299
      %5301 = vrot.lane.b32.xlu0 %v1002, 112
      %v5302 = vpop.permute.xlu0 %5301
      %5303 = vrot.lane.b32.xlu0 %v1003, 112
      %v5304 = vpop.permute.xlu0 %5303
      %5305 = vrot.lane.b32.xlu0 %v1004, 112
      %v5306 = vpop.permute.xlu0 %5305
      %5307 = vrot.lane.b32.xlu0 %v1005, 112
      %v5308 = vpop.permute.xlu0 %5307
      %5309 = vrot.lane.b32.xlu0 %v1006, 112
      %v5310 = vpop.permute.xlu0 %5309
      %5311 = vrot.lane.b32.xlu0 %v1007, 112
      %v5312 = vpop.permute.xlu0 %5311
      %v5313 = vsel %vm1121, %v5282, 0
      %v5315 = vsel %vm1121, %v5284, 0
      %v5317 = vsel %vm1121, %v5286, 0
      %v5319 = vsel %vm1121, %v5288, 0
      %v5321 = vsel %vm1121, %v5290, 0
      %v5323 = vsel %vm1121, %v5292, 0
      %v5325 = vsel %vm1121, %v5294, 0
      %v5327 = vsel %vm1121, %v5296, 0
      %v5329 = vsel %vm1121, %v5298, 0
      %v5331 = vsel %vm1121, %v5300, 0
      %v5333 = vsel %vm1121, %v5302, 0
      %v5335 = vsel %vm1121, %v5304, 0
      %v5337 = vsel %vm1121, %v5306, 0
      %v5339 = vsel %vm1121, %v5308, 0
      %v5341 = vsel %vm1121, %v5310, 0
      %v5343 = vsel %vm1121, %v5312, 0
      %5345 = vmatprep.subr.mxu0 0.0
      %5346 = vmatpush1.xpose.msra.mxu0 %v5329
      %5347 = vmatprep.subr.mxu0 0.0
      %5348 = vmatpush1.xpose.msra.mxu0 %v5331
      %5349 = vmatprep.subr.mxu0 0.0
      %5350 = vmatpush1.xpose.msra.mxu0 %v5333
      %5351 = vmatprep.subr.mxu0 0.0
      %5352 = vmatpush1.xpose.msra.mxu0 %v5335
      %5353 = vmatprep.subr.mxu0 0.0
      %5354 = vmatpush1.xpose.msra.mxu0 %v5337
      %5355 = vmatprep.subr.mxu0 0.0
      %5356 = vmatpush1.xpose.msra.mxu0 %v5339
      %5357 = vmatprep.subr.mxu0 0.0
      %5358 = vmatpush1.xpose.msra.mxu0 %v5341
      %5359 = vmatprep.subr.mxu0 0.0
      %5360 = vmatpush1.xpose.msra.mxu0 %v5343
      %5361 = vmatprep.subr.mxu0 0.0
      %5362 = vmatpush1.xpose.msra.mxu0 0.0
      %5363 = vmatprep.subr.mxu0 0.0
      %5364 = vmatpush1.xpose.msra.mxu0 0.0
      %5365 = vmatprep.subr.mxu0 0.0
      %5366 = vmatpush1.xpose.msra.mxu0 0.0
      %5367 = vmatprep.subr.mxu0 0.0
      %5368 = vmatpush1.xpose.msra.mxu0 0.0
      %5369 = vmatprep.subr.mxu0 0.0
      %5370 = vmatpush1.xpose.msra.mxu0 0.0
      %5371 = vmatprep.subr.mxu0 0.0
      %5372 = vmatpush1.xpose.msra.mxu0 0.0
      %5373 = vmatprep.subr.mxu0 0.0
      %5374 = vmatpush1.xpose.msra.mxu0 0.0
      %5375 = vmatprep.subr.mxu0 0.0
      %5376 = vmatpush1.xpose.msra.mxu0 0.0
      %5377 = vmatprep.subr.mxu0 0.0
      %5378 = vmatpush1.xpose.msra.mxu0 0.0
      %5379 = vmatprep.subr.mxu0 0.0
      %5380 = vmatpush1.xpose.msra.mxu0 0.0
      %5381 = vmatprep.subr.mxu0 0.0
      %5382 = vmatpush1.xpose.msra.mxu0 0.0
      %5383 = vmatprep.subr.mxu0 0.0
      %5384 = vmatpush1.xpose.msra.mxu0 0.0
      %5385 = vmatprep.subr.mxu0 0.0
      %5386 = vmatpush1.xpose.msra.mxu0 0.0
      %5387 = vmatprep.subr.mxu0 0.0
      %5388 = vmatpush1.xpose.msra.mxu0 0.0
      %5389 = vmatprep.subr.mxu0 0.0
      %5390 = vmatpush1.xpose.msra.mxu0 0.0
      %5391 = vmatprep.subr.mxu0 0.0
      %5392 = vmatpush1.xpose.msra.mxu0 0.0
      %5393 = vmatprep.subr.mxu0 0.0
      %5394 = vmatpush1.xpose.msra.mxu0 0.0
      %5395 = vmatprep.subr.mxu0 0.0
      %5396 = vmatpush1.xpose.msra.mxu0 0.0
      %5397 = vmatprep.subr.mxu0 0.0
      %5398 = vmatpush1.xpose.msra.mxu0 0.0
      %5399 = vmatprep.subr.mxu0 0.0
      %5400 = vmatpush1.xpose.msra.mxu0 0.0
      %5401 = vmatprep.subr.mxu0 0.0
      %5402 = vmatpush1.xpose.msra.mxu0 0.0
      %5403 = vmatprep.subr.mxu0 0.0
      %5404 = vmatpush1.xpose.msra.mxu0 0.0
      %5405 = vmatprep.subr.mxu0 0.0
      %5406 = vmatpush1.xpose.msra.mxu0 0.0
      %5407 = vmatprep.subr.mxu0 0.0
      %5408 = vmatpush1.xpose.msra.mxu0 0.0
      %5409 = vmatprep.mubr.f32.mxu0 0.0
      %5410 = vmatmul.mubr.f32.gmra.mrb[0].mxu0 %v5313
      %v5411 = vpop.f32.mrb[0].mxu0
      %v5412 = vadd.f32 %v4927, %v5411
      %v5413 = vpop.f32.mrb[0].mxu0
      %5414 = vmatprep.mubr.f32.mxu0 0.0
      %5415 = vmatmul.mubr.f32.gmra.mrb[0].mxu0 %v5315
      %v5416 = vpop.f32.mrb[0].mxu0
      %v5417 = vadd.f32 %v4928, %v5416
      %v5418 = vpop.f32.mrb[0].mxu0
      %5419 = vmatprep.mubr.f32.mxu0 0.0
      %5420 = vmatmul.mubr.f32.gmra.mrb[0].mxu0 %v5317
      %v5421 = vpop.f32.mrb[0].mxu0
      %v5422 = vadd.f32 %v4929, %v5421
      %v5423 = vpop.f32.mrb[0].mxu0
      %5424 = vmatprep.mubr.f32.mxu0 0.0
      %5425 = vmatmul.mubr.f32.gmra.mrb[0].mxu0 %v5319
      %v5426 = vpop.f32.mrb[0].mxu0
      %v5427 = vadd.f32 %v4930, %v5426
      %v5428 = vpop.f32.mrb[0].mxu0
      %5429 = vmatprep.mubr.f32.mxu0 0.0
      %5430 = vmatmul.mubr.f32.gmra.mrb[0].mxu0 %v5321
      %v5431 = vpop.f32.mrb[0].mxu0
      %v5432 = vadd.f32 %v4931, %v5431
      %v5433 = vpop.f32.mrb[0].mxu0
      %5434 = vmatprep.mubr.f32.mxu0 0.0
      %5435 = vmatmul.mubr.f32.gmra.mrb[0].mxu0 %v5323
      %v5436 = vpop.f32.mrb[0].mxu0
      %v5437 = vadd.f32 %v4932, %v5436
      %v5438 = vpop.f32.mrb[0].mxu0
      %5439 = vmatprep.mubr.f32.mxu0 0.0
      %5440 = vmatmul.mubr.f32.gmra.mrb[0].mxu0 %v5325
      %v5441 = vpop.f32.mrb[0].mxu0
      %v5442 = vadd.f32 %v4933, %v5441
      %v5443 = vpop.f32.mrb[0].mxu0
      %5444 = vmatprep.mubr.f32.mxu0 0.0
      %5445 = vmatmul.mubr.f32.gmra.mrb[0].mxu0 %v5327
      %v5446 = vpop.f32.mrb[0].mxu0
      %v5447 = vadd.f32 %v4934, %v5446
      %v5448 = vpop.f32.mrb[0].mxu0
      %5449 = vdwg.mxu0
      %5450 = vrot.lane.b32.xlu0 %v3906, 112
      %v5451 = vpop.permute.xlu0 %5450
      %5452 = vrot.lane.b32.xlu0 %v3907, 112
      %v5453 = vpop.permute.xlu0 %5452
      %5454 = vrot.lane.b32.xlu0 %v3908, 112
      %v5455 = vpop.permute.xlu0 %5454
      %5456 = vrot.lane.b32.xlu0 %v3909, 112
      %v5457 = vpop.permute.xlu0 %5456
      %5458 = vrot.lane.b32.xlu0 %v3910, 112
      %v5459 = vpop.permute.xlu0 %5458
      %5460 = vrot.lane.b32.xlu0 %v3911, 112
      %v5461 = vpop.permute.xlu0 %5460
      %5462 = vrot.lane.b32.xlu0 %v3912, 112
      %v5463 = vpop.permute.xlu0 %5462
      %5464 = vrot.lane.b32.xlu0 %v3913, 112
      %v5465 = vpop.permute.xlu0 %5464
      %5466 = vrot.lane.b32.xlu0 %v1008, 112
      %v5467 = vpop.permute.xlu0 %5466
      %5468 = vrot.lane.b32.xlu0 %v1009, 112
      %v5469 = vpop.permute.xlu0 %5468
      %5470 = vrot.lane.b32.xlu0 %v1010, 112
      %v5471 = vpop.permute.xlu0 %5470
      %5472 = vrot.lane.b32.xlu0 %v1011, 112
      %v5473 = vpop.permute.xlu0 %5472
      %5474 = vrot.lane.b32.xlu0 %v1012, 112
      %v5475 = vpop.permute.xlu0 %5474
      %5476 = vrot.lane.b32.xlu0 %v1013, 112
      %v5477 = vpop.permute.xlu0 %5476
      %5478 = vrot.lane.b32.xlu0 %v1014, 112
      %v5479 = vpop.permute.xlu0 %5478
      %5480 = vrot.lane.b32.xlu0 %v1015, 112
      %v5481 = vpop.permute.xlu0 %5480
      %v5482 = vsel %vm1121, %v5451, 0
      %v5484 = vsel %vm1121, %v5453, 0
      %v5486 = vsel %vm1121, %v5455, 0
      %v5488 = vsel %vm1121, %v5457, 0
      %v5490 = vsel %vm1121, %v5459, 0
      %v5492 = vsel %vm1121, %v5461, 0
      %v5494 = vsel %vm1121, %v5463, 0
      %v5496 = vsel %vm1121, %v5465, 0
      %v5498 = vsel %vm1121, %v5467, 0
      %v5500 = vsel %vm1121, %v5469, 0
      %v5502 = vsel %vm1121, %v5471, 0
      %v5504 = vsel %vm1121, %v5473, 0
      %v5506 = vsel %vm1121, %v5475, 0
      %v5508 = vsel %vm1121, %v5477, 0
      %v5510 = vsel %vm1121, %v5479, 0
      %v5512 = vsel %vm1121, %v5481, 0
      %5514 = vmatprep.subr.mxu0 0.0
      %5515 = vmatpush1.xpose.msra.mxu0 %v5498
      %5516 = vmatprep.subr.mxu0 0.0
      %5517 = vmatpush1.xpose.msra.mxu0 %v5500
      %5518 = vmatprep.subr.mxu0 0.0
      %5519 = vmatpush1.xpose.msra.mxu0 %v5502
      %5520 = vmatprep.subr.mxu0 0.0
      %5521 = vmatpush1.xpose.msra.mxu0 %v5504
      %5522 = vmatprep.subr.mxu0 0.0
      %5523 = vmatpush1.xpose.msra.mxu0 %v5506
      %5524 = vmatprep.subr.mxu0 0.0
      %5525 = vmatpush1.xpose.msra.mxu0 %v5508
      %5526 = vmatprep.subr.mxu0 0.0
      %5527 = vmatpush1.xpose.msra.mxu0 %v5510
      %5528 = vmatprep.subr.mxu0 0.0
      %5529 = vmatpush1.xpose.msra.mxu0 %v5512
      %5530 = vmatprep.subr.mxu0 0.0
      %5531 = vmatpush1.xpose.msra.mxu0 0.0
      %5532 = vmatprep.subr.mxu0 0.0
      %5533 = vmatpush1.xpose.msra.mxu0 0.0
      %5534 = vmatprep.subr.mxu0 0.0
      %5535 = vmatpush1.xpose.msra.mxu0 0.0
      %5536 = vmatprep.subr.mxu0 0.0
      %5537 = vmatpush1.xpose.msra.mxu0 0.0
      %5538 = vmatprep.subr.mxu0 0.0
      %5539 = vmatpush1.xpose.msra.mxu0 0.0
      %5540 = vmatprep.subr.mxu0 0.0
      %5541 = vmatpush1.xpose.msra.mxu0 0.0
      %5542 = vmatprep.subr.mxu0 0.0
      %5543 = vmatpush1.xpose.msra.mxu0 0.0
      %5544 = vmatprep.subr.mxu0 0.0
      %5545 = vmatpush1.xpose.msra.mxu0 0.0
      %5546 = vmatprep.subr.mxu0 0.0
      %5547 = vmatpush1.xpose.msra.mxu0 0.0
      %5548 = vmatprep.subr.mxu0 0.0
      %5549 = vmatpush1.xpose.msra.mxu0 0.0
      %5550 = vmatprep.subr.mxu0 0.0
      %5551 = vmatpush1.xpose.msra.mxu0 0.0
      %5552 = vmatprep.subr.mxu0 0.0
      %5553 = vmatpush1.xpose.msra.mxu0 0.0
      %5554 = vmatprep.subr.mxu0 0.0
      %5555 = vmatpush1.xpose.msra.mxu0 0.0
      %5556 = vmatprep.subr.mxu0 0.0
      %5557 = vmatpush1.xpose.msra.mxu0 0.0
      %5558 = vmatprep.subr.mxu0 0.0
      %5559 = vmatpush1.xpose.msra.mxu0 0.0
      %5560 = vmatprep.subr.mxu0 0.0
      %5561 = vmatpush1.xpose.msra.mxu0 0.0
      %5562 = vmatprep.subr.mxu0 0.0
      %5563 = vmatpush1.xpose.msra.mxu0 0.0
      %5564 = vmatprep.subr.mxu0 0.0
      %5565 = vmatpush1.xpose.msra.mxu0 0.0
      %5566 = vmatprep.subr.mxu0 0.0
      %5567 = vmatpush1.xpose.msra.mxu0 0.0
      %5568 = vmatprep.subr.mxu0 0.0
      %5569 = vmatpush1.xpose.msra.mxu0 0.0
      %5570 = vmatprep.subr.mxu0 0.0
      %5571 = vmatpush1.xpose.msra.mxu0 0.0
      %5572 = vmatprep.subr.mxu0 0.0
      %5573 = vmatpush1.xpose.msra.mxu0 0.0
      %5574 = vmatprep.subr.mxu0 0.0
      %5575 = vmatpush1.xpose.msra.mxu0 0.0
      %5576 = vmatprep.subr.mxu0 0.0
      %5577 = vmatpush1.xpose.msra.mxu0 0.0
      %5578 = vmatprep.mubr.f32.mxu0 0.0
      %5579 = vmatmul.mubr.f32.gmra.mrb[0].mxu0 %v5482
      %v5580 = vpop.f32.mrb[0].mxu0
      %v5581 = vadd.f32 %v4935, %v5580
      %v5582 = vpop.f32.mrb[0].mxu0
      %5583 = vmatprep.mubr.f32.mxu0 0.0
      %5584 = vmatmul.mubr.f32.gmra.mrb[0].mxu0 %v5484
      %v5585 = vpop.f32.mrb[0].mxu0
      %v5586 = vadd.f32 %v4936, %v5585
      %v5587 = vpop.f32.mrb[0].mxu0
      %5588 = vmatprep.mubr.f32.mxu0 0.0
      %5589 = vmatmul.mubr.f32.gmra.mrb[0].mxu0 %v5486
      %v5590 = vpop.f32.mrb[0].mxu0
      %v5591 = vadd.f32 %v4937, %v5590
      %v5592 = vpop.f32.mrb[0].mxu0
      %5593 = vmatprep.mubr.f32.mxu0 0.0
      %5594 = vmatmul.mubr.f32.gmra.mrb[0].mxu0 %v5488
      %v5595 = vpop.f32.mrb[0].mxu0
      %v5596 = vadd.f32 %v4938, %v5595
      %v5597 = vpop.f32.mrb[0].mxu0
      %5598 = vmatprep.mubr.f32.mxu0 0.0
      %5599 = vmatmul.mubr.f32.gmra.mrb[0].mxu0 %v5490
      %v5600 = vpop.f32.mrb[0].mxu0
      %v5601 = vadd.f32 %v4939, %v5600
      %v5602 = vpop.f32.mrb[0].mxu0
      %5603 = vmatprep.mubr.f32.mxu0 0.0
      %5604 = vmatmul.mubr.f32.gmra.mrb[0].mxu0 %v5492
      %v5605 = vpop.f32.mrb[0].mxu0
      %v5606 = vadd.f32 %v4940, %v5605
      %v5607 = vpop.f32.mrb[0].mxu0
      %5608 = vmatprep.mubr.f32.mxu0 0.0
      %5609 = vmatmul.mubr.f32.gmra.mrb[0].mxu0 %v5494
      %v5610 = vpop.f32.mrb[0].mxu0
      %v5611 = vadd.f32 %v4941, %v5610
      %v5612 = vpop.f32.mrb[0].mxu0
      %5613 = vmatprep.mubr.f32.mxu0 0.0
      %5614 = vmatmul.mubr.f32.gmra.mrb[0].mxu0 %v5496
      %v5615 = vpop.f32.mrb[0].mxu0
      %v5616 = vadd.f32 %v4942, %v5615
      %v5617 = vpop.f32.mrb[0].mxu0
      %5618 = vdwg.mxu0
      %v5619 = vsel %vm423, %v5074, -inf
      %5620 = vmax.xlane.f32.xlu0 %v5619
      %v5621 = vpop.xlane.xlu0 %5620
      %v5622 = vsel %vm423, %v5079, -inf
      %5623 = vmax.xlane.f32.xlu0 %v5622
      %v5624 = vpop.xlane.xlu0 %5623
      %v5625 = vsel %vm423, %v5084, -inf
      %5626 = vmax.xlane.f32.xlu0 %v5625
      %v5627 = vpop.xlane.xlu0 %5626
      %v5628 = vsel %vm423, %v5089, -inf
      %5629 = vmax.xlane.f32.xlu0 %v5628
      %v5630 = vpop.xlane.xlu0 %5629
      %v5631 = vsel %vm423, %v5094, -inf
      %5632 = vmax.xlane.f32.xlu0 %v5631
      %v5633 = vpop.xlane.xlu0 %5632
      %v5634 = vsel %vm423, %v5099, -inf
      %5635 = vmax.xlane.f32.xlu0 %v5634
      %v5636 = vpop.xlane.xlu0 %5635
      %v5637 = vsel %vm423, %v5104, -inf
      %5638 = vmax.xlane.f32.xlu0 %v5637
      %v5639 = vpop.xlane.xlu0 %5638
      %v5640 = vsel %vm423, %v5109, -inf
      %5641 = vmax.xlane.f32.xlu0 %v5640
      %v5642 = vpop.xlane.xlu0 %5641
      %v5643 = vsel %vm423, %v5243, -inf
      %5644 = vmax.xlane.f32.xlu0 %v5643
      %v5645 = vpop.xlane.xlu0 %5644
      %v5646 = vsel %vm423, %v5248, -inf
      %5647 = vmax.xlane.f32.xlu0 %v5646
      %v5648 = vpop.xlane.xlu0 %5647
      %v5649 = vsel %vm423, %v5253, -inf
      %5650 = vmax.xlane.f32.xlu0 %v5649
      %v5651 = vpop.xlane.xlu0 %5650
      %v5652 = vsel %vm423, %v5258, -inf
      %5653 = vmax.xlane.f32.xlu0 %v5652
      %v5654 = vpop.xlane.xlu0 %5653
      %v5655 = vsel %vm423, %v5263, -inf
      %5656 = vmax.xlane.f32.xlu0 %v5655
      %v5657 = vpop.xlane.xlu0 %5656
      %v5658 = vsel %vm423, %v5268, -inf
      %5659 = vmax.xlane.f32.xlu0 %v5658
      %v5660 = vpop.xlane.xlu0 %5659
      %v5661 = vsel %vm423, %v5273, -inf
      %5662 = vmax.xlane.f32.xlu0 %v5661
      %v5663 = vpop.xlane.xlu0 %5662
      %v5664 = vsel %vm423, %v5278, -inf
      %5665 = vmax.xlane.f32.xlu0 %v5664
      %v5666 = vpop.xlane.xlu0 %5665
      %v5667 = vsel %vm423, %v5412, -inf
      %5668 = vmax.xlane.f32.xlu0 %v5667
      %v5669 = vpop.xlane.xlu0 %5668
      %v5670 = vsel %vm423, %v5417, -inf
      %5671 = vmax.xlane.f32.xlu0 %v5670
      %v5672 = vpop.xlane.xlu0 %5671
      %v5673 = vsel %vm423, %v5422, -inf
      %5674 = vmax.xlane.f32.xlu0 %v5673
      %v5675 = vpop.xlane.xlu0 %5674
      %v5676 = vsel %vm423, %v5427, -inf
      %5677 = vmax.xlane.f32.xlu0 %v5676
      %v5678 = vpop.xlane.xlu0 %5677
      %v5679 = vsel %vm423, %v5432, -inf
      %5680 = vmax.xlane.f32.xlu0 %v5679
      %v5681 = vpop.xlane.xlu0 %5680
      %v5682 = vsel %vm423, %v5437, -inf
      %5683 = vmax.xlane.f32.xlu0 %v5682
      %v5684 = vpop.xlane.xlu0 %5683
      %v5685 = vsel %vm423, %v5442, -inf
      %5686 = vmax.xlane.f32.xlu0 %v5685
      %v5687 = vpop.xlane.xlu0 %5686
      %v5688 = vsel %vm423, %v5447, -inf
      %5689 = vmax.xlane.f32.xlu0 %v5688
      %v5690 = vpop.xlane.xlu0 %5689
      %v5691 = vsel %vm423, %v5581, -inf
      %5692 = vmax.xlane.f32.xlu0 %v5691
      %v5693 = vpop.xlane.xlu0 %5692
      %v5694 = vsel %vm423, %v5586, -inf
      %5695 = vmax.xlane.f32.xlu0 %v5694
      %v5696 = vpop.xlane.xlu0 %5695
      %v5697 = vsel %vm423, %v5591, -inf
      %5698 = vmax.xlane.f32.xlu0 %v5697
      %v5699 = vpop.xlane.xlu0 %5698
      %v5700 = vsel %vm423, %v5596, -inf
      %5701 = vmax.xlane.f32.xlu0 %v5700
      %v5702 = vpop.xlane.xlu0 %5701
      %v5703 = vsel %vm423, %v5601, -inf
      %5704 = vmax.xlane.f32.xlu0 %v5703
      %v5705 = vpop.xlane.xlu0 %5704
      %v5706 = vsel %vm423, %v5606, -inf
      %5707 = vmax.xlane.f32.xlu0 %v5706
      %v5708 = vpop.xlane.xlu0 %5707
      %v5709 = vsel %vm423, %v5611, -inf
      %5710 = vmax.xlane.f32.xlu0 %v5709
      %v5711 = vpop.xlane.xlu0 %5710
      %v5712 = vsel %vm423, %v5616, -inf
      %5713 = vmax.xlane.f32.xlu0 %v5712
      %v5714 = vpop.xlane.xlu0 %5713
      %v5715 = vsub.f32 %v5074, %v5621
      %v5716 = vsub.f32 %v5079, %v5624
      %v5717 = vsub.f32 %v5084, %v5627
      %v5718 = vsub.f32 %v5089, %v5630
      %v5719 = vsub.f32 %v5094, %v5633
      %v5720 = vsub.f32 %v5099, %v5636
      %v5721 = vsub.f32 %v5104, %v5639
      %v5722 = vsub.f32 %v5109, %v5642
      %v5723 = vsub.f32 %v5243, %v5645
      %v5724 = vsub.f32 %v5248, %v5648
      %v5725 = vsub.f32 %v5253, %v5651
      %v5726 = vsub.f32 %v5258, %v5654
      %v5727 = vsub.f32 %v5263, %v5657
      %v5728 = vsub.f32 %v5268, %v5660
      %v5729 = vsub.f32 %v5273, %v5663
      %v5730 = vsub.f32 %v5278, %v5666
      %v5731 = vsub.f32 %v5412, %v5669
      %v5732 = vsub.f32 %v5417, %v5672
      %v5733 = vsub.f32 %v5422, %v5675
      %v5734 = vsub.f32 %v5427, %v5678
      %v5735 = vsub.f32 %v5432, %v5681
      %v5736 = vsub.f32 %v5437, %v5684
      %v5737 = vsub.f32 %v5442, %v5687
      %v5738 = vsub.f32 %v5447, %v5690
      %v5739 = vsub.f32 %v5581, %v5693
      %v5740 = vsub.f32 %v5586, %v5696
      %v5741 = vsub.f32 %v5591, %v5699
      %v5742 = vsub.f32 %v5596, %v5702
      %v5743 = vsub.f32 %v5601, %v5705
      %v5744 = vsub.f32 %v5606, %v5708
      %v5745 = vsub.f32 %v5611, %v5711
      %v5746 = vsub.f32 %v5616, %v5714
      %v5747 = vmul.f32 %v5715, 1.442695
      %v5748 = vpow.pop %v5747
      %v5749 = vmul.f32 %v5716, 1.442695
      %v5750 = vpow.pop %v5749
      %v5751 = vmul.f32 %v5717, 1.442695
      %v5752 = vpow.pop %v5751
      %v5753 = vmul.f32 %v5718, 1.442695
      %v5754 = vpow.pop %v5753
      %v5755 = vmul.f32 %v5719, 1.442695
      %v5756 = vpow.pop %v5755
      %v5757 = vmul.f32 %v5720, 1.442695
      %v5758 = vpow.pop %v5757
      %v5759 = vmul.f32 %v5721, 1.442695
      %v5760 = vpow.pop %v5759
      %v5761 = vmul.f32 %v5722, 1.442695
      %v5762 = vpow.pop %v5761
      %v5763 = vmul.f32 %v5723, 1.442695
      %v5764 = vpow.pop %v5763
      %v5765 = vmul.f32 %v5724, 1.442695
      %v5766 = vpow.pop %v5765
      %v5767 = vmul.f32 %v5725, 1.442695
      %v5768 = vpow.pop %v5767
      %v5769 = vmul.f32 %v5726, 1.442695
      %v5770 = vpow.pop %v5769
      %v5771 = vmul.f32 %v5727, 1.442695
      %v5772 = vpow.pop %v5771
      %v5773 = vmul.f32 %v5728, 1.442695
      %v5774 = vpow.pop %v5773
      %v5775 = vmul.f32 %v5729, 1.442695
      %v5776 = vpow.pop %v5775
      %v5777 = vmul.f32 %v5730, 1.442695
      %v5778 = vpow.pop %v5777
      %v5779 = vmul.f32 %v5731, 1.442695
      %v5780 = vpow.pop %v5779
      %v5781 = vmul.f32 %v5732, 1.442695
      %v5782 = vpow.pop %v5781
      %v5783 = vmul.f32 %v5733, 1.442695
      %v5784 = vpow.pop %v5783
      %v5785 = vmul.f32 %v5734, 1.442695
      %v5786 = vpow.pop %v5785
      %v5787 = vmul.f32 %v5735, 1.442695
      %v5788 = vpow.pop %v5787
      %v5789 = vmul.f32 %v5736, 1.442695
      %v5790 = vpow.pop %v5789
      %v5791 = vmul.f32 %v5737, 1.442695
      %v5792 = vpow.pop %v5791
      %v5793 = vmul.f32 %v5738, 1.442695
      %v5794 = vpow.pop %v5793
      %v5795 = vmul.f32 %v5739, 1.442695
      %v5796 = vpow.pop %v5795
      %v5797 = vmul.f32 %v5740, 1.442695
      %v5798 = vpow.pop %v5797
      %v5799 = vmul.f32 %v5741, 1.442695
      %v5800 = vpow.pop %v5799
      %v5801 = vmul.f32 %v5742, 1.442695
      %v5802 = vpow.pop %v5801
      %v5803 = vmul.f32 %v5743, 1.442695
      %v5804 = vpow.pop %v5803
      %v5805 = vmul.f32 %v5744, 1.442695
      %v5806 = vpow.pop %v5805
      %v5807 = vmul.f32 %v5745, 1.442695
      %v5808 = vpow.pop %v5807
      %v5809 = vmul.f32 %v5746, 1.442695
      %v5810 = vpow.pop %v5809
      %v5811 = vsel %vm423, %v5748, 0.0
      %5812 = vadd.xlane.f32.xlu0 %v5811
      %v5813 = vpop.xlane.xlu0 %5812
      %v5814 = vsel %vm423, %v5750, 0.0
      %5815 = vadd.xlane.f32.xlu0 %v5814
      %v5816 = vpop.xlane.xlu0 %5815
      %v5817 = vsel %vm423, %v5752, 0.0
      %5818 = vadd.xlane.f32.xlu0 %v5817
      %v5819 = vpop.xlane.xlu0 %5818
      %v5820 = vsel %vm423, %v5754, 0.0
      %5821 = vadd.xlane.f32.xlu0 %v5820
      %v5822 = vpop.xlane.xlu0 %5821
      %v5823 = vsel %vm423, %v5756, 0.0
      %5824 = vadd.xlane.f32.xlu0 %v5823
      %v5825 = vpop.xlane.xlu0 %5824
      %v5826 = vsel %vm423, %v5758, 0.0
      %5827 = vadd.xlane.f32.xlu0 %v5826
      %v5828 = vpop.xlane.xlu0 %5827
      %v5829 = vsel %vm423, %v5760, 0.0
      %5830 = vadd.xlane.f32.xlu0 %v5829
      %v5831 = vpop.xlane.xlu0 %5830
      %v5832 = vsel %vm423, %v5762, 0.0
      %5833 = vadd.xlane.f32.xlu0 %v5832
      %v5834 = vpop.xlane.xlu0 %5833
      %v5835 = vsel %vm423, %v5764, 0.0
      %5836 = vadd.xlane.f32.xlu0 %v5835
      %v5837 = vpop.xlane.xlu0 %5836
      %v5838 = vsel %vm423, %v5766, 0.0
      %5839 = vadd.xlane.f32.xlu0 %v5838
      %v5840 = vpop.xlane.xlu0 %5839
      %v5841 = vsel %vm423, %v5768, 0.0
      %5842 = vadd.xlane.f32.xlu0 %v5841
      %v5843 = vpop.xlane.xlu0 %5842
      %v5844 = vsel %vm423, %v5770, 0.0
      %5845 = vadd.xlane.f32.xlu0 %v5844
      %v5846 = vpop.xlane.xlu0 %5845
      %v5847 = vsel %vm423, %v5772, 0.0
      %5848 = vadd.xlane.f32.xlu0 %v5847
      %v5849 = vpop.xlane.xlu0 %5848
      %v5850 = vsel %vm423, %v5774, 0.0
      %5851 = vadd.xlane.f32.xlu0 %v5850
      %v5852 = vpop.xlane.xlu0 %5851
      %v5853 = vsel %vm423, %v5776, 0.0
      %5854 = vadd.xlane.f32.xlu0 %v5853
      %v5855 = vpop.xlane.xlu0 %5854
      %v5856 = vsel %vm423, %v5778, 0.0
      %5857 = vadd.xlane.f32.xlu0 %v5856
      %v5858 = vpop.xlane.xlu0 %5857
      %v5859 = vsel %vm423, %v5780, 0.0
      %5860 = vadd.xlane.f32.xlu0 %v5859
      %v5861 = vpop.xlane.xlu0 %5860
      %v5862 = vsel %vm423, %v5782, 0.0
      %5863 = vadd.xlane.f32.xlu0 %v5862
      %v5864 = vpop.xlane.xlu0 %5863
      %v5865 = vsel %vm423, %v5784, 0.0
      %5866 = vadd.xlane.f32.xlu0 %v5865
      %v5867 = vpop.xlane.xlu0 %5866
      %v5868 = vsel %vm423, %v5786, 0.0
      %5869 = vadd.xlane.f32.xlu0 %v5868
      %v5870 = vpop.xlane.xlu0 %5869
      %v5871 = vsel %vm423, %v5788, 0.0
      %5872 = vadd.xlane.f32.xlu0 %v5871
      %v5873 = vpop.xlane.xlu0 %5872
      %v5874 = vsel %vm423, %v5790, 0.0
      %5875 = vadd.xlane.f32.xlu0 %v5874
      %v5876 = vpop.xlane.xlu0 %5875
      %v5877 = vsel %vm423, %v5792, 0.0
      %5878 = vadd.xlane.f32.xlu0 %v5877
      %v5879 = vpop.xlane.xlu0 %5878
      %v5880 = vsel %vm423, %v5794, 0.0
      %5881 = vadd.xlane.f32.xlu0 %v5880
      %v5882 = vpop.xlane.xlu0 %5881
      %v5883 = vsel %vm423, %v5796, 0.0
      %5884 = vadd.xlane.f32.xlu0 %v5883
      %v5885 = vpop.xlane.xlu0 %5884
      %v5886 = vsel %vm423, %v5798, 0.0
      %5887 = vadd.xlane.f32.xlu0 %v5886
      %v5888 = vpop.xlane.xlu0 %5887
      %v5889 = vsel %vm423, %v5800, 0.0
      %5890 = vadd.xlane.f32.xlu0 %v5889
      %v5891 = vpop.xlane.xlu0 %5890
      %v5892 = vsel %vm423, %v5802, 0.0
      %5893 = vadd.xlane.f32.xlu0 %v5892
      %v5894 = vpop.xlane.xlu0 %5893
      %v5895 = vsel %vm423, %v5804, 0.0
      %5896 = vadd.xlane.f32.xlu0 %v5895
      %v5897 = vpop.xlane.xlu0 %5896
      %v5898 = vsel %vm423, %v5806, 0.0
      %5899 = vadd.xlane.f32.xlu0 %v5898
      %v5900 = vpop.xlane.xlu0 %5899
      %v5901 = vsel %vm423, %v5808, 0.0
      %5902 = vadd.xlane.f32.xlu0 %v5901
      %v5903 = vpop.xlane.xlu0 %5902
      %v5904 = vsel %vm423, %v5810, 0.0
      %5905 = vadd.xlane.f32.xlu0 %v5904
      %v5906 = vpop.xlane.xlu0 %5905
      %v5907 = vrcp.pop %v5813
      %v5908 = vrcp.pop %v5816
      %v5909 = vrcp.pop %v5819
      %v5910 = vrcp.pop %v5822
      %v5911 = vrcp.pop %v5825
      %v5912 = vrcp.pop %v5828
      %v5913 = vrcp.pop %v5831
      %v5914 = vrcp.pop %v5834
      %v5915 = vrcp.pop %v5837
      %v5916 = vrcp.pop %v5840
      %v5917 = vrcp.pop %v5843
      %v5918 = vrcp.pop %v5846
      %v5919 = vrcp.pop %v5849
      %v5920 = vrcp.pop %v5852
      %v5921 = vrcp.pop %v5855
      %v5922 = vrcp.pop %v5858
      %v5923 = vrcp.pop %v5861
      %v5924 = vrcp.pop %v5864
      %v5925 = vrcp.pop %v5867
      %v5926 = vrcp.pop %v5870
      %v5927 = vrcp.pop %v5873
      %v5928 = vrcp.pop %v5876
      %v5929 = vrcp.pop %v5879
      %v5930 = vrcp.pop %v5882
      %v5931 = vrcp.pop %v5885
      %v5932 = vrcp.pop %v5888
      %v5933 = vrcp.pop %v5891
      %v5934 = vrcp.pop %v5894
      %v5935 = vrcp.pop %v5897
      %v5936 = vrcp.pop %v5900
      %v5937 = vrcp.pop %v5903
      %v5938 = vrcp.pop %v5906
      %v5939 = vmul.f32 %v5748, %v5907
      %v5940 = vmul.f32 %v5750, %v5908
      %v5941 = vmul.f32 %v5752, %v5909
      %v5942 = vmul.f32 %v5754, %v5910
      %v5943 = vmul.f32 %v5756, %v5911
      %v5944 = vmul.f32 %v5758, %v5912
      %v5945 = vmul.f32 %v5760, %v5913
      %v5946 = vmul.f32 %v5762, %v5914
      %v5947 = vmul.f32 %v5764, %v5915
      %v5948 = vmul.f32 %v5766, %v5916
      %v5949 = vmul.f32 %v5768, %v5917
      %v5950 = vmul.f32 %v5770, %v5918
      %v5951 = vmul.f32 %v5772, %v5919
      %v5952 = vmul.f32 %v5774, %v5920
      %v5953 = vmul.f32 %v5776, %v5921
      %v5954 = vmul.f32 %v5778, %v5922
      %v5955 = vmul.f32 %v5780, %v5923
      %v5956 = vmul.f32 %v5782, %v5924
      %v5957 = vmul.f32 %v5784, %v5925
      %v5958 = vmul.f32 %v5786, %v5926
      %v5959 = vmul.f32 %v5788, %v5927
      %v5960 = vmul.f32 %v5790, %v5928
      %v5961 = vmul.f32 %v5792, %v5929
      %v5962 = vmul.f32 %v5794, %v5930
      %v5963 = vmul.f32 %v5796, %v5931
      %v5964 = vmul.f32 %v5798, %v5932
      %v5965 = vmul.f32 %v5800, %v5933
      %v5966 = vmul.f32 %v5802, %v5934
      %v5967 = vmul.f32 %v5804, %v5935
      %v5968 = vmul.f32 %v5806, %v5936
      %v5969 = vmul.f32 %v5808, %v5937
      %v5970 = vmul.f32 %v5810, %v5938
      %v5972 = vsel %vm423, %v5939, 0
      %v5975 = vsel %vm423, %v5940, 0
      %v5978 = vsel %vm423, %v5941, 0
      %v5981 = vsel %vm423, %v5942, 0
      %v5984 = vsel %vm423, %v5943, 0
      %v5987 = vsel %vm423, %v5944, 0
      %v5990 = vsel %vm423, %v5945, 0
      %v5993 = vsel %vm423, %v5946, 0
      %5995 = vmatprep.subr.mxu0 0.0
      %5996 = vmatpush1.msra.mxu0 %v1606
      %5997 = vmatprep.subr.mxu0 0.0
      %5998 = vmatpush1.msra.mxu0 %v1611
      %5999 = vmatprep.subr.mxu0 0.0
      %6000 = vmatpush1.msra.mxu0 %v1616
      %6001 = vmatprep.subr.mxu0 0.0
      %6002 = vmatpush1.msra.mxu0 %v1621
      %6003 = vmatprep.subr.mxu0 0.0
      %6004 = vmatpush1.msra.mxu0 %v1626
      %6005 = vmatprep.subr.mxu0 0.0
      %6006 = vmatpush1.msra.mxu0 %v1631
      %6007 = vmatprep.subr.mxu0 0.0
      %6008 = vmatpush1.msra.mxu0 %v1636
      %6009 = vmatprep.subr.mxu0 0.0
      %6010 = vmatpush1.msra.mxu0 %v1641
      %6011 = vmatprep.subr.mxu0 0.0
      %6012 = vmatpush1.msra.mxu0 0.0
      %6013 = vmatprep.subr.mxu0 0.0
      %6014 = vmatpush1.msra.mxu0 0.0
      %6015 = vmatprep.subr.mxu0 0.0
      %6016 = vmatpush1.msra.mxu0 0.0
      %6017 = vmatprep.subr.mxu0 0.0
      %6018 = vmatpush1.msra.mxu0 0.0
      %6019 = vmatprep.subr.mxu0 0.0
      %6020 = vmatpush1.msra.mxu0 0.0
      %6021 = vmatprep.subr.mxu0 0.0
      %6022 = vmatpush1.msra.mxu0 0.0
      %6023 = vmatprep.subr.mxu0 0.0
      %6024 = vmatpush1.msra.mxu0 0.0
      %6025 = vmatprep.subr.mxu0 0.0
      %6026 = vmatpush1.msra.mxu0 0.0
      %6027 = vmatprep.subr.mxu0 0.0
      %6028 = vmatpush1.msra.mxu0 0.0
      %6029 = vmatprep.subr.mxu0 0.0
      %6030 = vmatpush1.msra.mxu0 0.0
      %6031 = vmatprep.subr.mxu0 0.0
      %6032 = vmatpush1.msra.mxu0 0.0
      %6033 = vmatprep.subr.mxu0 0.0
      %6034 = vmatpush1.msra.mxu0 0.0
      %6035 = vmatprep.subr.mxu0 0.0
      %6036 = vmatpush1.msra.mxu0 0.0
      %6037 = vmatprep.subr.mxu0 0.0
      %6038 = vmatpush1.msra.mxu0 0.0
      %6039 = vmatprep.subr.mxu0 0.0
      %6040 = vmatpush1.msra.mxu0 0.0
      %6041 = vmatprep.subr.mxu0 0.0
      %6042 = vmatpush1.msra.mxu0 0.0
      %6043 = vmatprep.subr.mxu0 0.0
      %6044 = vmatpush1.msra.mxu0 0.0
      %6045 = vmatprep.subr.mxu0 0.0
      %6046 = vmatpush1.msra.mxu0 0.0
      %6047 = vmatprep.subr.mxu0 0.0
      %6048 = vmatpush1.msra.mxu0 0.0
      %6049 = vmatprep.subr.mxu0 0.0
      %6050 = vmatpush1.msra.mxu0 0.0
      %6051 = vmatprep.subr.mxu0 0.0
      %6052 = vmatpush1.msra.mxu0 0.0
      %6053 = vmatprep.subr.mxu0 0.0
      %6054 = vmatpush1.msra.mxu0 0.0
      %6055 = vmatprep.subr.mxu0 0.0
      %6056 = vmatpush1.msra.mxu0 0.0
      %6057 = vmatprep.subr.mxu0 0.0
      %6058 = vmatpush1.msra.mxu0 0.0
      %6059 = vmatprep.mubr.f32.mxu0 0.0
      %6060 = vmatmul.mubr.f32.gmra.mrb[0].mxu0 %v5972
      %v6061 = vpop.f32.mrb[0].mxu0
      %v6062 = vadd.f32 0.0, %v6061
      %v6063 = vpop.f32.mrb[0].mxu0
      %6064 = vmatprep.mubr.f32.mxu0 0.0
      %6065 = vmatmul.mubr.f32.gmra.mrb[0].mxu0 %v5975
      %v6066 = vpop.f32.mrb[0].mxu0
      %v6067 = vadd.f32 0.0, %v6066
      %v6068 = vpop.f32.mrb[0].mxu0
      %6069 = vmatprep.mubr.f32.mxu0 0.0
      %6070 = vmatmul.mubr.f32.gmra.mrb[0].mxu0 %v5978
      %v6071 = vpop.f32.mrb[0].mxu0
      %v6072 = vadd.f32 0.0, %v6071
      %v6073 = vpop.f32.mrb[0].mxu0
      %6074 = vmatprep.mubr.f32.mxu0 0.0
      %6075 = vmatmul.mubr.f32.gmra.mrb[0].mxu0 %v5981
      %v6076 = vpop.f32.mrb[0].mxu0
      %v6077 = vadd.f32 0.0, %v6076
      %v6078 = vpop.f32.mrb[0].mxu0
      %6079 = vmatprep.mubr.f32.mxu0 0.0
      %6080 = vmatmul.mubr.f32.gmra.mrb[0].mxu0 %v5984
      %v6081 = vpop.f32.mrb[0].mxu0
      %v6082 = vadd.f32 0.0, %v6081
      %v6083 = vpop.f32.mrb[0].mxu0
      %6084 = vmatprep.mubr.f32.mxu0 0.0
      %6085 = vmatmul.mubr.f32.gmra.mrb[0].mxu0 %v5987
      %v6086 = vpop.f32.mrb[0].mxu0
      %v6087 = vadd.f32 0.0, %v6086
      %v6088 = vpop.f32.mrb[0].mxu0
      %6089 = vmatprep.mubr.f32.mxu0 0.0
      %6090 = vmatmul.mubr.f32.gmra.mrb[0].mxu0 %v5990
      %v6091 = vpop.f32.mrb[0].mxu0
      %v6092 = vadd.f32 0.0, %v6091
      %v6093 = vpop.f32.mrb[0].mxu0
      %6094 = vmatprep.mubr.f32.mxu0 0.0
      %6095 = vmatmul.mubr.f32.gmra.mrb[0].mxu0 %v5993
      %v6096 = vpop.f32.mrb[0].mxu0
      %v6097 = vadd.f32 0.0, %v6096
      %v6098 = vpop.f32.mrb[0].mxu0
      %6099 = vdwg.mxu0
      %v6101 = vsel %vm423, %v5947, 0
      %v6104 = vsel %vm423, %v5948, 0
      %v6107 = vsel %vm423, %v5949, 0
      %v6110 = vsel %vm423, %v5950, 0
      %v6113 = vsel %vm423, %v5951, 0
      %v6116 = vsel %vm423, %v5952, 0
      %v6119 = vsel %vm423, %v5953, 0
      %v6122 = vsel %vm423, %v5954, 0
      %6124 = vmatprep.subr.mxu0 0.0
      %6125 = vmatpush1.msra.mxu0 %v1646
      %6126 = vmatprep.subr.mxu0 0.0
      %6127 = vmatpush1.msra.mxu0 %v1651
      %6128 = vmatprep.subr.mxu0 0.0
      %6129 = vmatpush1.msra.mxu0 %v1656
      %6130 = vmatprep.subr.mxu0 0.0
      %6131 = vmatpush1.msra.mxu0 %v1661
      %6132 = vmatprep.subr.mxu0 0.0
      %6133 = vmatpush1.msra.mxu0 %v1666
      %6134 = vmatprep.subr.mxu0 0.0
      %6135 = vmatpush1.msra.mxu0 %v1671
      %6136 = vmatprep.subr.mxu0 0.0
      %6137 = vmatpush1.msra.mxu0 %v1676
      %6138 = vmatprep.subr.mxu0 0.0
      %6139 = vmatpush1.msra.mxu0 %v1681
      %6140 = vmatprep.subr.mxu0 0.0
      %6141 = vmatpush1.msra.mxu0 0.0
      %6142 = vmatprep.subr.mxu0 0.0
      %6143 = vmatpush1.msra.mxu0 0.0
      %6144 = vmatprep.subr.mxu0 0.0
      %6145 = vmatpush1.msra.mxu0 0.0
      %6146 = vmatprep.subr.mxu0 0.0
      %6147 = vmatpush1.msra.mxu0 0.0
      %6148 = vmatprep.subr.mxu0 0.0
      %6149 = vmatpush1.msra.mxu0 0.0
      %6150 = vmatprep.subr.mxu0 0.0
      %6151 = vmatpush1.msra.mxu0 0.0
      %6152 = vmatprep.subr.mxu0 0.0
      %6153 = vmatpush1.msra.mxu0 0.0
      %6154 = vmatprep.subr.mxu0 0.0
      %6155 = vmatpush1.msra.mxu0 0.0
      %6156 = vmatprep.subr.mxu0 0.0
      %6157 = vmatpush1.msra.mxu0 0.0
      %6158 = vmatprep.subr.mxu0 0.0
      %6159 = vmatpush1.msra.mxu0 0.0
      %6160 = vmatprep.subr.mxu0 0.0
      %6161 = vmatpush1.msra.mxu0 0.0
      %6162 = vmatprep.subr.mxu0 0.0
      %6163 = vmatpush1.msra.mxu0 0.0
      %6164 = vmatprep.subr.mxu0 0.0
      %6165 = vmatpush1.msra.mxu0 0.0
      %6166 = vmatprep.subr.mxu0 0.0
      %6167 = vmatpush1.msra.mxu0 0.0
      %6168 = vmatprep.subr.mxu0 0.0
      %6169 = vmatpush1.msra.mxu0 0.0
      %6170 = vmatprep.subr.mxu0 0.0
      %6171 = vmatpush1.msra.mxu0 0.0
      %6172 = vmatprep.subr.mxu0 0.0
      %6173 = vmatpush1.msra.mxu0 0.0
      %6174 = vmatprep.subr.mxu0 0.0
      %6175 = vmatpush1.msra.mxu0 0.0
      %6176 = vmatprep.subr.mxu0 0.0
      %6177 = vmatpush1.msra.mxu0 0.0
      %6178 = vmatprep.subr.mxu0 0.0
      %6179 = vmatpush1.msra.mxu0 0.0
      %6180 = vmatprep.subr.mxu0 0.0
      %6181 = vmatpush1.msra.mxu0 0.0
      %6182 = vmatprep.subr.mxu0 0.0
      %6183 = vmatpush1.msra.mxu0 0.0
      %6184 = vmatprep.subr.mxu0 0.0
      %6185 = vmatpush1.msra.mxu0 0.0
      %6186 = vmatprep.subr.mxu0 0.0
      %6187 = vmatpush1.msra.mxu0 0.0
      %6188 = vmatprep.mubr.f32.mxu0 0.0
      %6189 = vmatmul.mubr.f32.gmra.mrb[0].mxu0 %v6101
      %v6190 = vpop.f32.mrb[0].mxu0
      %v6191 = vadd.f32 0.0, %v6190
      %v6192 = vpop.f32.mrb[0].mxu0
      %6193 = vmatprep.mubr.f32.mxu0 0.0
      %6194 = vmatmul.mubr.f32.gmra.mrb[0].mxu0 %v6104
      %v6195 = vpop.f32.mrb[0].mxu0
      %v6196 = vadd.f32 0.0, %v6195
      %v6197 = vpop.f32.mrb[0].mxu0
      %6198 = vmatprep.mubr.f32.mxu0 0.0
      %6199 = vmatmul.mubr.f32.gmra.mrb[0].mxu0 %v6107
      %v6200 = vpop.f32.mrb[0].mxu0
      %v6201 = vadd.f32 0.0, %v6200
      %v6202 = vpop.f32.mrb[0].mxu0
      %6203 = vmatprep.mubr.f32.mxu0 0.0
      %6204 = vmatmul.mubr.f32.gmra.mrb[0].mxu0 %v6110
      %v6205 = vpop.f32.mrb[0].mxu0
      %v6206 = vadd.f32 0.0, %v6205
      %v6207 = vpop.f32.mrb[0].mxu0
      %6208 = vmatprep.mubr.f32.mxu0 0.0
      %6209 = vmatmul.mubr.f32.gmra.mrb[0].mxu0 %v6113
      %v6210 = vpop.f32.mrb[0].mxu0
      %v6211 = vadd.f32 0.0, %v6210
      %v6212 = vpop.f32.mrb[0].mxu0
      %6213 = vmatprep.mubr.f32.mxu0 0.0
      %6214 = vmatmul.mubr.f32.gmra.mrb[0].mxu0 %v6116
      %v6215 = vpop.f32.mrb[0].mxu0
      %v6216 = vadd.f32 0.0, %v6215
      %v6217 = vpop.f32.mrb[0].mxu0
      %6218 = vmatprep.mubr.f32.mxu0 0.0
      %6219 = vmatmul.mubr.f32.gmra.mrb[0].mxu0 %v6119
      %v6220 = vpop.f32.mrb[0].mxu0
      %v6221 = vadd.f32 0.0, %v6220
      %v6222 = vpop.f32.mrb[0].mxu0
      %6223 = vmatprep.mubr.f32.mxu0 0.0
      %6224 = vmatmul.mubr.f32.gmra.mrb[0].mxu0 %v6122
      %v6225 = vpop.f32.mrb[0].mxu0
      %v6226 = vadd.f32 0.0, %v6225
      %v6227 = vpop.f32.mrb[0].mxu0
      %6228 = vdwg.mxu0
      %v6230 = vsel %vm423, %v5955, 0
      %v6233 = vsel %vm423, %v5956, 0
      %v6236 = vsel %vm423, %v5957, 0
      %v6239 = vsel %vm423, %v5958, 0
      %v6242 = vsel %vm423, %v5959, 0
      %v6245 = vsel %vm423, %v5960, 0
      %v6248 = vsel %vm423, %v5961, 0
      %v6251 = vsel %vm423, %v5962, 0
      %6253 = vmatprep.subr.mxu0 0.0
      %6254 = vmatpush1.msra.mxu0 %v1686
      %6255 = vmatprep.subr.mxu0 0.0
      %6256 = vmatpush1.msra.mxu0 %v1691
      %6257 = vmatprep.subr.mxu0 0.0
      %6258 = vmatpush1.msra.mxu0 %v1696
      %6259 = vmatprep.subr.mxu0 0.0
      %6260 = vmatpush1.msra.mxu0 %v1701
      %6261 = vmatprep.subr.mxu0 0.0
      %6262 = vmatpush1.msra.mxu0 %v1706
      %6263 = vmatprep.subr.mxu0 0.0
      %6264 = vmatpush1.msra.mxu0 %v1711
      %6265 = vmatprep.subr.mxu0 0.0
      %6266 = vmatpush1.msra.mxu0 %v1716
      %6267 = vmatprep.subr.mxu0 0.0
      %6268 = vmatpush1.msra.mxu0 %v1721
      %6269 = vmatprep.subr.mxu0 0.0
      %6270 = vmatpush1.msra.mxu0 0.0
      %6271 = vmatprep.subr.mxu0 0.0
      %6272 = vmatpush1.msra.mxu0 0.0
      %6273 = vmatprep.subr.mxu0 0.0
      %6274 = vmatpush1.msra.mxu0 0.0
      %6275 = vmatprep.subr.mxu0 0.0
      %6276 = vmatpush1.msra.mxu0 0.0
      %6277 = vmatprep.subr.mxu0 0.0
      %6278 = vmatpush1.msra.mxu0 0.0
      %6279 = vmatprep.subr.mxu0 0.0
      %6280 = vmatpush1.msra.mxu0 0.0
      %6281 = vmatprep.subr.mxu0 0.0
      %6282 = vmatpush1.msra.mxu0 0.0
      %6283 = vmatprep.subr.mxu0 0.0
      %6284 = vmatpush1.msra.mxu0 0.0
      %6285 = vmatprep.subr.mxu0 0.0
      %6286 = vmatpush1.msra.mxu0 0.0
      %6287 = vmatprep.subr.mxu0 0.0
      %6288 = vmatpush1.msra.mxu0 0.0
      %6289 = vmatprep.subr.mxu0 0.0
      %6290 = vmatpush1.msra.mxu0 0.0
      %6291 = vmatprep.subr.mxu0 0.0
      %6292 = vmatpush1.msra.mxu0 0.0
      %6293 = vmatprep.subr.mxu0 0.0
      %6294 = vmatpush1.msra.mxu0 0.0
      %6295 = vmatprep.subr.mxu0 0.0
      %6296 = vmatpush1.msra.mxu0 0.0
      %6297 = vmatprep.subr.mxu0 0.0
      %6298 = vmatpush1.msra.mxu0 0.0
      %6299 = vmatprep.subr.mxu0 0.0
      %6300 = vmatpush1.msra.mxu0 0.0
      %6301 = vmatprep.subr.mxu0 0.0
      %6302 = vmatpush1.msra.mxu0 0.0
      %6303 = vmatprep.subr.mxu0 0.0
      %6304 = vmatpush1.msra.mxu0 0.0
      %6305 = vmatprep.subr.mxu0 0.0
      %6306 = vmatpush1.msra.mxu0 0.0
      %6307 = vmatprep.subr.mxu0 0.0
      %6308 = vmatpush1.msra.mxu0 0.0
      %6309 = vmatprep.subr.mxu0 0.0
      %6310 = vmatpush1.msra.mxu0 0.0
      %6311 = vmatprep.subr.mxu0 0.0
      %6312 = vmatpush1.msra.mxu0 0.0
      %6313 = vmatprep.subr.mxu0 0.0
      %6314 = vmatpush1.msra.mxu0 0.0
      %6315 = vmatprep.subr.mxu0 0.0
      %6316 = vmatpush1.msra.mxu0 0.0
      %6317 = vmatprep.mubr.f32.mxu0 0.0
      %6318 = vmatmul.mubr.f32.gmra.mrb[0].mxu0 %v6230
      %v6319 = vpop.f32.mrb[0].mxu0
      %v6320 = vadd.f32 0.0, %v6319
      %v6321 = vpop.f32.mrb[0].mxu0
      %6322 = vmatprep.mubr.f32.mxu0 0.0
      %6323 = vmatmul.mubr.f32.gmra.mrb[0].mxu0 %v6233
      %v6324 = vpop.f32.mrb[0].mxu0
      %v6325 = vadd.f32 0.0, %v6324
      %v6326 = vpop.f32.mrb[0].mxu0
      %6327 = vmatprep.mubr.f32.mxu0 0.0
      %6328 = vmatmul.mubr.f32.gmra.mrb[0].mxu0 %v6236
      %v6329 = vpop.f32.mrb[0].mxu0
      %v6330 = vadd.f32 0.0, %v6329
      %v6331 = vpop.f32.mrb[0].mxu0
      %6332 = vmatprep.mubr.f32.mxu0 0.0
      %6333 = vmatmul.mubr.f32.gmra.mrb[0].mxu0 %v6239
      %v6334 = vpop.f32.mrb[0].mxu0
      %v6335 = vadd.f32 0.0, %v6334
      %v6336 = vpop.f32.mrb[0].mxu0
      %6337 = vmatprep.mubr.f32.mxu0 0.0
      %6338 = vmatmul.mubr.f32.gmra.mrb[0].mxu0 %v6242
      %v6339 = vpop.f32.mrb[0].mxu0
      %v6340 = vadd.f32 0.0, %v6339
      %v6341 = vpop.f32.mrb[0].mxu0
      %6342 = vmatprep.mubr.f32.mxu0 0.0
      %6343 = vmatmul.mubr.f32.gmra.mrb[0].mxu0 %v6245
      %v6344 = vpop.f32.mrb[0].mxu0
      %v6345 = vadd.f32 0.0, %v6344
      %v6346 = vpop.f32.mrb[0].mxu0
      %6347 = vmatprep.mubr.f32.mxu0 0.0
      %6348 = vmatmul.mubr.f32.gmra.mrb[0].mxu0 %v6248
      %v6349 = vpop.f32.mrb[0].mxu0
      %v6350 = vadd.f32 0.0, %v6349
      %v6351 = vpop.f32.mrb[0].mxu0
      %6352 = vmatprep.mubr.f32.mxu0 0.0
      %6353 = vmatmul.mubr.f32.gmra.mrb[0].mxu0 %v6251
      %v6354 = vpop.f32.mrb[0].mxu0
      %v6355 = vadd.f32 0.0, %v6354
      %v6356 = vpop.f32.mrb[0].mxu0
      %6357 = vdwg.mxu0
      %v6359 = vsel %vm423, %v5963, 0
      %v6362 = vsel %vm423, %v5964, 0
      %v6365 = vsel %vm423, %v5965, 0
      %v6368 = vsel %vm423, %v5966, 0
      %v6371 = vsel %vm423, %v5967, 0
      %v6374 = vsel %vm423, %v5968, 0
      %v6377 = vsel %vm423, %v5969, 0
      %v6380 = vsel %vm423, %v5970, 0
      %6382 = vmatprep.subr.mxu0 0.0
      %6383 = vmatpush1.msra.mxu0 %v1726
      %6384 = vmatprep.subr.mxu0 0.0
      %6385 = vmatpush1.msra.mxu0 %v1731
      %6386 = vmatprep.subr.mxu0 0.0
      %6387 = vmatpush1.msra.mxu0 %v1736
      %6388 = vmatprep.subr.mxu0 0.0
      %6389 = vmatpush1.msra.mxu0 %v1741
      %6390 = vmatprep.subr.mxu0 0.0
      %6391 = vmatpush1.msra.mxu0 %v1746
      %6392 = vmatprep.subr.mxu0 0.0
      %6393 = vmatpush1.msra.mxu0 %v1751
      %6394 = vmatprep.subr.mxu0 0.0
      %6395 = vmatpush1.msra.mxu0 %v1756
      %6396 = vmatprep.subr.mxu0 0.0
      %6397 = vmatpush1.msra.mxu0 %v1761
      %6398 = vmatprep.subr.mxu0 0.0
      %6399 = vmatpush1.msra.mxu0 0.0
      %6400 = vmatprep.subr.mxu0 0.0
      %6401 = vmatpush1.msra.mxu0 0.0
      %6402 = vmatprep.subr.mxu0 0.0
      %6403 = vmatpush1.msra.mxu0 0.0
      %6404 = vmatprep.subr.mxu0 0.0
      %6405 = vmatpush1.msra.mxu0 0.0
      %6406 = vmatprep.subr.mxu0 0.0
      %6407 = vmatpush1.msra.mxu0 0.0
      %6408 = vmatprep.subr.mxu0 0.0
      %6409 = vmatpush1.msra.mxu0 0.0
      %6410 = vmatprep.subr.mxu0 0.0
      %6411 = vmatpush1.msra.mxu0 0.0
      %6412 = vmatprep.subr.mxu0 0.0
      %6413 = vmatpush1.msra.mxu0 0.0
      %6414 = vmatprep.subr.mxu0 0.0
      %6415 = vmatpush1.msra.mxu0 0.0
      %6416 = vmatprep.subr.mxu0 0.0
      %6417 = vmatpush1.msra.mxu0 0.0
      %6418 = vmatprep.subr.mxu0 0.0
      %6419 = vmatpush1.msra.mxu0 0.0
      %6420 = vmatprep.subr.mxu0 0.0
      %6421 = vmatpush1.msra.mxu0 0.0
      %6422 = vmatprep.subr.mxu0 0.0
      %6423 = vmatpush1.msra.mxu0 0.0
      %6424 = vmatprep.subr.mxu0 0.0
      %6425 = vmatpush1.msra.mxu0 0.0
      %6426 = vmatprep.subr.mxu0 0.0
      %6427 = vmatpush1.msra.mxu0 0.0
      %6428 = vmatprep.subr.mxu0 0.0
      %6429 = vmatpush1.msra.mxu0 0.0
      %6430 = vmatprep.subr.mxu0 0.0
      %6431 = vmatpush1.msra.mxu0 0.0
      %6432 = vmatprep.subr.mxu0 0.0
      %6433 = vmatpush1.msra.mxu0 0.0
      %6434 = vmatprep.subr.mxu0 0.0
      %6435 = vmatpush1.msra.mxu0 0.0
      %6436 = vmatprep.subr.mxu0 0.0
      %6437 = vmatpush1.msra.mxu0 0.0
      %6438 = vmatprep.subr.mxu0 0.0
      %6439 = vmatpush1.msra.mxu0 0.0
      %6440 = vmatprep.subr.mxu0 0.0
      %6441 = vmatpush1.msra.mxu0 0.0
      %6442 = vmatprep.subr.mxu0 0.0
      %6443 = vmatpush1.msra.mxu0 0.0
      %6444 = vmatprep.subr.mxu0 0.0
      %6445 = vmatpush1.msra.mxu0 0.0
      %6446 = vmatprep.mubr.f32.mxu0 0.0
      %6447 = vmatmul.mubr.f32.gmra.mrb[0].mxu0 %v6359
      %v6448 = vpop.f32.mrb[0].mxu0
      %v6449 = vadd.f32 0.0, %v6448
      %v6450 = vpop.f32.mrb[0].mxu0
      %6451 = vmatprep.mubr.f32.mxu0 0.0
      %6452 = vmatmul.mubr.f32.gmra.mrb[0].mxu0 %v6362
      %v6453 = vpop.f32.mrb[0].mxu0
      %v6454 = vadd.f32 0.0, %v6453
      %v6455 = vpop.f32.mrb[0].mxu0
      %6456 = vmatprep.mubr.f32.mxu0 0.0
      %6457 = vmatmul.mubr.f32.gmra.mrb[0].mxu0 %v6365
      %v6458 = vpop.f32.mrb[0].mxu0
      %v6459 = vadd.f32 0.0, %v6458
      %v6460 = vpop.f32.mrb[0].mxu0
      %6461 = vmatprep.mubr.f32.mxu0 0.0
      %6462 = vmatmul.mubr.f32.gmra.mrb[0].mxu0 %v6368
      %v6463 = vpop.f32.mrb[0].mxu0
      %v6464 = vadd.f32 0.0, %v6463
      %v6465 = vpop.f32.mrb[0].mxu0
      %6466 = vmatprep.mubr.f32.mxu0 0.0
      %6467 = vmatmul.mubr.f32.gmra.mrb[0].mxu0 %v6371
      %v6468 = vpop.f32.mrb[0].mxu0
      %v6469 = vadd.f32 0.0, %v6468
      %v6470 = vpop.f32.mrb[0].mxu0
      %6471 = vmatprep.mubr.f32.mxu0 0.0
      %6472 = vmatmul.mubr.f32.gmra.mrb[0].mxu0 %v6374
      %v6473 = vpop.f32.mrb[0].mxu0
      %v6474 = vadd.f32 0.0, %v6473
      %v6475 = vpop.f32.mrb[0].mxu0
      %6476 = vmatprep.mubr.f32.mxu0 0.0
      %6477 = vmatmul.mubr.f32.gmra.mrb[0].mxu0 %v6377
      %v6478 = vpop.f32.mrb[0].mxu0
      %v6479 = vadd.f32 0.0, %v6478
      %v6480 = vpop.f32.mrb[0].mxu0
      %6481 = vmatprep.mubr.f32.mxu0 0.0
      %6482 = vmatmul.mubr.f32.gmra.mrb[0].mxu0 %v6380
      %v6483 = vpop.f32.mrb[0].mxu0
      %v6484 = vadd.f32 0.0, %v6483
      %v6485 = vpop.f32.mrb[0].mxu0
      %6486 = vdwg.mxu0
      %v6488 = vsel %vm423, %v4878, 0
      %v6491 = vsel %vm423, %v4879, 0
      %v6494 = vsel %vm423, %v4880, 0
      %v6497 = vsel %vm423, %v4881, 0
      %v6500 = vsel %vm423, %v4882, 0
      %v6503 = vsel %vm423, %v4883, 0
      %v6506 = vsel %vm423, %v4884, 0
      %v6509 = vsel %vm423, %v4885, 0
      %6511 = vmatprep.subr.mxu0 0.0
      %6512 = vmatpush1.msra.mxu0 %v1253
      %6513 = vmatprep.subr.mxu0 0.0
      %6514 = vmatpush1.msra.mxu0 %v1258
      %6515 = vmatprep.subr.mxu0 0.0
      %6516 = vmatpush1.msra.mxu0 %v1263
      %6517 = vmatprep.subr.mxu0 0.0
      %6518 = vmatpush1.msra.mxu0 %v1268
      %6519 = vmatprep.subr.mxu0 0.0
      %6520 = vmatpush1.msra.mxu0 %v1273
      %6521 = vmatprep.subr.mxu0 0.0
      %6522 = vmatpush1.msra.mxu0 %v1278
      %6523 = vmatprep.subr.mxu0 0.0
      %6524 = vmatpush1.msra.mxu0 %v1283
      %6525 = vmatprep.subr.mxu0 0.0
      %6526 = vmatpush1.msra.mxu0 %v1288
      %6527 = vmatprep.subr.mxu0 0.0
      %6528 = vmatpush1.msra.mxu0 0.0
      %6529 = vmatprep.subr.mxu0 0.0
      %6530 = vmatpush1.msra.mxu0 0.0
      %6531 = vmatprep.subr.mxu0 0.0
      %6532 = vmatpush1.msra.mxu0 0.0
      %6533 = vmatprep.subr.mxu0 0.0
      %6534 = vmatpush1.msra.mxu0 0.0
      %6535 = vmatprep.subr.mxu0 0.0
      %6536 = vmatpush1.msra.mxu0 0.0
      %6537 = vmatprep.subr.mxu0 0.0
      %6538 = vmatpush1.msra.mxu0 0.0
      %6539 = vmatprep.subr.mxu0 0.0
      %6540 = vmatpush1.msra.mxu0 0.0
      %6541 = vmatprep.subr.mxu0 0.0
      %6542 = vmatpush1.msra.mxu0 0.0
      %6543 = vmatprep.subr.mxu0 0.0
      %6544 = vmatpush1.msra.mxu0 0.0
      %6545 = vmatprep.subr.mxu0 0.0
      %6546 = vmatpush1.msra.mxu0 0.0
      %6547 = vmatprep.subr.mxu0 0.0
      %6548 = vmatpush1.msra.mxu0 0.0
      %6549 = vmatprep.subr.mxu0 0.0
      %6550 = vmatpush1.msra.mxu0 0.0
      %6551 = vmatprep.subr.mxu0 0.0
      %6552 = vmatpush1.msra.mxu0 0.0
      %6553 = vmatprep.subr.mxu0 0.0
      %6554 = vmatpush1.msra.mxu0 0.0
      %6555 = vmatprep.subr.mxu0 0.0
      %6556 = vmatpush1.msra.mxu0 0.0
      %6557 = vmatprep.subr.mxu0 0.0
      %6558 = vmatpush1.msra.mxu0 0.0
      %6559 = vmatprep.subr.mxu0 0.0
      %6560 = vmatpush1.msra.mxu0 0.0
      %6561 = vmatprep.subr.mxu0 0.0
      %6562 = vmatpush1.msra.mxu0 0.0
      %6563 = vmatprep.subr.mxu0 0.0
      %6564 = vmatpush1.msra.mxu0 0.0
      %6565 = vmatprep.subr.mxu0 0.0
      %6566 = vmatpush1.msra.mxu0 0.0
      %6567 = vmatprep.subr.mxu0 0.0
      %6568 = vmatpush1.msra.mxu0 0.0
      %6569 = vmatprep.subr.mxu0 0.0
      %6570 = vmatpush1.msra.mxu0 0.0
      %6571 = vmatprep.subr.mxu0 0.0
      %6572 = vmatpush1.msra.mxu0 0.0
      %6573 = vmatprep.subr.mxu0 0.0
      %6574 = vmatpush1.msra.mxu0 0.0
      %6575 = vmatprep.mubr.f32.mxu0 0.0
      %6576 = vmatmul.mubr.f32.gmra.mrb[0].mxu0 %v6488
      %v6577 = vpop.f32.mrb[0].mxu0
      %v6578 = vadd.f32 %v6062, %v6577
      %v6579 = vpop.f32.mrb[0].mxu0
      %6580 = vmatprep.mubr.f32.mxu0 0.0
      %6581 = vmatmul.mubr.f32.gmra.mrb[0].mxu0 %v6491
      %v6582 = vpop.f32.mrb[0].mxu0
      %v6583 = vadd.f32 %v6067, %v6582
      %v6584 = vpop.f32.mrb[0].mxu0
      %6585 = vmatprep.mubr.f32.mxu0 0.0
      %6586 = vmatmul.mubr.f32.gmra.mrb[0].mxu0 %v6494
      %v6587 = vpop.f32.mrb[0].mxu0
      %v6588 = vadd.f32 %v6072, %v6587
      %v6589 = vpop.f32.mrb[0].mxu0
      %6590 = vmatprep.mubr.f32.mxu0 0.0
      %6591 = vmatmul.mubr.f32.gmra.mrb[0].mxu0 %v6497
      %v6592 = vpop.f32.mrb[0].mxu0
      %v6593 = vadd.f32 %v6077, %v6592
      %v6594 = vpop.f32.mrb[0].mxu0
      %6595 = vmatprep.mubr.f32.mxu0 0.0
      %6596 = vmatmul.mubr.f32.gmra.mrb[0].mxu0 %v6500
      %v6597 = vpop.f32.mrb[0].mxu0
      %v6598 = vadd.f32 %v6082, %v6597
      %v6599 = vpop.f32.mrb[0].mxu0
      %6600 = vmatprep.mubr.f32.mxu0 0.0
      %6601 = vmatmul.mubr.f32.gmra.mrb[0].mxu0 %v6503
      %v6602 = vpop.f32.mrb[0].mxu0
      %v6603 = vadd.f32 %v6087, %v6602
      %v6604 = vpop.f32.mrb[0].mxu0
      %6605 = vmatprep.mubr.f32.mxu0 0.0
      %6606 = vmatmul.mubr.f32.gmra.mrb[0].mxu0 %v6506
      %v6607 = vpop.f32.mrb[0].mxu0
      %v6608 = vadd.f32 %v6092, %v6607
      %v6609 = vpop.f32.mrb[0].mxu0
      %6610 = vmatprep.mubr.f32.mxu0 0.0
      %6611 = vmatmul.mubr.f32.gmra.mrb[0].mxu0 %v6509
      %v6612 = vpop.f32.mrb[0].mxu0
      %v6613 = vadd.f32 %v6097, %v6612
      %v6614 = vpop.f32.mrb[0].mxu0
      %6615 = vdwg.mxu0
      %v6617 = vsel %vm423, %v4886, 0
      %v6620 = vsel %vm423, %v4887, 0
      %v6623 = vsel %vm423, %v4888, 0
      %v6626 = vsel %vm423, %v4889, 0
      %v6629 = vsel %vm423, %v4890, 0
      %v6632 = vsel %vm423, %v4891, 0
      %v6635 = vsel %vm423, %v4892, 0
      %v6638 = vsel %vm423, %v4893, 0
      %6640 = vmatprep.subr.mxu0 0.0
      %6641 = vmatpush1.msra.mxu0 %v1293
      %6642 = vmatprep.subr.mxu0 0.0
      %6643 = vmatpush1.msra.mxu0 %v1298
      %6644 = vmatprep.subr.mxu0 0.0
      %6645 = vmatpush1.msra.mxu0 %v1303
      %6646 = vmatprep.subr.mxu0 0.0
      %6647 = vmatpush1.msra.mxu0 %v1308
      %6648 = vmatprep.subr.mxu0 0.0
      %6649 = vmatpush1.msra.mxu0 %v1313
      %6650 = vmatprep.subr.mxu0 0.0
      %6651 = vmatpush1.msra.mxu0 %v1318
      %6652 = vmatprep.subr.mxu0 0.0
      %6653 = vmatpush1.msra.mxu0 %v1323
      %6654 = vmatprep.subr.mxu0 0.0
      %6655 = vmatpush1.msra.mxu0 %v1328
      %6656 = vmatprep.subr.mxu0 0.0
      %6657 = vmatpush1.msra.mxu0 0.0
      %6658 = vmatprep.subr.mxu0 0.0
      %6659 = vmatpush1.msra.mxu0 0.0
      %6660 = vmatprep.subr.mxu0 0.0
      %6661 = vmatpush1.msra.mxu0 0.0
      %6662 = vmatprep.subr.mxu0 0.0
      %6663 = vmatpush1.msra.mxu0 0.0
      %6664 = vmatprep.subr.mxu0 0.0
      %6665 = vmatpush1.msra.mxu0 0.0
      %6666 = vmatprep.subr.mxu0 0.0
      %6667 = vmatpush1.msra.mxu0 0.0
      %6668 = vmatprep.subr.mxu0 0.0
      %6669 = vmatpush1.msra.mxu0 0.0
      %6670 = vmatprep.subr.mxu0 0.0
      %6671 = vmatpush1.msra.mxu0 0.0
      %6672 = vmatprep.subr.mxu0 0.0
      %6673 = vmatpush1.msra.mxu0 0.0
      %6674 = vmatprep.subr.mxu0 0.0
      %6675 = vmatpush1.msra.mxu0 0.0
      %6676 = vmatprep.subr.mxu0 0.0
      %6677 = vmatpush1.msra.mxu0 0.0
      %6678 = vmatprep.subr.mxu0 0.0
      %6679 = vmatpush1.msra.mxu0 0.0
      %6680 = vmatprep.subr.mxu0 0.0
      %6681 = vmatpush1.msra.mxu0 0.0
      %6682 = vmatprep.subr.mxu0 0.0
      %6683 = vmatpush1.msra.mxu0 0.0
      %6684 = vmatprep.subr.mxu0 0.0
      %6685 = vmatpush1.msra.mxu0 0.0
      %6686 = vmatprep.subr.mxu0 0.0
      %6687 = vmatpush1.msra.mxu0 0.0
      %6688 = vmatprep.subr.mxu0 0.0
      %6689 = vmatpush1.msra.mxu0 0.0
      %6690 = vmatprep.subr.mxu0 0.0
      %6691 = vmatpush1.msra.mxu0 0.0
      %6692 = vmatprep.subr.mxu0 0.0
      %6693 = vmatpush1.msra.mxu0 0.0
      %6694 = vmatprep.subr.mxu0 0.0
      %6695 = vmatpush1.msra.mxu0 0.0
      %6696 = vmatprep.subr.mxu0 0.0
      %6697 = vmatpush1.msra.mxu0 0.0
      %6698 = vmatprep.subr.mxu0 0.0
      %6699 = vmatpush1.msra.mxu0 0.0
      %6700 = vmatprep.subr.mxu0 0.0
      %6701 = vmatpush1.msra.mxu0 0.0
      %6702 = vmatprep.subr.mxu0 0.0
      %6703 = vmatpush1.msra.mxu0 0.0
      %6704 = vmatprep.mubr.f32.mxu0 0.0
      %6705 = vmatmul.mubr.f32.gmra.mrb[0].mxu0 %v6617
      %v6706 = vpop.f32.mrb[0].mxu0
      %v6707 = vadd.f32 %v6191, %v6706
      %v6708 = vpop.f32.mrb[0].mxu0
      %6709 = vmatprep.mubr.f32.mxu0 0.0
      %6710 = vmatmul.mubr.f32.gmra.mrb[0].mxu0 %v6620
      %v6711 = vpop.f32.mrb[0].mxu0
      %v6712 = vadd.f32 %v6196, %v6711
      %v6713 = vpop.f32.mrb[0].mxu0
      %6714 = vmatprep.mubr.f32.mxu0 0.0
      %6715 = vmatmul.mubr.f32.gmra.mrb[0].mxu0 %v6623
      %v6716 = vpop.f32.mrb[0].mxu0
      %v6717 = vadd.f32 %v6201, %v6716
      %v6718 = vpop.f32.mrb[0].mxu0
      %6719 = vmatprep.mubr.f32.mxu0 0.0
      %6720 = vmatmul.mubr.f32.gmra.mrb[0].mxu0 %v6626
      %v6721 = vpop.f32.mrb[0].mxu0
      %v6722 = vadd.f32 %v6206, %v6721
      %v6723 = vpop.f32.mrb[0].mxu0
      %6724 = vmatprep.mubr.f32.mxu0 0.0
      %6725 = vmatmul.mubr.f32.gmra.mrb[0].mxu0 %v6629
      %v6726 = vpop.f32.mrb[0].mxu0
      %v6727 = vadd.f32 %v6211, %v6726
      %v6728 = vpop.f32.mrb[0].mxu0
      %6729 = vmatprep.mubr.f32.mxu0 0.0
      %6730 = vmatmul.mubr.f32.gmra.mrb[0].mxu0 %v6632
      %v6731 = vpop.f32.mrb[0].mxu0
      %v6732 = vadd.f32 %v6216, %v6731
      %v6733 = vpop.f32.mrb[0].mxu0
      %6734 = vmatprep.mubr.f32.mxu0 0.0
      %6735 = vmatmul.mubr.f32.gmra.mrb[0].mxu0 %v6635
      %v6736 = vpop.f32.mrb[0].mxu0
      %v6737 = vadd.f32 %v6221, %v6736
      %v6738 = vpop.f32.mrb[0].mxu0
      %6739 = vmatprep.mubr.f32.mxu0 0.0
      %6740 = vmatmul.mubr.f32.gmra.mrb[0].mxu0 %v6638
      %v6741 = vpop.f32.mrb[0].mxu0
      %v6742 = vadd.f32 %v6226, %v6741
      %v6743 = vpop.f32.mrb[0].mxu0
      %6744 = vdwg.mxu0
      %v6746 = vsel %vm423, %v4894, 0
      %v6749 = vsel %vm423, %v4895, 0
      %v6752 = vsel %vm423, %v4896, 0
      %v6755 = vsel %vm423, %v4897, 0
      %v6758 = vsel %vm423, %v4898, 0
      %v6761 = vsel %vm423, %v4899, 0
      %v6764 = vsel %vm423, %v4900, 0
      %v6767 = vsel %vm423, %v4901, 0
      %6769 = vmatprep.subr.mxu0 0.0
      %6770 = vmatpush1.msra.mxu0 %v1333
      %6771 = vmatprep.subr.mxu0 0.0
      %6772 = vmatpush1.msra.mxu0 %v1338
      %6773 = vmatprep.subr.mxu0 0.0
      %6774 = vmatpush1.msra.mxu0 %v1343
      %6775 = vmatprep.subr.mxu0 0.0
      %6776 = vmatpush1.msra.mxu0 %v1348
      %6777 = vmatprep.subr.mxu0 0.0
      %6778 = vmatpush1.msra.mxu0 %v1353
      %6779 = vmatprep.subr.mxu0 0.0
      %6780 = vmatpush1.msra.mxu0 %v1358
      %6781 = vmatprep.subr.mxu0 0.0
      %6782 = vmatpush1.msra.mxu0 %v1363
      %6783 = vmatprep.subr.mxu0 0.0
      %6784 = vmatpush1.msra.mxu0 %v1368
      %6785 = vmatprep.subr.mxu0 0.0
      %6786 = vmatpush1.msra.mxu0 0.0
      %6787 = vmatprep.subr.mxu0 0.0
      %6788 = vmatpush1.msra.mxu0 0.0
      %6789 = vmatprep.subr.mxu0 0.0
      %6790 = vmatpush1.msra.mxu0 0.0
      %6791 = vmatprep.subr.mxu0 0.0
      %6792 = vmatpush1.msra.mxu0 0.0
      %6793 = vmatprep.subr.mxu0 0.0
      %6794 = vmatpush1.msra.mxu0 0.0
      %6795 = vmatprep.subr.mxu0 0.0
      %6796 = vmatpush1.msra.mxu0 0.0
      %6797 = vmatprep.subr.mxu0 0.0
      %6798 = vmatpush1.msra.mxu0 0.0
      %6799 = vmatprep.subr.mxu0 0.0
      %6800 = vmatpush1.msra.mxu0 0.0
      %6801 = vmatprep.subr.mxu0 0.0
      %6802 = vmatpush1.msra.mxu0 0.0
      %6803 = vmatprep.subr.mxu0 0.0
      %6804 = vmatpush1.msra.mxu0 0.0
      %6805 = vmatprep.subr.mxu0 0.0
      %6806 = vmatpush1.msra.mxu0 0.0
      %6807 = vmatprep.subr.mxu0 0.0
      %6808 = vmatpush1.msra.mxu0 0.0
      %6809 = vmatprep.subr.mxu0 0.0
      %6810 = vmatpush1.msra.mxu0 0.0
      %6811 = vmatprep.subr.mxu0 0.0
      %6812 = vmatpush1.msra.mxu0 0.0
      %6813 = vmatprep.subr.mxu0 0.0
      %6814 = vmatpush1.msra.mxu0 0.0
      %6815 = vmatprep.subr.mxu0 0.0
      %6816 = vmatpush1.msra.mxu0 0.0
      %6817 = vmatprep.subr.mxu0 0.0
      %6818 = vmatpush1.msra.mxu0 0.0
      %6819 = vmatprep.subr.mxu0 0.0
      %6820 = vmatpush1.msra.mxu0 0.0
      %6821 = vmatprep.subr.mxu0 0.0
      %6822 = vmatpush1.msra.mxu0 0.0
      %6823 = vmatprep.subr.mxu0 0.0
      %6824 = vmatpush1.msra.mxu0 0.0
      %6825 = vmatprep.subr.mxu0 0.0
      %6826 = vmatpush1.msra.mxu0 0.0
      %6827 = vmatprep.subr.mxu0 0.0
      %6828 = vmatpush1.msra.mxu0 0.0
      %6829 = vmatprep.subr.mxu0 0.0
      %6830 = vmatpush1.msra.mxu0 0.0
      %6831 = vmatprep.subr.mxu0 0.0
      %6832 = vmatpush1.msra.mxu0 0.0
      %6833 = vmatprep.mubr.f32.mxu0 0.0
      %6834 = vmatmul.mubr.f32.gmra.mrb[0].mxu0 %v6746
      %v6835 = vpop.f32.mrb[0].mxu0
      %v6836 = vadd.f32 %v6320, %v6835
      %v6837 = vpop.f32.mrb[0].mxu0
      %6838 = vmatprep.mubr.f32.mxu0 0.0
      %6839 = vmatmul.mubr.f32.gmra.mrb[0].mxu0 %v6749
      %v6840 = vpop.f32.mrb[0].mxu0
      %v6841 = vadd.f32 %v6325, %v6840
      %v6842 = vpop.f32.mrb[0].mxu0
      %6843 = vmatprep.mubr.f32.mxu0 0.0
      %6844 = vmatmul.mubr.f32.gmra.mrb[0].mxu0 %v6752
      %v6845 = vpop.f32.mrb[0].mxu0
      %v6846 = vadd.f32 %v6330, %v6845
      %v6847 = vpop.f32.mrb[0].mxu0
      %6848 = vmatprep.mubr.f32.mxu0 0.0
      %6849 = vmatmul.mubr.f32.gmra.mrb[0].mxu0 %v6755
      %v6850 = vpop.f32.mrb[0].mxu0
      %v6851 = vadd.f32 %v6335, %v6850
      %v6852 = vpop.f32.mrb[0].mxu0
      %6853 = vmatprep.mubr.f32.mxu0 0.0
      %6854 = vmatmul.mubr.f32.gmra.mrb[0].mxu0 %v6758
      %v6855 = vpop.f32.mrb[0].mxu0
      %v6856 = vadd.f32 %v6340, %v6855
      %v6857 = vpop.f32.mrb[0].mxu0
      %6858 = vmatprep.mubr.f32.mxu0 0.0
      %6859 = vmatmul.mubr.f32.gmra.mrb[0].mxu0 %v6761
      %v6860 = vpop.f32.mrb[0].mxu0
      %v6861 = vadd.f32 %v6345, %v6860
      %v6862 = vpop.f32.mrb[0].mxu0
      %6863 = vmatprep.mubr.f32.mxu0 0.0
      %6864 = vmatmul.mubr.f32.gmra.mrb[0].mxu0 %v6764
      %v6865 = vpop.f32.mrb[0].mxu0
      %v6866 = vadd.f32 %v6350, %v6865
      %v6867 = vpop.f32.mrb[0].mxu0
      %6868 = vmatprep.mubr.f32.mxu0 0.0
      %6869 = vmatmul.mubr.f32.gmra.mrb[0].mxu0 %v6767
      %v6870 = vpop.f32.mrb[0].mxu0
      %v6871 = vadd.f32 %v6355, %v6870
      %v6872 = vpop.f32.mrb[0].mxu0
      %6873 = vdwg.mxu0
      %v6875 = vsel %vm423, %v4902, 0
      %v6878 = vsel %vm423, %v4903, 0
      %v6881 = vsel %vm423, %v4904, 0
      %v6884 = vsel %vm423, %v4905, 0
      %v6887 = vsel %vm423, %v4906, 0
      %v6890 = vsel %vm423, %v4907, 0
      %v6893 = vsel %vm423, %v4908, 0
      %v6896 = vsel %vm423, %v4909, 0
      %6898 = vmatprep.subr.mxu0 0.0
      %6899 = vmatpush1.msra.mxu0 %v1373
      %6900 = vmatprep.subr.mxu0 0.0
      %6901 = vmatpush1.msra.mxu0 %v1378
      %6902 = vmatprep.subr.mxu0 0.0
      %6903 = vmatpush1.msra.mxu0 %v1383
      %6904 = vmatprep.subr.mxu0 0.0
      %6905 = vmatpush1.msra.mxu0 %v1388
      %6906 = vmatprep.subr.mxu0 0.0
      %6907 = vmatpush1.msra.mxu0 %v1393
      %6908 = vmatprep.subr.mxu0 0.0
      %6909 = vmatpush1.msra.mxu0 %v1398
      %6910 = vmatprep.subr.mxu0 0.0
      %6911 = vmatpush1.msra.mxu0 %v1403
      %6912 = vmatprep.subr.mxu0 0.0
      %6913 = vmatpush1.msra.mxu0 %v1408
      %6914 = vmatprep.subr.mxu0 0.0
      %6915 = vmatpush1.msra.mxu0 0.0
      %6916 = vmatprep.subr.mxu0 0.0
      %6917 = vmatpush1.msra.mxu0 0.0
      %6918 = vmatprep.subr.mxu0 0.0
      %6919 = vmatpush1.msra.mxu0 0.0
      %6920 = vmatprep.subr.mxu0 0.0
      %6921 = vmatpush1.msra.mxu0 0.0
      %6922 = vmatprep.subr.mxu0 0.0
      %6923 = vmatpush1.msra.mxu0 0.0
      %6924 = vmatprep.subr.mxu0 0.0
      %6925 = vmatpush1.msra.mxu0 0.0
      %6926 = vmatprep.subr.mxu0 0.0
      %6927 = vmatpush1.msra.mxu0 0.0
      %6928 = vmatprep.subr.mxu0 0.0
      %6929 = vmatpush1.msra.mxu0 0.0
      %6930 = vmatprep.subr.mxu0 0.0
      %6931 = vmatpush1.msra.mxu0 0.0
      %6932 = vmatprep.subr.mxu0 0.0
      %6933 = vmatpush1.msra.mxu0 0.0
      %6934 = vmatprep.subr.mxu0 0.0
      %6935 = vmatpush1.msra.mxu0 0.0
      %6936 = vmatprep.subr.mxu0 0.0
      %6937 = vmatpush1.msra.mxu0 0.0
      %6938 = vmatprep.subr.mxu0 0.0
      %6939 = vmatpush1.msra.mxu0 0.0
      %6940 = vmatprep.subr.mxu0 0.0
      %6941 = vmatpush1.msra.mxu0 0.0
      %6942 = vmatprep.subr.mxu0 0.0
      %6943 = vmatpush1.msra.mxu0 0.0
      %6944 = vmatprep.subr.mxu0 0.0
      %6945 = vmatpush1.msra.mxu0 0.0
      %6946 = vmatprep.subr.mxu0 0.0
      %6947 = vmatpush1.msra.mxu0 0.0
      %6948 = vmatprep.subr.mxu0 0.0
      %6949 = vmatpush1.msra.mxu0 0.0
      %6950 = vmatprep.subr.mxu0 0.0
      %6951 = vmatpush1.msra.mxu0 0.0
      %6952 = vmatprep.subr.mxu0 0.0
      %6953 = vmatpush1.msra.mxu0 0.0
      %6954 = vmatprep.subr.mxu0 0.0
      %6955 = vmatpush1.msra.mxu0 0.0
      %6956 = vmatprep.subr.mxu0 0.0
      %6957 = vmatpush1.msra.mxu0 0.0
      %6958 = vmatprep.subr.mxu0 0.0
      %6959 = vmatpush1.msra.mxu0 0.0
      %6960 = vmatprep.subr.mxu0 0.0
      %6961 = vmatpush1.msra.mxu0 0.0
      %6962 = vmatprep.mubr.f32.mxu0 0.0
      %6963 = vmatmul.mubr.f32.gmra.mrb[0].mxu0 %v6875
      %v6964 = vpop.f32.mrb[0].mxu0
      %v6965 = vadd.f32 %v6449, %v6964
      %v6966 = vpop.f32.mrb[0].mxu0
      %6967 = vmatprep.mubr.f32.mxu0 0.0
      %6968 = vmatmul.mubr.f32.gmra.mrb[0].mxu0 %v6878
      %v6969 = vpop.f32.mrb[0].mxu0
      %v6970 = vadd.f32 %v6454, %v6969
      %v6971 = vpop.f32.mrb[0].mxu0
      %6972 = vmatprep.mubr.f32.mxu0 0.0
      %6973 = vmatmul.mubr.f32.gmra.mrb[0].mxu0 %v6881
      %v6974 = vpop.f32.mrb[0].mxu0
      %v6975 = vadd.f32 %v6459, %v6974
      %v6976 = vpop.f32.mrb[0].mxu0
      %6977 = vmatprep.mubr.f32.mxu0 0.0
      %6978 = vmatmul.mubr.f32.gmra.mrb[0].mxu0 %v6884
      %v6979 = vpop.f32.mrb[0].mxu0
      %v6980 = vadd.f32 %v6464, %v6979
      %v6981 = vpop.f32.mrb[0].mxu0
      %6982 = vmatprep.mubr.f32.mxu0 0.0
      %6983 = vmatmul.mubr.f32.gmra.mrb[0].mxu0 %v6887
      %v6984 = vpop.f32.mrb[0].mxu0
      %v6985 = vadd.f32 %v6469, %v6984
      %v6986 = vpop.f32.mrb[0].mxu0
      %6987 = vmatprep.mubr.f32.mxu0 0.0
      %6988 = vmatmul.mubr.f32.gmra.mrb[0].mxu0 %v6890
      %v6989 = vpop.f32.mrb[0].mxu0
      %v6990 = vadd.f32 %v6474, %v6989
      %v6991 = vpop.f32.mrb[0].mxu0
      %6992 = vmatprep.mubr.f32.mxu0 0.0
      %6993 = vmatmul.mubr.f32.gmra.mrb[0].mxu0 %v6893
      %v6994 = vpop.f32.mrb[0].mxu0
      %v6995 = vadd.f32 %v6479, %v6994
      %v6996 = vpop.f32.mrb[0].mxu0
      %6997 = vmatprep.mubr.f32.mxu0 0.0
      %6998 = vmatmul.mubr.f32.gmra.mrb[0].mxu0 %v6896
      %v6999 = vpop.f32.mrb[0].mxu0
      %v7000 = vadd.f32 %v6484, %v6999
      %v7001 = vpop.f32.mrb[0].mxu0
      %7002 = vdwg.mxu0
      %7003 = vmatprep.subr.mxu0 0.0
      %7004 = vmatpush1.msra.mxu0 %v2986
      %7005 = vmatprep.subr.mxu0 0.0
      %7006 = vmatpush1.msra.mxu0 %v2991
      %7007 = vmatprep.subr.mxu0 0.0
      %7008 = vmatpush1.msra.mxu0 %v2996
      %7009 = vmatprep.subr.mxu0 0.0
      %7010 = vmatpush1.msra.mxu0 %v3001
      %7011 = vmatprep.subr.mxu0 0.0
      %7012 = vmatpush1.msra.mxu0 %v3006
      %7013 = vmatprep.subr.mxu0 0.0
      %7014 = vmatpush1.msra.mxu0 %v3011
      %7015 = vmatprep.subr.mxu0 0.0
      %7016 = vmatpush1.msra.mxu0 %v3016
      %7017 = vmatprep.subr.mxu0 0.0
      %7018 = vmatpush1.msra.mxu0 %v3021
      %7019 = vmatprep.subr.mxu0 0.0
      %7020 = vmatpush1.msra.mxu0 0.0
      %7021 = vmatprep.subr.mxu0 0.0
      %7022 = vmatpush1.msra.mxu0 0.0
      %7023 = vmatprep.subr.mxu0 0.0
      %7024 = vmatpush1.msra.mxu0 0.0
      %7025 = vmatprep.subr.mxu0 0.0
      %7026 = vmatpush1.msra.mxu0 0.0
      %7027 = vmatprep.subr.mxu0 0.0
      %7028 = vmatpush1.msra.mxu0 0.0
      %7029 = vmatprep.subr.mxu0 0.0
      %7030 = vmatpush1.msra.mxu0 0.0
      %7031 = vmatprep.subr.mxu0 0.0
      %7032 = vmatpush1.msra.mxu0 0.0
      %7033 = vmatprep.subr.mxu0 0.0
      %7034 = vmatpush1.msra.mxu0 0.0
      %7035 = vmatprep.subr.mxu0 0.0
      %7036 = vmatpush1.msra.mxu0 0.0
      %7037 = vmatprep.subr.mxu0 0.0
      %7038 = vmatpush1.msra.mxu0 0.0
      %7039 = vmatprep.subr.mxu0 0.0
      %7040 = vmatpush1.msra.mxu0 0.0
      %7041 = vmatprep.subr.mxu0 0.0
      %7042 = vmatpush1.msra.mxu0 0.0
      %7043 = vmatprep.subr.mxu0 0.0
      %7044 = vmatpush1.msra.mxu0 0.0
      %7045 = vmatprep.subr.mxu0 0.0
      %7046 = vmatpush1.msra.mxu0 0.0
      %7047 = vmatprep.subr.mxu0 0.0
      %7048 = vmatpush1.msra.mxu0 0.0
      %7049 = vmatprep.subr.mxu0 0.0
      %7050 = vmatpush1.msra.mxu0 0.0
      %7051 = vmatprep.subr.mxu0 0.0
      %7052 = vmatpush1.msra.mxu0 0.0
      %7053 = vmatprep.subr.mxu0 0.0
      %7054 = vmatpush1.msra.mxu0 0.0
      %7055 = vmatprep.subr.mxu0 0.0
      %7056 = vmatpush1.msra.mxu0 0.0
      %7057 = vmatprep.subr.mxu0 0.0
      %7058 = vmatpush1.msra.mxu0 0.0
      %7059 = vmatprep.subr.mxu0 0.0
      %7060 = vmatpush1.msra.mxu0 0.0
      %7061 = vmatprep.subr.mxu0 0.0
      %7062 = vmatpush1.msra.mxu0 0.0
      %7063 = vmatprep.subr.mxu0 0.0
      %7064 = vmatpush1.msra.mxu0 0.0
      %7065 = vmatprep.subr.mxu0 0.0
      %7066 = vmatpush1.msra.mxu0 0.0
      %7067 = vmatprep.mubr.f32.mxu0 0.0
      %7068 = vmatmul.mubr.f32.gmra.mrb[0].mxu0 %v5972
      %v7069 = vpop.f32.mrb[0].mxu0
      %v7070 = vadd.f32 0.0, %v7069
      %v7071 = vpop.f32.mrb[0].mxu0
      %7072 = vmatprep.mubr.f32.mxu0 0.0
      %7073 = vmatmul.mubr.f32.gmra.mrb[0].mxu0 %v5975
      %v7074 = vpop.f32.mrb[0].mxu0
      %v7075 = vadd.f32 0.0, %v7074
      %v7076 = vpop.f32.mrb[0].mxu0
      %7077 = vmatprep.mubr.f32.mxu0 0.0
      %7078 = vmatmul.mubr.f32.gmra.mrb[0].mxu0 %v5978
      %v7079 = vpop.f32.mrb[0].mxu0
      %v7080 = vadd.f32 0.0, %v7079
      %v7081 = vpop.f32.mrb[0].mxu0
      %7082 = vmatprep.mubr.f32.mxu0 0.0
      %7083 = vmatmul.mubr.f32.gmra.mrb[0].mxu0 %v5981
      %v7084 = vpop.f32.mrb[0].mxu0
      %v7085 = vadd.f32 0.0, %v7084
      %v7086 = vpop.f32.mrb[0].mxu0
      %7087 = vmatprep.mubr.f32.mxu0 0.0
      %7088 = vmatmul.mubr.f32.gmra.mrb[0].mxu0 %v5984
      %v7089 = vpop.f32.mrb[0].mxu0
      %v7090 = vadd.f32 0.0, %v7089
      %v7091 = vpop.f32.mrb[0].mxu0
      %7092 = vmatprep.mubr.f32.mxu0 0.0
      %7093 = vmatmul.mubr.f32.gmra.mrb[0].mxu0 %v5987
      %v7094 = vpop.f32.mrb[0].mxu0
      %v7095 = vadd.f32 0.0, %v7094
      %v7096 = vpop.f32.mrb[0].mxu0
      %7097 = vmatprep.mubr.f32.mxu0 0.0
      %7098 = vmatmul.mubr.f32.gmra.mrb[0].mxu0 %v5990
      %v7099 = vpop.f32.mrb[0].mxu0
      %v7100 = vadd.f32 0.0, %v7099
      %v7101 = vpop.f32.mrb[0].mxu0
      %7102 = vmatprep.mubr.f32.mxu0 0.0
      %7103 = vmatmul.mubr.f32.gmra.mrb[0].mxu0 %v5993
      %v7104 = vpop.f32.mrb[0].mxu0
      %v7105 = vadd.f32 0.0, %v7104
      %v7106 = vpop.f32.mrb[0].mxu0
      %7107 = vdwg.mxu0
      %7108 = vmatprep.subr.mxu0 0.0
      %7109 = vmatpush1.msra.mxu0 %v3026
      %7110 = vmatprep.subr.mxu0 0.0
      %7111 = vmatpush1.msra.mxu0 %v3031
      %7112 = vmatprep.subr.mxu0 0.0
      %7113 = vmatpush1.msra.mxu0 %v3036
      %7114 = vmatprep.subr.mxu0 0.0
      %7115 = vmatpush1.msra.mxu0 %v3041
      %7116 = vmatprep.subr.mxu0 0.0
      %7117 = vmatpush1.msra.mxu0 %v3046
      %7118 = vmatprep.subr.mxu0 0.0
      %7119 = vmatpush1.msra.mxu0 %v3051
      %7120 = vmatprep.subr.mxu0 0.0
      %7121 = vmatpush1.msra.mxu0 %v3056
      %7122 = vmatprep.subr.mxu0 0.0
      %7123 = vmatpush1.msra.mxu0 %v3061
      %7124 = vmatprep.subr.mxu0 0.0
      %7125 = vmatpush1.msra.mxu0 0.0
      %7126 = vmatprep.subr.mxu0 0.0
      %7127 = vmatpush1.msra.mxu0 0.0
      %7128 = vmatprep.subr.mxu0 0.0
      %7129 = vmatpush1.msra.mxu0 0.0
      %7130 = vmatprep.subr.mxu0 0.0
      %7131 = vmatpush1.msra.mxu0 0.0
      %7132 = vmatprep.subr.mxu0 0.0
      %7133 = vmatpush1.msra.mxu0 0.0
      %7134 = vmatprep.subr.mxu0 0.0
      %7135 = vmatpush1.msra.mxu0 0.0
      %7136 = vmatprep.subr.mxu0 0.0
      %7137 = vmatpush1.msra.mxu0 0.0
      %7138 = vmatprep.subr.mxu0 0.0
      %7139 = vmatpush1.msra.mxu0 0.0
      %7140 = vmatprep.subr.mxu0 0.0
      %7141 = vmatpush1.msra.mxu0 0.0
      %7142 = vmatprep.subr.mxu0 0.0
      %7143 = vmatpush1.msra.mxu0 0.0
      %7144 = vmatprep.subr.mxu0 0.0
      %7145 = vmatpush1.msra.mxu0 0.0
      %7146 = vmatprep.subr.mxu0 0.0
      %7147 = vmatpush1.msra.mxu0 0.0
      %7148 = vmatprep.subr.mxu0 0.0
      %7149 = vmatpush1.msra.mxu0 0.0
      %7150 = vmatprep.subr.mxu0 0.0
      %7151 = vmatpush1.msra.mxu0 0.0
      %7152 = vmatprep.subr.mxu0 0.0
      %7153 = vmatpush1.msra.mxu0 0.0
      %7154 = vmatprep.subr.mxu0 0.0
      %7155 = vmatpush1.msra.mxu0 0.0
      %7156 = vmatprep.subr.mxu0 0.0
      %7157 = vmatpush1.msra.mxu0 0.0
      %7158 = vmatprep.subr.mxu0 0.0
      %7159 = vmatpush1.msra.mxu0 0.0
      %7160 = vmatprep.subr.mxu0 0.0
      %7161 = vmatpush1.msra.mxu0 0.0
      %7162 = vmatprep.subr.mxu0 0.0
      %7163 = vmatpush1.msra.mxu0 0.0
      %7164 = vmatprep.subr.mxu0 0.0
      %7165 = vmatpush1.msra.mxu0 0.0
      %7166 = vmatprep.subr.mxu0 0.0
      %7167 = vmatpush1.msra.mxu0 0.0
      %7168 = vmatprep.subr.mxu0 0.0
      %7169 = vmatpush1.msra.mxu0 0.0
      %7170 = vmatprep.subr.mxu0 0.0
      %7171 = vmatpush1.msra.mxu0 0.0
      %7172 = vmatprep.mubr.f32.mxu0 0.0
      %7173 = vmatmul.mubr.f32.gmra.mrb[0].mxu0 %v6101
      %v7174 = vpop.f32.mrb[0].mxu0
      %v7175 = vadd.f32 0.0, %v7174
      %v7176 = vpop.f32.mrb[0].mxu0
      %7177 = vmatprep.mubr.f32.mxu0 0.0
      %7178 = vmatmul.mubr.f32.gmra.mrb[0].mxu0 %v6104
      %v7179 = vpop.f32.mrb[0].mxu0
      %v7180 = vadd.f32 0.0, %v7179
      %v7181 = vpop.f32.mrb[0].mxu0
      %7182 = vmatprep.mubr.f32.mxu0 0.0
      %7183 = vmatmul.mubr.f32.gmra.mrb[0].mxu0 %v6107
      %v7184 = vpop.f32.mrb[0].mxu0
      %v7185 = vadd.f32 0.0, %v7184
      %v7186 = vpop.f32.mrb[0].mxu0
      %7187 = vmatprep.mubr.f32.mxu0 0.0
      %7188 = vmatmul.mubr.f32.gmra.mrb[0].mxu0 %v6110
      %v7189 = vpop.f32.mrb[0].mxu0
      %v7190 = vadd.f32 0.0, %v7189
      %v7191 = vpop.f32.mrb[0].mxu0
      %7192 = vmatprep.mubr.f32.mxu0 0.0
      %7193 = vmatmul.mubr.f32.gmra.mrb[0].mxu0 %v6113
      %v7194 = vpop.f32.mrb[0].mxu0
      %v7195 = vadd.f32 0.0, %v7194
      %v7196 = vpop.f32.mrb[0].mxu0
      %7197 = vmatprep.mubr.f32.mxu0 0.0
      %7198 = vmatmul.mubr.f32.gmra.mrb[0].mxu0 %v6116
      %v7199 = vpop.f32.mrb[0].mxu0
      %v7200 = vadd.f32 0.0, %v7199
      %v7201 = vpop.f32.mrb[0].mxu0
      %7202 = vmatprep.mubr.f32.mxu0 0.0
      %7203 = vmatmul.mubr.f32.gmra.mrb[0].mxu0 %v6119
      %v7204 = vpop.f32.mrb[0].mxu0
      %v7205 = vadd.f32 0.0, %v7204
      %v7206 = vpop.f32.mrb[0].mxu0
      %7207 = vmatprep.mubr.f32.mxu0 0.0
      %7208 = vmatmul.mubr.f32.gmra.mrb[0].mxu0 %v6122
      %v7209 = vpop.f32.mrb[0].mxu0
      %v7210 = vadd.f32 0.0, %v7209
      %v7211 = vpop.f32.mrb[0].mxu0
      %7212 = vdwg.mxu0
      %7213 = vmatprep.subr.mxu0 0.0
      %7214 = vmatpush1.msra.mxu0 %v3066
      %7215 = vmatprep.subr.mxu0 0.0
      %7216 = vmatpush1.msra.mxu0 %v3071
      %7217 = vmatprep.subr.mxu0 0.0
      %7218 = vmatpush1.msra.mxu0 %v3076
      %7219 = vmatprep.subr.mxu0 0.0
      %7220 = vmatpush1.msra.mxu0 %v3081
      %7221 = vmatprep.subr.mxu0 0.0
      %7222 = vmatpush1.msra.mxu0 %v3086
      %7223 = vmatprep.subr.mxu0 0.0
      %7224 = vmatpush1.msra.mxu0 %v3091
      %7225 = vmatprep.subr.mxu0 0.0
      %7226 = vmatpush1.msra.mxu0 %v3096
      %7227 = vmatprep.subr.mxu0 0.0
      %7228 = vmatpush1.msra.mxu0 %v3101
      %7229 = vmatprep.subr.mxu0 0.0
      %7230 = vmatpush1.msra.mxu0 0.0
      %7231 = vmatprep.subr.mxu0 0.0
      %7232 = vmatpush1.msra.mxu0 0.0
      %7233 = vmatprep.subr.mxu0 0.0
      %7234 = vmatpush1.msra.mxu0 0.0
      %7235 = vmatprep.subr.mxu0 0.0
      %7236 = vmatpush1.msra.mxu0 0.0
      %7237 = vmatprep.subr.mxu0 0.0
      %7238 = vmatpush1.msra.mxu0 0.0
      %7239 = vmatprep.subr.mxu0 0.0
      %7240 = vmatpush1.msra.mxu0 0.0
      %7241 = vmatprep.subr.mxu0 0.0
      %7242 = vmatpush1.msra.mxu0 0.0
      %7243 = vmatprep.subr.mxu0 0.0
      %7244 = vmatpush1.msra.mxu0 0.0
      %7245 = vmatprep.subr.mxu0 0.0
      %7246 = vmatpush1.msra.mxu0 0.0
      %7247 = vmatprep.subr.mxu0 0.0
      %7248 = vmatpush1.msra.mxu0 0.0
      %7249 = vmatprep.subr.mxu0 0.0
      %7250 = vmatpush1.msra.mxu0 0.0
      %7251 = vmatprep.subr.mxu0 0.0
      %7252 = vmatpush1.msra.mxu0 0.0
      %7253 = vmatprep.subr.mxu0 0.0
      %7254 = vmatpush1.msra.mxu0 0.0
      %7255 = vmatprep.subr.mxu0 0.0
      %7256 = vmatpush1.msra.mxu0 0.0
      %7257 = vmatprep.subr.mxu0 0.0
      %7258 = vmatpush1.msra.mxu0 0.0
      %7259 = vmatprep.subr.mxu0 0.0
      %7260 = vmatpush1.msra.mxu0 0.0
      %7261 = vmatprep.subr.mxu0 0.0
      %7262 = vmatpush1.msra.mxu0 0.0
      %7263 = vmatprep.subr.mxu0 0.0
      %7264 = vmatpush1.msra.mxu0 0.0
      %7265 = vmatprep.subr.mxu0 0.0
      %7266 = vmatpush1.msra.mxu0 0.0
      %7267 = vmatprep.subr.mxu0 0.0
      %7268 = vmatpush1.msra.mxu0 0.0
      %7269 = vmatprep.subr.mxu0 0.0
      %7270 = vmatpush1.msra.mxu0 0.0
      %7271 = vmatprep.subr.mxu0 0.0
      %7272 = vmatpush1.msra.mxu0 0.0
      %7273 = vmatprep.subr.mxu0 0.0
      %7274 = vmatpush1.msra.mxu0 0.0
      %7275 = vmatprep.subr.mxu0 0.0
      %7276 = vmatpush1.msra.mxu0 0.0
      %7277 = vmatprep.mubr.f32.mxu0 0.0
      %7278 = vmatmul.mubr.f32.gmra.mrb[0].mxu0 %v6230
      %v7279 = vpop.f32.mrb[0].mxu0
      %v7280 = vadd.f32 0.0, %v7279
      %v7281 = vpop.f32.mrb[0].mxu0
      %7282 = vmatprep.mubr.f32.mxu0 0.0
      %7283 = vmatmul.mubr.f32.gmra.mrb[0].mxu0 %v6233
      %v7284 = vpop.f32.mrb[0].mxu0
      %v7285 = vadd.f32 0.0, %v7284
      %v7286 = vpop.f32.mrb[0].mxu0
      %7287 = vmatprep.mubr.f32.mxu0 0.0
      %7288 = vmatmul.mubr.f32.gmra.mrb[0].mxu0 %v6236
      %v7289 = vpop.f32.mrb[0].mxu0
      %v7290 = vadd.f32 0.0, %v7289
      %v7291 = vpop.f32.mrb[0].mxu0
      %7292 = vmatprep.mubr.f32.mxu0 0.0
      %7293 = vmatmul.mubr.f32.gmra.mrb[0].mxu0 %v6239
      %v7294 = vpop.f32.mrb[0].mxu0
      %v7295 = vadd.f32 0.0, %v7294
      %v7296 = vpop.f32.mrb[0].mxu0
      %7297 = vmatprep.mubr.f32.mxu0 0.0
      %7298 = vmatmul.mubr.f32.gmra.mrb[0].mxu0 %v6242
      %v7299 = vpop.f32.mrb[0].mxu0
      %v7300 = vadd.f32 0.0, %v7299
      %v7301 = vpop.f32.mrb[0].mxu0
      %7302 = vmatprep.mubr.f32.mxu0 0.0
      %7303 = vmatmul.mubr.f32.gmra.mrb[0].mxu0 %v6245
      %v7304 = vpop.f32.mrb[0].mxu0
      %v7305 = vadd.f32 0.0, %v7304
      %v7306 = vpop.f32.mrb[0].mxu0
      %7307 = vmatprep.mubr.f32.mxu0 0.0
      %7308 = vmatmul.mubr.f32.gmra.mrb[0].mxu0 %v6248
      %v7309 = vpop.f32.mrb[0].mxu0
      %v7310 = vadd.f32 0.0, %v7309
      %v7311 = vpop.f32.mrb[0].mxu0
      %7312 = vmatprep.mubr.f32.mxu0 0.0
      %7313 = vmatmul.mubr.f32.gmra.mrb[0].mxu0 %v6251
      %v7314 = vpop.f32.mrb[0].mxu0
      %v7315 = vadd.f32 0.0, %v7314
      %v7316 = vpop.f32.mrb[0].mxu0
      %7317 = vdwg.mxu0
      %7318 = vmatprep.subr.mxu0 0.0
      %7319 = vmatpush1.msra.mxu0 %v3106
      %7320 = vmatprep.subr.mxu0 0.0
      %7321 = vmatpush1.msra.mxu0 %v3111
      %7322 = vmatprep.subr.mxu0 0.0
      %7323 = vmatpush1.msra.mxu0 %v3116
      %7324 = vmatprep.subr.mxu0 0.0
      %7325 = vmatpush1.msra.mxu0 %v3121
      %7326 = vmatprep.subr.mxu0 0.0
      %7327 = vmatpush1.msra.mxu0 %v3126
      %7328 = vmatprep.subr.mxu0 0.0
      %7329 = vmatpush1.msra.mxu0 %v3131
      %7330 = vmatprep.subr.mxu0 0.0
      %7331 = vmatpush1.msra.mxu0 %v3136
      %7332 = vmatprep.subr.mxu0 0.0
      %7333 = vmatpush1.msra.mxu0 %v3141
      %7334 = vmatprep.subr.mxu0 0.0
      %7335 = vmatpush1.msra.mxu0 0.0
      %7336 = vmatprep.subr.mxu0 0.0
      %7337 = vmatpush1.msra.mxu0 0.0
      %7338 = vmatprep.subr.mxu0 0.0
      %7339 = vmatpush1.msra.mxu0 0.0
      %7340 = vmatprep.subr.mxu0 0.0
      %7341 = vmatpush1.msra.mxu0 0.0
      %7342 = vmatprep.subr.mxu0 0.0
      %7343 = vmatpush1.msra.mxu0 0.0
      %7344 = vmatprep.subr.mxu0 0.0
      %7345 = vmatpush1.msra.mxu0 0.0
      %7346 = vmatprep.subr.mxu0 0.0
      %7347 = vmatpush1.msra.mxu0 0.0
      %7348 = vmatprep.subr.mxu0 0.0
      %7349 = vmatpush1.msra.mxu0 0.0
      %7350 = vmatprep.subr.mxu0 0.0
      %7351 = vmatpush1.msra.mxu0 0.0
      %7352 = vmatprep.subr.mxu0 0.0
      %7353 = vmatpush1.msra.mxu0 0.0
      %7354 = vmatprep.subr.mxu0 0.0
      %7355 = vmatpush1.msra.mxu0 0.0
      %7356 = vmatprep.subr.mxu0 0.0
      %7357 = vmatpush1.msra.mxu0 0.0
      %7358 = vmatprep.subr.mxu0 0.0
      %7359 = vmatpush1.msra.mxu0 0.0
      %7360 = vmatprep.subr.mxu0 0.0
      %7361 = vmatpush1.msra.mxu0 0.0
      %7362 = vmatprep.subr.mxu0 0.0
      %7363 = vmatpush1.msra.mxu0 0.0
      %7364 = vmatprep.subr.mxu0 0.0
      %7365 = vmatpush1.msra.mxu0 0.0
      %7366 = vmatprep.subr.mxu0 0.0
      %7367 = vmatpush1.msra.mxu0 0.0
      %7368 = vmatprep.subr.mxu0 0.0
      %7369 = vmatpush1.msra.mxu0 0.0
      %7370 = vmatprep.subr.mxu0 0.0
      %7371 = vmatpush1.msra.mxu0 0.0
      %7372 = vmatprep.subr.mxu0 0.0
      %7373 = vmatpush1.msra.mxu0 0.0
      %7374 = vmatprep.subr.mxu0 0.0
      %7375 = vmatpush1.msra.mxu0 0.0
      %7376 = vmatprep.subr.mxu0 0.0
      %7377 = vmatpush1.msra.mxu0 0.0
      %7378 = vmatprep.subr.mxu0 0.0
      %7379 = vmatpush1.msra.mxu0 0.0
      %7380 = vmatprep.subr.mxu0 0.0
      %7381 = vmatpush1.msra.mxu0 0.0
      %7382 = vmatprep.mubr.f32.mxu0 0.0
      %7383 = vmatmul.mubr.f32.gmra.mrb[0].mxu0 %v6359
      %v7384 = vpop.f32.mrb[0].mxu0
      %v7385 = vadd.f32 0.0, %v7384
      %v7386 = vpop.f32.mrb[0].mxu0
      %7387 = vmatprep.mubr.f32.mxu0 0.0
      %7388 = vmatmul.mubr.f32.gmra.mrb[0].mxu0 %v6362
      %v7389 = vpop.f32.mrb[0].mxu0
      %v7390 = vadd.f32 0.0, %v7389
      %v7391 = vpop.f32.mrb[0].mxu0
      %7392 = vmatprep.mubr.f32.mxu0 0.0
      %7393 = vmatmul.mubr.f32.gmra.mrb[0].mxu0 %v6365
      %v7394 = vpop.f32.mrb[0].mxu0
      %v7395 = vadd.f32 0.0, %v7394
      %v7396 = vpop.f32.mrb[0].mxu0
      %7397 = vmatprep.mubr.f32.mxu0 0.0
      %7398 = vmatmul.mubr.f32.gmra.mrb[0].mxu0 %v6368
      %v7399 = vpop.f32.mrb[0].mxu0
      %v7400 = vadd.f32 0.0, %v7399
      %v7401 = vpop.f32.mrb[0].mxu0
      %7402 = vmatprep.mubr.f32.mxu0 0.0
      %7403 = vmatmul.mubr.f32.gmra.mrb[0].mxu0 %v6371
      %v7404 = vpop.f32.mrb[0].mxu0
      %v7405 = vadd.f32 0.0, %v7404
      %v7406 = vpop.f32.mrb[0].mxu0
      %7407 = vmatprep.mubr.f32.mxu0 0.0
      %7408 = vmatmul.mubr.f32.gmra.mrb[0].mxu0 %v6374
      %v7409 = vpop.f32.mrb[0].mxu0
      %v7410 = vadd.f32 0.0, %v7409
      %v7411 = vpop.f32.mrb[0].mxu0
      %7412 = vmatprep.mubr.f32.mxu0 0.0
      %7413 = vmatmul.mubr.f32.gmra.mrb[0].mxu0 %v6377
      %v7414 = vpop.f32.mrb[0].mxu0
      %v7415 = vadd.f32 0.0, %v7414
      %v7416 = vpop.f32.mrb[0].mxu0
      %7417 = vmatprep.mubr.f32.mxu0 0.0
      %7418 = vmatmul.mubr.f32.gmra.mrb[0].mxu0 %v6380
      %v7419 = vpop.f32.mrb[0].mxu0
      %v7420 = vadd.f32 0.0, %v7419
      %v7421 = vpop.f32.mrb[0].mxu0
      %7422 = vdwg.mxu0
      %7423 = vmatprep.subr.mxu0 0.0
      %7424 = vmatpush1.msra.mxu0 %v2633
      %7425 = vmatprep.subr.mxu0 0.0
      %7426 = vmatpush1.msra.mxu0 %v2638
      %7427 = vmatprep.subr.mxu0 0.0
      %7428 = vmatpush1.msra.mxu0 %v2643
      %7429 = vmatprep.subr.mxu0 0.0
      %7430 = vmatpush1.msra.mxu0 %v2648
      %7431 = vmatprep.subr.mxu0 0.0
      %7432 = vmatpush1.msra.mxu0 %v2653
      %7433 = vmatprep.subr.mxu0 0.0
      %7434 = vmatpush1.msra.mxu0 %v2658
      %7435 = vmatprep.subr.mxu0 0.0
      %7436 = vmatpush1.msra.mxu0 %v2663
      %7437 = vmatprep.subr.mxu0 0.0
      %7438 = vmatpush1.msra.mxu0 %v2668
      %7439 = vmatprep.subr.mxu0 0.0
      %7440 = vmatpush1.msra.mxu0 0.0
      %7441 = vmatprep.subr.mxu0 0.0
      %7442 = vmatpush1.msra.mxu0 0.0
      %7443 = vmatprep.subr.mxu0 0.0
      %7444 = vmatpush1.msra.mxu0 0.0
      %7445 = vmatprep.subr.mxu0 0.0
      %7446 = vmatpush1.msra.mxu0 0.0
      %7447 = vmatprep.subr.mxu0 0.0
      %7448 = vmatpush1.msra.mxu0 0.0
      %7449 = vmatprep.subr.mxu0 0.0
      %7450 = vmatpush1.msra.mxu0 0.0
      %7451 = vmatprep.subr.mxu0 0.0
      %7452 = vmatpush1.msra.mxu0 0.0
      %7453 = vmatprep.subr.mxu0 0.0
      %7454 = vmatpush1.msra.mxu0 0.0
      %7455 = vmatprep.subr.mxu0 0.0
      %7456 = vmatpush1.msra.mxu0 0.0
      %7457 = vmatprep.subr.mxu0 0.0
      %7458 = vmatpush1.msra.mxu0 0.0
      %7459 = vmatprep.subr.mxu0 0.0
      %7460 = vmatpush1.msra.mxu0 0.0
      %7461 = vmatprep.subr.mxu0 0.0
      %7462 = vmatpush1.msra.mxu0 0.0
      %7463 = vmatprep.subr.mxu0 0.0
      %7464 = vmatpush1.msra.mxu0 0.0
      %7465 = vmatprep.subr.mxu0 0.0
      %7466 = vmatpush1.msra.mxu0 0.0
      %7467 = vmatprep.subr.mxu0 0.0
      %7468 = vmatpush1.msra.mxu0 0.0
      %7469 = vmatprep.subr.mxu0 0.0
      %7470 = vmatpush1.msra.mxu0 0.0
      %7471 = vmatprep.subr.mxu0 0.0
      %7472 = vmatpush1.msra.mxu0 0.0
      %7473 = vmatprep.subr.mxu0 0.0
      %7474 = vmatpush1.msra.mxu0 0.0
      %7475 = vmatprep.subr.mxu0 0.0
      %7476 = vmatpush1.msra.mxu0 0.0
      %7477 = vmatprep.subr.mxu0 0.0
      %7478 = vmatpush1.msra.mxu0 0.0
      %7479 = vmatprep.subr.mxu0 0.0
      %7480 = vmatpush1.msra.mxu0 0.0
      %7481 = vmatprep.subr.mxu0 0.0
      %7482 = vmatpush1.msra.mxu0 0.0
      %7483 = vmatprep.subr.mxu0 0.0
      %7484 = vmatpush1.msra.mxu0 0.0
      %7485 = vmatprep.subr.mxu0 0.0
      %7486 = vmatpush1.msra.mxu0 0.0
      %7487 = vmatprep.mubr.f32.mxu0 0.0
      %7488 = vmatmul.mubr.f32.gmra.mrb[0].mxu0 %v6488
      %v7489 = vpop.f32.mrb[0].mxu0
      %v7490 = vadd.f32 %v7070, %v7489
      %v7491 = vpop.f32.mrb[0].mxu0
      %7492 = vmatprep.mubr.f32.mxu0 0.0
      %7493 = vmatmul.mubr.f32.gmra.mrb[0].mxu0 %v6491
      %v7494 = vpop.f32.mrb[0].mxu0
      %v7495 = vadd.f32 %v7075, %v7494
      %v7496 = vpop.f32.mrb[0].mxu0
      %7497 = vmatprep.mubr.f32.mxu0 0.0
      %7498 = vmatmul.mubr.f32.gmra.mrb[0].mxu0 %v6494
      %v7499 = vpop.f32.mrb[0].mxu0
      %v7500 = vadd.f32 %v7080, %v7499
      %v7501 = vpop.f32.mrb[0].mxu0
      %7502 = vmatprep.mubr.f32.mxu0 0.0
      %7503 = vmatmul.mubr.f32.gmra.mrb[0].mxu0 %v6497
      %v7504 = vpop.f32.mrb[0].mxu0
      %v7505 = vadd.f32 %v7085, %v7504
      %v7506 = vpop.f32.mrb[0].mxu0
      %7507 = vmatprep.mubr.f32.mxu0 0.0
      %7508 = vmatmul.mubr.f32.gmra.mrb[0].mxu0 %v6500
      %v7509 = vpop.f32.mrb[0].mxu0
      %v7510 = vadd.f32 %v7090, %v7509
      %v7511 = vpop.f32.mrb[0].mxu0
      %7512 = vmatprep.mubr.f32.mxu0 0.0
      %7513 = vmatmul.mubr.f32.gmra.mrb[0].mxu0 %v6503
      %v7514 = vpop.f32.mrb[0].mxu0
      %v7515 = vadd.f32 %v7095, %v7514
      %v7516 = vpop.f32.mrb[0].mxu0
      %7517 = vmatprep.mubr.f32.mxu0 0.0
      %7518 = vmatmul.mubr.f32.gmra.mrb[0].mxu0 %v6506
      %v7519 = vpop.f32.mrb[0].mxu0
      %v7520 = vadd.f32 %v7100, %v7519
      %v7521 = vpop.f32.mrb[0].mxu0
      %7522 = vmatprep.mubr.f32.mxu0 0.0
      %7523 = vmatmul.mubr.f32.gmra.mrb[0].mxu0 %v6509
      %v7524 = vpop.f32.mrb[0].mxu0
      %v7525 = vadd.f32 %v7105, %v7524
      %v7526 = vpop.f32.mrb[0].mxu0
      %7527 = vdwg.mxu0
      %7528 = vmatprep.subr.mxu0 0.0
      %7529 = vmatpush1.msra.mxu0 %v2673
      %7530 = vmatprep.subr.mxu0 0.0
      %7531 = vmatpush1.msra.mxu0 %v2678
      %7532 = vmatprep.subr.mxu0 0.0
      %7533 = vmatpush1.msra.mxu0 %v2683
      %7534 = vmatprep.subr.mxu0 0.0
      %7535 = vmatpush1.msra.mxu0 %v2688
      %7536 = vmatprep.subr.mxu0 0.0
      %7537 = vmatpush1.msra.mxu0 %v2693
      %7538 = vmatprep.subr.mxu0 0.0
      %7539 = vmatpush1.msra.mxu0 %v2698
      %7540 = vmatprep.subr.mxu0 0.0
      %7541 = vmatpush1.msra.mxu0 %v2703
      %7542 = vmatprep.subr.mxu0 0.0
      %7543 = vmatpush1.msra.mxu0 %v2708
      %7544 = vmatprep.subr.mxu0 0.0
      %7545 = vmatpush1.msra.mxu0 0.0
      %7546 = vmatprep.subr.mxu0 0.0
      %7547 = vmatpush1.msra.mxu0 0.0
      %7548 = vmatprep.subr.mxu0 0.0
      %7549 = vmatpush1.msra.mxu0 0.0
      %7550 = vmatprep.subr.mxu0 0.0
      %7551 = vmatpush1.msra.mxu0 0.0
      %7552 = vmatprep.subr.mxu0 0.0
      %7553 = vmatpush1.msra.mxu0 0.0
      %7554 = vmatprep.subr.mxu0 0.0
      %7555 = vmatpush1.msra.mxu0 0.0
      %7556 = vmatprep.subr.mxu0 0.0
      %7557 = vmatpush1.msra.mxu0 0.0
      %7558 = vmatprep.subr.mxu0 0.0
      %7559 = vmatpush1.msra.mxu0 0.0
      %7560 = vmatprep.subr.mxu0 0.0
      %7561 = vmatpush1.msra.mxu0 0.0
      %7562 = vmatprep.subr.mxu0 0.0
      %7563 = vmatpush1.msra.mxu0 0.0
      %7564 = vmatprep.subr.mxu0 0.0
      %7565 = vmatpush1.msra.mxu0 0.0
      %7566 = vmatprep.subr.mxu0 0.0
      %7567 = vmatpush1.msra.mxu0 0.0
      %7568 = vmatprep.subr.mxu0 0.0
      %7569 = vmatpush1.msra.mxu0 0.0
      %7570 = vmatprep.subr.mxu0 0.0
      %7571 = vmatpush1.msra.mxu0 0.0
      %7572 = vmatprep.subr.mxu0 0.0
      %7573 = vmatpush1.msra.mxu0 0.0
      %7574 = vmatprep.subr.mxu0 0.0
      %7575 = vmatpush1.msra.mxu0 0.0
      %7576 = vmatprep.subr.mxu0 0.0
      %7577 = vmatpush1.msra.mxu0 0.0
      %7578 = vmatprep.subr.mxu0 0.0
      %7579 = vmatpush1.msra.mxu0 0.0
      %7580 = vmatprep.subr.mxu0 0.0
      %7581 = vmatpush1.msra.mxu0 0.0
      %7582 = vmatprep.subr.mxu0 0.0
      %7583 = vmatpush1.msra.mxu0 0.0
      %7584 = vmatprep.subr.mxu0 0.0
      %7585 = vmatpush1.msra.mxu0 0.0
      %7586 = vmatprep.subr.mxu0 0.0
      %7587 = vmatpush1.msra.mxu0 0.0
      %7588 = vmatprep.subr.mxu0 0.0
      %7589 = vmatpush1.msra.mxu0 0.0
      %7590 = vmatprep.subr.mxu0 0.0
      %7591 = vmatpush1.msra.mxu0 0.0
      %7592 = vmatprep.mubr.f32.mxu0 0.0
      %7593 = vmatmul.mubr.f32.gmra.mrb[0].mxu0 %v6617
      %v7594 = vpop.f32.mrb[0].mxu0
      %v7595 = vadd.f32 %v7175, %v7594
      %v7596 = vpop.f32.mrb[0].mxu0
      %7597 = vmatprep.mubr.f32.mxu0 0.0
      %7598 = vmatmul.mubr.f32.gmra.mrb[0].mxu0 %v6620
      %v7599 = vpop.f32.mrb[0].mxu0
      %v7600 = vadd.f32 %v7180, %v7599
      %v7601 = vpop.f32.mrb[0].mxu0
      %7602 = vmatprep.mubr.f32.mxu0 0.0
      %7603 = vmatmul.mubr.f32.gmra.mrb[0].mxu0 %v6623
      %v7604 = vpop.f32.mrb[0].mxu0
      %v7605 = vadd.f32 %v7185, %v7604
      %v7606 = vpop.f32.mrb[0].mxu0
      %7607 = vmatprep.mubr.f32.mxu0 0.0
      %7608 = vmatmul.mubr.f32.gmra.mrb[0].mxu0 %v6626
      %v7609 = vpop.f32.mrb[0].mxu0
      %v7610 = vadd.f32 %v7190, %v7609
      %v7611 = vpop.f32.mrb[0].mxu0
      %7612 = vmatprep.mubr.f32.mxu0 0.0
      %7613 = vmatmul.mubr.f32.gmra.mrb[0].mxu0 %v6629
      %v7614 = vpop.f32.mrb[0].mxu0
      %v7615 = vadd.f32 %v7195, %v7614
      %v7616 = vpop.f32.mrb[0].mxu0
      %7617 = vmatprep.mubr.f32.mxu0 0.0
      %7618 = vmatmul.mubr.f32.gmra.mrb[0].mxu0 %v6632
      %v7619 = vpop.f32.mrb[0].mxu0
      %v7620 = vadd.f32 %v7200, %v7619
      %v7621 = vpop.f32.mrb[0].mxu0
      %7622 = vmatprep.mubr.f32.mxu0 0.0
      %7623 = vmatmul.mubr.f32.gmra.mrb[0].mxu0 %v6635
      %v7624 = vpop.f32.mrb[0].mxu0
      %v7625 = vadd.f32 %v7205, %v7624
      %v7626 = vpop.f32.mrb[0].mxu0
      %7627 = vmatprep.mubr.f32.mxu0 0.0
      %7628 = vmatmul.mubr.f32.gmra.mrb[0].mxu0 %v6638
      %v7629 = vpop.f32.mrb[0].mxu0
      %v7630 = vadd.f32 %v7210, %v7629
      %v7631 = vpop.f32.mrb[0].mxu0
      %7632 = vdwg.mxu0
      %7633 = vmatprep.subr.mxu0 0.0
      %7634 = vmatpush1.msra.mxu0 %v2713
      %7635 = vmatprep.subr.mxu0 0.0
      %7636 = vmatpush1.msra.mxu0 %v2718
      %7637 = vmatprep.subr.mxu0 0.0
      %7638 = vmatpush1.msra.mxu0 %v2723
      %7639 = vmatprep.subr.mxu0 0.0
      %7640 = vmatpush1.msra.mxu0 %v2728
      %7641 = vmatprep.subr.mxu0 0.0
      %7642 = vmatpush1.msra.mxu0 %v2733
      %7643 = vmatprep.subr.mxu0 0.0
      %7644 = vmatpush1.msra.mxu0 %v2738
      %7645 = vmatprep.subr.mxu0 0.0
      %7646 = vmatpush1.msra.mxu0 %v2743
      %7647 = vmatprep.subr.mxu0 0.0
      %7648 = vmatpush1.msra.mxu0 %v2748
      %7649 = vmatprep.subr.mxu0 0.0
      %7650 = vmatpush1.msra.mxu0 0.0
      %7651 = vmatprep.subr.mxu0 0.0
      %7652 = vmatpush1.msra.mxu0 0.0
      %7653 = vmatprep.subr.mxu0 0.0
      %7654 = vmatpush1.msra.mxu0 0.0
      %7655 = vmatprep.subr.mxu0 0.0
      %7656 = vmatpush1.msra.mxu0 0.0
      %7657 = vmatprep.subr.mxu0 0.0
      %7658 = vmatpush1.msra.mxu0 0.0
      %7659 = vmatprep.subr.mxu0 0.0
      %7660 = vmatpush1.msra.mxu0 0.0
      %7661 = vmatprep.subr.mxu0 0.0
      %7662 = vmatpush1.msra.mxu0 0.0
      %7663 = vmatprep.subr.mxu0 0.0
      %7664 = vmatpush1.msra.mxu0 0.0
      %7665 = vmatprep.subr.mxu0 0.0
      %7666 = vmatpush1.msra.mxu0 0.0
      %7667 = vmatprep.subr.mxu0 0.0
      %7668 = vmatpush1.msra.mxu0 0.0
      %7669 = vmatprep.subr.mxu0 0.0
      %7670 = vmatpush1.msra.mxu0 0.0
      %7671 = vmatprep.subr.mxu0 0.0
      %7672 = vmatpush1.msra.mxu0 0.0
      %7673 = vmatprep.subr.mxu0 0.0
      %7674 = vmatpush1.msra.mxu0 0.0
      %7675 = vmatprep.subr.mxu0 0.0
      %7676 = vmatpush1.msra.mxu0 0.0
      %7677 = vmatprep.subr.mxu0 0.0
      %7678 = vmatpush1.msra.mxu0 0.0
      %7679 = vmatprep.subr.mxu0 0.0
      %7680 = vmatpush1.msra.mxu0 0.0
      %7681 = vmatprep.subr.mxu0 0.0
      %7682 = vmatpush1.msra.mxu0 0.0
      %7683 = vmatprep.subr.mxu0 0.0
      %7684 = vmatpush1.msra.mxu0 0.0
      %7685 = vmatprep.subr.mxu0 0.0
      %7686 = vmatpush1.msra.mxu0 0.0
      %7687 = vmatprep.subr.mxu0 0.0
      %7688 = vmatpush1.msra.mxu0 0.0
      %7689 = vmatprep.subr.mxu0 0.0
      %7690 = vmatpush1.msra.mxu0 0.0
      %7691 = vmatprep.subr.mxu0 0.0
      %7692 = vmatpush1.msra.mxu0 0.0
      %7693 = vmatprep.subr.mxu0 0.0
      %7694 = vmatpush1.msra.mxu0 0.0
      %7695 = vmatprep.subr.mxu0 0.0
      %7696 = vmatpush1.msra.mxu0 0.0
      %7697 = vmatprep.mubr.f32.mxu0 0.0
      %7698 = vmatmul.mubr.f32.gmra.mrb[0].mxu0 %v6746
      %v7699 = vpop.f32.mrb[0].mxu0
      %v7700 = vadd.f32 %v7280, %v7699
      %v7701 = vpop.f32.mrb[0].mxu0
      %7702 = vmatprep.mubr.f32.mxu0 0.0
      %7703 = vmatmul.mubr.f32.gmra.mrb[0].mxu0 %v6749
      %v7704 = vpop.f32.mrb[0].mxu0
      %v7705 = vadd.f32 %v7285, %v7704
      %v7706 = vpop.f32.mrb[0].mxu0
      %7707 = vmatprep.mubr.f32.mxu0 0.0
      %7708 = vmatmul.mubr.f32.gmra.mrb[0].mxu0 %v6752
      %v7709 = vpop.f32.mrb[0].mxu0
      %v7710 = vadd.f32 %v7290, %v7709
      %v7711 = vpop.f32.mrb[0].mxu0
      %7712 = vmatprep.mubr.f32.mxu0 0.0
      %7713 = vmatmul.mubr.f32.gmra.mrb[0].mxu0 %v6755
      %v7714 = vpop.f32.mrb[0].mxu0
      %v7715 = vadd.f32 %v7295, %v7714
      %v7716 = vpop.f32.mrb[0].mxu0
      %7717 = vmatprep.mubr.f32.mxu0 0.0
      %7718 = vmatmul.mubr.f32.gmra.mrb[0].mxu0 %v6758
      %v7719 = vpop.f32.mrb[0].mxu0
      %v7720 = vadd.f32 %v7300, %v7719
      %v7721 = vpop.f32.mrb[0].mxu0
      %7722 = vmatprep.mubr.f32.mxu0 0.0
      %7723 = vmatmul.mubr.f32.gmra.mrb[0].mxu0 %v6761
      %v7724 = vpop.f32.mrb[0].mxu0
      %v7725 = vadd.f32 %v7305, %v7724
      %v7726 = vpop.f32.mrb[0].mxu0
      %7727 = vmatprep.mubr.f32.mxu0 0.0
      %7728 = vmatmul.mubr.f32.gmra.mrb[0].mxu0 %v6764
      %v7729 = vpop.f32.mrb[0].mxu0
      %v7730 = vadd.f32 %v7310, %v7729
      %v7731 = vpop.f32.mrb[0].mxu0
      %7732 = vmatprep.mubr.f32.mxu0 0.0
      %7733 = vmatmul.mubr.f32.gmra.mrb[0].mxu0 %v6767
      %v7734 = vpop.f32.mrb[0].mxu0
      %v7735 = vadd.f32 %v7315, %v7734
      %v7736 = vpop.f32.mrb[0].mxu0
      %7737 = vdwg.mxu0
      %7738 = vmatprep.subr.mxu0 0.0
      %7739 = vmatpush1.msra.mxu0 %v2753
      %7740 = vmatprep.subr.mxu0 0.0
      %7741 = vmatpush1.msra.mxu0 %v2758
      %7742 = vmatprep.subr.mxu0 0.0
      %7743 = vmatpush1.msra.mxu0 %v2763
      %7744 = vmatprep.subr.mxu0 0.0
      %7745 = vmatpush1.msra.mxu0 %v2768
      %7746 = vmatprep.subr.mxu0 0.0
      %7747 = vmatpush1.msra.mxu0 %v2773
      %7748 = vmatprep.subr.mxu0 0.0
      %7749 = vmatpush1.msra.mxu0 %v2778
      %7750 = vmatprep.subr.mxu0 0.0
      %7751 = vmatpush1.msra.mxu0 %v2783
      %7752 = vmatprep.subr.mxu0 0.0
      %7753 = vmatpush1.msra.mxu0 %v2788
      %7754 = vmatprep.subr.mxu0 0.0
      %7755 = vmatpush1.msra.mxu0 0.0
      %7756 = vmatprep.subr.mxu0 0.0
      %7757 = vmatpush1.msra.mxu0 0.0
      %7758 = vmatprep.subr.mxu0 0.0
      %7759 = vmatpush1.msra.mxu0 0.0
      %7760 = vmatprep.subr.mxu0 0.0
      %7761 = vmatpush1.msra.mxu0 0.0
      %7762 = vmatprep.subr.mxu0 0.0
      %7763 = vmatpush1.msra.mxu0 0.0
      %7764 = vmatprep.subr.mxu0 0.0
      %7765 = vmatpush1.msra.mxu0 0.0
      %7766 = vmatprep.subr.mxu0 0.0
      %7767 = vmatpush1.msra.mxu0 0.0
      %7768 = vmatprep.subr.mxu0 0.0
      %7769 = vmatpush1.msra.mxu0 0.0
      %7770 = vmatprep.subr.mxu0 0.0
      %7771 = vmatpush1.msra.mxu0 0.0
      %7772 = vmatprep.subr.mxu0 0.0
      %7773 = vmatpush1.msra.mxu0 0.0
      %7774 = vmatprep.subr.mxu0 0.0
      %7775 = vmatpush1.msra.mxu0 0.0
      %7776 = vmatprep.subr.mxu0 0.0
      %7777 = vmatpush1.msra.mxu0 0.0
      %7778 = vmatprep.subr.mxu0 0.0
      %7779 = vmatpush1.msra.mxu0 0.0
      %7780 = vmatprep.subr.mxu0 0.0
      %7781 = vmatpush1.msra.mxu0 0.0
      %7782 = vmatprep.subr.mxu0 0.0
      %7783 = vmatpush1.msra.mxu0 0.0
      %7784 = vmatprep.subr.mxu0 0.0
      %7785 = vmatpush1.msra.mxu0 0.0
      %7786 = vmatprep.subr.mxu0 0.0
      %7787 = vmatpush1.msra.mxu0 0.0
      %7788 = vmatprep.subr.mxu0 0.0
      %7789 = vmatpush1.msra.mxu0 0.0
      %7790 = vmatprep.subr.mxu0 0.0
      %7791 = vmatpush1.msra.mxu0 0.0
      %7792 = vmatprep.subr.mxu0 0.0
      %7793 = vmatpush1.msra.mxu0 0.0
      %7794 = vmatprep.subr.mxu0 0.0
      %7795 = vmatpush1.msra.mxu0 0.0
      %7796 = vmatprep.subr.mxu0 0.0
      %7797 = vmatpush1.msra.mxu0 0.0
      %7798 = vmatprep.subr.mxu0 0.0
      %7799 = vmatpush1.msra.mxu0 0.0
      %7800 = vmatprep.subr.mxu0 0.0
      %7801 = vmatpush1.msra.mxu0 0.0
      %7802 = vmatprep.mubr.f32.mxu0 0.0
      %7803 = vmatmul.mubr.f32.gmra.mrb[0].mxu0 %v6875
      %v7804 = vpop.f32.mrb[0].mxu0
      %v7805 = vadd.f32 %v7385, %v7804
      %v7806 = vpop.f32.mrb[0].mxu0
      %7807 = vmatprep.mubr.f32.mxu0 0.0
      %7808 = vmatmul.mubr.f32.gmra.mrb[0].mxu0 %v6878
      %v7809 = vpop.f32.mrb[0].mxu0
      %v7810 = vadd.f32 %v7390, %v7809
      %v7811 = vpop.f32.mrb[0].mxu0
      %7812 = vmatprep.mubr.f32.mxu0 0.0
      %7813 = vmatmul.mubr.f32.gmra.mrb[0].mxu0 %v6881
      %v7814 = vpop.f32.mrb[0].mxu0
      %v7815 = vadd.f32 %v7395, %v7814
      %v7816 = vpop.f32.mrb[0].mxu0
      %7817 = vmatprep.mubr.f32.mxu0 0.0
      %7818 = vmatmul.mubr.f32.gmra.mrb[0].mxu0 %v6884
      %v7819 = vpop.f32.mrb[0].mxu0
      %v7820 = vadd.f32 %v7400, %v7819
      %v7821 = vpop.f32.mrb[0].mxu0
      %7822 = vmatprep.mubr.f32.mxu0 0.0
      %7823 = vmatmul.mubr.f32.gmra.mrb[0].mxu0 %v6887
      %v7824 = vpop.f32.mrb[0].mxu0
      %v7825 = vadd.f32 %v7405, %v7824
      %v7826 = vpop.f32.mrb[0].mxu0
      %7827 = vmatprep.mubr.f32.mxu0 0.0
      %7828 = vmatmul.mubr.f32.gmra.mrb[0].mxu0 %v6890
      %v7829 = vpop.f32.mrb[0].mxu0
      %v7830 = vadd.f32 %v7410, %v7829
      %v7831 = vpop.f32.mrb[0].mxu0
      %7832 = vmatprep.mubr.f32.mxu0 0.0
      %7833 = vmatmul.mubr.f32.gmra.mrb[0].mxu0 %v6893
      %v7834 = vpop.f32.mrb[0].mxu0
      %v7835 = vadd.f32 %v7415, %v7834
      %v7836 = vpop.f32.mrb[0].mxu0
      %7837 = vmatprep.mubr.f32.mxu0 0.0
      %7838 = vmatmul.mubr.f32.gmra.mrb[0].mxu0 %v6896
      %v7839 = vpop.f32.mrb[0].mxu0
      %v7840 = vadd.f32 %v7420, %v7839
      %v7841 = vpop.f32.mrb[0].mxu0
      %7842 = vdwg.mxu0
      %s7843 = scalar_lea.vmem %s6, 512
      %v7844 = vld [vmem:[%s7843] sm:$0xff]
      %v7845 = vld [vmem:[%s7843 + $0x8] sm:$0xff]
      %v7846 = vld [vmem:[%s7843 + $0x10] sm:$0xff]
      %v7847 = vld [vmem:[%s7843 + $0x18] sm:$0xff]
      %v7848 = vld [vmem:[%s7843 + $0x20] sm:$0xff]
      %v7849 = vld [vmem:[%s7843 + $0x28] sm:$0xff]
      %v7850 = vld [vmem:[%s7843 + $0x30] sm:$0xff]
      %v7851 = vld [vmem:[%s7843 + $0x38] sm:$0xff]
      %v7852 = vld [vmem:[%s7843 + $0x40] sm:$0xff]
      %v7853 = vld [vmem:[%s7843 + $0x48] sm:$0xff]
      %v7854 = vld [vmem:[%s7843 + $0x50] sm:$0xff]
      %v7855 = vld [vmem:[%s7843 + $0x58] sm:$0xff]
      %v7856 = vld [vmem:[%s7843 + $0x60] sm:$0xff]
      %v7857 = vld [vmem:[%s7843 + $0x68] sm:$0xff]
      %v7858 = vld [vmem:[%s7843 + $0x70] sm:$0xff]
      %v7859 = vld [vmem:[%s7843 + $0x78] sm:$0xff]
      %v7860 = vld [vmem:[%s7843 + $0x80] sm:$0xff]
      %v7861 = vld [vmem:[%s7843 + $0x88] sm:$0xff]
      %v7862 = vld [vmem:[%s7843 + $0x90] sm:$0xff]
      %v7863 = vld [vmem:[%s7843 + $0x98] sm:$0xff]
      %v7864 = vld [vmem:[%s7843 + $0xa0] sm:$0xff]
      %v7865 = vld [vmem:[%s7843 + $0xa8] sm:$0xff]
      %v7866 = vld [vmem:[%s7843 + $0xb0] sm:$0xff]
      %v7867 = vld [vmem:[%s7843 + $0xb8] sm:$0xff]
      %v7868 = vld [vmem:[%s7843 + $0xc0] sm:$0xff]
      %v7869 = vld [vmem:[%s7843 + $0xc8] sm:$0xff]
      %v7870 = vld [vmem:[%s7843 + $0xd0] sm:$0xff]
      %v7871 = vld [vmem:[%s7843 + $0xd8] sm:$0xff]
      %v7872 = vld [vmem:[%s7843 + $0xe0] sm:$0xff]
      %v7873 = vld [vmem:[%s7843 + $0xe8] sm:$0xff]
      %v7874 = vld [vmem:[%s7843 + $0xf0] sm:$0xff]
      %v7875 = vld [vmem:[%s7843 + $0xf8] sm:$0xff]
      %7876 = vrot.lane.b32.xlu0 %v3882, 96
      %v7877 = vpop.permute.xlu0 %7876
      %7878 = vrot.lane.b32.xlu0 %v3883, 96
      %v7879 = vpop.permute.xlu0 %7878
      %7880 = vrot.lane.b32.xlu0 %v3884, 96
      %v7881 = vpop.permute.xlu0 %7880
      %7882 = vrot.lane.b32.xlu0 %v3885, 96
      %v7883 = vpop.permute.xlu0 %7882
      %7884 = vrot.lane.b32.xlu0 %v3886, 96
      %v7885 = vpop.permute.xlu0 %7884
      %7886 = vrot.lane.b32.xlu0 %v3887, 96
      %v7887 = vpop.permute.xlu0 %7886
      %7888 = vrot.lane.b32.xlu0 %v3888, 96
      %v7889 = vpop.permute.xlu0 %7888
      %7890 = vrot.lane.b32.xlu0 %v3889, 96
      %v7891 = vpop.permute.xlu0 %7890
      %7892 = vrot.lane.b32.xlu0 %v984, 96
      %v7893 = vpop.permute.xlu0 %7892
      %7894 = vrot.lane.b32.xlu0 %v985, 96
      %v7895 = vpop.permute.xlu0 %7894
      %7896 = vrot.lane.b32.xlu0 %v986, 96
      %v7897 = vpop.permute.xlu0 %7896
      %7898 = vrot.lane.b32.xlu0 %v987, 96
      %v7899 = vpop.permute.xlu0 %7898
      %7900 = vrot.lane.b32.xlu0 %v988, 96
      %v7901 = vpop.permute.xlu0 %7900
      %7902 = vrot.lane.b32.xlu0 %v989, 96
      %v7903 = vpop.permute.xlu0 %7902
      %7904 = vrot.lane.b32.xlu0 %v990, 96
      %v7905 = vpop.permute.xlu0 %7904
      %7906 = vrot.lane.b32.xlu0 %v991, 96
      %v7907 = vpop.permute.xlu0 %7906
      %v7908 = vsel %vm1121, %v7877, 0
      %v7910 = vsel %vm1121, %v7879, 0
      %v7912 = vsel %vm1121, %v7881, 0
      %v7914 = vsel %vm1121, %v7883, 0
      %v7916 = vsel %vm1121, %v7885, 0
      %v7918 = vsel %vm1121, %v7887, 0
      %v7920 = vsel %vm1121, %v7889, 0
      %v7922 = vsel %vm1121, %v7891, 0
      %v7924 = vsel %vm1121, %v7893, 0
      %v7926 = vsel %vm1121, %v7895, 0
      %v7928 = vsel %vm1121, %v7897, 0
      %v7930 = vsel %vm1121, %v7899, 0
      %v7932 = vsel %vm1121, %v7901, 0
      %v7934 = vsel %vm1121, %v7903, 0
      %v7936 = vsel %vm1121, %v7905, 0
      %v7938 = vsel %vm1121, %v7907, 0
      %7940 = vmatprep.subr.mxu0 0.0
      %7941 = vmatpush1.xpose.msra.mxu0 %v7924
      %7942 = vmatprep.subr.mxu0 0.0
      %7943 = vmatpush1.xpose.msra.mxu0 %v7926
      %7944 = vmatprep.subr.mxu0 0.0
      %7945 = vmatpush1.xpose.msra.mxu0 %v7928
      %7946 = vmatprep.subr.mxu0 0.0
      %7947 = vmatpush1.xpose.msra.mxu0 %v7930
      %7948 = vmatprep.subr.mxu0 0.0
      %7949 = vmatpush1.xpose.msra.mxu0 %v7932
      %7950 = vmatprep.subr.mxu0 0.0
      %7951 = vmatpush1.xpose.msra.mxu0 %v7934
      %7952 = vmatprep.subr.mxu0 0.0
      %7953 = vmatpush1.xpose.msra.mxu0 %v7936
      %7954 = vmatprep.subr.mxu0 0.0
      %7955 = vmatpush1.xpose.msra.mxu0 %v7938
      %7956 = vmatprep.subr.mxu0 0.0
      %7957 = vmatpush1.xpose.msra.mxu0 0.0
      %7958 = vmatprep.subr.mxu0 0.0
      %7959 = vmatpush1.xpose.msra.mxu0 0.0
      %7960 = vmatprep.subr.mxu0 0.0
      %7961 = vmatpush1.xpose.msra.mxu0 0.0
      %7962 = vmatprep.subr.mxu0 0.0
      %7963 = vmatpush1.xpose.msra.mxu0 0.0
      %7964 = vmatprep.subr.mxu0 0.0
      %7965 = vmatpush1.xpose.msra.mxu0 0.0
      %7966 = vmatprep.subr.mxu0 0.0
      %7967 = vmatpush1.xpose.msra.mxu0 0.0
      %7968 = vmatprep.subr.mxu0 0.0
      %7969 = vmatpush1.xpose.msra.mxu0 0.0
      %7970 = vmatprep.subr.mxu0 0.0
      %7971 = vmatpush1.xpose.msra.mxu0 0.0
      %7972 = vmatprep.subr.mxu0 0.0
      %7973 = vmatpush1.xpose.msra.mxu0 0.0
      %7974 = vmatprep.subr.mxu0 0.0
      %7975 = vmatpush1.xpose.msra.mxu0 0.0
      %7976 = vmatprep.subr.mxu0 0.0
      %7977 = vmatpush1.xpose.msra.mxu0 0.0
      %7978 = vmatprep.subr.mxu0 0.0
      %7979 = vmatpush1.xpose.msra.mxu0 0.0
      %7980 = vmatprep.subr.mxu0 0.0
      %7981 = vmatpush1.xpose.msra.mxu0 0.0
      %7982 = vmatprep.subr.mxu0 0.0
      %7983 = vmatpush1.xpose.msra.mxu0 0.0
      %7984 = vmatprep.subr.mxu0 0.0
      %7985 = vmatpush1.xpose.msra.mxu0 0.0
      %7986 = vmatprep.subr.mxu0 0.0
      %7987 = vmatpush1.xpose.msra.mxu0 0.0
      %7988 = vmatprep.subr.mxu0 0.0
      %7989 = vmatpush1.xpose.msra.mxu0 0.0
      %7990 = vmatprep.subr.mxu0 0.0
      %7991 = vmatpush1.xpose.msra.mxu0 0.0
      %7992 = vmatprep.subr.mxu0 0.0
      %7993 = vmatpush1.xpose.msra.mxu0 0.0
      %7994 = vmatprep.subr.mxu0 0.0
      %7995 = vmatpush1.xpose.msra.mxu0 0.0
      %7996 = vmatprep.subr.mxu0 0.0
      %7997 = vmatpush1.xpose.msra.mxu0 0.0
      %7998 = vmatprep.subr.mxu0 0.0
      %7999 = vmatpush1.xpose.msra.mxu0 0.0
      %8000 = vmatprep.subr.mxu0 0.0
      %8001 = vmatpush1.xpose.msra.mxu0 0.0
      %8002 = vmatprep.subr.mxu0 0.0
      %8003 = vmatpush1.xpose.msra.mxu0 0.0
      %8004 = vmatprep.mubr.f32.mxu0 0.0
      %8005 = vmatmul.mubr.f32.gmra.mrb[0].mxu0 %v7908
      %v8006 = vpop.f32.mrb[0].mxu0
      %v8007 = vadd.f32 %v7844, %v8006
      %v8008 = vpop.f32.mrb[0].mxu0
      %8009 = vmatprep.mubr.f32.mxu0 0.0
      %8010 = vmatmul.mubr.f32.gmra.mrb[0].mxu0 %v7910
      %v8011 = vpop.f32.mrb[0].mxu0
      %v8012 = vadd.f32 %v7845, %v8011
      %v8013 = vpop.f32.mrb[0].mxu0
      %8014 = vmatprep.mubr.f32.mxu0 0.0
      %8015 = vmatmul.mubr.f32.gmra.mrb[0].mxu0 %v7912
      %v8016 = vpop.f32.mrb[0].mxu0
      %v8017 = vadd.f32 %v7846, %v8016
      %v8018 = vpop.f32.mrb[0].mxu0
      %8019 = vmatprep.mubr.f32.mxu0 0.0
      %8020 = vmatmul.mubr.f32.gmra.mrb[0].mxu0 %v7914
      %v8021 = vpop.f32.mrb[0].mxu0
      %v8022 = vadd.f32 %v7847, %v8021
      %v8023 = vpop.f32.mrb[0].mxu0
      %8024 = vmatprep.mubr.f32.mxu0 0.0
      %8025 = vmatmul.mubr.f32.gmra.mrb[0].mxu0 %v7916
      %v8026 = vpop.f32.mrb[0].mxu0
      %v8027 = vadd.f32 %v7848, %v8026
      %v8028 = vpop.f32.mrb[0].mxu0
      %8029 = vmatprep.mubr.f32.mxu0 0.0
      %8030 = vmatmul.mubr.f32.gmra.mrb[0].mxu0 %v7918
      %v8031 = vpop.f32.mrb[0].mxu0
      %v8032 = vadd.f32 %v7849, %v8031
      %v8033 = vpop.f32.mrb[0].mxu0
      %8034 = vmatprep.mubr.f32.mxu0 0.0
      %8035 = vmatmul.mubr.f32.gmra.mrb[0].mxu0 %v7920
      %v8036 = vpop.f32.mrb[0].mxu0
      %v8037 = vadd.f32 %v7850, %v8036
      %v8038 = vpop.f32.mrb[0].mxu0
      %8039 = vmatprep.mubr.f32.mxu0 0.0
      %8040 = vmatmul.mubr.f32.gmra.mrb[0].mxu0 %v7922
      %v8041 = vpop.f32.mrb[0].mxu0
      %v8042 = vadd.f32 %v7851, %v8041
      %v8043 = vpop.f32.mrb[0].mxu0
      %8044 = vdwg.mxu0
      %8045 = vrot.lane.b32.xlu0 %v3890, 96
      %v8046 = vpop.permute.xlu0 %8045
      %8047 = vrot.lane.b32.xlu0 %v3891, 96
      %v8048 = vpop.permute.xlu0 %8047
      %8049 = vrot.lane.b32.xlu0 %v3892, 96
      %v8050 = vpop.permute.xlu0 %8049
      %8051 = vrot.lane.b32.xlu0 %v3893, 96
      %v8052 = vpop.permute.xlu0 %8051
      %8053 = vrot.lane.b32.xlu0 %v3894, 96
      %v8054 = vpop.permute.xlu0 %8053
      %8055 = vrot.lane.b32.xlu0 %v3895, 96
      %v8056 = vpop.permute.xlu0 %8055
      %8057 = vrot.lane.b32.xlu0 %v3896, 96
      %v8058 = vpop.permute.xlu0 %8057
      %8059 = vrot.lane.b32.xlu0 %v3897, 96
      %v8060 = vpop.permute.xlu0 %8059
      %8061 = vrot.lane.b32.xlu0 %v992, 96
      %v8062 = vpop.permute.xlu0 %8061
      %8063 = vrot.lane.b32.xlu0 %v993, 96
      %v8064 = vpop.permute.xlu0 %8063
      %8065 = vrot.lane.b32.xlu0 %v994, 96
      %v8066 = vpop.permute.xlu0 %8065
      %8067 = vrot.lane.b32.xlu0 %v995, 96
      %v8068 = vpop.permute.xlu0 %8067
      %8069 = vrot.lane.b32.xlu0 %v996, 96
      %v8070 = vpop.permute.xlu0 %8069
      %8071 = vrot.lane.b32.xlu0 %v997, 96
      %v8072 = vpop.permute.xlu0 %8071
      %8073 = vrot.lane.b32.xlu0 %v998, 96
      %v8074 = vpop.permute.xlu0 %8073
      %8075 = vrot.lane.b32.xlu0 %v999, 96
      %v8076 = vpop.permute.xlu0 %8075
      %v8077 = vsel %vm1121, %v8046, 0
      %v8079 = vsel %vm1121, %v8048, 0
      %v8081 = vsel %vm1121, %v8050, 0
      %v8083 = vsel %vm1121, %v8052, 0
      %v8085 = vsel %vm1121, %v8054, 0
      %v8087 = vsel %vm1121, %v8056, 0
      %v8089 = vsel %vm1121, %v8058, 0
      %v8091 = vsel %vm1121, %v8060, 0
      %v8093 = vsel %vm1121, %v8062, 0
      %v8095 = vsel %vm1121, %v8064, 0
      %v8097 = vsel %vm1121, %v8066, 0
      %v8099 = vsel %vm1121, %v8068, 0
      %v8101 = vsel %vm1121, %v8070, 0
      %v8103 = vsel %vm1121, %v8072, 0
      %v8105 = vsel %vm1121, %v8074, 0
      %v8107 = vsel %vm1121, %v8076, 0
      %8109 = vmatprep.subr.mxu0 0.0
      %8110 = vmatpush1.xpose.msra.mxu0 %v8093
      %8111 = vmatprep.subr.mxu0 0.0
      %8112 = vmatpush1.xpose.msra.mxu0 %v8095
      %8113 = vmatprep.subr.mxu0 0.0
      %8114 = vmatpush1.xpose.msra.mxu0 %v8097
      %8115 = vmatprep.subr.mxu0 0.0
      %8116 = vmatpush1.xpose.msra.mxu0 %v8099
      %8117 = vmatprep.subr.mxu0 0.0
      %8118 = vmatpush1.xpose.msra.mxu0 %v8101
      %8119 = vmatprep.subr.mxu0 0.0
      %8120 = vmatpush1.xpose.msra.mxu0 %v8103
      %8121 = vmatprep.subr.mxu0 0.0
      %8122 = vmatpush1.xpose.msra.mxu0 %v8105
      %8123 = vmatprep.subr.mxu0 0.0
      %8124 = vmatpush1.xpose.msra.mxu0 %v8107
      %8125 = vmatprep.subr.mxu0 0.0
      %8126 = vmatpush1.xpose.msra.mxu0 0.0
      %8127 = vmatprep.subr.mxu0 0.0
      %8128 = vmatpush1.xpose.msra.mxu0 0.0
      %8129 = vmatprep.subr.mxu0 0.0
      %8130 = vmatpush1.xpose.msra.mxu0 0.0
      %8131 = vmatprep.subr.mxu0 0.0
      %8132 = vmatpush1.xpose.msra.mxu0 0.0
      %8133 = vmatprep.subr.mxu0 0.0
      %8134 = vmatpush1.xpose.msra.mxu0 0.0
      %8135 = vmatprep.subr.mxu0 0.0
      %8136 = vmatpush1.xpose.msra.mxu0 0.0
      %8137 = vmatprep.subr.mxu0 0.0
      %8138 = vmatpush1.xpose.msra.mxu0 0.0
      %8139 = vmatprep.subr.mxu0 0.0
      %8140 = vmatpush1.xpose.msra.mxu0 0.0
      %8141 = vmatprep.subr.mxu0 0.0
      %8142 = vmatpush1.xpose.msra.mxu0 0.0
      %8143 = vmatprep.subr.mxu0 0.0
      %8144 = vmatpush1.xpose.msra.mxu0 0.0
      %8145 = vmatprep.subr.mxu0 0.0
      %8146 = vmatpush1.xpose.msra.mxu0 0.0
      %8147 = vmatprep.subr.mxu0 0.0
      %8148 = vmatpush1.xpose.msra.mxu0 0.0
      %8149 = vmatprep.subr.mxu0 0.0
      %8150 = vmatpush1.xpose.msra.mxu0 0.0
      %8151 = vmatprep.subr.mxu0 0.0
      %8152 = vmatpush1.xpose.msra.mxu0 0.0
      %8153 = vmatprep.subr.mxu0 0.0
      %8154 = vmatpush1.xpose.msra.mxu0 0.0
      %8155 = vmatprep.subr.mxu0 0.0
      %8156 = vmatpush1.xpose.msra.mxu0 0.0
      %8157 = vmatprep.subr.mxu0 0.0
      %8158 = vmatpush1.xpose.msra.mxu0 0.0
      %8159 = vmatprep.subr.mxu0 0.0
      %8160 = vmatpush1.xpose.msra.mxu0 0.0
      %8161 = vmatprep.subr.mxu0 0.0
      %8162 = vmatpush1.xpose.msra.mxu0 0.0
      %8163 = vmatprep.subr.mxu0 0.0
      %8164 = vmatpush1.xpose.msra.mxu0 0.0
      %8165 = vmatprep.subr.mxu0 0.0
      %8166 = vmatpush1.xpose.msra.mxu0 0.0
      %8167 = vmatprep.subr.mxu0 0.0
      %8168 = vmatpush1.xpose.msra.mxu0 0.0
      %8169 = vmatprep.subr.mxu0 0.0
      %8170 = vmatpush1.xpose.msra.mxu0 0.0
      %8171 = vmatprep.subr.mxu0 0.0
      %8172 = vmatpush1.xpose.msra.mxu0 0.0
      %8173 = vmatprep.mubr.f32.mxu0 0.0
      %8174 = vmatmul.mubr.f32.gmra.mrb[0].mxu0 %v8077
      %v8175 = vpop.f32.mrb[0].mxu0
      %v8176 = vadd.f32 %v7852, %v8175
      %v8177 = vpop.f32.mrb[0].mxu0
      %8178 = vmatprep.mubr.f32.mxu0 0.0
      %8179 = vmatmul.mubr.f32.gmra.mrb[0].mxu0 %v8079
      %v8180 = vpop.f32.mrb[0].mxu0
      %v8181 = vadd.f32 %v7853, %v8180
      %v8182 = vpop.f32.mrb[0].mxu0
      %8183 = vmatprep.mubr.f32.mxu0 0.0
      %8184 = vmatmul.mubr.f32.gmra.mrb[0].mxu0 %v8081
      %v8185 = vpop.f32.mrb[0].mxu0
      %v8186 = vadd.f32 %v7854, %v8185
      %v8187 = vpop.f32.mrb[0].mxu0
      %8188 = vmatprep.mubr.f32.mxu0 0.0
      %8189 = vmatmul.mubr.f32.gmra.mrb[0].mxu0 %v8083
      %v8190 = vpop.f32.mrb[0].mxu0
      %v8191 = vadd.f32 %v7855, %v8190
      %v8192 = vpop.f32.mrb[0].mxu0
      %8193 = vmatprep.mubr.f32.mxu0 0.0
      %8194 = vmatmul.mubr.f32.gmra.mrb[0].mxu0 %v8085
      %v8195 = vpop.f32.mrb[0].mxu0
      %v8196 = vadd.f32 %v7856, %v8195
      %v8197 = vpop.f32.mrb[0].mxu0
      %8198 = vmatprep.mubr.f32.mxu0 0.0
      %8199 = vmatmul.mubr.f32.gmra.mrb[0].mxu0 %v8087
      %v8200 = vpop.f32.mrb[0].mxu0
      %v8201 = vadd.f32 %v7857, %v8200
      %v8202 = vpop.f32.mrb[0].mxu0
      %8203 = vmatprep.mubr.f32.mxu0 0.0
      %8204 = vmatmul.mubr.f32.gmra.mrb[0].mxu0 %v8089
      %v8205 = vpop.f32.mrb[0].mxu0
      %v8206 = vadd.f32 %v7858, %v8205
      %v8207 = vpop.f32.mrb[0].mxu0
      %8208 = vmatprep.mubr.f32.mxu0 0.0
      %8209 = vmatmul.mubr.f32.gmra.mrb[0].mxu0 %v8091
      %v8210 = vpop.f32.mrb[0].mxu0
      %v8211 = vadd.f32 %v7859, %v8210
      %v8212 = vpop.f32.mrb[0].mxu0
      %8213 = vdwg.mxu0
      %8214 = vrot.lane.b32.xlu0 %v3898, 96
      %v8215 = vpop.permute.xlu0 %8214
      %8216 = vrot.lane.b32.xlu0 %v3899, 96
      %v8217 = vpop.permute.xlu0 %8216
      %8218 = vrot.lane.b32.xlu0 %v3900, 96
      %v8219 = vpop.permute.xlu0 %8218
      %8220 = vrot.lane.b32.xlu0 %v3901, 96
      %v8221 = vpop.permute.xlu0 %8220
      %8222 = vrot.lane.b32.xlu0 %v3902, 96
      %v8223 = vpop.permute.xlu0 %8222
      %8224 = vrot.lane.b32.xlu0 %v3903, 96
      %v8225 = vpop.permute.xlu0 %8224
      %8226 = vrot.lane.b32.xlu0 %v3904, 96
      %v8227 = vpop.permute.xlu0 %8226
      %8228 = vrot.lane.b32.xlu0 %v3905, 96
      %v8229 = vpop.permute.xlu0 %8228
      %8230 = vrot.lane.b32.xlu0 %v1000, 96
      %v8231 = vpop.permute.xlu0 %8230
      %8232 = vrot.lane.b32.xlu0 %v1001, 96
      %v8233 = vpop.permute.xlu0 %8232
      %8234 = vrot.lane.b32.xlu0 %v1002, 96
      %v8235 = vpop.permute.xlu0 %8234
      %8236 = vrot.lane.b32.xlu0 %v1003, 96
      %v8237 = vpop.permute.xlu0 %8236
      %8238 = vrot.lane.b32.xlu0 %v1004, 96
      %v8239 = vpop.permute.xlu0 %8238
      %8240 = vrot.lane.b32.xlu0 %v1005, 96
      %v8241 = vpop.permute.xlu0 %8240
      %8242 = vrot.lane.b32.xlu0 %v1006, 96
      %v8243 = vpop.permute.xlu0 %8242
      %8244 = vrot.lane.b32.xlu0 %v1007, 96
      %v8245 = vpop.permute.xlu0 %8244
      %v8246 = vsel %vm1121, %v8215, 0
      %v8248 = vsel %vm1121, %v8217, 0
      %v8250 = vsel %vm1121, %v8219, 0
      %v8252 = vsel %vm1121, %v8221, 0
      %v8254 = vsel %vm1121, %v8223, 0
      %v8256 = vsel %vm1121, %v8225, 0
      %v8258 = vsel %vm1121, %v8227, 0
      %v8260 = vsel %vm1121, %v8229, 0
      %v8262 = vsel %vm1121, %v8231, 0
      %v8264 = vsel %vm1121, %v8233, 0
      %v8266 = vsel %vm1121, %v8235, 0
      %v8268 = vsel %vm1121, %v8237, 0
      %v8270 = vsel %vm1121, %v8239, 0
      %v8272 = vsel %vm1121, %v8241, 0
      %v8274 = vsel %vm1121, %v8243, 0
      %v8276 = vsel %vm1121, %v8245, 0
      %8278 = vmatprep.subr.mxu0 0.0
      %8279 = vmatpush1.xpose.msra.mxu0 %v8262
      %8280 = vmatprep.subr.mxu0 0.0
      %8281 = vmatpush1.xpose.msra.mxu0 %v8264
      %8282 = vmatprep.subr.mxu0 0.0
      %8283 = vmatpush1.xpose.msra.mxu0 %v8266
      %8284 = vmatprep.subr.mxu0 0.0
      %8285 = vmatpush1.xpose.msra.mxu0 %v8268
      %8286 = vmatprep.subr.mxu0 0.0
      %8287 = vmatpush1.xpose.msra.mxu0 %v8270
      %8288 = vmatprep.subr.mxu0 0.0
      %8289 = vmatpush1.xpose.msra.mxu0 %v8272
      %8290 = vmatprep.subr.mxu0 0.0
      %8291 = vmatpush1.xpose.msra.mxu0 %v8274
      %8292 = vmatprep.subr.mxu0 0.0
      %8293 = vmatpush1.xpose.msra.mxu0 %v8276
      %8294 = vmatprep.subr.mxu0 0.0
      %8295 = vmatpush1.xpose.msra.mxu0 0.0
      %8296 = vmatprep.subr.mxu0 0.0
      %8297 = vmatpush1.xpose.msra.mxu0 0.0
      %8298 = vmatprep.subr.mxu0 0.0
      %8299 = vmatpush1.xpose.msra.mxu0 0.0
      %8300 = vmatprep.subr.mxu0 0.0
      %8301 = vmatpush1.xpose.msra.mxu0 0.0
      %8302 = vmatprep.subr.mxu0 0.0
      %8303 = vmatpush1.xpose.msra.mxu0 0.0
      %8304 = vmatprep.subr.mxu0 0.0
      %8305 = vmatpush1.xpose.msra.mxu0 0.0
      %8306 = vmatprep.subr.mxu0 0.0
      %8307 = vmatpush1.xpose.msra.mxu0 0.0
      %8308 = vmatprep.subr.mxu0 0.0
      %8309 = vmatpush1.xpose.msra.mxu0 0.0
      %8310 = vmatprep.subr.mxu0 0.0
      %8311 = vmatpush1.xpose.msra.mxu0 0.0
      %8312 = vmatprep.subr.mxu0 0.0
      %8313 = vmatpush1.xpose.msra.mxu0 0.0
      %8314 = vmatprep.subr.mxu0 0.0
      %8315 = vmatpush1.xpose.msra.mxu0 0.0
      %8316 = vmatprep.subr.mxu0 0.0
      %8317 = vmatpush1.xpose.msra.mxu0 0.0
      %8318 = vmatprep.subr.mxu0 0.0
      %8319 = vmatpush1.xpose.msra.mxu0 0.0
      %8320 = vmatprep.subr.mxu0 0.0
      %8321 = vmatpush1.xpose.msra.mxu0 0.0
      %8322 = vmatprep.subr.mxu0 0.0
      %8323 = vmatpush1.xpose.msra.mxu0 0.0
      %8324 = vmatprep.subr.mxu0 0.0
      %8325 = vmatpush1.xpose.msra.mxu0 0.0
      %8326 = vmatprep.subr.mxu0 0.0
      %8327 = vmatpush1.xpose.msra.mxu0 0.0
      %8328 = vmatprep.subr.mxu0 0.0
      %8329 = vmatpush1.xpose.msra.mxu0 0.0
      %8330 = vmatprep.subr.mxu0 0.0
      %8331 = vmatpush1.xpose.msra.mxu0 0.0
      %8332 = vmatprep.subr.mxu0 0.0
      %8333 = vmatpush1.xpose.msra.mxu0 0.0
      %8334 = vmatprep.subr.mxu0 0.0
      %8335 = vmatpush1.xpose.msra.mxu0 0.0
      %8336 = vmatprep.subr.mxu0 0.0
      %8337 = vmatpush1.xpose.msra.mxu0 0.0
      %8338 = vmatprep.subr.mxu0 0.0
      %8339 = vmatpush1.xpose.msra.mxu0 0.0
      %8340 = vmatprep.subr.mxu0 0.0
      %8341 = vmatpush1.xpose.msra.mxu0 0.0
      %8342 = vmatprep.mubr.f32.mxu0 0.0
      %8343 = vmatmul.mubr.f32.gmra.mrb[0].mxu0 %v8246
      %v8344 = vpop.f32.mrb[0].mxu0
      %v8345 = vadd.f32 %v7860, %v8344
      %v8346 = vpop.f32.mrb[0].mxu0
      %8347 = vmatprep.mubr.f32.mxu0 0.0
      %8348 = vmatmul.mubr.f32.gmra.mrb[0].mxu0 %v8248
      %v8349 = vpop.f32.mrb[0].mxu0
      %v8350 = vadd.f32 %v7861, %v8349
      %v8351 = vpop.f32.mrb[0].mxu0
      %8352 = vmatprep.mubr.f32.mxu0 0.0
      %8353 = vmatmul.mubr.f32.gmra.mrb[0].mxu0 %v8250
      %v8354 = vpop.f32.mrb[0].mxu0
      %v8355 = vadd.f32 %v7862, %v8354
      %v8356 = vpop.f32.mrb[0].mxu0
      %8357 = vmatprep.mubr.f32.mxu0 0.0
      %8358 = vmatmul.mubr.f32.gmra.mrb[0].mxu0 %v8252
      %v8359 = vpop.f32.mrb[0].mxu0
      %v8360 = vadd.f32 %v7863, %v8359
      %v8361 = vpop.f32.mrb[0].mxu0
      %8362 = vmatprep.mubr.f32.mxu0 0.0
      %8363 = vmatmul.mubr.f32.gmra.mrb[0].mxu0 %v8254
      %v8364 = vpop.f32.mrb[0].mxu0
      %v8365 = vadd.f32 %v7864, %v8364
      %v8366 = vpop.f32.mrb[0].mxu0
      %8367 = vmatprep.mubr.f32.mxu0 0.0
      %8368 = vmatmul.mubr.f32.gmra.mrb[0].mxu0 %v8256
      %v8369 = vpop.f32.mrb[0].mxu0
      %v8370 = vadd.f32 %v7865, %v8369
      %v8371 = vpop.f32.mrb[0].mxu0
      %8372 = vmatprep.mubr.f32.mxu0 0.0
      %8373 = vmatmul.mubr.f32.gmra.mrb[0].mxu0 %v8258
      %v8374 = vpop.f32.mrb[0].mxu0
      %v8375 = vadd.f32 %v7866, %v8374
      %v8376 = vpop.f32.mrb[0].mxu0
      %8377 = vmatprep.mubr.f32.mxu0 0.0
      %8378 = vmatmul.mubr.f32.gmra.mrb[0].mxu0 %v8260
      %v8379 = vpop.f32.mrb[0].mxu0
      %v8380 = vadd.f32 %v7867, %v8379
      %v8381 = vpop.f32.mrb[0].mxu0
      %8382 = vdwg.mxu0
      %8383 = vrot.lane.b32.xlu0 %v3906, 96
      %v8384 = vpop.permute.xlu0 %8383
      %8385 = vrot.lane.b32.xlu0 %v3907, 96
      %v8386 = vpop.permute.xlu0 %8385
      %8387 = vrot.lane.b32.xlu0 %v3908, 96
      %v8388 = vpop.permute.xlu0 %8387
      %8389 = vrot.lane.b32.xlu0 %v3909, 96
      %v8390 = vpop.permute.xlu0 %8389
      %8391 = vrot.lane.b32.xlu0 %v3910, 96
      %v8392 = vpop.permute.xlu0 %8391
      %8393 = vrot.lane.b32.xlu0 %v3911, 96
      %v8394 = vpop.permute.xlu0 %8393
      %8395 = vrot.lane.b32.xlu0 %v3912, 96
      %v8396 = vpop.permute.xlu0 %8395
      %8397 = vrot.lane.b32.xlu0 %v3913, 96
      %v8398 = vpop.permute.xlu0 %8397
      %8399 = vrot.lane.b32.xlu0 %v1008, 96
      %v8400 = vpop.permute.xlu0 %8399
      %8401 = vrot.lane.b32.xlu0 %v1009, 96
      %v8402 = vpop.permute.xlu0 %8401
      %8403 = vrot.lane.b32.xlu0 %v1010, 96
      %v8404 = vpop.permute.xlu0 %8403
      %8405 = vrot.lane.b32.xlu0 %v1011, 96
      %v8406 = vpop.permute.xlu0 %8405
      %8407 = vrot.lane.b32.xlu0 %v1012, 96
      %v8408 = vpop.permute.xlu0 %8407
      %8409 = vrot.lane.b32.xlu0 %v1013, 96
      %v8410 = vpop.permute.xlu0 %8409
      %8411 = vrot.lane.b32.xlu0 %v1014, 96
      %v8412 = vpop.permute.xlu0 %8411
      %8413 = vrot.lane.b32.xlu0 %v1015, 96
      %v8414 = vpop.permute.xlu0 %8413
      %v8415 = vsel %vm1121, %v8384, 0
      %v8417 = vsel %vm1121, %v8386, 0
      %v8419 = vsel %vm1121, %v8388, 0
      %v8421 = vsel %vm1121, %v8390, 0
      %v8423 = vsel %vm1121, %v8392, 0
      %v8425 = vsel %vm1121, %v8394, 0
      %v8427 = vsel %vm1121, %v8396, 0
      %v8429 = vsel %vm1121, %v8398, 0
      %v8431 = vsel %vm1121, %v8400, 0
      %v8433 = vsel %vm1121, %v8402, 0
      %v8435 = vsel %vm1121, %v8404, 0
      %v8437 = vsel %vm1121, %v8406, 0
      %v8439 = vsel %vm1121, %v8408, 0
      %v8441 = vsel %vm1121, %v8410, 0
      %v8443 = vsel %vm1121, %v8412, 0
      %v8445 = vsel %vm1121, %v8414, 0
      %8447 = vmatprep.subr.mxu0 0.0
      %8448 = vmatpush1.xpose.msra.mxu0 %v8431
      %8449 = vmatprep.subr.mxu0 0.0
      %8450 = vmatpush1.xpose.msra.mxu0 %v8433
      %8451 = vmatprep.subr.mxu0 0.0
      %8452 = vmatpush1.xpose.msra.mxu0 %v8435
      %8453 = vmatprep.subr.mxu0 0.0
      %8454 = vmatpush1.xpose.msra.mxu0 %v8437
      %8455 = vmatprep.subr.mxu0 0.0
      %8456 = vmatpush1.xpose.msra.mxu0 %v8439
      %8457 = vmatprep.subr.mxu0 0.0
      %8458 = vmatpush1.xpose.msra.mxu0 %v8441
      %8459 = vmatprep.subr.mxu0 0.0
      %8460 = vmatpush1.xpose.msra.mxu0 %v8443
      %8461 = vmatprep.subr.mxu0 0.0
      %8462 = vmatpush1.xpose.msra.mxu0 %v8445
      %8463 = vmatprep.subr.mxu0 0.0
      %8464 = vmatpush1.xpose.msra.mxu0 0.0
      %8465 = vmatprep.subr.mxu0 0.0
      %8466 = vmatpush1.xpose.msra.mxu0 0.0
      %8467 = vmatprep.subr.mxu0 0.0
      %8468 = vmatpush1.xpose.msra.mxu0 0.0
      %8469 = vmatprep.subr.mxu0 0.0
      %8470 = vmatpush1.xpose.msra.mxu0 0.0
      %8471 = vmatprep.subr.mxu0 0.0
      %8472 = vmatpush1.xpose.msra.mxu0 0.0
      %8473 = vmatprep.subr.mxu0 0.0
      %8474 = vmatpush1.xpose.msra.mxu0 0.0
      %8475 = vmatprep.subr.mxu0 0.0
      %8476 = vmatpush1.xpose.msra.mxu0 0.0
      %8477 = vmatprep.subr.mxu0 0.0
      %8478 = vmatpush1.xpose.msra.mxu0 0.0
      %8479 = vmatprep.subr.mxu0 0.0
      %8480 = vmatpush1.xpose.msra.mxu0 0.0
      %8481 = vmatprep.subr.mxu0 0.0
      %8482 = vmatpush1.xpose.msra.mxu0 0.0
      %8483 = vmatprep.subr.mxu0 0.0
      %8484 = vmatpush1.xpose.msra.mxu0 0.0
      %8485 = vmatprep.subr.mxu0 0.0
      %8486 = vmatpush1.xpose.msra.mxu0 0.0
      %8487 = vmatprep.subr.mxu0 0.0
      %8488 = vmatpush1.xpose.msra.mxu0 0.0
      %8489 = vmatprep.subr.mxu0 0.0
      %8490 = vmatpush1.xpose.msra.mxu0 0.0
      %8491 = vmatprep.subr.mxu0 0.0
      %8492 = vmatpush1.xpose.msra.mxu0 0.0
      %8493 = vmatprep.subr.mxu0 0.0
      %8494 = vmatpush1.xpose.msra.mxu0 0.0
      %8495 = vmatprep.subr.mxu0 0.0
      %8496 = vmatpush1.xpose.msra.mxu0 0.0
      %8497 = vmatprep.subr.mxu0 0.0
      %8498 = vmatpush1.xpose.msra.mxu0 0.0
      %8499 = vmatprep.subr.mxu0 0.0
      %8500 = vmatpush1.xpose.msra.mxu0 0.0
      %8501 = vmatprep.subr.mxu0 0.0
      %8502 = vmatpush1.xpose.msra.mxu0 0.0
      %8503 = vmatprep.subr.mxu0 0.0
      %8504 = vmatpush1.xpose.msra.mxu0 0.0
      %8505 = vmatprep.subr.mxu0 0.0
      %8506 = vmatpush1.xpose.msra.mxu0 0.0
      %8507 = vmatprep.subr.mxu0 0.0
      %8508 = vmatpush1.xpose.msra.mxu0 0.0
      %8509 = vmatprep.subr.mxu0 0.0
      %8510 = vmatpush1.xpose.msra.mxu0 0.0
      %8511 = vmatprep.mubr.f32.mxu0 0.0
      %8512 = vmatmul.mubr.f32.gmra.mrb[0].mxu0 %v8415
      %v8513 = vpop.f32.mrb[0].mxu0
      %v8514 = vadd.f32 %v7868, %v8513
      %v8515 = vpop.f32.mrb[0].mxu0
      %8516 = vmatprep.mubr.f32.mxu0 0.0
      %8517 = vmatmul.mubr.f32.gmra.mrb[0].mxu0 %v8417
      %v8518 = vpop.f32.mrb[0].mxu0
      %v8519 = vadd.f32 %v7869, %v8518
      %v8520 = vpop.f32.mrb[0].mxu0
      %8521 = vmatprep.mubr.f32.mxu0 0.0
      %8522 = vmatmul.mubr.f32.gmra.mrb[0].mxu0 %v8419
      %v8523 = vpop.f32.mrb[0].mxu0
      %v8524 = vadd.f32 %v7870, %v8523
      %v8525 = vpop.f32.mrb[0].mxu0
      %8526 = vmatprep.mubr.f32.mxu0 0.0
      %8527 = vmatmul.mubr.f32.gmra.mrb[0].mxu0 %v8421
      %v8528 = vpop.f32.mrb[0].mxu0
      %v8529 = vadd.f32 %v7871, %v8528
      %v8530 = vpop.f32.mrb[0].mxu0
      %8531 = vmatprep.mubr.f32.mxu0 0.0
      %8532 = vmatmul.mubr.f32.gmra.mrb[0].mxu0 %v8423
      %v8533 = vpop.f32.mrb[0].mxu0
      %v8534 = vadd.f32 %v7872, %v8533
      %v8535 = vpop.f32.mrb[0].mxu0
      %8536 = vmatprep.mubr.f32.mxu0 0.0
      %8537 = vmatmul.mubr.f32.gmra.mrb[0].mxu0 %v8425
      %v8538 = vpop.f32.mrb[0].mxu0
      %v8539 = vadd.f32 %v7873, %v8538
      %v8540 = vpop.f32.mrb[0].mxu0
      %8541 = vmatprep.mubr.f32.mxu0 0.0
      %8542 = vmatmul.mubr.f32.gmra.mrb[0].mxu0 %v8427
      %v8543 = vpop.f32.mrb[0].mxu0
      %v8544 = vadd.f32 %v7874, %v8543
      %v8545 = vpop.f32.mrb[0].mxu0
      %8546 = vmatprep.mubr.f32.mxu0 0.0
      %8547 = vmatmul.mubr.f32.gmra.mrb[0].mxu0 %v8429
      %v8548 = vpop.f32.mrb[0].mxu0
      %v8549 = vadd.f32 %v7875, %v8548
      %v8550 = vpop.f32.mrb[0].mxu0
      %8551 = vdwg.mxu0
      %v8552 = vsel %vm423, %v8007, -inf
      %8553 = vmax.xlane.f32.xlu0 %v8552
      %v8554 = vpop.xlane.xlu0 %8553
      %v8555 = vsel %vm423, %v8012, -inf
      %8556 = vmax.xlane.f32.xlu0 %v8555
      %v8557 = vpop.xlane.xlu0 %8556
      %v8558 = vsel %vm423, %v8017, -inf
      %8559 = vmax.xlane.f32.xlu0 %v8558
      %v8560 = vpop.xlane.xlu0 %8559
      %v8561 = vsel %vm423, %v8022, -inf
      %8562 = vmax.xlane.f32.xlu0 %v8561
      %v8563 = vpop.xlane.xlu0 %8562
      %v8564 = vsel %vm423, %v8027, -inf
      %8565 = vmax.xlane.f32.xlu0 %v8564
      %v8566 = vpop.xlane.xlu0 %8565
      %v8567 = vsel %vm423, %v8032, -inf
      %8568 = vmax.xlane.f32.xlu0 %v8567
      %v8569 = vpop.xlane.xlu0 %8568
      %v8570 = vsel %vm423, %v8037, -inf
      %8571 = vmax.xlane.f32.xlu0 %v8570
      %v8572 = vpop.xlane.xlu0 %8571
      %v8573 = vsel %vm423, %v8042, -inf
      %8574 = vmax.xlane.f32.xlu0 %v8573
      %v8575 = vpop.xlane.xlu0 %8574
      %v8576 = vsel %vm423, %v8176, -inf
      %8577 = vmax.xlane.f32.xlu0 %v8576
      %v8578 = vpop.xlane.xlu0 %8577
      %v8579 = vsel %vm423, %v8181, -inf
      %8580 = vmax.xlane.f32.xlu0 %v8579
      %v8581 = vpop.xlane.xlu0 %8580
      %v8582 = vsel %vm423, %v8186, -inf
      %8583 = vmax.xlane.f32.xlu0 %v8582
      %v8584 = vpop.xlane.xlu0 %8583
      %v8585 = vsel %vm423, %v8191, -inf
      %8586 = vmax.xlane.f32.xlu0 %v8585
      %v8587 = vpop.xlane.xlu0 %8586
      %v8588 = vsel %vm423, %v8196, -inf
      %8589 = vmax.xlane.f32.xlu0 %v8588
      %v8590 = vpop.xlane.xlu0 %8589
      %v8591 = vsel %vm423, %v8201, -inf
      %8592 = vmax.xlane.f32.xlu0 %v8591
      %v8593 = vpop.xlane.xlu0 %8592
      %v8594 = vsel %vm423, %v8206, -inf
      %8595 = vmax.xlane.f32.xlu0 %v8594
      %v8596 = vpop.xlane.xlu0 %8595
      %v8597 = vsel %vm423, %v8211, -inf
      %8598 = vmax.xlane.f32.xlu0 %v8597
      %v8599 = vpop.xlane.xlu0 %8598
      %v8600 = vsel %vm423, %v8345, -inf
      %8601 = vmax.xlane.f32.xlu0 %v8600
      %v8602 = vpop.xlane.xlu0 %8601
      %v8603 = vsel %vm423, %v8350, -inf
      %8604 = vmax.xlane.f32.xlu0 %v8603
      %v8605 = vpop.xlane.xlu0 %8604
      %v8606 = vsel %vm423, %v8355, -inf
      %8607 = vmax.xlane.f32.xlu0 %v8606
      %v8608 = vpop.xlane.xlu0 %8607
      %v8609 = vsel %vm423, %v8360, -inf
      %8610 = vmax.xlane.f32.xlu0 %v8609
      %v8611 = vpop.xlane.xlu0 %8610
      %v8612 = vsel %vm423, %v8365, -inf
      %8613 = vmax.xlane.f32.xlu0 %v8612
      %v8614 = vpop.xlane.xlu0 %8613
      %v8615 = vsel %vm423, %v8370, -inf
      %8616 = vmax.xlane.f32.xlu0 %v8615
      %v8617 = vpop.xlane.xlu0 %8616
      %v8618 = vsel %vm423, %v8375, -inf
      %8619 = vmax.xlane.f32.xlu0 %v8618
      %v8620 = vpop.xlane.xlu0 %8619
      %v8621 = vsel %vm423, %v8380, -inf
      %8622 = vmax.xlane.f32.xlu0 %v8621
      %v8623 = vpop.xlane.xlu0 %8622
      %v8624 = vsel %vm423, %v8514, -inf
      %8625 = vmax.xlane.f32.xlu0 %v8624
      %v8626 = vpop.xlane.xlu0 %8625
      %v8627 = vsel %vm423, %v8519, -inf
      %8628 = vmax.xlane.f32.xlu0 %v8627
      %v8629 = vpop.xlane.xlu0 %8628
      %v8630 = vsel %vm423, %v8524, -inf
      %8631 = vmax.xlane.f32.xlu0 %v8630
      %v8632 = vpop.xlane.xlu0 %8631
      %v8633 = vsel %vm423, %v8529, -inf
      %8634 = vmax.xlane.f32.xlu0 %v8633
      %v8635 = vpop.xlane.xlu0 %8634
      %v8636 = vsel %vm423, %v8534, -inf
      %8637 = vmax.xlane.f32.xlu0 %v8636
      %v8638 = vpop.xlane.xlu0 %8637
      %v8639 = vsel %vm423, %v8539, -inf
      %8640 = vmax.xlane.f32.xlu0 %v8639
      %v8641 = vpop.xlane.xlu0 %8640
      %v8642 = vsel %vm423, %v8544, -inf
      %8643 = vmax.xlane.f32.xlu0 %v8642
      %v8644 = vpop.xlane.xlu0 %8643
      %v8645 = vsel %vm423, %v8549, -inf
      %8646 = vmax.xlane.f32.xlu0 %v8645
      %v8647 = vpop.xlane.xlu0 %8646
      %v8648 = vsub.f32 %v8007, %v8554
      %v8649 = vsub.f32 %v8012, %v8557
      %v8650 = vsub.f32 %v8017, %v8560
      %v8651 = vsub.f32 %v8022, %v8563
      %v8652 = vsub.f32 %v8027, %v8566
      %v8653 = vsub.f32 %v8032, %v8569
      %v8654 = vsub.f32 %v8037, %v8572
      %v8655 = vsub.f32 %v8042, %v8575
      %v8656 = vsub.f32 %v8176, %v8578
      %v8657 = vsub.f32 %v8181, %v8581
      %v8658 = vsub.f32 %v8186, %v8584
      %v8659 = vsub.f32 %v8191, %v8587
      %v8660 = vsub.f32 %v8196, %v8590
      %v8661 = vsub.f32 %v8201, %v8593
      %v8662 = vsub.f32 %v8206, %v8596
      %v8663 = vsub.f32 %v8211, %v8599
      %v8664 = vsub.f32 %v8345, %v8602
      %v8665 = vsub.f32 %v8350, %v8605
      %v8666 = vsub.f32 %v8355, %v8608
      %v8667 = vsub.f32 %v8360, %v8611
      %v8668 = vsub.f32 %v8365, %v8614
      %v8669 = vsub.f32 %v8370, %v8617
      %v8670 = vsub.f32 %v8375, %v8620
      %v8671 = vsub.f32 %v8380, %v8623
      %v8672 = vsub.f32 %v8514, %v8626
      %v8673 = vsub.f32 %v8519, %v8629
      %v8674 = vsub.f32 %v8524, %v8632
      %v8675 = vsub.f32 %v8529, %v8635
      %v8676 = vsub.f32 %v8534, %v8638
      %v8677 = vsub.f32 %v8539, %v8641
      %v8678 = vsub.f32 %v8544, %v8644
      %v8679 = vsub.f32 %v8549, %v8647
      %v8680 = vmul.f32 %v8648, 1.442695
      %v8681 = vpow.pop %v8680
      %v8682 = vmul.f32 %v8649, 1.442695
      %v8683 = vpow.pop %v8682
      %v8684 = vmul.f32 %v8650, 1.442695
      %v8685 = vpow.pop %v8684
      %v8686 = vmul.f32 %v8651, 1.442695
      %v8687 = vpow.pop %v8686
      %v8688 = vmul.f32 %v8652, 1.442695
      %v8689 = vpow.pop %v8688
      %v8690 = vmul.f32 %v8653, 1.442695
      %v8691 = vpow.pop %v8690
      %v8692 = vmul.f32 %v8654, 1.442695
      %v8693 = vpow.pop %v8692
      %v8694 = vmul.f32 %v8655, 1.442695
      %v8695 = vpow.pop %v8694
      %v8696 = vmul.f32 %v8656, 1.442695
      %v8697 = vpow.pop %v8696
      %v8698 = vmul.f32 %v8657, 1.442695
      %v8699 = vpow.pop %v8698
      %v8700 = vmul.f32 %v8658, 1.442695
      %v8701 = vpow.pop %v8700
      %v8702 = vmul.f32 %v8659, 1.442695
      %v8703 = vpow.pop %v8702
      %v8704 = vmul.f32 %v8660, 1.442695
      %v8705 = vpow.pop %v8704
      %v8706 = vmul.f32 %v8661, 1.442695
      %v8707 = vpow.pop %v8706
      %v8708 = vmul.f32 %v8662, 1.442695
      %v8709 = vpow.pop %v8708
      %v8710 = vmul.f32 %v8663, 1.442695
      %v8711 = vpow.pop %v8710
      %v8712 = vmul.f32 %v8664, 1.442695
      %v8713 = vpow.pop %v8712
      %v8714 = vmul.f32 %v8665, 1.442695
      %v8715 = vpow.pop %v8714
      %v8716 = vmul.f32 %v8666, 1.442695
      %v8717 = vpow.pop %v8716
      %v8718 = vmul.f32 %v8667, 1.442695
      %v8719 = vpow.pop %v8718
      %v8720 = vmul.f32 %v8668, 1.442695
      %v8721 = vpow.pop %v8720
      %v8722 = vmul.f32 %v8669, 1.442695
      %v8723 = vpow.pop %v8722
      %v8724 = vmul.f32 %v8670, 1.442695
      %v8725 = vpow.pop %v8724
      %v8726 = vmul.f32 %v8671, 1.442695
      %v8727 = vpow.pop %v8726
      %v8728 = vmul.f32 %v8672, 1.442695
      %v8729 = vpow.pop %v8728
      %v8730 = vmul.f32 %v8673, 1.442695
      %v8731 = vpow.pop %v8730
      %v8732 = vmul.f32 %v8674, 1.442695
      %v8733 = vpow.pop %v8732
      %v8734 = vmul.f32 %v8675, 1.442695
      %v8735 = vpow.pop %v8734
      %v8736 = vmul.f32 %v8676, 1.442695
      %v8737 = vpow.pop %v8736
      %v8738 = vmul.f32 %v8677, 1.442695
      %v8739 = vpow.pop %v8738
      %v8740 = vmul.f32 %v8678, 1.442695
      %v8741 = vpow.pop %v8740
      %v8742 = vmul.f32 %v8679, 1.442695
      %v8743 = vpow.pop %v8742
      %v8744 = vsel %vm423, %v8681, 0.0
      %8745 = vadd.xlane.f32.xlu0 %v8744
      %v8746 = vpop.xlane.xlu0 %8745
      %v8747 = vsel %vm423, %v8683, 0.0
      %8748 = vadd.xlane.f32.xlu0 %v8747
      %v8749 = vpop.xlane.xlu0 %8748
      %v8750 = vsel %vm423, %v8685, 0.0
      %8751 = vadd.xlane.f32.xlu0 %v8750
      %v8752 = vpop.xlane.xlu0 %8751
      %v8753 = vsel %vm423, %v8687, 0.0
      %8754 = vadd.xlane.f32.xlu0 %v8753
      %v8755 = vpop.xlane.xlu0 %8754
      %v8756 = vsel %vm423, %v8689, 0.0
      %8757 = vadd.xlane.f32.xlu0 %v8756
      %v8758 = vpop.xlane.xlu0 %8757
      %v8759 = vsel %vm423, %v8691, 0.0
      %8760 = vadd.xlane.f32.xlu0 %v8759
      %v8761 = vpop.xlane.xlu0 %8760
      %v8762 = vsel %vm423, %v8693, 0.0
      %8763 = vadd.xlane.f32.xlu0 %v8762
      %v8764 = vpop.xlane.xlu0 %8763
      %v8765 = vsel %vm423, %v8695, 0.0
      %8766 = vadd.xlane.f32.xlu0 %v8765
      %v8767 = vpop.xlane.xlu0 %8766
      %v8768 = vsel %vm423, %v8697, 0.0
      %8769 = vadd.xlane.f32.xlu0 %v8768
      %v8770 = vpop.xlane.xlu0 %8769
      %v8771 = vsel %vm423, %v8699, 0.0
      %8772 = vadd.xlane.f32.xlu0 %v8771
      %v8773 = vpop.xlane.xlu0 %8772
      %v8774 = vsel %vm423, %v8701, 0.0
      %8775 = vadd.xlane.f32.xlu0 %v8774
      %v8776 = vpop.xlane.xlu0 %8775
      %v8777 = vsel %vm423, %v8703, 0.0
      %8778 = vadd.xlane.f32.xlu0 %v8777
      %v8779 = vpop.xlane.xlu0 %8778
      %v8780 = vsel %vm423, %v8705, 0.0
      %8781 = vadd.xlane.f32.xlu0 %v8780
      %v8782 = vpop.xlane.xlu0 %8781
      %v8783 = vsel %vm423, %v8707, 0.0
      %8784 = vadd.xlane.f32.xlu0 %v8783
      %v8785 = vpop.xlane.xlu0 %8784
      %v8786 = vsel %vm423, %v8709, 0.0
      %8787 = vadd.xlane.f32.xlu0 %v8786
      %v8788 = vpop.xlane.xlu0 %8787
      %v8789 = vsel %vm423, %v8711, 0.0
      %8790 = vadd.xlane.f32.xlu0 %v8789
      %v8791 = vpop.xlane.xlu0 %8790
      %v8792 = vsel %vm423, %v8713, 0.0
      %8793 = vadd.xlane.f32.xlu0 %v8792
      %v8794 = vpop.xlane.xlu0 %8793
      %v8795 = vsel %vm423, %v8715, 0.0
      %8796 = vadd.xlane.f32.xlu0 %v8795
      %v8797 = vpop.xlane.xlu0 %8796
      %v8798 = vsel %vm423, %v8717, 0.0
      %8799 = vadd.xlane.f32.xlu0 %v8798
      %v8800 = vpop.xlane.xlu0 %8799
      %v8801 = vsel %vm423, %v8719, 0.0
      %8802 = vadd.xlane.f32.xlu0 %v8801
      %v8803 = vpop.xlane.xlu0 %8802
      %v8804 = vsel %vm423, %v8721, 0.0
      %8805 = vadd.xlane.f32.xlu0 %v8804
      %v8806 = vpop.xlane.xlu0 %8805
      %v8807 = vsel %vm423, %v8723, 0.0
      %8808 = vadd.xlane.f32.xlu0 %v8807
      %v8809 = vpop.xlane.xlu0 %8808
      %v8810 = vsel %vm423, %v8725, 0.0
      %8811 = vadd.xlane.f32.xlu0 %v8810
      %v8812 = vpop.xlane.xlu0 %8811
      %v8813 = vsel %vm423, %v8727, 0.0
      %8814 = vadd.xlane.f32.xlu0 %v8813
      %v8815 = vpop.xlane.xlu0 %8814
      %v8816 = vsel %vm423, %v8729, 0.0
      %8817 = vadd.xlane.f32.xlu0 %v8816
      %v8818 = vpop.xlane.xlu0 %8817
      %v8819 = vsel %vm423, %v8731, 0.0
      %8820 = vadd.xlane.f32.xlu0 %v8819
      %v8821 = vpop.xlane.xlu0 %8820
      %v8822 = vsel %vm423, %v8733, 0.0
      %8823 = vadd.xlane.f32.xlu0 %v8822
      %v8824 = vpop.xlane.xlu0 %8823
      %v8825 = vsel %vm423, %v8735, 0.0
      %8826 = vadd.xlane.f32.xlu0 %v8825
      %v8827 = vpop.xlane.xlu0 %8826
      %v8828 = vsel %vm423, %v8737, 0.0
      %8829 = vadd.xlane.f32.xlu0 %v8828
      %v8830 = vpop.xlane.xlu0 %8829
      %v8831 = vsel %vm423, %v8739, 0.0
      %8832 = vadd.xlane.f32.xlu0 %v8831
      %v8833 = vpop.xlane.xlu0 %8832
      %v8834 = vsel %vm423, %v8741, 0.0
      %8835 = vadd.xlane.f32.xlu0 %v8834
      %v8836 = vpop.xlane.xlu0 %8835
      %v8837 = vsel %vm423, %v8743, 0.0
      %8838 = vadd.xlane.f32.xlu0 %v8837
      %v8839 = vpop.xlane.xlu0 %8838
      %v8840 = vrcp.pop %v8746
      %v8841 = vrcp.pop %v8749
      %v8842 = vrcp.pop %v8752
      %v8843 = vrcp.pop %v8755
      %v8844 = vrcp.pop %v8758
      %v8845 = vrcp.pop %v8761
      %v8846 = vrcp.pop %v8764
      %v8847 = vrcp.pop %v8767
      %v8848 = vrcp.pop %v8770
      %v8849 = vrcp.pop %v8773
      %v8850 = vrcp.pop %v8776
      %v8851 = vrcp.pop %v8779
      %v8852 = vrcp.pop %v8782
      %v8853 = vrcp.pop %v8785
      %v8854 = vrcp.pop %v8788
      %v8855 = vrcp.pop %v8791
      %v8856 = vrcp.pop %v8794
      %v8857 = vrcp.pop %v8797
      %v8858 = vrcp.pop %v8800
      %v8859 = vrcp.pop %v8803
      %v8860 = vrcp.pop %v8806
      %v8861 = vrcp.pop %v8809
      %v8862 = vrcp.pop %v8812
      %v8863 = vrcp.pop %v8815
      %v8864 = vrcp.pop %v8818
      %v8865 = vrcp.pop %v8821
      %v8866 = vrcp.pop %v8824
      %v8867 = vrcp.pop %v8827
      %v8868 = vrcp.pop %v8830
      %v8869 = vrcp.pop %v8833
      %v8870 = vrcp.pop %v8836
      %v8871 = vrcp.pop %v8839
      %v8872 = vmul.f32 %v8681, %v8840
      %v8873 = vmul.f32 %v8683, %v8841
      %v8874 = vmul.f32 %v8685, %v8842
      %v8875 = vmul.f32 %v8687, %v8843
      %v8876 = vmul.f32 %v8689, %v8844
      %v8877 = vmul.f32 %v8691, %v8845
      %v8878 = vmul.f32 %v8693, %v8846
      %v8879 = vmul.f32 %v8695, %v8847
      %v8880 = vmul.f32 %v8697, %v8848
      %v8881 = vmul.f32 %v8699, %v8849
      %v8882 = vmul.f32 %v8701, %v8850
      %v8883 = vmul.f32 %v8703, %v8851
      %v8884 = vmul.f32 %v8705, %v8852
      %v8885 = vmul.f32 %v8707, %v8853
      %v8886 = vmul.f32 %v8709, %v8854
      %v8887 = vmul.f32 %v8711, %v8855
      %v8888 = vmul.f32 %v8713, %v8856
      %v8889 = vmul.f32 %v8715, %v8857
      %v8890 = vmul.f32 %v8717, %v8858
      %v8891 = vmul.f32 %v8719, %v8859
      %v8892 = vmul.f32 %v8721, %v8860
      %v8893 = vmul.f32 %v8723, %v8861
      %v8894 = vmul.f32 %v8725, %v8862
      %v8895 = vmul.f32 %v8727, %v8863
      %v8896 = vmul.f32 %v8729, %v8864
      %v8897 = vmul.f32 %v8731, %v8865
      %v8898 = vmul.f32 %v8733, %v8866
      %v8899 = vmul.f32 %v8735, %v8867
      %v8900 = vmul.f32 %v8737, %v8868
      %v8901 = vmul.f32 %v8739, %v8869
      %v8902 = vmul.f32 %v8741, %v8870
      %v8903 = vmul.f32 %v8743, %v8871
      %v8905 = vsel %vm423, %v8872, 0
      %v8908 = vsel %vm423, %v8873, 0
      %v8911 = vsel %vm423, %v8874, 0
      %v8914 = vsel %vm423, %v8875, 0
      %v8917 = vsel %vm423, %v8876, 0
      %v8920 = vsel %vm423, %v8877, 0
      %v8923 = vsel %vm423, %v8878, 0
      %v8926 = vsel %vm423, %v8879, 0
      %8928 = vmatprep.subr.mxu0 0.0
      %8929 = vmatpush1.msra.mxu0 %v1959
      %8930 = vmatprep.subr.mxu0 0.0
      %8931 = vmatpush1.msra.mxu0 %v1964
      %8932 = vmatprep.subr.mxu0 0.0
      %8933 = vmatpush1.msra.mxu0 %v1969
      %8934 = vmatprep.subr.mxu0 0.0
      %8935 = vmatpush1.msra.mxu0 %v1974
      %8936 = vmatprep.subr.mxu0 0.0
      %8937 = vmatpush1.msra.mxu0 %v1979
      %8938 = vmatprep.subr.mxu0 0.0
      %8939 = vmatpush1.msra.mxu0 %v1984
      %8940 = vmatprep.subr.mxu0 0.0
      %8941 = vmatpush1.msra.mxu0 %v1989
      %8942 = vmatprep.subr.mxu0 0.0
      %8943 = vmatpush1.msra.mxu0 %v1994
      %8944 = vmatprep.subr.mxu0 0.0
      %8945 = vmatpush1.msra.mxu0 0.0
      %8946 = vmatprep.subr.mxu0 0.0
      %8947 = vmatpush1.msra.mxu0 0.0
      %8948 = vmatprep.subr.mxu0 0.0
      %8949 = vmatpush1.msra.mxu0 0.0
      %8950 = vmatprep.subr.mxu0 0.0
      %8951 = vmatpush1.msra.mxu0 0.0
      %8952 = vmatprep.subr.mxu0 0.0
      %8953 = vmatpush1.msra.mxu0 0.0
      %8954 = vmatprep.subr.mxu0 0.0
      %8955 = vmatpush1.msra.mxu0 0.0
      %8956 = vmatprep.subr.mxu0 0.0
      %8957 = vmatpush1.msra.mxu0 0.0
      %8958 = vmatprep.subr.mxu0 0.0
      %8959 = vmatpush1.msra.mxu0 0.0
      %8960 = vmatprep.subr.mxu0 0.0
      %8961 = vmatpush1.msra.mxu0 0.0
      %8962 = vmatprep.subr.mxu0 0.0
      %8963 = vmatpush1.msra.mxu0 0.0
      %8964 = vmatprep.subr.mxu0 0.0
      %8965 = vmatpush1.msra.mxu0 0.0
      %8966 = vmatprep.subr.mxu0 0.0
      %8967 = vmatpush1.msra.mxu0 0.0
      %8968 = vmatprep.subr.mxu0 0.0
      %8969 = vmatpush1.msra.mxu0 0.0
      %8970 = vmatprep.subr.mxu0 0.0
      %8971 = vmatpush1.msra.mxu0 0.0
      %8972 = vmatprep.subr.mxu0 0.0
      %8973 = vmatpush1.msra.mxu0 0.0
      %8974 = vmatprep.subr.mxu0 0.0
      %8975 = vmatpush1.msra.mxu0 0.0
      %8976 = vmatprep.subr.mxu0 0.0
      %8977 = vmatpush1.msra.mxu0 0.0
      %8978 = vmatprep.subr.mxu0 0.0
      %8979 = vmatpush1.msra.mxu0 0.0
      %8980 = vmatprep.subr.mxu0 0.0
      %8981 = vmatpush1.msra.mxu0 0.0
      %8982 = vmatprep.subr.mxu0 0.0
      %8983 = vmatpush1.msra.mxu0 0.0
      %8984 = vmatprep.subr.mxu0 0.0
      %8985 = vmatpush1.msra.mxu0 0.0
      %8986 = vmatprep.subr.mxu0 0.0
      %8987 = vmatpush1.msra.mxu0 0.0
      %8988 = vmatprep.subr.mxu0 0.0
      %8989 = vmatpush1.msra.mxu0 0.0
      %8990 = vmatprep.subr.mxu0 0.0
      %8991 = vmatpush1.msra.mxu0 0.0
      %8992 = vmatprep.mubr.f32.mxu0 0.0
      %8993 = vmatmul.mubr.f32.gmra.mrb[0].mxu0 %v8905
      %v8994 = vpop.f32.mrb[0].mxu0
      %v8995 = vadd.f32 0.0, %v8994
      %v8996 = vpop.f32.mrb[0].mxu0
      %8997 = vmatprep.mubr.f32.mxu0 0.0
      %8998 = vmatmul.mubr.f32.gmra.mrb[0].mxu0 %v8908
      %v8999 = vpop.f32.mrb[0].mxu0
      %v9000 = vadd.f32 0.0, %v8999
      %v9001 = vpop.f32.mrb[0].mxu0
      %9002 = vmatprep.mubr.f32.mxu0 0.0
      %9003 = vmatmul.mubr.f32.gmra.mrb[0].mxu0 %v8911
      %v9004 = vpop.f32.mrb[0].mxu0
      %v9005 = vadd.f32 0.0, %v9004
      %v9006 = vpop.f32.mrb[0].mxu0
      %9007 = vmatprep.mubr.f32.mxu0 0.0
      %9008 = vmatmul.mubr.f32.gmra.mrb[0].mxu0 %v8914
      %v9009 = vpop.f32.mrb[0].mxu0
      %v9010 = vadd.f32 0.0, %v9009
      %v9011 = vpop.f32.mrb[0].mxu0
      %9012 = vmatprep.mubr.f32.mxu0 0.0
      %9013 = vmatmul.mubr.f32.gmra.mrb[0].mxu0 %v8917
      %v9014 = vpop.f32.mrb[0].mxu0
      %v9015 = vadd.f32 0.0, %v9014
      %v9016 = vpop.f32.mrb[0].mxu0
      %9017 = vmatprep.mubr.f32.mxu0 0.0
      %9018 = vmatmul.mubr.f32.gmra.mrb[0].mxu0 %v8920
      %v9019 = vpop.f32.mrb[0].mxu0
      %v9020 = vadd.f32 0.0, %v9019
      %v9021 = vpop.f32.mrb[0].mxu0
      %9022 = vmatprep.mubr.f32.mxu0 0.0
      %9023 = vmatmul.mubr.f32.gmra.mrb[0].mxu0 %v8923
      %v9024 = vpop.f32.mrb[0].mxu0
      %v9025 = vadd.f32 0.0, %v9024
      %v9026 = vpop.f32.mrb[0].mxu0
      %9027 = vmatprep.mubr.f32.mxu0 0.0
      %9028 = vmatmul.mubr.f32.gmra.mrb[0].mxu0 %v8926
      %v9029 = vpop.f32.mrb[0].mxu0
      %v9030 = vadd.f32 0.0, %v9029
      %v9031 = vpop.f32.mrb[0].mxu0
      %9032 = vdwg.mxu0
      %v9034 = vsel %vm423, %v8880, 0
      %v9037 = vsel %vm423, %v8881, 0
      %v9040 = vsel %vm423, %v8882, 0
      %v9043 = vsel %vm423, %v8883, 0
      %v9046 = vsel %vm423, %v8884, 0
      %v9049 = vsel %vm423, %v8885, 0
      %v9052 = vsel %vm423, %v8886, 0
      %v9055 = vsel %vm423, %v8887, 0
      %9057 = vmatprep.subr.mxu0 0.0
      %9058 = vmatpush1.msra.mxu0 %v1999
      %9059 = vmatprep.subr.mxu0 0.0
      %9060 = vmatpush1.msra.mxu0 %v2004
      %9061 = vmatprep.subr.mxu0 0.0
      %9062 = vmatpush1.msra.mxu0 %v2009
      %9063 = vmatprep.subr.mxu0 0.0
      %9064 = vmatpush1.msra.mxu0 %v2014
      %9065 = vmatprep.subr.mxu0 0.0
      %9066 = vmatpush1.msra.mxu0 %v2019
      %9067 = vmatprep.subr.mxu0 0.0
      %9068 = vmatpush1.msra.mxu0 %v2024
      %9069 = vmatprep.subr.mxu0 0.0
      %9070 = vmatpush1.msra.mxu0 %v2029
      %9071 = vmatprep.subr.mxu0 0.0
      %9072 = vmatpush1.msra.mxu0 %v2034
      %9073 = vmatprep.subr.mxu0 0.0
      %9074 = vmatpush1.msra.mxu0 0.0
      %9075 = vmatprep.subr.mxu0 0.0
      %9076 = vmatpush1.msra.mxu0 0.0
      %9077 = vmatprep.subr.mxu0 0.0
      %9078 = vmatpush1.msra.mxu0 0.0
      %9079 = vmatprep.subr.mxu0 0.0
      %9080 = vmatpush1.msra.mxu0 0.0
      %9081 = vmatprep.subr.mxu0 0.0
      %9082 = vmatpush1.msra.mxu0 0.0
      %9083 = vmatprep.subr.mxu0 0.0
      %9084 = vmatpush1.msra.mxu0 0.0
      %9085 = vmatprep.subr.mxu0 0.0
      %9086 = vmatpush1.msra.mxu0 0.0
      %9087 = vmatprep.subr.mxu0 0.0
      %9088 = vmatpush1.msra.mxu0 0.0
      %9089 = vmatprep.subr.mxu0 0.0
      %9090 = vmatpush1.msra.mxu0 0.0
      %9091 = vmatprep.subr.mxu0 0.0
      %9092 = vmatpush1.msra.mxu0 0.0
      %9093 = vmatprep.subr.mxu0 0.0
      %9094 = vmatpush1.msra.mxu0 0.0
      %9095 = vmatprep.subr.mxu0 0.0
      %9096 = vmatpush1.msra.mxu0 0.0
      %9097 = vmatprep.subr.mxu0 0.0
      %9098 = vmatpush1.msra.mxu0 0.0
      %9099 = vmatprep.subr.mxu0 0.0
      %9100 = vmatpush1.msra.mxu0 0.0
      %9101 = vmatprep.subr.mxu0 0.0
      %9102 = vmatpush1.msra.mxu0 0.0
      %9103 = vmatprep.subr.mxu0 0.0
      %9104 = vmatpush1.msra.mxu0 0.0
      %9105 = vmatprep.subr.mxu0 0.0
      %9106 = vmatpush1.msra.mxu0 0.0
      %9107 = vmatprep.subr.mxu0 0.0
      %9108 = vmatpush1.msra.mxu0 0.0
      %9109 = vmatprep.subr.mxu0 0.0
      %9110 = vmatpush1.msra.mxu0 0.0
      %9111 = vmatprep.subr.mxu0 0.0
      %9112 = vmatpush1.msra.mxu0 0.0
      %9113 = vmatprep.subr.mxu0 0.0
      %9114 = vmatpush1.msra.mxu0 0.0
      %9115 = vmatprep.subr.mxu0 0.0
      %9116 = vmatpush1.msra.mxu0 0.0
      %9117 = vmatprep.subr.mxu0 0.0
      %9118 = vmatpush1.msra.mxu0 0.0
      %9119 = vmatprep.subr.mxu0 0.0
      %9120 = vmatpush1.msra.mxu0 0.0
      %9121 = vmatprep.mubr.f32.mxu0 0.0
      %9122 = vmatmul.mubr.f32.gmra.mrb[0].mxu0 %v9034
      %v9123 = vpop.f32.mrb[0].mxu0
      %v9124 = vadd.f32 0.0, %v9123
      %v9125 = vpop.f32.mrb[0].mxu0
      %9126 = vmatprep.mubr.f32.mxu0 0.0
      %9127 = vmatmul.mubr.f32.gmra.mrb[0].mxu0 %v9037
      %v9128 = vpop.f32.mrb[0].mxu0
      %v9129 = vadd.f32 0.0, %v9128
      %v9130 = vpop.f32.mrb[0].mxu0
      %9131 = vmatprep.mubr.f32.mxu0 0.0
      %9132 = vmatmul.mubr.f32.gmra.mrb[0].mxu0 %v9040
      %v9133 = vpop.f32.mrb[0].mxu0
      %v9134 = vadd.f32 0.0, %v9133
      %v9135 = vpop.f32.mrb[0].mxu0
      %9136 = vmatprep.mubr.f32.mxu0 0.0
      %9137 = vmatmul.mubr.f32.gmra.mrb[0].mxu0 %v9043
      %v9138 = vpop.f32.mrb[0].mxu0
      %v9139 = vadd.f32 0.0, %v9138
      %v9140 = vpop.f32.mrb[0].mxu0
      %9141 = vmatprep.mubr.f32.mxu0 0.0
      %9142 = vmatmul.mubr.f32.gmra.mrb[0].mxu0 %v9046
      %v9143 = vpop.f32.mrb[0].mxu0
      %v9144 = vadd.f32 0.0, %v9143
      %v9145 = vpop.f32.mrb[0].mxu0
      %9146 = vmatprep.mubr.f32.mxu0 0.0
      %9147 = vmatmul.mubr.f32.gmra.mrb[0].mxu0 %v9049
      %v9148 = vpop.f32.mrb[0].mxu0
      %v9149 = vadd.f32 0.0, %v9148
      %v9150 = vpop.f32.mrb[0].mxu0
      %9151 = vmatprep.mubr.f32.mxu0 0.0
      %9152 = vmatmul.mubr.f32.gmra.mrb[0].mxu0 %v9052
      %v9153 = vpop.f32.mrb[0].mxu0
      %v9154 = vadd.f32 0.0, %v9153
      %v9155 = vpop.f32.mrb[0].mxu0
      %9156 = vmatprep.mubr.f32.mxu0 0.0
      %9157 = vmatmul.mubr.f32.gmra.mrb[0].mxu0 %v9055
      %v9158 = vpop.f32.mrb[0].mxu0
      %v9159 = vadd.f32 0.0, %v9158
      %v9160 = vpop.f32.mrb[0].mxu0
      %9161 = vdwg.mxu0
      %v9163 = vsel %vm423, %v8888, 0
      %v9166 = vsel %vm423, %v8889, 0
      %v9169 = vsel %vm423, %v8890, 0
      %v9172 = vsel %vm423, %v8891, 0
      %v9175 = vsel %vm423, %v8892, 0
      %v9178 = vsel %vm423, %v8893, 0
      %v9181 = vsel %vm423, %v8894, 0
      %v9184 = vsel %vm423, %v8895, 0
      %9186 = vmatprep.subr.mxu0 0.0
      %9187 = vmatpush1.msra.mxu0 %v2039
      %9188 = vmatprep.subr.mxu0 0.0
      %9189 = vmatpush1.msra.mxu0 %v2044
      %9190 = vmatprep.subr.mxu0 0.0
      %9191 = vmatpush1.msra.mxu0 %v2049
      %9192 = vmatprep.subr.mxu0 0.0
      %9193 = vmatpush1.msra.mxu0 %v2054
      %9194 = vmatprep.subr.mxu0 0.0
      %9195 = vmatpush1.msra.mxu0 %v2059
      %9196 = vmatprep.subr.mxu0 0.0
      %9197 = vmatpush1.msra.mxu0 %v2064
      %9198 = vmatprep.subr.mxu0 0.0
      %9199 = vmatpush1.msra.mxu0 %v2069
      %9200 = vmatprep.subr.mxu0 0.0
      %9201 = vmatpush1.msra.mxu0 %v2074
      %9202 = vmatprep.subr.mxu0 0.0
      %9203 = vmatpush1.msra.mxu0 0.0
      %9204 = vmatprep.subr.mxu0 0.0
      %9205 = vmatpush1.msra.mxu0 0.0
      %9206 = vmatprep.subr.mxu0 0.0
      %9207 = vmatpush1.msra.mxu0 0.0
      %9208 = vmatprep.subr.mxu0 0.0
      %9209 = vmatpush1.msra.mxu0 0.0
      %9210 = vmatprep.subr.mxu0 0.0
      %9211 = vmatpush1.msra.mxu0 0.0
      %9212 = vmatprep.subr.mxu0 0.0
      %9213 = vmatpush1.msra.mxu0 0.0
      %9214 = vmatprep.subr.mxu0 0.0
      %9215 = vmatpush1.msra.mxu0 0.0
      %9216 = vmatprep.subr.mxu0 0.0
      %9217 = vmatpush1.msra.mxu0 0.0
      %9218 = vmatprep.subr.mxu0 0.0
      %9219 = vmatpush1.msra.mxu0 0.0
      %9220 = vmatprep.subr.mxu0 0.0
      %9221 = vmatpush1.msra.mxu0 0.0
      %9222 = vmatprep.subr.mxu0 0.0
      %9223 = vmatpush1.msra.mxu0 0.0
      %9224 = vmatprep.subr.mxu0 0.0
      %9225 = vmatpush1.msra.mxu0 0.0
      %9226 = vmatprep.subr.mxu0 0.0
      %9227 = vmatpush1.msra.mxu0 0.0
      %9228 = vmatprep.subr.mxu0 0.0
      %9229 = vmatpush1.msra.mxu0 0.0
      %9230 = vmatprep.subr.mxu0 0.0
      %9231 = vmatpush1.msra.mxu0 0.0
      %9232 = vmatprep.subr.mxu0 0.0
      %9233 = vmatpush1.msra.mxu0 0.0
      %9234 = vmatprep.subr.mxu0 0.0
      %9235 = vmatpush1.msra.mxu0 0.0
      %9236 = vmatprep.subr.mxu0 0.0
      %9237 = vmatpush1.msra.mxu0 0.0
      %9238 = vmatprep.subr.mxu0 0.0
      %9239 = vmatpush1.msra.mxu0 0.0
      %9240 = vmatprep.subr.mxu0 0.0
      %9241 = vmatpush1.msra.mxu0 0.0
      %9242 = vmatprep.subr.mxu0 0.0
      %9243 = vmatpush1.msra.mxu0 0.0
      %9244 = vmatprep.subr.mxu0 0.0
      %9245 = vmatpush1.msra.mxu0 0.0
      %9246 = vmatprep.subr.mxu0 0.0
      %9247 = vmatpush1.msra.mxu0 0.0
      %9248 = vmatprep.subr.mxu0 0.0
      %9249 = vmatpush1.msra.mxu0 0.0
      %9250 = vmatprep.mubr.f32.mxu0 0.0
      %9251 = vmatmul.mubr.f32.gmra.mrb[0].mxu0 %v9163
      %v9252 = vpop.f32.mrb[0].mxu0
      %v9253 = vadd.f32 0.0, %v9252
      %v9254 = vpop.f32.mrb[0].mxu0
      %9255 = vmatprep.mubr.f32.mxu0 0.0
      %9256 = vmatmul.mubr.f32.gmra.mrb[0].mxu0 %v9166
      %v9257 = vpop.f32.mrb[0].mxu0
      %v9258 = vadd.f32 0.0, %v9257
      %v9259 = vpop.f32.mrb[0].mxu0
      %9260 = vmatprep.mubr.f32.mxu0 0.0
      %9261 = vmatmul.mubr.f32.gmra.mrb[0].mxu0 %v9169
      %v9262 = vpop.f32.mrb[0].mxu0
      %v9263 = vadd.f32 0.0, %v9262
      %v9264 = vpop.f32.mrb[0].mxu0
      %9265 = vmatprep.mubr.f32.mxu0 0.0
      %9266 = vmatmul.mubr.f32.gmra.mrb[0].mxu0 %v9172
      %v9267 = vpop.f32.mrb[0].mxu0
      %v9268 = vadd.f32 0.0, %v9267
      %v9269 = vpop.f32.mrb[0].mxu0
      %9270 = vmatprep.mubr.f32.mxu0 0.0
      %9271 = vmatmul.mubr.f32.gmra.mrb[0].mxu0 %v9175
      %v9272 = vpop.f32.mrb[0].mxu0
      %v9273 = vadd.f32 0.0, %v9272
      %v9274 = vpop.f32.mrb[0].mxu0
      %9275 = vmatprep.mubr.f32.mxu0 0.0
      %9276 = vmatmul.mubr.f32.gmra.mrb[0].mxu0 %v9178
      %v9277 = vpop.f32.mrb[0].mxu0
      %v9278 = vadd.f32 0.0, %v9277
      %v9279 = vpop.f32.mrb[0].mxu0
      %9280 = vmatprep.mubr.f32.mxu0 0.0
      %9281 = vmatmul.mubr.f32.gmra.mrb[0].mxu0 %v9181
      %v9282 = vpop.f32.mrb[0].mxu0
      %v9283 = vadd.f32 0.0, %v9282
      %v9284 = vpop.f32.mrb[0].mxu0
      %9285 = vmatprep.mubr.f32.mxu0 0.0
      %9286 = vmatmul.mubr.f32.gmra.mrb[0].mxu0 %v9184
      %v9287 = vpop.f32.mrb[0].mxu0
      %v9288 = vadd.f32 0.0, %v9287
      %v9289 = vpop.f32.mrb[0].mxu0
      %9290 = vdwg.mxu0
      %v9292 = vsel %vm423, %v8896, 0
      %v9295 = vsel %vm423, %v8897, 0
      %v9298 = vsel %vm423, %v8898, 0
      %v9301 = vsel %vm423, %v8899, 0
      %v9304 = vsel %vm423, %v8900, 0
      %v9307 = vsel %vm423, %v8901, 0
      %v9310 = vsel %vm423, %v8902, 0
      %v9313 = vsel %vm423, %v8903, 0
      %9315 = vmatprep.subr.mxu0 0.0
      %9316 = vmatpush1.msra.mxu0 %v2079
      %9317 = vmatprep.subr.mxu0 0.0
      %9318 = vmatpush1.msra.mxu0 %v2084
      %9319 = vmatprep.subr.mxu0 0.0
      %9320 = vmatpush1.msra.mxu0 %v2089
      %9321 = vmatprep.subr.mxu0 0.0
      %9322 = vmatpush1.msra.mxu0 %v2094
      %9323 = vmatprep.subr.mxu0 0.0
      %9324 = vmatpush1.msra.mxu0 %v2099
      %9325 = vmatprep.subr.mxu0 0.0
      %9326 = vmatpush1.msra.mxu0 %v2104
      %9327 = vmatprep.subr.mxu0 0.0
      %9328 = vmatpush1.msra.mxu0 %v2109
      %9329 = vmatprep.subr.mxu0 0.0
      %9330 = vmatpush1.msra.mxu0 %v2114
      %9331 = vmatprep.subr.mxu0 0.0
      %9332 = vmatpush1.msra.mxu0 0.0
      %9333 = vmatprep.subr.mxu0 0.0
      %9334 = vmatpush1.msra.mxu0 0.0
      %9335 = vmatprep.subr.mxu0 0.0
      %9336 = vmatpush1.msra.mxu0 0.0
      %9337 = vmatprep.subr.mxu0 0.0
      %9338 = vmatpush1.msra.mxu0 0.0
      %9339 = vmatprep.subr.mxu0 0.0
      %9340 = vmatpush1.msra.mxu0 0.0
      %9341 = vmatprep.subr.mxu0 0.0
      %9342 = vmatpush1.msra.mxu0 0.0
      %9343 = vmatprep.subr.mxu0 0.0
      %9344 = vmatpush1.msra.mxu0 0.0
      %9345 = vmatprep.subr.mxu0 0.0
      %9346 = vmatpush1.msra.mxu0 0.0
      %9347 = vmatprep.subr.mxu0 0.0
      %9348 = vmatpush1.msra.mxu0 0.0
      %9349 = vmatprep.subr.mxu0 0.0
      %9350 = vmatpush1.msra.mxu0 0.0
      %9351 = vmatprep.subr.mxu0 0.0
      %9352 = vmatpush1.msra.mxu0 0.0
      %9353 = vmatprep.subr.mxu0 0.0
      %9354 = vmatpush1.msra.mxu0 0.0
      %9355 = vmatprep.subr.mxu0 0.0
      %9356 = vmatpush1.msra.mxu0 0.0
      %9357 = vmatprep.subr.mxu0 0.0
      %9358 = vmatpush1.msra.mxu0 0.0
      %9359 = vmatprep.subr.mxu0 0.0
      %9360 = vmatpush1.msra.mxu0 0.0
      %9361 = vmatprep.subr.mxu0 0.0
      %9362 = vmatpush1.msra.mxu0 0.0
      %9363 = vmatprep.subr.mxu0 0.0
      %9364 = vmatpush1.msra.mxu0 0.0
      %9365 = vmatprep.subr.mxu0 0.0
      %9366 = vmatpush1.msra.mxu0 0.0
      %9367 = vmatprep.subr.mxu0 0.0
      %9368 = vmatpush1.msra.mxu0 0.0
      %9369 = vmatprep.subr.mxu0 0.0
      %9370 = vmatpush1.msra.mxu0 0.0
      %9371 = vmatprep.subr.mxu0 0.0
      %9372 = vmatpush1.msra.mxu0 0.0
      %9373 = vmatprep.subr.mxu0 0.0
      %9374 = vmatpush1.msra.mxu0 0.0
      %9375 = vmatprep.subr.mxu0 0.0
      %9376 = vmatpush1.msra.mxu0 0.0
      %9377 = vmatprep.subr.mxu0 0.0
      %9378 = vmatpush1.msra.mxu0 0.0
      %9379 = vmatprep.mubr.f32.mxu0 0.0
      %9380 = vmatmul.mubr.f32.gmra.mrb[0].mxu0 %v9292
      %v9381 = vpop.f32.mrb[0].mxu0
      %v9382 = vadd.f32 0.0, %v9381
      %v9383 = vpop.f32.mrb[0].mxu0
      %9384 = vmatprep.mubr.f32.mxu0 0.0
      %9385 = vmatmul.mubr.f32.gmra.mrb[0].mxu0 %v9295
      %v9386 = vpop.f32.mrb[0].mxu0
      %v9387 = vadd.f32 0.0, %v9386
      %v9388 = vpop.f32.mrb[0].mxu0
      %9389 = vmatprep.mubr.f32.mxu0 0.0
      %9390 = vmatmul.mubr.f32.gmra.mrb[0].mxu0 %v9298
      %v9391 = vpop.f32.mrb[0].mxu0
      %v9392 = vadd.f32 0.0, %v9391
      %v9393 = vpop.f32.mrb[0].mxu0
      %9394 = vmatprep.mubr.f32.mxu0 0.0
      %9395 = vmatmul.mubr.f32.gmra.mrb[0].mxu0 %v9301
      %v9396 = vpop.f32.mrb[0].mxu0
      %v9397 = vadd.f32 0.0, %v9396
      %v9398 = vpop.f32.mrb[0].mxu0
      %9399 = vmatprep.mubr.f32.mxu0 0.0
      %9400 = vmatmul.mubr.f32.gmra.mrb[0].mxu0 %v9304
      %v9401 = vpop.f32.mrb[0].mxu0
      %v9402 = vadd.f32 0.0, %v9401
      %v9403 = vpop.f32.mrb[0].mxu0
      %9404 = vmatprep.mubr.f32.mxu0 0.0
      %9405 = vmatmul.mubr.f32.gmra.mrb[0].mxu0 %v9307
      %v9406 = vpop.f32.mrb[0].mxu0
      %v9407 = vadd.f32 0.0, %v9406
      %v9408 = vpop.f32.mrb[0].mxu0
      %9409 = vmatprep.mubr.f32.mxu0 0.0
      %9410 = vmatmul.mubr.f32.gmra.mrb[0].mxu0 %v9310
      %v9411 = vpop.f32.mrb[0].mxu0
      %v9412 = vadd.f32 0.0, %v9411
      %v9413 = vpop.f32.mrb[0].mxu0
      %9414 = vmatprep.mubr.f32.mxu0 0.0
      %9415 = vmatmul.mubr.f32.gmra.mrb[0].mxu0 %v9313
      %v9416 = vpop.f32.mrb[0].mxu0
      %v9417 = vadd.f32 0.0, %v9416
      %v9418 = vpop.f32.mrb[0].mxu0
      %9419 = vdwg.mxu0
      %v9420 = vadd.f32 %v6578, %v8995
      %v9421 = vadd.f32 %v6583, %v9000
      %v9422 = vadd.f32 %v6588, %v9005
      %v9423 = vadd.f32 %v6593, %v9010
      %v9424 = vadd.f32 %v6598, %v9015
      %v9425 = vadd.f32 %v6603, %v9020
      %v9426 = vadd.f32 %v6608, %v9025
      %v9427 = vadd.f32 %v6613, %v9030
      %v9428 = vadd.f32 %v6707, %v9124
      %v9429 = vadd.f32 %v6712, %v9129
      %v9430 = vadd.f32 %v6717, %v9134
      %v9431 = vadd.f32 %v6722, %v9139
      %v9432 = vadd.f32 %v6727, %v9144
      %v9433 = vadd.f32 %v6732, %v9149
      %v9434 = vadd.f32 %v6737, %v9154
      %v9435 = vadd.f32 %v6742, %v9159
      %v9436 = vadd.f32 %v6836, %v9253
      %v9437 = vadd.f32 %v6841, %v9258
      %v9438 = vadd.f32 %v6846, %v9263
      %v9439 = vadd.f32 %v6851, %v9268
      %v9440 = vadd.f32 %v6856, %v9273
      %v9441 = vadd.f32 %v6861, %v9278
      %v9442 = vadd.f32 %v6866, %v9283
      %v9443 = vadd.f32 %v6871, %v9288
      %v9444 = vadd.f32 %v6965, %v9382
      %v9445 = vadd.f32 %v6970, %v9387
      %v9446 = vadd.f32 %v6975, %v9392
      %v9447 = vadd.f32 %v6980, %v9397
      %v9448 = vadd.f32 %v6985, %v9402
      %v9449 = vadd.f32 %v6990, %v9407
      %v9450 = vadd.f32 %v6995, %v9412
      %v9451 = vadd.f32 %v7000, %v9417
      %9452 = vmatprep.subr.mxu0 0.0
      %9453 = vmatpush1.msra.mxu0 %v3339
      %9454 = vmatprep.subr.mxu0 0.0
      %9455 = vmatpush1.msra.mxu0 %v3344
      %9456 = vmatprep.subr.mxu0 0.0
      %9457 = vmatpush1.msra.mxu0 %v3349
      %9458 = vmatprep.subr.mxu0 0.0
      %9459 = vmatpush1.msra.mxu0 %v3354
      %9460 = vmatprep.subr.mxu0 0.0
      %9461 = vmatpush1.msra.mxu0 %v3359
      %9462 = vmatprep.subr.mxu0 0.0
      %9463 = vmatpush1.msra.mxu0 %v3364
      %9464 = vmatprep.subr.mxu0 0.0
      %9465 = vmatpush1.msra.mxu0 %v3369
      %9466 = vmatprep.subr.mxu0 0.0
      %9467 = vmatpush1.msra.mxu0 %v3374
      %9468 = vmatprep.subr.mxu0 0.0
      %9469 = vmatpush1.msra.mxu0 0.0
      %9470 = vmatprep.subr.mxu0 0.0
      %9471 = vmatpush1.msra.mxu0 0.0
      %9472 = vmatprep.subr.mxu0 0.0
      %9473 = vmatpush1.msra.mxu0 0.0
      %9474 = vmatprep.subr.mxu0 0.0
      %9475 = vmatpush1.msra.mxu0 0.0
      %9476 = vmatprep.subr.mxu0 0.0
      %9477 = vmatpush1.msra.mxu0 0.0
      %9478 = vmatprep.subr.mxu0 0.0
      %9479 = vmatpush1.msra.mxu0 0.0
      %9480 = vmatprep.subr.mxu0 0.0
      %9481 = vmatpush1.msra.mxu0 0.0
      %9482 = vmatprep.subr.mxu0 0.0
      %9483 = vmatpush1.msra.mxu0 0.0
      %9484 = vmatprep.subr.mxu0 0.0
      %9485 = vmatpush1.msra.mxu0 0.0
      %9486 = vmatprep.subr.mxu0 0.0
      %9487 = vmatpush1.msra.mxu0 0.0
      %9488 = vmatprep.subr.mxu0 0.0
      %9489 = vmatpush1.msra.mxu0 0.0
      %9490 = vmatprep.subr.mxu0 0.0
      %9491 = vmatpush1.msra.mxu0 0.0
      %9492 = vmatprep.subr.mxu0 0.0
      %9493 = vmatpush1.msra.mxu0 0.0
      %9494 = vmatprep.subr.mxu0 0.0
      %9495 = vmatpush1.msra.mxu0 0.0
      %9496 = vmatprep.subr.mxu0 0.0
      %9497 = vmatpush1.msra.mxu0 0.0
      %9498 = vmatprep.subr.mxu0 0.0
      %9499 = vmatpush1.msra.mxu0 0.0
      %9500 = vmatprep.subr.mxu0 0.0
      %9501 = vmatpush1.msra.mxu0 0.0
      %9502 = vmatprep.subr.mxu0 0.0
      %9503 = vmatpush1.msra.mxu0 0.0
      %9504 = vmatprep.subr.mxu0 0.0
      %9505 = vmatpush1.msra.mxu0 0.0
      %9506 = vmatprep.subr.mxu0 0.0
      %9507 = vmatpush1.msra.mxu0 0.0
      %9508 = vmatprep.subr.mxu0 0.0
      %9509 = vmatpush1.msra.mxu0 0.0
      %9510 = vmatprep.subr.mxu0 0.0
      %9511 = vmatpush1.msra.mxu0 0.0
      %9512 = vmatprep.subr.mxu0 0.0
      %9513 = vmatpush1.msra.mxu0 0.0
      %9514 = vmatprep.subr.mxu0 0.0
      %9515 = vmatpush1.msra.mxu0 0.0
      %9516 = vmatprep.mubr.f32.mxu0 0.0
      %9517 = vmatmul.mubr.f32.gmra.mrb[0].mxu0 %v8905
      %v9518 = vpop.f32.mrb[0].mxu0
      %v9519 = vadd.f32 0.0, %v9518
      %v9520 = vpop.f32.mrb[0].mxu0
      %9521 = vmatprep.mubr.f32.mxu0 0.0
      %9522 = vmatmul.mubr.f32.gmra.mrb[0].mxu0 %v8908
      %v9523 = vpop.f32.mrb[0].mxu0
      %v9524 = vadd.f32 0.0, %v9523
      %v9525 = vpop.f32.mrb[0].mxu0
      %9526 = vmatprep.mubr.f32.mxu0 0.0
      %9527 = vmatmul.mubr.f32.gmra.mrb[0].mxu0 %v8911
      %v9528 = vpop.f32.mrb[0].mxu0
      %v9529 = vadd.f32 0.0, %v9528
      %v9530 = vpop.f32.mrb[0].mxu0
      %9531 = vmatprep.mubr.f32.mxu0 0.0
      %9532 = vmatmul.mubr.f32.gmra.mrb[0].mxu0 %v8914
      %v9533 = vpop.f32.mrb[0].mxu0
      %v9534 = vadd.f32 0.0, %v9533
      %v9535 = vpop.f32.mrb[0].mxu0
      %9536 = vmatprep.mubr.f32.mxu0 0.0
      %9537 = vmatmul.mubr.f32.gmra.mrb[0].mxu0 %v8917
      %v9538 = vpop.f32.mrb[0].mxu0
      %v9539 = vadd.f32 0.0, %v9538
      %v9540 = vpop.f32.mrb[0].mxu0
      %9541 = vmatprep.mubr.f32.mxu0 0.0
      %9542 = vmatmul.mubr.f32.gmra.mrb[0].mxu0 %v8920
      %v9543 = vpop.f32.mrb[0].mxu0
      %v9544 = vadd.f32 0.0, %v9543
      %v9545 = vpop.f32.mrb[0].mxu0
      %9546 = vmatprep.mubr.f32.mxu0 0.0
      %9547 = vmatmul.mubr.f32.gmra.mrb[0].mxu0 %v8923
      %v9548 = vpop.f32.mrb[0].mxu0
      %v9549 = vadd.f32 0.0, %v9548
      %v9550 = vpop.f32.mrb[0].mxu0
      %9551 = vmatprep.mubr.f32.mxu0 0.0
      %9552 = vmatmul.mubr.f32.gmra.mrb[0].mxu0 %v8926
      %v9553 = vpop.f32.mrb[0].mxu0
      %v9554 = vadd.f32 0.0, %v9553
      %v9555 = vpop.f32.mrb[0].mxu0
      %9556 = vdwg.mxu0
      %9557 = vmatprep.subr.mxu0 0.0
      %9558 = vmatpush1.msra.mxu0 %v3379
      %9559 = vmatprep.subr.mxu0 0.0
      %9560 = vmatpush1.msra.mxu0 %v3384
      %9561 = vmatprep.subr.mxu0 0.0
      %9562 = vmatpush1.msra.mxu0 %v3389
      %9563 = vmatprep.subr.mxu0 0.0
      %9564 = vmatpush1.msra.mxu0 %v3394
      %9565 = vmatprep.subr.mxu0 0.0
      %9566 = vmatpush1.msra.mxu0 %v3399
      %9567 = vmatprep.subr.mxu0 0.0
      %9568 = vmatpush1.msra.mxu0 %v3404
      %9569 = vmatprep.subr.mxu0 0.0
      %9570 = vmatpush1.msra.mxu0 %v3409
      %9571 = vmatprep.subr.mxu0 0.0
      %9572 = vmatpush1.msra.mxu0 %v3414
      %9573 = vmatprep.subr.mxu0 0.0
      %9574 = vmatpush1.msra.mxu0 0.0
      %9575 = vmatprep.subr.mxu0 0.0
      %9576 = vmatpush1.msra.mxu0 0.0
      %9577 = vmatprep.subr.mxu0 0.0
      %9578 = vmatpush1.msra.mxu0 0.0
      %9579 = vmatprep.subr.mxu0 0.0
      %9580 = vmatpush1.msra.mxu0 0.0
      %9581 = vmatprep.subr.mxu0 0.0
      %9582 = vmatpush1.msra.mxu0 0.0
      %9583 = vmatprep.subr.mxu0 0.0
      %9584 = vmatpush1.msra.mxu0 0.0
      %9585 = vmatprep.subr.mxu0 0.0
      %9586 = vmatpush1.msra.mxu0 0.0
      %9587 = vmatprep.subr.mxu0 0.0
      %9588 = vmatpush1.msra.mxu0 0.0
      %9589 = vmatprep.subr.mxu0 0.0
      %9590 = vmatpush1.msra.mxu0 0.0
      %9591 = vmatprep.subr.mxu0 0.0
      %9592 = vmatpush1.msra.mxu0 0.0
      %9593 = vmatprep.subr.mxu0 0.0
      %9594 = vmatpush1.msra.mxu0 0.0
      %9595 = vmatprep.subr.mxu0 0.0
      %9596 = vmatpush1.msra.mxu0 0.0
      %9597 = vmatprep.subr.mxu0 0.0
      %9598 = vmatpush1.msra.mxu0 0.0
      %9599 = vmatprep.subr.mxu0 0.0
      %9600 = vmatpush1.msra.mxu0 0.0
      %9601 = vmatprep.subr.mxu0 0.0
      %9602 = vmatpush1.msra.mxu0 0.0
      %9603 = vmatprep.subr.mxu0 0.0
      %9604 = vmatpush1.msra.mxu0 0.0
      %9605 = vmatprep.subr.mxu0 0.0
      %9606 = vmatpush1.msra.mxu0 0.0
      %9607 = vmatprep.subr.mxu0 0.0
      %9608 = vmatpush1.msra.mxu0 0.0
      %9609 = vmatprep.subr.mxu0 0.0
      %9610 = vmatpush1.msra.mxu0 0.0
      %9611 = vmatprep.subr.mxu0 0.0
      %9612 = vmatpush1.msra.mxu0 0.0
      %9613 = vmatprep.subr.mxu0 0.0
      %9614 = vmatpush1.msra.mxu0 0.0
      %9615 = vmatprep.subr.mxu0 0.0
      %9616 = vmatpush1.msra.mxu0 0.0
      %9617 = vmatprep.subr.mxu0 0.0
      %9618 = vmatpush1.msra.mxu0 0.0
      %9619 = vmatprep.subr.mxu0 0.0
      %9620 = vmatpush1.msra.mxu0 0.0
      %9621 = vmatprep.mubr.f32.mxu0 0.0
      %9622 = vmatmul.mubr.f32.gmra.mrb[0].mxu0 %v9034
      %v9623 = vpop.f32.mrb[0].mxu0
      %v9624 = vadd.f32 0.0, %v9623
      %v9625 = vpop.f32.mrb[0].mxu0
      %9626 = vmatprep.mubr.f32.mxu0 0.0
      %9627 = vmatmul.mubr.f32.gmra.mrb[0].mxu0 %v9037
      %v9628 = vpop.f32.mrb[0].mxu0
      %v9629 = vadd.f32 0.0, %v9628
      %v9630 = vpop.f32.mrb[0].mxu0
      %9631 = vmatprep.mubr.f32.mxu0 0.0
      %9632 = vmatmul.mubr.f32.gmra.mrb[0].mxu0 %v9040
      %v9633 = vpop.f32.mrb[0].mxu0
      %v9634 = vadd.f32 0.0, %v9633
      %v9635 = vpop.f32.mrb[0].mxu0
      %9636 = vmatprep.mubr.f32.mxu0 0.0
      %9637 = vmatmul.mubr.f32.gmra.mrb[0].mxu0 %v9043
      %v9638 = vpop.f32.mrb[0].mxu0
      %v9639 = vadd.f32 0.0, %v9638
      %v9640 = vpop.f32.mrb[0].mxu0
      %9641 = vmatprep.mubr.f32.mxu0 0.0
      %9642 = vmatmul.mubr.f32.gmra.mrb[0].mxu0 %v9046
      %v9643 = vpop.f32.mrb[0].mxu0
      %v9644 = vadd.f32 0.0, %v9643
      %v9645 = vpop.f32.mrb[0].mxu0
      %9646 = vmatprep.mubr.f32.mxu0 0.0
      %9647 = vmatmul.mubr.f32.gmra.mrb[0].mxu0 %v9049
      %v9648 = vpop.f32.mrb[0].mxu0
      %v9649 = vadd.f32 0.0, %v9648
      %v9650 = vpop.f32.mrb[0].mxu0
      %9651 = vmatprep.mubr.f32.mxu0 0.0
      %9652 = vmatmul.mubr.f32.gmra.mrb[0].mxu0 %v9052
      %v9653 = vpop.f32.mrb[0].mxu0
      %v9654 = vadd.f32 0.0, %v9653
      %v9655 = vpop.f32.mrb[0].mxu0
      %9656 = vmatprep.mubr.f32.mxu0 0.0
      %9657 = vmatmul.mubr.f32.gmra.mrb[0].mxu0 %v9055
      %v9658 = vpop.f32.mrb[0].mxu0
      %v9659 = vadd.f32 0.0, %v9658
      %v9660 = vpop.f32.mrb[0].mxu0
      %9661 = vdwg.mxu0
      %9662 = vmatprep.subr.mxu0 0.0
      %9663 = vmatpush1.msra.mxu0 %v3419
      %9664 = vmatprep.subr.mxu0 0.0
      %9665 = vmatpush1.msra.mxu0 %v3424
      %9666 = vmatprep.subr.mxu0 0.0
      %9667 = vmatpush1.msra.mxu0 %v3429
      %9668 = vmatprep.subr.mxu0 0.0
      %9669 = vmatpush1.msra.mxu0 %v3434
      %9670 = vmatprep.subr.mxu0 0.0
      %9671 = vmatpush1.msra.mxu0 %v3439
      %9672 = vmatprep.subr.mxu0 0.0
      %9673 = vmatpush1.msra.mxu0 %v3444
      %9674 = vmatprep.subr.mxu0 0.0
      %9675 = vmatpush1.msra.mxu0 %v3449
      %9676 = vmatprep.subr.mxu0 0.0
      %9677 = vmatpush1.msra.mxu0 %v3454
      %9678 = vmatprep.subr.mxu0 0.0
      %9679 = vmatpush1.msra.mxu0 0.0
      %9680 = vmatprep.subr.mxu0 0.0
      %9681 = vmatpush1.msra.mxu0 0.0
      %9682 = vmatprep.subr.mxu0 0.0
      %9683 = vmatpush1.msra.mxu0 0.0
      %9684 = vmatprep.subr.mxu0 0.0
      %9685 = vmatpush1.msra.mxu0 0.0
      %9686 = vmatprep.subr.mxu0 0.0
      %9687 = vmatpush1.msra.mxu0 0.0
      %9688 = vmatprep.subr.mxu0 0.0
      %9689 = vmatpush1.msra.mxu0 0.0
      %9690 = vmatprep.subr.mxu0 0.0
      %9691 = vmatpush1.msra.mxu0 0.0
      %9692 = vmatprep.subr.mxu0 0.0
      %9693 = vmatpush1.msra.mxu0 0.0
      %9694 = vmatprep.subr.mxu0 0.0
      %9695 = vmatpush1.msra.mxu0 0.0
      %9696 = vmatprep.subr.mxu0 0.0
      %9697 = vmatpush1.msra.mxu0 0.0
      %9698 = vmatprep.subr.mxu0 0.0
      %9699 = vmatpush1.msra.mxu0 0.0
      %9700 = vmatprep.subr.mxu0 0.0
      %9701 = vmatpush1.msra.mxu0 0.0
      %9702 = vmatprep.subr.mxu0 0.0
      %9703 = vmatpush1.msra.mxu0 0.0
      %9704 = vmatprep.subr.mxu0 0.0
      %9705 = vmatpush1.msra.mxu0 0.0
      %9706 = vmatprep.subr.mxu0 0.0
      %9707 = vmatpush1.msra.mxu0 0.0
      %9708 = vmatprep.subr.mxu0 0.0
      %9709 = vmatpush1.msra.mxu0 0.0
      %9710 = vmatprep.subr.mxu0 0.0
      %9711 = vmatpush1.msra.mxu0 0.0
      %9712 = vmatprep.subr.mxu0 0.0
      %9713 = vmatpush1.msra.mxu0 0.0
      %9714 = vmatprep.subr.mxu0 0.0
      %9715 = vmatpush1.msra.mxu0 0.0
      %9716 = vmatprep.subr.mxu0 0.0
      %9717 = vmatpush1.msra.mxu0 0.0
      %9718 = vmatprep.subr.mxu0 0.0
      %9719 = vmatpush1.msra.mxu0 0.0
      %9720 = vmatprep.subr.mxu0 0.0
      %9721 = vmatpush1.msra.mxu0 0.0
      %9722 = vmatprep.subr.mxu0 0.0
      %9723 = vmatpush1.msra.mxu0 0.0
      %9724 = vmatprep.subr.mxu0 0.0
      %9725 = vmatpush1.msra.mxu0 0.0
      %9726 = vmatprep.mubr.f32.mxu0 0.0
      %9727 = vmatmul.mubr.f32.gmra.mrb[0].mxu0 %v9163
      %v9728 = vpop.f32.mrb[0].mxu0
      %v9729 = vadd.f32 0.0, %v9728
      %v9730 = vpop.f32.mrb[0].mxu0
      %9731 = vmatprep.mubr.f32.mxu0 0.0
      %9732 = vmatmul.mubr.f32.gmra.mrb[0].mxu0 %v9166
      %v9733 = vpop.f32.mrb[0].mxu0
      %v9734 = vadd.f32 0.0, %v9733
      %v9735 = vpop.f32.mrb[0].mxu0
      %9736 = vmatprep.mubr.f32.mxu0 0.0
      %9737 = vmatmul.mubr.f32.gmra.mrb[0].mxu0 %v9169
      %v9738 = vpop.f32.mrb[0].mxu0
      %v9739 = vadd.f32 0.0, %v9738
      %v9740 = vpop.f32.mrb[0].mxu0
      %9741 = vmatprep.mubr.f32.mxu0 0.0
      %9742 = vmatmul.mubr.f32.gmra.mrb[0].mxu0 %v9172
      %v9743 = vpop.f32.mrb[0].mxu0
      %v9744 = vadd.f32 0.0, %v9743
      %v9745 = vpop.f32.mrb[0].mxu0
      %9746 = vmatprep.mubr.f32.mxu0 0.0
      %9747 = vmatmul.mubr.f32.gmra.mrb[0].mxu0 %v9175
      %v9748 = vpop.f32.mrb[0].mxu0
      %v9749 = vadd.f32 0.0, %v9748
      %v9750 = vpop.f32.mrb[0].mxu0
      %9751 = vmatprep.mubr.f32.mxu0 0.0
      %9752 = vmatmul.mubr.f32.gmra.mrb[0].mxu0 %v9178
      %v9753 = vpop.f32.mrb[0].mxu0
      %v9754 = vadd.f32 0.0, %v9753
      %v9755 = vpop.f32.mrb[0].mxu0
      %9756 = vmatprep.mubr.f32.mxu0 0.0
      %9757 = vmatmul.mubr.f32.gmra.mrb[0].mxu0 %v9181
      %v9758 = vpop.f32.mrb[0].mxu0
      %v9759 = vadd.f32 0.0, %v9758
      %v9760 = vpop.f32.mrb[0].mxu0
      %9761 = vmatprep.mubr.f32.mxu0 0.0
      %9762 = vmatmul.mubr.f32.gmra.mrb[0].mxu0 %v9184
      %v9763 = vpop.f32.mrb[0].mxu0
      %v9764 = vadd.f32 0.0, %v9763
      %v9765 = vpop.f32.mrb[0].mxu0
      %9766 = vdwg.mxu0
      %9767 = vmatprep.subr.mxu0 0.0
      %9768 = vmatpush1.msra.mxu0 %v3459
      %9769 = vmatprep.subr.mxu0 0.0
      %9770 = vmatpush1.msra.mxu0 %v3464
      %9771 = vmatprep.subr.mxu0 0.0
      %9772 = vmatpush1.msra.mxu0 %v3469
      %9773 = vmatprep.subr.mxu0 0.0
      %9774 = vmatpush1.msra.mxu0 %v3474
      %9775 = vmatprep.subr.mxu0 0.0
      %9776 = vmatpush1.msra.mxu0 %v3479
      %9777 = vmatprep.subr.mxu0 0.0
      %9778 = vmatpush1.msra.mxu0 %v3484
      %9779 = vmatprep.subr.mxu0 0.0
      %9780 = vmatpush1.msra.mxu0 %v3489
      %9781 = vmatprep.subr.mxu0 0.0
      %9782 = vmatpush1.msra.mxu0 %v3494
      %9783 = vmatprep.subr.mxu0 0.0
      %9784 = vmatpush1.msra.mxu0 0.0
      %9785 = vmatprep.subr.mxu0 0.0
      %9786 = vmatpush1.msra.mxu0 0.0
      %9787 = vmatprep.subr.mxu0 0.0
      %9788 = vmatpush1.msra.mxu0 0.0
      %9789 = vmatprep.subr.mxu0 0.0
      %9790 = vmatpush1.msra.mxu0 0.0
      %9791 = vmatprep.subr.mxu0 0.0
      %9792 = vmatpush1.msra.mxu0 0.0
      %9793 = vmatprep.subr.mxu0 0.0
      %9794 = vmatpush1.msra.mxu0 0.0
      %9795 = vmatprep.subr.mxu0 0.0
      %9796 = vmatpush1.msra.mxu0 0.0
      %9797 = vmatprep.subr.mxu0 0.0
      %9798 = vmatpush1.msra.mxu0 0.0
      %9799 = vmatprep.subr.mxu0 0.0
      %9800 = vmatpush1.msra.mxu0 0.0
      %9801 = vmatprep.subr.mxu0 0.0
      %9802 = vmatpush1.msra.mxu0 0.0
      %9803 = vmatprep.subr.mxu0 0.0
      %9804 = vmatpush1.msra.mxu0 0.0
      %9805 = vmatprep.subr.mxu0 0.0
      %9806 = vmatpush1.msra.mxu0 0.0
      %9807 = vmatprep.subr.mxu0 0.0
      %9808 = vmatpush1.msra.mxu0 0.0
      %9809 = vmatprep.subr.mxu0 0.0
      %9810 = vmatpush1.msra.mxu0 0.0
      %9811 = vmatprep.subr.mxu0 0.0
      %9812 = vmatpush1.msra.mxu0 0.0
      %9813 = vmatprep.subr.mxu0 0.0
      %9814 = vmatpush1.msra.mxu0 0.0
      %9815 = vmatprep.subr.mxu0 0.0
      %9816 = vmatpush1.msra.mxu0 0.0
      %9817 = vmatprep.subr.mxu0 0.0
      %9818 = vmatpush1.msra.mxu0 0.0
      %9819 = vmatprep.subr.mxu0 0.0
      %9820 = vmatpush1.msra.mxu0 0.0
      %9821 = vmatprep.subr.mxu0 0.0
      %9822 = vmatpush1.msra.mxu0 0.0
      %9823 = vmatprep.subr.mxu0 0.0
      %9824 = vmatpush1.msra.mxu0 0.0
      %9825 = vmatprep.subr.mxu0 0.0
      %9826 = vmatpush1.msra.mxu0 0.0
      %9827 = vmatprep.subr.mxu0 0.0
      %9828 = vmatpush1.msra.mxu0 0.0
      %9829 = vmatprep.subr.mxu0 0.0
      %9830 = vmatpush1.msra.mxu0 0.0
      %9831 = vmatprep.mubr.f32.mxu0 0.0
      %9832 = vmatmul.mubr.f32.gmra.mrb[0].mxu0 %v9292
      %v9833 = vpop.f32.mrb[0].mxu0
      %v9834 = vadd.f32 0.0, %v9833
      %v9835 = vpop.f32.mrb[0].mxu0
      %9836 = vmatprep.mubr.f32.mxu0 0.0
      %9837 = vmatmul.mubr.f32.gmra.mrb[0].mxu0 %v9295
      %v9838 = vpop.f32.mrb[0].mxu0
      %v9839 = vadd.f32 0.0, %v9838
      %v9840 = vpop.f32.mrb[0].mxu0
      %9841 = vmatprep.mubr.f32.mxu0 0.0
      %9842 = vmatmul.mubr.f32.gmra.mrb[0].mxu0 %v9298
      %v9843 = vpop.f32.mrb[0].mxu0
      %v9844 = vadd.f32 0.0, %v9843
      %v9845 = vpop.f32.mrb[0].mxu0
      %9846 = vmatprep.mubr.f32.mxu0 0.0
      %9847 = vmatmul.mubr.f32.gmra.mrb[0].mxu0 %v9301
      %v9848 = vpop.f32.mrb[0].mxu0
      %v9849 = vadd.f32 0.0, %v9848
      %v9850 = vpop.f32.mrb[0].mxu0
      %9851 = vmatprep.mubr.f32.mxu0 0.0
      %9852 = vmatmul.mubr.f32.gmra.mrb[0].mxu0 %v9304
      %v9853 = vpop.f32.mrb[0].mxu0
      %v9854 = vadd.f32 0.0, %v9853
      %v9855 = vpop.f32.mrb[0].mxu0
      %9856 = vmatprep.mubr.f32.mxu0 0.0
      %9857 = vmatmul.mubr.f32.gmra.mrb[0].mxu0 %v9307
      %v9858 = vpop.f32.mrb[0].mxu0
      %v9859 = vadd.f32 0.0, %v9858
      %v9860 = vpop.f32.mrb[0].mxu0
      %9861 = vmatprep.mubr.f32.mxu0 0.0
      %9862 = vmatmul.mubr.f32.gmra.mrb[0].mxu0 %v9310
      %v9863 = vpop.f32.mrb[0].mxu0
      %v9864 = vadd.f32 0.0, %v9863
      %v9865 = vpop.f32.mrb[0].mxu0
      %9866 = vmatprep.mubr.f32.mxu0 0.0
      %9867 = vmatmul.mubr.f32.gmra.mrb[0].mxu0 %v9313
      %v9868 = vpop.f32.mrb[0].mxu0
      %v9869 = vadd.f32 0.0, %v9868
      %v9870 = vpop.f32.mrb[0].mxu0
      %9871 = vdwg.mxu0
      %v9872 = vadd.f32 %v7490, %v9519
      %v9873 = vadd.f32 %v7495, %v9524
      %v9874 = vadd.f32 %v7500, %v9529
      %v9875 = vadd.f32 %v7505, %v9534
      %v9876 = vadd.f32 %v7510, %v9539
      %v9877 = vadd.f32 %v7515, %v9544
      %v9878 = vadd.f32 %v7520, %v9549
      %v9879 = vadd.f32 %v7525, %v9554
      %v9880 = vadd.f32 %v7595, %v9624
      %v9881 = vadd.f32 %v7600, %v9629
      %v9882 = vadd.f32 %v7605, %v9634
      %v9883 = vadd.f32 %v7610, %v9639
      %v9884 = vadd.f32 %v7615, %v9644
      %v9885 = vadd.f32 %v7620, %v9649
      %v9886 = vadd.f32 %v7625, %v9654
      %v9887 = vadd.f32 %v7630, %v9659
      %v9888 = vadd.f32 %v7700, %v9729
      %v9889 = vadd.f32 %v7705, %v9734
      %v9890 = vadd.f32 %v7710, %v9739
      %v9891 = vadd.f32 %v7715, %v9744
      %v9892 = vadd.f32 %v7720, %v9749
      %v9893 = vadd.f32 %v7725, %v9754
      %v9894 = vadd.f32 %v7730, %v9759
      %v9895 = vadd.f32 %v7735, %v9764
      %v9896 = vadd.f32 %v7805, %v9834
      %v9897 = vadd.f32 %v7810, %v9839
      %v9898 = vadd.f32 %v7815, %v9844
      %v9899 = vadd.f32 %v7820, %v9849
      %v9900 = vadd.f32 %v7825, %v9854
      %v9901 = vadd.f32 %v7830, %v9859
      %v9902 = vadd.f32 %v7835, %v9864
      %v9903 = vadd.f32 %v7840, %v9869
      %s9904 = scalar_lea.vmem %s6, 768
      %v9905 = vld [vmem:[%s9904] sm:$0xff]
      %v9906 = vld [vmem:[%s9904 + $0x8] sm:$0xff]
      %v9907 = vld [vmem:[%s9904 + $0x10] sm:$0xff]
      %v9908 = vld [vmem:[%s9904 + $0x18] sm:$0xff]
      %v9909 = vld [vmem:[%s9904 + $0x20] sm:$0xff]
      %v9910 = vld [vmem:[%s9904 + $0x28] sm:$0xff]
      %v9911 = vld [vmem:[%s9904 + $0x30] sm:$0xff]
      %v9912 = vld [vmem:[%s9904 + $0x38] sm:$0xff]
      %v9913 = vld [vmem:[%s9904 + $0x40] sm:$0xff]
      %v9914 = vld [vmem:[%s9904 + $0x48] sm:$0xff]
      %v9915 = vld [vmem:[%s9904 + $0x50] sm:$0xff]
      %v9916 = vld [vmem:[%s9904 + $0x58] sm:$0xff]
      %v9917 = vld [vmem:[%s9904 + $0x60] sm:$0xff]
      %v9918 = vld [vmem:[%s9904 + $0x68] sm:$0xff]
      %v9919 = vld [vmem:[%s9904 + $0x70] sm:$0xff]
      %v9920 = vld [vmem:[%s9904 + $0x78] sm:$0xff]
      %v9921 = vld [vmem:[%s9904 + $0x80] sm:$0xff]
      %v9922 = vld [vmem:[%s9904 + $0x88] sm:$0xff]
      %v9923 = vld [vmem:[%s9904 + $0x90] sm:$0xff]
      %v9924 = vld [vmem:[%s9904 + $0x98] sm:$0xff]
      %v9925 = vld [vmem:[%s9904 + $0xa0] sm:$0xff]
      %v9926 = vld [vmem:[%s9904 + $0xa8] sm:$0xff]
      %v9927 = vld [vmem:[%s9904 + $0xb0] sm:$0xff]
      %v9928 = vld [vmem:[%s9904 + $0xb8] sm:$0xff]
      %v9929 = vld [vmem:[%s9904 + $0xc0] sm:$0xff]
      %v9930 = vld [vmem:[%s9904 + $0xc8] sm:$0xff]
      %v9931 = vld [vmem:[%s9904 + $0xd0] sm:$0xff]
      %v9932 = vld [vmem:[%s9904 + $0xd8] sm:$0xff]
      %v9933 = vld [vmem:[%s9904 + $0xe0] sm:$0xff]
      %v9934 = vld [vmem:[%s9904 + $0xe8] sm:$0xff]
      %v9935 = vld [vmem:[%s9904 + $0xf0] sm:$0xff]
      %v9936 = vld [vmem:[%s9904 + $0xf8] sm:$0xff]
      %9937 = vrot.lane.b32.xlu0 %v3882, 80
      %v9938 = vpop.permute.xlu0 %9937
      %9939 = vrot.lane.b32.xlu0 %v3883, 80
      %v9940 = vpop.permute.xlu0 %9939
      %9941 = vrot.lane.b32.xlu0 %v3884, 80
      %v9942 = vpop.permute.xlu0 %9941
      %9943 = vrot.lane.b32.xlu0 %v3885, 80
      %v9944 = vpop.permute.xlu0 %9943
      %9945 = vrot.lane.b32.xlu0 %v3886, 80
      %v9946 = vpop.permute.xlu0 %9945
      %9947 = vrot.lane.b32.xlu0 %v3887, 80
      %v9948 = vpop.permute.xlu0 %9947
      %9949 = vrot.lane.b32.xlu0 %v3888, 80
      %v9950 = vpop.permute.xlu0 %9949
      %9951 = vrot.lane.b32.xlu0 %v3889, 80
      %v9952 = vpop.permute.xlu0 %9951
      %9953 = vrot.lane.b32.xlu0 %v984, 80
      %v9954 = vpop.permute.xlu0 %9953
      %9955 = vrot.lane.b32.xlu0 %v985, 80
      %v9956 = vpop.permute.xlu0 %9955
      %9957 = vrot.lane.b32.xlu0 %v986, 80
      %v9958 = vpop.permute.xlu0 %9957
      %9959 = vrot.lane.b32.xlu0 %v987, 80
      %v9960 = vpop.permute.xlu0 %9959
      %9961 = vrot.lane.b32.xlu0 %v988, 80
      %v9962 = vpop.permute.xlu0 %9961
      %9963 = vrot.lane.b32.xlu0 %v989, 80
      %v9964 = vpop.permute.xlu0 %9963
      %9965 = vrot.lane.b32.xlu0 %v990, 80
      %v9966 = vpop.permute.xlu0 %9965
      %9967 = vrot.lane.b32.xlu0 %v991, 80
      %v9968 = vpop.permute.xlu0 %9967
      %v9969 = vsel %vm1121, %v9938, 0
      %v9971 = vsel %vm1121, %v9940, 0
      %v9973 = vsel %vm1121, %v9942, 0
      %v9975 = vsel %vm1121, %v9944, 0
      %v9977 = vsel %vm1121, %v9946, 0
      %v9979 = vsel %vm1121, %v9948, 0
      %v9981 = vsel %vm1121, %v9950, 0
      %v9983 = vsel %vm1121, %v9952, 0
      %v9985 = vsel %vm1121, %v9954, 0
      %v9987 = vsel %vm1121, %v9956, 0
      %v9989 = vsel %vm1121, %v9958, 0
      %v9991 = vsel %vm1121, %v9960, 0
      %v9993 = vsel %vm1121, %v9962, 0
      %v9995 = vsel %vm1121, %v9964, 0
      %v9997 = vsel %vm1121, %v9966, 0
      %v9999 = vsel %vm1121, %v9968, 0
      %10001 = vmatprep.subr.mxu0 0.0
      %10002 = vmatpush1.xpose.msra.mxu0 %v9985
      %10003 = vmatprep.subr.mxu0 0.0
      %10004 = vmatpush1.xpose.msra.mxu0 %v9987
      %10005 = vmatprep.subr.mxu0 0.0
      %10006 = vmatpush1.xpose.msra.mxu0 %v9989
      %10007 = vmatprep.subr.mxu0 0.0
      %10008 = vmatpush1.xpose.msra.mxu0 %v9991
      %10009 = vmatprep.subr.mxu0 0.0
      %10010 = vmatpush1.xpose.msra.mxu0 %v9993
      %10011 = vmatprep.subr.mxu0 0.0
      %10012 = vmatpush1.xpose.msra.mxu0 %v9995
      %10013 = vmatprep.subr.mxu0 0.0
      %10014 = vmatpush1.xpose.msra.mxu0 %v9997
      %10015 = vmatprep.subr.mxu0 0.0
      %10016 = vmatpush1.xpose.msra.mxu0 %v9999
      %10017 = vmatprep.subr.mxu0 0.0
      %10018 = vmatpush1.xpose.msra.mxu0 0.0
      %10019 = vmatprep.subr.mxu0 0.0
      %10020 = vmatpush1.xpose.msra.mxu0 0.0
      %10021 = vmatprep.subr.mxu0 0.0
      %10022 = vmatpush1.xpose.msra.mxu0 0.0
      %10023 = vmatprep.subr.mxu0 0.0
      %10024 = vmatpush1.xpose.msra.mxu0 0.0
      %10025 = vmatprep.subr.mxu0 0.0
      %10026 = vmatpush1.xpose.msra.mxu0 0.0
      %10027 = vmatprep.subr.mxu0 0.0
      %10028 = vmatpush1.xpose.msra.mxu0 0.0
      %10029 = vmatprep.subr.mxu0 0.0
      %10030 = vmatpush1.xpose.msra.mxu0 0.0
      %10031 = vmatprep.subr.mxu0 0.0
      %10032 = vmatpush1.xpose.msra.mxu0 0.0
      %10033 = vmatprep.subr.mxu0 0.0
      %10034 = vmatpush1.xpose.msra.mxu0 0.0
      %10035 = vmatprep.subr.mxu0 0.0
      %10036 = vmatpush1.xpose.msra.mxu0 0.0
      %10037 = vmatprep.subr.mxu0 0.0
      %10038 = vmatpush1.xpose.msra.mxu0 0.0
      %10039 = vmatprep.subr.mxu0 0.0
      %10040 = vmatpush1.xpose.msra.mxu0 0.0
      %10041 = vmatprep.subr.mxu0 0.0
      %10042 = vmatpush1.xpose.msra.mxu0 0.0
      %10043 = vmatprep.subr.mxu0 0.0
      %10044 = vmatpush1.xpose.msra.mxu0 0.0
      %10045 = vmatprep.subr.mxu0 0.0
      %10046 = vmatpush1.xpose.msra.mxu0 0.0
      %10047 = vmatprep.subr.mxu0 0.0
      %10048 = vmatpush1.xpose.msra.mxu0 0.0
      %10049 = vmatprep.subr.mxu0 0.0
      %10050 = vmatpush1.xpose.msra.mxu0 0.0
      %10051 = vmatprep.subr.mxu0 0.0
      %10052 = vmatpush1.xpose.msra.mxu0 0.0
      %10053 = vmatprep.subr.mxu0 0.0
      %10054 = vmatpush1.xpose.msra.mxu0 0.0
      %10055 = vmatprep.subr.mxu0 0.0
      %10056 = vmatpush1.xpose.msra.mxu0 0.0
      %10057 = vmatprep.subr.mxu0 0.0
      %10058 = vmatpush1.xpose.msra.mxu0 0.0
      %10059 = vmatprep.subr.mxu0 0.0
      %10060 = vmatpush1.xpose.msra.mxu0 0.0
      %10061 = vmatprep.subr.mxu0 0.0
      %10062 = vmatpush1.xpose.msra.mxu0 0.0
      %10063 = vmatprep.subr.mxu0 0.0
      %10064 = vmatpush1.xpose.msra.mxu0 0.0
      %10065 = vmatprep.mubr.f32.mxu0 0.0
      %10066 = vmatmul.mubr.f32.gmra.mrb[0].mxu0 %v9969
      %v10067 = vpop.f32.mrb[0].mxu0
      %v10068 = vadd.f32 %v9905, %v10067
      %v10069 = vpop.f32.mrb[0].mxu0
      %10070 = vmatprep.mubr.f32.mxu0 0.0
      %10071 = vmatmul.mubr.f32.gmra.mrb[0].mxu0 %v9971
      %v10072 = vpop.f32.mrb[0].mxu0
      %v10073 = vadd.f32 %v9906, %v10072
      %v10074 = vpop.f32.mrb[0].mxu0
      %10075 = vmatprep.mubr.f32.mxu0 0.0
      %10076 = vmatmul.mubr.f32.gmra.mrb[0].mxu0 %v9973
      %v10077 = vpop.f32.mrb[0].mxu0
      %v10078 = vadd.f32 %v9907, %v10077
      %v10079 = vpop.f32.mrb[0].mxu0
      %10080 = vmatprep.mubr.f32.mxu0 0.0
      %10081 = vmatmul.mubr.f32.gmra.mrb[0].mxu0 %v9975
      %v10082 = vpop.f32.mrb[0].mxu0
      %v10083 = vadd.f32 %v9908, %v10082
      %v10084 = vpop.f32.mrb[0].mxu0
      %10085 = vmatprep.mubr.f32.mxu0 0.0
      %10086 = vmatmul.mubr.f32.gmra.mrb[0].mxu0 %v9977
      %v10087 = vpop.f32.mrb[0].mxu0
      %v10088 = vadd.f32 %v9909, %v10087
      %v10089 = vpop.f32.mrb[0].mxu0
      %10090 = vmatprep.mubr.f32.mxu0 0.0
      %10091 = vmatmul.mubr.f32.gmra.mrb[0].mxu0 %v9979
      %v10092 = vpop.f32.mrb[0].mxu0
      %v10093 = vadd.f32 %v9910, %v10092
      %v10094 = vpop.f32.mrb[0].mxu0
      %10095 = vmatprep.mubr.f32.mxu0 0.0
      %10096 = vmatmul.mubr.f32.gmra.mrb[0].mxu0 %v9981
      %v10097 = vpop.f32.mrb[0].mxu0
      %v10098 = vadd.f32 %v9911, %v10097
      %v10099 = vpop.f32.mrb[0].mxu0
      %10100 = vmatprep.mubr.f32.mxu0 0.0
      %10101 = vmatmul.mubr.f32.gmra.mrb[0].mxu0 %v9983
      %v10102 = vpop.f32.mrb[0].mxu0
      %v10103 = vadd.f32 %v9912, %v10102
      %v10104 = vpop.f32.mrb[0].mxu0
      %10105 = vdwg.mxu0
      %10106 = vrot.lane.b32.xlu0 %v3890, 80
      %v10107 = vpop.permute.xlu0 %10106
      %10108 = vrot.lane.b32.xlu0 %v3891, 80
      %v10109 = vpop.permute.xlu0 %10108
      %10110 = vrot.lane.b32.xlu0 %v3892, 80
      %v10111 = vpop.permute.xlu0 %10110
      %10112 = vrot.lane.b32.xlu0 %v3893, 80
      %v10113 = vpop.permute.xlu0 %10112
      %10114 = vrot.lane.b32.xlu0 %v3894, 80
      %v10115 = vpop.permute.xlu0 %10114
      %10116 = vrot.lane.b32.xlu0 %v3895, 80
      %v10117 = vpop.permute.xlu0 %10116
      %10118 = vrot.lane.b32.xlu0 %v3896, 80
      %v10119 = vpop.permute.xlu0 %10118
      %10120 = vrot.lane.b32.xlu0 %v3897, 80
      %v10121 = vpop.permute.xlu0 %10120
      %10122 = vrot.lane.b32.xlu0 %v992, 80
      %v10123 = vpop.permute.xlu0 %10122
      %10124 = vrot.lane.b32.xlu0 %v993, 80
      %v10125 = vpop.permute.xlu0 %10124
      %10126 = vrot.lane.b32.xlu0 %v994, 80
      %v10127 = vpop.permute.xlu0 %10126
      %10128 = vrot.lane.b32.xlu0 %v995, 80
      %v10129 = vpop.permute.xlu0 %10128
      %10130 = vrot.lane.b32.xlu0 %v996, 80
      %v10131 = vpop.permute.xlu0 %10130
      %10132 = vrot.lane.b32.xlu0 %v997, 80
      %v10133 = vpop.permute.xlu0 %10132
      %10134 = vrot.lane.b32.xlu0 %v998, 80
      %v10135 = vpop.permute.xlu0 %10134
      %10136 = vrot.lane.b32.xlu0 %v999, 80
      %v10137 = vpop.permute.xlu0 %10136
      %v10138 = vsel %vm1121, %v10107, 0
      %v10140 = vsel %vm1121, %v10109, 0
      %v10142 = vsel %vm1121, %v10111, 0
      %v10144 = vsel %vm1121, %v10113, 0
      %v10146 = vsel %vm1121, %v10115, 0
      %v10148 = vsel %vm1121, %v10117, 0
      %v10150 = vsel %vm1121, %v10119, 0
      %v10152 = vsel %vm1121, %v10121, 0
      %v10154 = vsel %vm1121, %v10123, 0
      %v10156 = vsel %vm1121, %v10125, 0
      %v10158 = vsel %vm1121, %v10127, 0
      %v10160 = vsel %vm1121, %v10129, 0
      %v10162 = vsel %vm1121, %v10131, 0
      %v10164 = vsel %vm1121, %v10133, 0
      %v10166 = vsel %vm1121, %v10135, 0
      %v10168 = vsel %vm1121, %v10137, 0
      %10170 = vmatprep.subr.mxu0 0.0
      %10171 = vmatpush1.xpose.msra.mxu0 %v10154
      %10172 = vmatprep.subr.mxu0 0.0
      %10173 = vmatpush1.xpose.msra.mxu0 %v10156
      %10174 = vmatprep.subr.mxu0 0.0
      %10175 = vmatpush1.xpose.msra.mxu0 %v10158
      %10176 = vmatprep.subr.mxu0 0.0
      %10177 = vmatpush1.xpose.msra.mxu0 %v10160
      %10178 = vmatprep.subr.mxu0 0.0
      %10179 = vmatpush1.xpose.msra.mxu0 %v10162
      %10180 = vmatprep.subr.mxu0 0.0
      %10181 = vmatpush1.xpose.msra.mxu0 %v10164
      %10182 = vmatprep.subr.mxu0 0.0
      %10183 = vmatpush1.xpose.msra.mxu0 %v10166
      %10184 = vmatprep.subr.mxu0 0.0
      %10185 = vmatpush1.xpose.msra.mxu0 %v10168
      %10186 = vmatprep.subr.mxu0 0.0
      %10187 = vmatpush1.xpose.msra.mxu0 0.0
      %10188 = vmatprep.subr.mxu0 0.0
      %10189 = vmatpush1.xpose.msra.mxu0 0.0
      %10190 = vmatprep.subr.mxu0 0.0
      %10191 = vmatpush1.xpose.msra.mxu0 0.0
      %10192 = vmatprep.subr.mxu0 0.0
      %10193 = vmatpush1.xpose.msra.mxu0 0.0
      %10194 = vmatprep.subr.mxu0 0.0
      %10195 = vmatpush1.xpose.msra.mxu0 0.0
      %10196 = vmatprep.subr.mxu0 0.0
      %10197 = vmatpush1.xpose.msra.mxu0 0.0
      %10198 = vmatprep.subr.mxu0 0.0
      %10199 = vmatpush1.xpose.msra.mxu0 0.0
      %10200 = vmatprep.subr.mxu0 0.0
      %10201 = vmatpush1.xpose.msra.mxu0 0.0
      %10202 = vmatprep.subr.mxu0 0.0
      %10203 = vmatpush1.xpose.msra.mxu0 0.0
      %10204 = vmatprep.subr.mxu0 0.0
      %10205 = vmatpush1.xpose.msra.mxu0 0.0
      %10206 = vmatprep.subr.mxu0 0.0
      %10207 = vmatpush1.xpose.msra.mxu0 0.0
      %10208 = vmatprep.subr.mxu0 0.0
      %10209 = vmatpush1.xpose.msra.mxu0 0.0
      %10210 = vmatprep.subr.mxu0 0.0
      %10211 = vmatpush1.xpose.msra.mxu0 0.0
      %10212 = vmatprep.subr.mxu0 0.0
      %10213 = vmatpush1.xpose.msra.mxu0 0.0
      %10214 = vmatprep.subr.mxu0 0.0
      %10215 = vmatpush1.xpose.msra.mxu0 0.0
      %10216 = vmatprep.subr.mxu0 0.0
      %10217 = vmatpush1.xpose.msra.mxu0 0.0
      %10218 = vmatprep.subr.mxu0 0.0
      %10219 = vmatpush1.xpose.msra.mxu0 0.0
      %10220 = vmatprep.subr.mxu0 0.0
      %10221 = vmatpush1.xpose.msra.mxu0 0.0
      %10222 = vmatprep.subr.mxu0 0.0
      %10223 = vmatpush1.xpose.msra.mxu0 0.0
      %10224 = vmatprep.subr.mxu0 0.0
      %10225 = vmatpush1.xpose.msra.mxu0 0.0
      %10226 = vmatprep.subr.mxu0 0.0
      %10227 = vmatpush1.xpose.msra.mxu0 0.0
      %10228 = vmatprep.subr.mxu0 0.0
      %10229 = vmatpush1.xpose.msra.mxu0 0.0
      %10230 = vmatprep.subr.mxu0 0.0
      %10231 = vmatpush1.xpose.msra.mxu0 0.0
      %10232 = vmatprep.subr.mxu0 0.0
      %10233 = vmatpush1.xpose.msra.mxu0 0.0
      %10234 = vmatprep.mubr.f32.mxu0 0.0
      %10235 = vmatmul.mubr.f32.gmra.mrb[0].mxu0 %v10138
      %v10236 = vpop.f32.mrb[0].mxu0
      %v10237 = vadd.f32 %v9913, %v10236
      %v10238 = vpop.f32.mrb[0].mxu0
      %10239 = vmatprep.mubr.f32.mxu0 0.0
      %10240 = vmatmul.mubr.f32.gmra.mrb[0].mxu0 %v10140
      %v10241 = vpop.f32.mrb[0].mxu0
      %v10242 = vadd.f32 %v9914, %v10241
      %v10243 = vpop.f32.mrb[0].mxu0
      %10244 = vmatprep.mubr.f32.mxu0 0.0
      %10245 = vmatmul.mubr.f32.gmra.mrb[0].mxu0 %v10142
      %v10246 = vpop.f32.mrb[0].mxu0
      %v10247 = vadd.f32 %v9915, %v10246
      %v10248 = vpop.f32.mrb[0].mxu0
      %10249 = vmatprep.mubr.f32.mxu0 0.0
      %10250 = vmatmul.mubr.f32.gmra.mrb[0].mxu0 %v10144
      %v10251 = vpop.f32.mrb[0].mxu0
      %v10252 = vadd.f32 %v9916, %v10251
      %v10253 = vpop.f32.mrb[0].mxu0
      %10254 = vmatprep.mubr.f32.mxu0 0.0
      %10255 = vmatmul.mubr.f32.gmra.mrb[0].mxu0 %v10146
      %v10256 = vpop.f32.mrb[0].mxu0
      %v10257 = vadd.f32 %v9917, %v10256
      %v10258 = vpop.f32.mrb[0].mxu0
      %10259 = vmatprep.mubr.f32.mxu0 0.0
      %10260 = vmatmul.mubr.f32.gmra.mrb[0].mxu0 %v10148
      %v10261 = vpop.f32.mrb[0].mxu0
      %v10262 = vadd.f32 %v9918, %v10261
      %v10263 = vpop.f32.mrb[0].mxu0
      %10264 = vmatprep.mubr.f32.mxu0 0.0
      %10265 = vmatmul.mubr.f32.gmra.mrb[0].mxu0 %v10150
      %v10266 = vpop.f32.mrb[0].mxu0
      %v10267 = vadd.f32 %v9919, %v10266
      %v10268 = vpop.f32.mrb[0].mxu0
      %10269 = vmatprep.mubr.f32.mxu0 0.0
      %10270 = vmatmul.mubr.f32.gmra.mrb[0].mxu0 %v10152
      %v10271 = vpop.f32.mrb[0].mxu0
      %v10272 = vadd.f32 %v9920, %v10271
      %v10273 = vpop.f32.mrb[0].mxu0
      %10274 = vdwg.mxu0
      %10275 = vrot.lane.b32.xlu0 %v3898, 80
      %v10276 = vpop.permute.xlu0 %10275
      %10277 = vrot.lane.b32.xlu0 %v3899, 80
      %v10278 = vpop.permute.xlu0 %10277
      %10279 = vrot.lane.b32.xlu0 %v3900, 80
      %v10280 = vpop.permute.xlu0 %10279
      %10281 = vrot.lane.b32.xlu0 %v3901, 80
      %v10282 = vpop.permute.xlu0 %10281
      %10283 = vrot.lane.b32.xlu0 %v3902, 80
      %v10284 = vpop.permute.xlu0 %10283
      %10285 = vrot.lane.b32.xlu0 %v3903, 80
      %v10286 = vpop.permute.xlu0 %10285
      %10287 = vrot.lane.b32.xlu0 %v3904, 80
      %v10288 = vpop.permute.xlu0 %10287
      %10289 = vrot.lane.b32.xlu0 %v3905, 80
      %v10290 = vpop.permute.xlu0 %10289
      %10291 = vrot.lane.b32.xlu0 %v1000, 80
      %v10292 = vpop.permute.xlu0 %10291
      %10293 = vrot.lane.b32.xlu0 %v1001, 80
      %v10294 = vpop.permute.xlu0 %10293
      %10295 = vrot.lane.b32.xlu0 %v1002, 80
      %v10296 = vpop.permute.xlu0 %10295
      %10297 = vrot.lane.b32.xlu0 %v1003, 80
      %v10298 = vpop.permute.xlu0 %10297
      %10299 = vrot.lane.b32.xlu0 %v1004, 80
      %v10300 = vpop.permute.xlu0 %10299
      %10301 = vrot.lane.b32.xlu0 %v1005, 80
      %v10302 = vpop.permute.xlu0 %10301
      %10303 = vrot.lane.b32.xlu0 %v1006, 80
      %v10304 = vpop.permute.xlu0 %10303
      %10305 = vrot.lane.b32.xlu0 %v1007, 80
      %v10306 = vpop.permute.xlu0 %10305
      %v10307 = vsel %vm1121, %v10276, 0
      %v10309 = vsel %vm1121, %v10278, 0
      %v10311 = vsel %vm1121, %v10280, 0
      %v10313 = vsel %vm1121, %v10282, 0
      %v10315 = vsel %vm1121, %v10284, 0
      %v10317 = vsel %vm1121, %v10286, 0
      %v10319 = vsel %vm1121, %v10288, 0
      %v10321 = vsel %vm1121, %v10290, 0
      %v10323 = vsel %vm1121, %v10292, 0
      %v10325 = vsel %vm1121, %v10294, 0
      %v10327 = vsel %vm1121, %v10296, 0
      %v10329 = vsel %vm1121, %v10298, 0
      %v10331 = vsel %vm1121, %v10300, 0
      %v10333 = vsel %vm1121, %v10302, 0
      %v10335 = vsel %vm1121, %v10304, 0
      %v10337 = vsel %vm1121, %v10306, 0
      %10339 = vmatprep.subr.mxu0 0.0
      %10340 = vmatpush1.xpose.msra.mxu0 %v10323
      %10341 = vmatprep.subr.mxu0 0.0
      %10342 = vmatpush1.xpose.msra.mxu0 %v10325
      %10343 = vmatprep.subr.mxu0 0.0
      %10344 = vmatpush1.xpose.msra.mxu0 %v10327
      %10345 = vmatprep.subr.mxu0 0.0
      %10346 = vmatpush1.xpose.msra.mxu0 %v10329
      %10347 = vmatprep.subr.mxu0 0.0
      %10348 = vmatpush1.xpose.msra.mxu0 %v10331
      %10349 = vmatprep.subr.mxu0 0.0
      %10350 = vmatpush1.xpose.msra.mxu0 %v10333
      %10351 = vmatprep.subr.mxu0 0.0
      %10352 = vmatpush1.xpose.msra.mxu0 %v10335
      %10353 = vmatprep.subr.mxu0 0.0
      %10354 = vmatpush1.xpose.msra.mxu0 %v10337
      %10355 = vmatprep.subr.mxu0 0.0
      %10356 = vmatpush1.xpose.msra.mxu0 0.0
      %10357 = vmatprep.subr.mxu0 0.0
      %10358 = vmatpush1.xpose.msra.mxu0 0.0
      %10359 = vmatprep.subr.mxu0 0.0
      %10360 = vmatpush1.xpose.msra.mxu0 0.0
      %10361 = vmatprep.subr.mxu0 0.0
      %10362 = vmatpush1.xpose.msra.mxu0 0.0
      %10363 = vmatprep.subr.mxu0 0.0
      %10364 = vmatpush1.xpose.msra.mxu0 0.0
      %10365 = vmatprep.subr.mxu0 0.0
      %10366 = vmatpush1.xpose.msra.mxu0 0.0
      %10367 = vmatprep.subr.mxu0 0.0
      %10368 = vmatpush1.xpose.msra.mxu0 0.0
      %10369 = vmatprep.subr.mxu0 0.0
      %10370 = vmatpush1.xpose.msra.mxu0 0.0
      %10371 = vmatprep.subr.mxu0 0.0
      %10372 = vmatpush1.xpose.msra.mxu0 0.0
      %10373 = vmatprep.subr.mxu0 0.0
      %10374 = vmatpush1.xpose.msra.mxu0 0.0
      %10375 = vmatprep.subr.mxu0 0.0
      %10376 = vmatpush1.xpose.msra.mxu0 0.0
      %10377 = vmatprep.subr.mxu0 0.0
      %10378 = vmatpush1.xpose.msra.mxu0 0.0
      %10379 = vmatprep.subr.mxu0 0.0
      %10380 = vmatpush1.xpose.msra.mxu0 0.0
      %10381 = vmatprep.subr.mxu0 0.0
      %10382 = vmatpush1.xpose.msra.mxu0 0.0
      %10383 = vmatprep.subr.mxu0 0.0
      %10384 = vmatpush1.xpose.msra.mxu0 0.0
      %10385 = vmatprep.subr.mxu0 0.0
      %10386 = vmatpush1.xpose.msra.mxu0 0.0
      %10387 = vmatprep.subr.mxu0 0.0
      %10388 = vmatpush1.xpose.msra.mxu0 0.0
      %10389 = vmatprep.subr.mxu0 0.0
      %10390 = vmatpush1.xpose.msra.mxu0 0.0
      %10391 = vmatprep.subr.mxu0 0.0
      %10392 = vmatpush1.xpose.msra.mxu0 0.0
      %10393 = vmatprep.subr.mxu0 0.0
      %10394 = vmatpush1.xpose.msra.mxu0 0.0
      %10395 = vmatprep.subr.mxu0 0.0
      %10396 = vmatpush1.xpose.msra.mxu0 0.0
      %10397 = vmatprep.subr.mxu0 0.0
      %10398 = vmatpush1.xpose.msra.mxu0 0.0
      %10399 = vmatprep.subr.mxu0 0.0
      %10400 = vmatpush1.xpose.msra.mxu0 0.0
      %10401 = vmatprep.subr.mxu0 0.0
      %10402 = vmatpush1.xpose.msra.mxu0 0.0
      %10403 = vmatprep.mubr.f32.mxu0 0.0
      %10404 = vmatmul.mubr.f32.gmra.mrb[0].mxu0 %v10307
      %v10405 = vpop.f32.mrb[0].mxu0
      %v10406 = vadd.f32 %v9921, %v10405
      %v10407 = vpop.f32.mrb[0].mxu0
      %10408 = vmatprep.mubr.f32.mxu0 0.0
      %10409 = vmatmul.mubr.f32.gmra.mrb[0].mxu0 %v10309
      %v10410 = vpop.f32.mrb[0].mxu0
      %v10411 = vadd.f32 %v9922, %v10410
      %v10412 = vpop.f32.mrb[0].mxu0
      %10413 = vmatprep.mubr.f32.mxu0 0.0
      %10414 = vmatmul.mubr.f32.gmra.mrb[0].mxu0 %v10311
      %v10415 = vpop.f32.mrb[0].mxu0
      %v10416 = vadd.f32 %v9923, %v10415
      %v10417 = vpop.f32.mrb[0].mxu0
      %10418 = vmatprep.mubr.f32.mxu0 0.0
      %10419 = vmatmul.mubr.f32.gmra.mrb[0].mxu0 %v10313
      %v10420 = vpop.f32.mrb[0].mxu0
      %v10421 = vadd.f32 %v9924, %v10420
      %v10422 = vpop.f32.mrb[0].mxu0
      %10423 = vmatprep.mubr.f32.mxu0 0.0
      %10424 = vmatmul.mubr.f32.gmra.mrb[0].mxu0 %v10315
      %v10425 = vpop.f32.mrb[0].mxu0
      %v10426 = vadd.f32 %v9925, %v10425
      %v10427 = vpop.f32.mrb[0].mxu0
      %10428 = vmatprep.mubr.f32.mxu0 0.0
      %10429 = vmatmul.mubr.f32.gmra.mrb[0].mxu0 %v10317
      %v10430 = vpop.f32.mrb[0].mxu0
      %v10431 = vadd.f32 %v9926, %v10430
      %v10432 = vpop.f32.mrb[0].mxu0
      %10433 = vmatprep.mubr.f32.mxu0 0.0
      %10434 = vmatmul.mubr.f32.gmra.mrb[0].mxu0 %v10319
      %v10435 = vpop.f32.mrb[0].mxu0
      %v10436 = vadd.f32 %v9927, %v10435
      %v10437 = vpop.f32.mrb[0].mxu0
      %10438 = vmatprep.mubr.f32.mxu0 0.0
      %10439 = vmatmul.mubr.f32.gmra.mrb[0].mxu0 %v10321
      %v10440 = vpop.f32.mrb[0].mxu0
      %v10441 = vadd.f32 %v9928, %v10440
      %v10442 = vpop.f32.mrb[0].mxu0
      %10443 = vdwg.mxu0
      %10444 = vrot.lane.b32.xlu0 %v3906, 80
      %v10445 = vpop.permute.xlu0 %10444
      %10446 = vrot.lane.b32.xlu0 %v3907, 80
      %v10447 = vpop.permute.xlu0 %10446
      %10448 = vrot.lane.b32.xlu0 %v3908, 80
      %v10449 = vpop.permute.xlu0 %10448
      %10450 = vrot.lane.b32.xlu0 %v3909, 80
      %v10451 = vpop.permute.xlu0 %10450
      %10452 = vrot.lane.b32.xlu0 %v3910, 80
      %v10453 = vpop.permute.xlu0 %10452
      %10454 = vrot.lane.b32.xlu0 %v3911, 80
      %v10455 = vpop.permute.xlu0 %10454
      %10456 = vrot.lane.b32.xlu0 %v3912, 80
      %v10457 = vpop.permute.xlu0 %10456
      %10458 = vrot.lane.b32.xlu0 %v3913, 80
      %v10459 = vpop.permute.xlu0 %10458
      %10460 = vrot.lane.b32.xlu0 %v1008, 80
      %v10461 = vpop.permute.xlu0 %10460
      %10462 = vrot.lane.b32.xlu0 %v1009, 80
      %v10463 = vpop.permute.xlu0 %10462
      %10464 = vrot.lane.b32.xlu0 %v1010, 80
      %v10465 = vpop.permute.xlu0 %10464
      %10466 = vrot.lane.b32.xlu0 %v1011, 80
      %v10467 = vpop.permute.xlu0 %10466
      %10468 = vrot.lane.b32.xlu0 %v1012, 80
      %v10469 = vpop.permute.xlu0 %10468
      %10470 = vrot.lane.b32.xlu0 %v1013, 80
      %v10471 = vpop.permute.xlu0 %10470
      %10472 = vrot.lane.b32.xlu0 %v1014, 80
      %v10473 = vpop.permute.xlu0 %10472
      %10474 = vrot.lane.b32.xlu0 %v1015, 80
      %v10475 = vpop.permute.xlu0 %10474
      %v10476 = vsel %vm1121, %v10445, 0
      %v10478 = vsel %vm1121, %v10447, 0
      %v10480 = vsel %vm1121, %v10449, 0
      %v10482 = vsel %vm1121, %v10451, 0
      %v10484 = vsel %vm1121, %v10453, 0
      %v10486 = vsel %vm1121, %v10455, 0
      %v10488 = vsel %vm1121, %v10457, 0
      %v10490 = vsel %vm1121, %v10459, 0
      %v10492 = vsel %vm1121, %v10461, 0
      %v10494 = vsel %vm1121, %v10463, 0
      %v10496 = vsel %vm1121, %v10465, 0
      %v10498 = vsel %vm1121, %v10467, 0
      %v10500 = vsel %vm1121, %v10469, 0
      %v10502 = vsel %vm1121, %v10471, 0
      %v10504 = vsel %vm1121, %v10473, 0
      %v10506 = vsel %vm1121, %v10475, 0
      %10508 = vmatprep.subr.mxu0 0.0
      %10509 = vmatpush1.xpose.msra.mxu0 %v10492
      %10510 = vmatprep.subr.mxu0 0.0
      %10511 = vmatpush1.xpose.msra.mxu0 %v10494
      %10512 = vmatprep.subr.mxu0 0.0
      %10513 = vmatpush1.xpose.msra.mxu0 %v10496
      %10514 = vmatprep.subr.mxu0 0.0
      %10515 = vmatpush1.xpose.msra.mxu0 %v10498
      %10516 = vmatprep.subr.mxu0 0.0
      %10517 = vmatpush1.xpose.msra.mxu0 %v10500
      %10518 = vmatprep.subr.mxu0 0.0
      %10519 = vmatpush1.xpose.msra.mxu0 %v10502
      %10520 = vmatprep.subr.mxu0 0.0
      %10521 = vmatpush1.xpose.msra.mxu0 %v10504
      %10522 = vmatprep.subr.mxu0 0.0
      %10523 = vmatpush1.xpose.msra.mxu0 %v10506
      %10524 = vmatprep.subr.mxu0 0.0
      %10525 = vmatpush1.xpose.msra.mxu0 0.0
      %10526 = vmatprep.subr.mxu0 0.0
      %10527 = vmatpush1.xpose.msra.mxu0 0.0
      %10528 = vmatprep.subr.mxu0 0.0
      %10529 = vmatpush1.xpose.msra.mxu0 0.0
      %10530 = vmatprep.subr.mxu0 0.0
      %10531 = vmatpush1.xpose.msra.mxu0 0.0
      %10532 = vmatprep.subr.mxu0 0.0
      %10533 = vmatpush1.xpose.msra.mxu0 0.0
      %10534 = vmatprep.subr.mxu0 0.0
      %10535 = vmatpush1.xpose.msra.mxu0 0.0
      %10536 = vmatprep.subr.mxu0 0.0
      %10537 = vmatpush1.xpose.msra.mxu0 0.0
      %10538 = vmatprep.subr.mxu0 0.0
      %10539 = vmatpush1.xpose.msra.mxu0 0.0
      %10540 = vmatprep.subr.mxu0 0.0
      %10541 = vmatpush1.xpose.msra.mxu0 0.0
      %10542 = vmatprep.subr.mxu0 0.0
      %10543 = vmatpush1.xpose.msra.mxu0 0.0
      %10544 = vmatprep.subr.mxu0 0.0
      %10545 = vmatpush1.xpose.msra.mxu0 0.0
      %10546 = vmatprep.subr.mxu0 0.0
      %10547 = vmatpush1.xpose.msra.mxu0 0.0
      %10548 = vmatprep.subr.mxu0 0.0
      %10549 = vmatpush1.xpose.msra.mxu0 0.0
      %10550 = vmatprep.subr.mxu0 0.0
      %10551 = vmatpush1.xpose.msra.mxu0 0.0
      %10552 = vmatprep.subr.mxu0 0.0
      %10553 = vmatpush1.xpose.msra.mxu0 0.0
      %10554 = vmatprep.subr.mxu0 0.0
      %10555 = vmatpush1.xpose.msra.mxu0 0.0
      %10556 = vmatprep.subr.mxu0 0.0
      %10557 = vmatpush1.xpose.msra.mxu0 0.0
      %10558 = vmatprep.subr.mxu0 0.0
      %10559 = vmatpush1.xpose.msra.mxu0 0.0
      %10560 = vmatprep.subr.mxu0 0.0
      %10561 = vmatpush1.xpose.msra.mxu0 0.0
      %10562 = vmatprep.subr.mxu0 0.0
      %10563 = vmatpush1.xpose.msra.mxu0 0.0
      %10564 = vmatprep.subr.mxu0 0.0
      %10565 = vmatpush1.xpose.msra.mxu0 0.0
      %10566 = vmatprep.subr.mxu0 0.0
      %10567 = vmatpush1.xpose.msra.mxu0 0.0
      %10568 = vmatprep.subr.mxu0 0.0
      %10569 = vmatpush1.xpose.msra.mxu0 0.0
      %10570 = vmatprep.subr.mxu0 0.0
      %10571 = vmatpush1.xpose.msra.mxu0 0.0
      %10572 = vmatprep.mubr.f32.mxu0 0.0
      %10573 = vmatmul.mubr.f32.gmra.mrb[0].mxu0 %v10476
      %v10574 = vpop.f32.mrb[0].mxu0
      %v10575 = vadd.f32 %v9929, %v10574
      %v10576 = vpop.f32.mrb[0].mxu0
      %10577 = vmatprep.mubr.f32.mxu0 0.0
      %10578 = vmatmul.mubr.f32.gmra.mrb[0].mxu0 %v10478
      %v10579 = vpop.f32.mrb[0].mxu0
      %v10580 = vadd.f32 %v9930, %v10579
      %v10581 = vpop.f32.mrb[0].mxu0
      %10582 = vmatprep.mubr.f32.mxu0 0.0
      %10583 = vmatmul.mubr.f32.gmra.mrb[0].mxu0 %v10480
      %v10584 = vpop.f32.mrb[0].mxu0
      %v10585 = vadd.f32 %v9931, %v10584
      %v10586 = vpop.f32.mrb[0].mxu0
      %10587 = vmatprep.mubr.f32.mxu0 0.0
      %10588 = vmatmul.mubr.f32.gmra.mrb[0].mxu0 %v10482
      %v10589 = vpop.f32.mrb[0].mxu0
      %v10590 = vadd.f32 %v9932, %v10589
      %v10591 = vpop.f32.mrb[0].mxu0
      %10592 = vmatprep.mubr.f32.mxu0 0.0
      %10593 = vmatmul.mubr.f32.gmra.mrb[0].mxu0 %v10484
      %v10594 = vpop.f32.mrb[0].mxu0
      %v10595 = vadd.f32 %v9933, %v10594
      %v10596 = vpop.f32.mrb[0].mxu0
      %10597 = vmatprep.mubr.f32.mxu0 0.0
      %10598 = vmatmul.mubr.f32.gmra.mrb[0].mxu0 %v10486
      %v10599 = vpop.f32.mrb[0].mxu0
      %v10600 = vadd.f32 %v9934, %v10599
      %v10601 = vpop.f32.mrb[0].mxu0
      %10602 = vmatprep.mubr.f32.mxu0 0.0
      %10603 = vmatmul.mubr.f32.gmra.mrb[0].mxu0 %v10488
      %v10604 = vpop.f32.mrb[0].mxu0
      %v10605 = vadd.f32 %v9935, %v10604
      %v10606 = vpop.f32.mrb[0].mxu0
      %10607 = vmatprep.mubr.f32.mxu0 0.0
      %10608 = vmatmul.mubr.f32.gmra.mrb[0].mxu0 %v10490
      %v10609 = vpop.f32.mrb[0].mxu0
      %v10610 = vadd.f32 %v9936, %v10609
      %v10611 = vpop.f32.mrb[0].mxu0
      %10612 = vdwg.mxu0
      %v10613 = vsel %vm423, %v10068, -inf
      %10614 = vmax.xlane.f32.xlu0 %v10613
      %v10615 = vpop.xlane.xlu0 %10614
      %v10616 = vsel %vm423, %v10073, -inf
      %10617 = vmax.xlane.f32.xlu0 %v10616
      %v10618 = vpop.xlane.xlu0 %10617
      %v10619 = vsel %vm423, %v10078, -inf
      %10620 = vmax.xlane.f32.xlu0 %v10619
      %v10621 = vpop.xlane.xlu0 %10620
      %v10622 = vsel %vm423, %v10083, -inf
      %10623 = vmax.xlane.f32.xlu0 %v10622
      %v10624 = vpop.xlane.xlu0 %10623
      %v10625 = vsel %vm423, %v10088, -inf
      %10626 = vmax.xlane.f32.xlu0 %v10625
      %v10627 = vpop.xlane.xlu0 %10626
      %v10628 = vsel %vm423, %v10093, -inf
      %10629 = vmax.xlane.f32.xlu0 %v10628
      %v10630 = vpop.xlane.xlu0 %10629
      %v10631 = vsel %vm423, %v10098, -inf
      %10632 = vmax.xlane.f32.xlu0 %v10631
      %v10633 = vpop.xlane.xlu0 %10632
      %v10634 = vsel %vm423, %v10103, -inf
      %10635 = vmax.xlane.f32.xlu0 %v10634
      %v10636 = vpop.xlane.xlu0 %10635
      %v10637 = vsel %vm423, %v10237, -inf
      %10638 = vmax.xlane.f32.xlu0 %v10637
      %v10639 = vpop.xlane.xlu0 %10638
      %v10640 = vsel %vm423, %v10242, -inf
      %10641 = vmax.xlane.f32.xlu0 %v10640
      %v10642 = vpop.xlane.xlu0 %10641
      %v10643 = vsel %vm423, %v10247, -inf
      %10644 = vmax.xlane.f32.xlu0 %v10643
      %v10645 = vpop.xlane.xlu0 %10644
      %v10646 = vsel %vm423, %v10252, -inf
      %10647 = vmax.xlane.f32.xlu0 %v10646
      %v10648 = vpop.xlane.xlu0 %10647
      %v10649 = vsel %vm423, %v10257, -inf
      %10650 = vmax.xlane.f32.xlu0 %v10649
      %v10651 = vpop.xlane.xlu0 %10650
      %v10652 = vsel %vm423, %v10262, -inf
      %10653 = vmax.xlane.f32.xlu0 %v10652
      %v10654 = vpop.xlane.xlu0 %10653
      %v10655 = vsel %vm423, %v10267, -inf
      %10656 = vmax.xlane.f32.xlu0 %v10655
      %v10657 = vpop.xlane.xlu0 %10656
      %v10658 = vsel %vm423, %v10272, -inf
      %10659 = vmax.xlane.f32.xlu0 %v10658
      %v10660 = vpop.xlane.xlu0 %10659
      %v10661 = vsel %vm423, %v10406, -inf
      %10662 = vmax.xlane.f32.xlu0 %v10661
      %v10663 = vpop.xlane.xlu0 %10662
      %v10664 = vsel %vm423, %v10411, -inf
      %10665 = vmax.xlane.f32.xlu0 %v10664
      %v10666 = vpop.xlane.xlu0 %10665
      %v10667 = vsel %vm423, %v10416, -inf
      %10668 = vmax.xlane.f32.xlu0 %v10667
      %v10669 = vpop.xlane.xlu0 %10668
      %v10670 = vsel %vm423, %v10421, -inf
      %10671 = vmax.xlane.f32.xlu0 %v10670
      %v10672 = vpop.xlane.xlu0 %10671
      %v10673 = vsel %vm423, %v10426, -inf
      %10674 = vmax.xlane.f32.xlu0 %v10673
      %v10675 = vpop.xlane.xlu0 %10674
      %v10676 = vsel %vm423, %v10431, -inf
      %10677 = vmax.xlane.f32.xlu0 %v10676
      %v10678 = vpop.xlane.xlu0 %10677
      %v10679 = vsel %vm423, %v10436, -inf
      %10680 = vmax.xlane.f32.xlu0 %v10679
      %v10681 = vpop.xlane.xlu0 %10680
      %v10682 = vsel %vm423, %v10441, -inf
      %10683 = vmax.xlane.f32.xlu0 %v10682
      %v10684 = vpop.xlane.xlu0 %10683
      %v10685 = vsel %vm423, %v10575, -inf
      %10686 = vmax.xlane.f32.xlu0 %v10685
      %v10687 = vpop.xlane.xlu0 %10686
      %v10688 = vsel %vm423, %v10580, -inf
      %10689 = vmax.xlane.f32.xlu0 %v10688
      %v10690 = vpop.xlane.xlu0 %10689
      %v10691 = vsel %vm423, %v10585, -inf
      %10692 = vmax.xlane.f32.xlu0 %v10691
      %v10693 = vpop.xlane.xlu0 %10692
      %v10694 = vsel %vm423, %v10590, -inf
      %10695 = vmax.xlane.f32.xlu0 %v10694
      %v10696 = vpop.xlane.xlu0 %10695
      %v10697 = vsel %vm423, %v10595, -inf
      %10698 = vmax.xlane.f32.xlu0 %v10697
      %v10699 = vpop.xlane.xlu0 %10698
      %v10700 = vsel %vm423, %v10600, -inf
      %10701 = vmax.xlane.f32.xlu0 %v10700
      %v10702 = vpop.xlane.xlu0 %10701
      %v10703 = vsel %vm423, %v10605, -inf
      %10704 = vmax.xlane.f32.xlu0 %v10703
      %v10705 = vpop.xlane.xlu0 %10704
      %v10706 = vsel %vm423, %v10610, -inf
      %10707 = vmax.xlane.f32.xlu0 %v10706
      %v10708 = vpop.xlane.xlu0 %10707
      %v10709 = vsub.f32 %v10068, %v10615
      %v10710 = vsub.f32 %v10073, %v10618
      %v10711 = vsub.f32 %v10078, %v10621
      %v10712 = vsub.f32 %v10083, %v10624
      %v10713 = vsub.f32 %v10088, %v10627
      %v10714 = vsub.f32 %v10093, %v10630
      %v10715 = vsub.f32 %v10098, %v10633
      %v10716 = vsub.f32 %v10103, %v10636
      %v10717 = vsub.f32 %v10237, %v10639
      %v10718 = vsub.f32 %v10242, %v10642
      %v10719 = vsub.f32 %v10247, %v10645
      %v10720 = vsub.f32 %v10252, %v10648
      %v10721 = vsub.f32 %v10257, %v10651
      %v10722 = vsub.f32 %v10262, %v10654
      %v10723 = vsub.f32 %v10267, %v10657
      %v10724 = vsub.f32 %v10272, %v10660
      %v10725 = vsub.f32 %v10406, %v10663
      %v10726 = vsub.f32 %v10411, %v10666
      %v10727 = vsub.f32 %v10416, %v10669
      %v10728 = vsub.f32 %v10421, %v10672
      %v10729 = vsub.f32 %v10426, %v10675
      %v10730 = vsub.f32 %v10431, %v10678
      %v10731 = vsub.f32 %v10436, %v10681
      %v10732 = vsub.f32 %v10441, %v10684
      %v10733 = vsub.f32 %v10575, %v10687
      %v10734 = vsub.f32 %v10580, %v10690
      %v10735 = vsub.f32 %v10585, %v10693
      %v10736 = vsub.f32 %v10590, %v10696
      %v10737 = vsub.f32 %v10595, %v10699
      %v10738 = vsub.f32 %v10600, %v10702
      %v10739 = vsub.f32 %v10605, %v10705
      %v10740 = vsub.f32 %v10610, %v10708
      %v10741 = vmul.f32 %v10709, 1.442695
      %v10742 = vpow.pop %v10741
      %v10743 = vmul.f32 %v10710, 1.442695
      %v10744 = vpow.pop %v10743
      %v10745 = vmul.f32 %v10711, 1.442695
      %v10746 = vpow.pop %v10745
      %v10747 = vmul.f32 %v10712, 1.442695
      %v10748 = vpow.pop %v10747
      %v10749 = vmul.f32 %v10713, 1.442695
      %v10750 = vpow.pop %v10749
      %v10751 = vmul.f32 %v10714, 1.442695
      %v10752 = vpow.pop %v10751
      %v10753 = vmul.f32 %v10715, 1.442695
      %v10754 = vpow.pop %v10753
      %v10755 = vmul.f32 %v10716, 1.442695
      %v10756 = vpow.pop %v10755
      %v10757 = vmul.f32 %v10717, 1.442695
      %v10758 = vpow.pop %v10757
      %v10759 = vmul.f32 %v10718, 1.442695
      %v10760 = vpow.pop %v10759
      %v10761 = vmul.f32 %v10719, 1.442695
      %v10762 = vpow.pop %v10761
      %v10763 = vmul.f32 %v10720, 1.442695
      %v10764 = vpow.pop %v10763
      %v10765 = vmul.f32 %v10721, 1.442695
      %v10766 = vpow.pop %v10765
      %v10767 = vmul.f32 %v10722, 1.442695
      %v10768 = vpow.pop %v10767
      %v10769 = vmul.f32 %v10723, 1.442695
      %v10770 = vpow.pop %v10769
      %v10771 = vmul.f32 %v10724, 1.442695
      %v10772 = vpow.pop %v10771
      %v10773 = vmul.f32 %v10725, 1.442695
      %v10774 = vpow.pop %v10773
      %v10775 = vmul.f32 %v10726, 1.442695
      %v10776 = vpow.pop %v10775
      %v10777 = vmul.f32 %v10727, 1.442695
      %v10778 = vpow.pop %v10777
      %v10779 = vmul.f32 %v10728, 1.442695
      %v10780 = vpow.pop %v10779
      %v10781 = vmul.f32 %v10729, 1.442695
      %v10782 = vpow.pop %v10781
      %v10783 = vmul.f32 %v10730, 1.442695
      %v10784 = vpow.pop %v10783
      %v10785 = vmul.f32 %v10731, 1.442695
      %v10786 = vpow.pop %v10785
      %v10787 = vmul.f32 %v10732, 1.442695
      %v10788 = vpow.pop %v10787
      %v10789 = vmul.f32 %v10733, 1.442695
      %v10790 = vpow.pop %v10789
      %v10791 = vmul.f32 %v10734, 1.442695
      %v10792 = vpow.pop %v10791
      %v10793 = vmul.f32 %v10735, 1.442695
      %v10794 = vpow.pop %v10793
      %v10795 = vmul.f32 %v10736, 1.442695
      %v10796 = vpow.pop %v10795
      %v10797 = vmul.f32 %v10737, 1.442695
      %v10798 = vpow.pop %v10797
      %v10799 = vmul.f32 %v10738, 1.442695
      %v10800 = vpow.pop %v10799
      %v10801 = vmul.f32 %v10739, 1.442695
      %v10802 = vpow.pop %v10801
      %v10803 = vmul.f32 %v10740, 1.442695
      %v10804 = vpow.pop %v10803
      %v10805 = vsel %vm423, %v10742, 0.0
      %10806 = vadd.xlane.f32.xlu0 %v10805
      %v10807 = vpop.xlane.xlu0 %10806
      %v10808 = vsel %vm423, %v10744, 0.0
      %10809 = vadd.xlane.f32.xlu0 %v10808
      %v10810 = vpop.xlane.xlu0 %10809
      %v10811 = vsel %vm423, %v10746, 0.0
      %10812 = vadd.xlane.f32.xlu0 %v10811
      %v10813 = vpop.xlane.xlu0 %10812
      %v10814 = vsel %vm423, %v10748, 0.0
      %10815 = vadd.xlane.f32.xlu0 %v10814
      %v10816 = vpop.xlane.xlu0 %10815
      %v10817 = vsel %vm423, %v10750, 0.0
      %10818 = vadd.xlane.f32.xlu0 %v10817
      %v10819 = vpop.xlane.xlu0 %10818
      %v10820 = vsel %vm423, %v10752, 0.0
      %10821 = vadd.xlane.f32.xlu0 %v10820
      %v10822 = vpop.xlane.xlu0 %10821
      %v10823 = vsel %vm423, %v10754, 0.0
      %10824 = vadd.xlane.f32.xlu0 %v10823
      %v10825 = vpop.xlane.xlu0 %10824
      %v10826 = vsel %vm423, %v10756, 0.0
      %10827 = vadd.xlane.f32.xlu0 %v10826
      %v10828 = vpop.xlane.xlu0 %10827
      %v10829 = vsel %vm423, %v10758, 0.0
      %10830 = vadd.xlane.f32.xlu0 %v10829
      %v10831 = vpop.xlane.xlu0 %10830
      %v10832 = vsel %vm423, %v10760, 0.0
      %10833 = vadd.xlane.f32.xlu0 %v10832
      %v10834 = vpop.xlane.xlu0 %10833
      %v10835 = vsel %vm423, %v10762, 0.0
      %10836 = vadd.xlane.f32.xlu0 %v10835
      %v10837 = vpop.xlane.xlu0 %10836
      %v10838 = vsel %vm423, %v10764, 0.0
      %10839 = vadd.xlane.f32.xlu0 %v10838
      %v10840 = vpop.xlane.xlu0 %10839
      %v10841 = vsel %vm423, %v10766, 0.0
      %10842 = vadd.xlane.f32.xlu0 %v10841
      %v10843 = vpop.xlane.xlu0 %10842
      %v10844 = vsel %vm423, %v10768, 0.0
      %10845 = vadd.xlane.f32.xlu0 %v10844
      %v10846 = vpop.xlane.xlu0 %10845
      %v10847 = vsel %vm423, %v10770, 0.0
      %10848 = vadd.xlane.f32.xlu0 %v10847
      %v10849 = vpop.xlane.xlu0 %10848
      %v10850 = vsel %vm423, %v10772, 0.0
      %10851 = vadd.xlane.f32.xlu0 %v10850
      %v10852 = vpop.xlane.xlu0 %10851
      %v10853 = vsel %vm423, %v10774, 0.0
      %10854 = vadd.xlane.f32.xlu0 %v10853
      %v10855 = vpop.xlane.xlu0 %10854
      %v10856 = vsel %vm423, %v10776, 0.0
      %10857 = vadd.xlane.f32.xlu0 %v10856
      %v10858 = vpop.xlane.xlu0 %10857
      %v10859 = vsel %vm423, %v10778, 0.0
      %10860 = vadd.xlane.f32.xlu0 %v10859
      %v10861 = vpop.xlane.xlu0 %10860
      %v10862 = vsel %vm423, %v10780, 0.0
      %10863 = vadd.xlane.f32.xlu0 %v10862
      %v10864 = vpop.xlane.xlu0 %10863
      %v10865 = vsel %vm423, %v10782, 0.0
      %10866 = vadd.xlane.f32.xlu0 %v10865
      %v10867 = vpop.xlane.xlu0 %10866
      %v10868 = vsel %vm423, %v10784, 0.0
      %10869 = vadd.xlane.f32.xlu0 %v10868
      %v10870 = vpop.xlane.xlu0 %10869
      %v10871 = vsel %vm423, %v10786, 0.0
      %10872 = vadd.xlane.f32.xlu0 %v10871
      %v10873 = vpop.xlane.xlu0 %10872
      %v10874 = vsel %vm423, %v10788, 0.0
      %10875 = vadd.xlane.f32.xlu0 %v10874
      %v10876 = vpop.xlane.xlu0 %10875
      %v10877 = vsel %vm423, %v10790, 0.0
      %10878 = vadd.xlane.f32.xlu0 %v10877
      %v10879 = vpop.xlane.xlu0 %10878
      %v10880 = vsel %vm423, %v10792, 0.0
      %10881 = vadd.xlane.f32.xlu0 %v10880
      %v10882 = vpop.xlane.xlu0 %10881
      %v10883 = vsel %vm423, %v10794, 0.0
      %10884 = vadd.xlane.f32.xlu0 %v10883
      %v10885 = vpop.xlane.xlu0 %10884
      %v10886 = vsel %vm423, %v10796, 0.0
      %10887 = vadd.xlane.f32.xlu0 %v10886
      %v10888 = vpop.xlane.xlu0 %10887
      %v10889 = vsel %vm423, %v10798, 0.0
      %10890 = vadd.xlane.f32.xlu0 %v10889
      %v10891 = vpop.xlane.xlu0 %10890
      %v10892 = vsel %vm423, %v10800, 0.0
      %10893 = vadd.xlane.f32.xlu0 %v10892
      %v10894 = vpop.xlane.xlu0 %10893
      %v10895 = vsel %vm423, %v10802, 0.0
      %10896 = vadd.xlane.f32.xlu0 %v10895
      %v10897 = vpop.xlane.xlu0 %10896
      %v10898 = vsel %vm423, %v10804, 0.0
      %10899 = vadd.xlane.f32.xlu0 %v10898
      %v10900 = vpop.xlane.xlu0 %10899
      %v10901 = vrcp.pop %v10807
      %v10902 = vrcp.pop %v10810
      %v10903 = vrcp.pop %v10813
      %v10904 = vrcp.pop %v10816
      %v10905 = vrcp.pop %v10819
      %v10906 = vrcp.pop %v10822
      %v10907 = vrcp.pop %v10825
      %v10908 = vrcp.pop %v10828
      %v10909 = vrcp.pop %v10831
      %v10910 = vrcp.pop %v10834
      %v10911 = vrcp.pop %v10837
      %v10912 = vrcp.pop %v10840
      %v10913 = vrcp.pop %v10843
      %v10914 = vrcp.pop %v10846
      %v10915 = vrcp.pop %v10849
      %v10916 = vrcp.pop %v10852
      %v10917 = vrcp.pop %v10855
      %v10918 = vrcp.pop %v10858
      %v10919 = vrcp.pop %v10861
      %v10920 = vrcp.pop %v10864
      %v10921 = vrcp.pop %v10867
      %v10922 = vrcp.pop %v10870
      %v10923 = vrcp.pop %v10873
      %v10924 = vrcp.pop %v10876
      %v10925 = vrcp.pop %v10879
      %v10926 = vrcp.pop %v10882
      %v10927 = vrcp.pop %v10885
      %v10928 = vrcp.pop %v10888
      %v10929 = vrcp.pop %v10891
      %v10930 = vrcp.pop %v10894
      %v10931 = vrcp.pop %v10897
      %v10932 = vrcp.pop %v10900
      %v10933 = vmul.f32 %v10742, %v10901
      %v10934 = vmul.f32 %v10744, %v10902
      %v10935 = vmul.f32 %v10746, %v10903
      %v10936 = vmul.f32 %v10748, %v10904
      %v10937 = vmul.f32 %v10750, %v10905
      %v10938 = vmul.f32 %v10752, %v10906
      %v10939 = vmul.f32 %v10754, %v10907
      %v10940 = vmul.f32 %v10756, %v10908
      %v10941 = vmul.f32 %v10758, %v10909
      %v10942 = vmul.f32 %v10760, %v10910
      %v10943 = vmul.f32 %v10762, %v10911
      %v10944 = vmul.f32 %v10764, %v10912
      %v10945 = vmul.f32 %v10766, %v10913
      %v10946 = vmul.f32 %v10768, %v10914
      %v10947 = vmul.f32 %v10770, %v10915
      %v10948 = vmul.f32 %v10772, %v10916
      %v10949 = vmul.f32 %v10774, %v10917
      %v10950 = vmul.f32 %v10776, %v10918
      %v10951 = vmul.f32 %v10778, %v10919
      %v10952 = vmul.f32 %v10780, %v10920
      %v10953 = vmul.f32 %v10782, %v10921
      %v10954 = vmul.f32 %v10784, %v10922
      %v10955 = vmul.f32 %v10786, %v10923
      %v10956 = vmul.f32 %v10788, %v10924
      %v10957 = vmul.f32 %v10790, %v10925
      %v10958 = vmul.f32 %v10792, %v10926
      %v10959 = vmul.f32 %v10794, %v10927
      %v10960 = vmul.f32 %v10796, %v10928
      %v10961 = vmul.f32 %v10798, %v10929
      %v10962 = vmul.f32 %v10800, %v10930
      %v10963 = vmul.f32 %v10802, %v10931
      %v10964 = vmul.f32 %v10804, %v10932
      %v10966 = vsel %vm423, %v10933, 0
      %v10969 = vsel %vm423, %v10934, 0
      %v10972 = vsel %vm423, %v10935, 0
      %v10975 = vsel %vm423, %v10936, 0
      %v10978 = vsel %vm423, %v10937, 0
      %v10981 = vsel %vm423, %v10938, 0
      %v10984 = vsel %vm423, %v10939, 0
      %v10987 = vsel %vm423, %v10940, 0
      %10989 = vmatprep.subr.mxu0 0.0
      %10990 = vmatpush1.msra.mxu0 %v2312
      %10991 = vmatprep.subr.mxu0 0.0
      %10992 = vmatpush1.msra.mxu0 %v2317
      %10993 = vmatprep.subr.mxu0 0.0
      %10994 = vmatpush1.msra.mxu0 %v2322
      %10995 = vmatprep.subr.mxu0 0.0
      %10996 = vmatpush1.msra.mxu0 %v2327
      %10997 = vmatprep.subr.mxu0 0.0
      %10998 = vmatpush1.msra.mxu0 %v2332
      %10999 = vmatprep.subr.mxu0 0.0
      %11000 = vmatpush1.msra.mxu0 %v2337
      %11001 = vmatprep.subr.mxu0 0.0
      %11002 = vmatpush1.msra.mxu0 %v2342
      %11003 = vmatprep.subr.mxu0 0.0
      %11004 = vmatpush1.msra.mxu0 %v2347
      %11005 = vmatprep.subr.mxu0 0.0
      %11006 = vmatpush1.msra.mxu0 0.0
      %11007 = vmatprep.subr.mxu0 0.0
      %11008 = vmatpush1.msra.mxu0 0.0
      %11009 = vmatprep.subr.mxu0 0.0
      %11010 = vmatpush1.msra.mxu0 0.0
      %11011 = vmatprep.subr.mxu0 0.0
      %11012 = vmatpush1.msra.mxu0 0.0
      %11013 = vmatprep.subr.mxu0 0.0
      %11014 = vmatpush1.msra.mxu0 0.0
      %11015 = vmatprep.subr.mxu0 0.0
      %11016 = vmatpush1.msra.mxu0 0.0
      %11017 = vmatprep.subr.mxu0 0.0
      %11018 = vmatpush1.msra.mxu0 0.0
      %11019 = vmatprep.subr.mxu0 0.0
      %11020 = vmatpush1.msra.mxu0 0.0
      %11021 = vmatprep.subr.mxu0 0.0
      %11022 = vmatpush1.msra.mxu0 0.0
      %11023 = vmatprep.subr.mxu0 0.0
      %11024 = vmatpush1.msra.mxu0 0.0
      %11025 = vmatprep.subr.mxu0 0.0
      %11026 = vmatpush1.msra.mxu0 0.0
      %11027 = vmatprep.subr.mxu0 0.0
      %11028 = vmatpush1.msra.mxu0 0.0
      %11029 = vmatprep.subr.mxu0 0.0
      %11030 = vmatpush1.msra.mxu0 0.0
      %11031 = vmatprep.subr.mxu0 0.0
      %11032 = vmatpush1.msra.mxu0 0.0
      %11033 = vmatprep.subr.mxu0 0.0
      %11034 = vmatpush1.msra.mxu0 0.0
      %11035 = vmatprep.subr.mxu0 0.0
      %11036 = vmatpush1.msra.mxu0 0.0
      %11037 = vmatprep.subr.mxu0 0.0
      %11038 = vmatpush1.msra.mxu0 0.0
      %11039 = vmatprep.subr.mxu0 0.0
      %11040 = vmatpush1.msra.mxu0 0.0
      %11041 = vmatprep.subr.mxu0 0.0
      %11042 = vmatpush1.msra.mxu0 0.0
      %11043 = vmatprep.subr.mxu0 0.0
      %11044 = vmatpush1.msra.mxu0 0.0
      %11045 = vmatprep.subr.mxu0 0.0
      %11046 = vmatpush1.msra.mxu0 0.0
      %11047 = vmatprep.subr.mxu0 0.0
      %11048 = vmatpush1.msra.mxu0 0.0
      %11049 = vmatprep.subr.mxu0 0.0
      %11050 = vmatpush1.msra.mxu0 0.0
      %11051 = vmatprep.subr.mxu0 0.0
      %11052 = vmatpush1.msra.mxu0 0.0
      %11053 = vmatprep.mubr.f32.mxu0 0.0
      %11054 = vmatmul.mubr.f32.gmra.mrb[0].mxu0 %v10966
      %v11055 = vpop.f32.mrb[0].mxu0
      %v11056 = vadd.f32 0.0, %v11055
      %v11057 = vpop.f32.mrb[0].mxu0
      %11058 = vmatprep.mubr.f32.mxu0 0.0
      %11059 = vmatmul.mubr.f32.gmra.mrb[0].mxu0 %v10969
      %v11060 = vpop.f32.mrb[0].mxu0
      %v11061 = vadd.f32 0.0, %v11060
      %v11062 = vpop.f32.mrb[0].mxu0
      %11063 = vmatprep.mubr.f32.mxu0 0.0
      %11064 = vmatmul.mubr.f32.gmra.mrb[0].mxu0 %v10972
      %v11065 = vpop.f32.mrb[0].mxu0
      %v11066 = vadd.f32 0.0, %v11065
      %v11067 = vpop.f32.mrb[0].mxu0
      %11068 = vmatprep.mubr.f32.mxu0 0.0
      %11069 = vmatmul.mubr.f32.gmra.mrb[0].mxu0 %v10975
      %v11070 = vpop.f32.mrb[0].mxu0
      %v11071 = vadd.f32 0.0, %v11070
      %v11072 = vpop.f32.mrb[0].mxu0
      %11073 = vmatprep.mubr.f32.mxu0 0.0
      %11074 = vmatmul.mubr.f32.gmra.mrb[0].mxu0 %v10978
      %v11075 = vpop.f32.mrb[0].mxu0
      %v11076 = vadd.f32 0.0, %v11075
      %v11077 = vpop.f32.mrb[0].mxu0
      %11078 = vmatprep.mubr.f32.mxu0 0.0
      %11079 = vmatmul.mubr.f32.gmra.mrb[0].mxu0 %v10981
      %v11080 = vpop.f32.mrb[0].mxu0
      %v11081 = vadd.f32 0.0, %v11080
      %v11082 = vpop.f32.mrb[0].mxu0
      %11083 = vmatprep.mubr.f32.mxu0 0.0
      %11084 = vmatmul.mubr.f32.gmra.mrb[0].mxu0 %v10984
      %v11085 = vpop.f32.mrb[0].mxu0
      %v11086 = vadd.f32 0.0, %v11085
      %v11087 = vpop.f32.mrb[0].mxu0
      %11088 = vmatprep.mubr.f32.mxu0 0.0
      %11089 = vmatmul.mubr.f32.gmra.mrb[0].mxu0 %v10987
      %v11090 = vpop.f32.mrb[0].mxu0
      %v11091 = vadd.f32 0.0, %v11090
      %v11092 = vpop.f32.mrb[0].mxu0
      %11093 = vdwg.mxu0
      %v11095 = vsel %vm423, %v10941, 0
      %v11098 = vsel %vm423, %v10942, 0
      %v11101 = vsel %vm423, %v10943, 0
      %v11104 = vsel %vm423, %v10944, 0
      %v11107 = vsel %vm423, %v10945, 0
      %v11110 = vsel %vm423, %v10946, 0
      %v11113 = vsel %vm423, %v10947, 0
      %v11116 = vsel %vm423, %v10948, 0
      %11118 = vmatprep.subr.mxu0 0.0
      %11119 = vmatpush1.msra.mxu0 %v2352
      %11120 = vmatprep.subr.mxu0 0.0
      %11121 = vmatpush1.msra.mxu0 %v2357
      %11122 = vmatprep.subr.mxu0 0.0
      %11123 = vmatpush1.msra.mxu0 %v2362
      %11124 = vmatprep.subr.mxu0 0.0
      %11125 = vmatpush1.msra.mxu0 %v2367
      %11126 = vmatprep.subr.mxu0 0.0
      %11127 = vmatpush1.msra.mxu0 %v2372
      %11128 = vmatprep.subr.mxu0 0.0
      %11129 = vmatpush1.msra.mxu0 %v2377
      %11130 = vmatprep.subr.mxu0 0.0
      %11131 = vmatpush1.msra.mxu0 %v2382
      %11132 = vmatprep.subr.mxu0 0.0
      %11133 = vmatpush1.msra.mxu0 %v2387
      %11134 = vmatprep.subr.mxu0 0.0
      %11135 = vmatpush1.msra.mxu0 0.0
      %11136 = vmatprep.subr.mxu0 0.0
      %11137 = vmatpush1.msra.mxu0 0.0
      %11138 = vmatprep.subr.mxu0 0.0
      %11139 = vmatpush1.msra.mxu0 0.0
      %11140 = vmatprep.subr.mxu0 0.0
      %11141 = vmatpush1.msra.mxu0 0.0
      %11142 = vmatprep.subr.mxu0 0.0
      %11143 = vmatpush1.msra.mxu0 0.0
      %11144 = vmatprep.subr.mxu0 0.0
      %11145 = vmatpush1.msra.mxu0 0.0
      %11146 = vmatprep.subr.mxu0 0.0
      %11147 = vmatpush1.msra.mxu0 0.0
      %11148 = vmatprep.subr.mxu0 0.0
      %11149 = vmatpush1.msra.mxu0 0.0
      %11150 = vmatprep.subr.mxu0 0.0
      %11151 = vmatpush1.msra.mxu0 0.0
      %11152 = vmatprep.subr.mxu0 0.0
      %11153 = vmatpush1.msra.mxu0 0.0
      %11154 = vmatprep.subr.mxu0 0.0
      %11155 = vmatpush1.msra.mxu0 0.0
      %11156 = vmatprep.subr.mxu0 0.0
      %11157 = vmatpush1.msra.mxu0 0.0
      %11158 = vmatprep.subr.mxu0 0.0
      %11159 = vmatpush1.msra.mxu0 0.0
      %11160 = vmatprep.subr.mxu0 0.0
      %11161 = vmatpush1.msra.mxu0 0.0
      %11162 = vmatprep.subr.mxu0 0.0
      %11163 = vmatpush1.msra.mxu0 0.0
      %11164 = vmatprep.subr.mxu0 0.0
      %11165 = vmatpush1.msra.mxu0 0.0
      %11166 = vmatprep.subr.mxu0 0.0
      %11167 = vmatpush1.msra.mxu0 0.0
      %11168 = vmatprep.subr.mxu0 0.0
      %11169 = vmatpush1.msra.mxu0 0.0
      %11170 = vmatprep.subr.mxu0 0.0
      %11171 = vmatpush1.msra.mxu0 0.0
      %11172 = vmatprep.subr.mxu0 0.0
      %11173 = vmatpush1.msra.mxu0 0.0
      %11174 = vmatprep.subr.mxu0 0.0
      %11175 = vmatpush1.msra.mxu0 0.0
      %11176 = vmatprep.subr.mxu0 0.0
      %11177 = vmatpush1.msra.mxu0 0.0
      %11178 = vmatprep.subr.mxu0 0.0
      %11179 = vmatpush1.msra.mxu0 0.0
      %11180 = vmatprep.subr.mxu0 0.0
      %11181 = vmatpush1.msra.mxu0 0.0
      %11182 = vmatprep.mubr.f32.mxu0 0.0
      %11183 = vmatmul.mubr.f32.gmra.mrb[0].mxu0 %v11095
      %v11184 = vpop.f32.mrb[0].mxu0
      %v11185 = vadd.f32 0.0, %v11184
      %v11186 = vpop.f32.mrb[0].mxu0
      %11187 = vmatprep.mubr.f32.mxu0 0.0
      %11188 = vmatmul.mubr.f32.gmra.mrb[0].mxu0 %v11098
      %v11189 = vpop.f32.mrb[0].mxu0
      %v11190 = vadd.f32 0.0, %v11189
      %v11191 = vpop.f32.mrb[0].mxu0
      %11192 = vmatprep.mubr.f32.mxu0 0.0
      %11193 = vmatmul.mubr.f32.gmra.mrb[0].mxu0 %v11101
      %v11194 = vpop.f32.mrb[0].mxu0
      %v11195 = vadd.f32 0.0, %v11194
      %v11196 = vpop.f32.mrb[0].mxu0
      %11197 = vmatprep.mubr.f32.mxu0 0.0
      %11198 = vmatmul.mubr.f32.gmra.mrb[0].mxu0 %v11104
      %v11199 = vpop.f32.mrb[0].mxu0
      %v11200 = vadd.f32 0.0, %v11199
      %v11201 = vpop.f32.mrb[0].mxu0
      %11202 = vmatprep.mubr.f32.mxu0 0.0
      %11203 = vmatmul.mubr.f32.gmra.mrb[0].mxu0 %v11107
      %v11204 = vpop.f32.mrb[0].mxu0
      %v11205 = vadd.f32 0.0, %v11204
      %v11206 = vpop.f32.mrb[0].mxu0
      %11207 = vmatprep.mubr.f32.mxu0 0.0
      %11208 = vmatmul.mubr.f32.gmra.mrb[0].mxu0 %v11110
      %v11209 = vpop.f32.mrb[0].mxu0
      %v11210 = vadd.f32 0.0, %v11209
      %v11211 = vpop.f32.mrb[0].mxu0
      %11212 = vmatprep.mubr.f32.mxu0 0.0
      %11213 = vmatmul.mubr.f32.gmra.mrb[0].mxu0 %v11113
      %v11214 = vpop.f32.mrb[0].mxu0
      %v11215 = vadd.f32 0.0, %v11214
      %v11216 = vpop.f32.mrb[0].mxu0
      %11217 = vmatprep.mubr.f32.mxu0 0.0
      %11218 = vmatmul.mubr.f32.gmra.mrb[0].mxu0 %v11116
      %v11219 = vpop.f32.mrb[0].mxu0
      %v11220 = vadd.f32 0.0, %v11219
      %v11221 = vpop.f32.mrb[0].mxu0
      %11222 = vdwg.mxu0
      %v11224 = vsel %vm423, %v10949, 0
      %v11227 = vsel %vm423, %v10950, 0
      %v11230 = vsel %vm423, %v10951, 0
      %v11233 = vsel %vm423, %v10952, 0
      %v11236 = vsel %vm423, %v10953, 0
      %v11239 = vsel %vm423, %v10954, 0
      %v11242 = vsel %vm423, %v10955, 0
      %v11245 = vsel %vm423, %v10956, 0
      %11247 = vmatprep.subr.mxu0 0.0
      %11248 = vmatpush1.msra.mxu0 %v2392
      %11249 = vmatprep.subr.mxu0 0.0
      %11250 = vmatpush1.msra.mxu0 %v2397
      %11251 = vmatprep.subr.mxu0 0.0
      %11252 = vmatpush1.msra.mxu0 %v2402
      %11253 = vmatprep.subr.mxu0 0.0
      %11254 = vmatpush1.msra.mxu0 %v2407
      %11255 = vmatprep.subr.mxu0 0.0
      %11256 = vmatpush1.msra.mxu0 %v2412
      %11257 = vmatprep.subr.mxu0 0.0
      %11258 = vmatpush1.msra.mxu0 %v2417
      %11259 = vmatprep.subr.mxu0 0.0
      %11260 = vmatpush1.msra.mxu0 %v2422
      %11261 = vmatprep.subr.mxu0 0.0
      %11262 = vmatpush1.msra.mxu0 %v2427
      %11263 = vmatprep.subr.mxu0 0.0
      %11264 = vmatpush1.msra.mxu0 0.0
      %11265 = vmatprep.subr.mxu0 0.0
      %11266 = vmatpush1.msra.mxu0 0.0
      %11267 = vmatprep.subr.mxu0 0.0
      %11268 = vmatpush1.msra.mxu0 0.0
      %11269 = vmatprep.subr.mxu0 0.0
      %11270 = vmatpush1.msra.mxu0 0.0
      %11271 = vmatprep.subr.mxu0 0.0
      %11272 = vmatpush1.msra.mxu0 0.0
      %11273 = vmatprep.subr.mxu0 0.0
      %11274 = vmatpush1.msra.mxu0 0.0
      %11275 = vmatprep.subr.mxu0 0.0
      %11276 = vmatpush1.msra.mxu0 0.0
      %11277 = vmatprep.subr.mxu0 0.0
      %11278 = vmatpush1.msra.mxu0 0.0
      %11279 = vmatprep.subr.mxu0 0.0
      %11280 = vmatpush1.msra.mxu0 0.0
      %11281 = vmatprep.subr.mxu0 0.0
      %11282 = vmatpush1.msra.mxu0 0.0
      %11283 = vmatprep.subr.mxu0 0.0
      %11284 = vmatpush1.msra.mxu0 0.0
      %11285 = vmatprep.subr.mxu0 0.0
      %11286 = vmatpush1.msra.mxu0 0.0
      %11287 = vmatprep.subr.mxu0 0.0
      %11288 = vmatpush1.msra.mxu0 0.0
      %11289 = vmatprep.subr.mxu0 0.0
      %11290 = vmatpush1.msra.mxu0 0.0
      %11291 = vmatprep.subr.mxu0 0.0
      %11292 = vmatpush1.msra.mxu0 0.0
      %11293 = vmatprep.subr.mxu0 0.0
      %11294 = vmatpush1.msra.mxu0 0.0
      %11295 = vmatprep.subr.mxu0 0.0
      %11296 = vmatpush1.msra.mxu0 0.0
      %11297 = vmatprep.subr.mxu0 0.0
      %11298 = vmatpush1.msra.mxu0 0.0
      %11299 = vmatprep.subr.mxu0 0.0
      %11300 = vmatpush1.msra.mxu0 0.0
      %11301 = vmatprep.subr.mxu0 0.0
      %11302 = vmatpush1.msra.mxu0 0.0
      %11303 = vmatprep.subr.mxu0 0.0
      %11304 = vmatpush1.msra.mxu0 0.0
      %11305 = vmatprep.subr.mxu0 0.0
      %11306 = vmatpush1.msra.mxu0 0.0
      %11307 = vmatprep.subr.mxu0 0.0
      %11308 = vmatpush1.msra.mxu0 0.0
      %11309 = vmatprep.subr.mxu0 0.0
      %11310 = vmatpush1.msra.mxu0 0.0
      %11311 = vmatprep.mubr.f32.mxu0 0.0
      %11312 = vmatmul.mubr.f32.gmra.mrb[0].mxu0 %v11224
      %v11313 = vpop.f32.mrb[0].mxu0
      %v11314 = vadd.f32 0.0, %v11313
      %v11315 = vpop.f32.mrb[0].mxu0
      %11316 = vmatprep.mubr.f32.mxu0 0.0
      %11317 = vmatmul.mubr.f32.gmra.mrb[0].mxu0 %v11227
      %v11318 = vpop.f32.mrb[0].mxu0
      %v11319 = vadd.f32 0.0, %v11318
      %v11320 = vpop.f32.mrb[0].mxu0
      %11321 = vmatprep.mubr.f32.mxu0 0.0
      %11322 = vmatmul.mubr.f32.gmra.mrb[0].mxu0 %v11230
      %v11323 = vpop.f32.mrb[0].mxu0
      %v11324 = vadd.f32 0.0, %v11323
      %v11325 = vpop.f32.mrb[0].mxu0
      %11326 = vmatprep.mubr.f32.mxu0 0.0
      %11327 = vmatmul.mubr.f32.gmra.mrb[0].mxu0 %v11233
      %v11328 = vpop.f32.mrb[0].mxu0
      %v11329 = vadd.f32 0.0, %v11328
      %v11330 = vpop.f32.mrb[0].mxu0
      %11331 = vmatprep.mubr.f32.mxu0 0.0
      %11332 = vmatmul.mubr.f32.gmra.mrb[0].mxu0 %v11236
      %v11333 = vpop.f32.mrb[0].mxu0
      %v11334 = vadd.f32 0.0, %v11333
      %v11335 = vpop.f32.mrb[0].mxu0
      %11336 = vmatprep.mubr.f32.mxu0 0.0
      %11337 = vmatmul.mubr.f32.gmra.mrb[0].mxu0 %v11239
      %v11338 = vpop.f32.mrb[0].mxu0
      %v11339 = vadd.f32 0.0, %v11338
      %v11340 = vpop.f32.mrb[0].mxu0
      %11341 = vmatprep.mubr.f32.mxu0 0.0
      %11342 = vmatmul.mubr.f32.gmra.mrb[0].mxu0 %v11242
      %v11343 = vpop.f32.mrb[0].mxu0
      %v11344 = vadd.f32 0.0, %v11343
      %v11345 = vpop.f32.mrb[0].mxu0
      %11346 = vmatprep.mubr.f32.mxu0 0.0
      %11347 = vmatmul.mubr.f32.gmra.mrb[0].mxu0 %v11245
      %v11348 = vpop.f32.mrb[0].mxu0
      %v11349 = vadd.f32 0.0, %v11348
      %v11350 = vpop.f32.mrb[0].mxu0
      %11351 = vdwg.mxu0
      %v11353 = vsel %vm423, %v10957, 0
      %v11356 = vsel %vm423, %v10958, 0
      %v11359 = vsel %vm423, %v10959, 0
      %v11362 = vsel %vm423, %v10960, 0
      %v11365 = vsel %vm423, %v10961, 0
      %v11368 = vsel %vm423, %v10962, 0
      %v11371 = vsel %vm423, %v10963, 0
      %v11374 = vsel %vm423, %v10964, 0
      %11376 = vmatprep.subr.mxu0 0.0
      %11377 = vmatpush1.msra.mxu0 %v2432
      %11378 = vmatprep.subr.mxu0 0.0
      %11379 = vmatpush1.msra.mxu0 %v2437
      %11380 = vmatprep.subr.mxu0 0.0
      %11381 = vmatpush1.msra.mxu0 %v2442
      %11382 = vmatprep.subr.mxu0 0.0
      %11383 = vmatpush1.msra.mxu0 %v2447
      %11384 = vmatprep.subr.mxu0 0.0
      %11385 = vmatpush1.msra.mxu0 %v2452
      %11386 = vmatprep.subr.mxu0 0.0
      %11387 = vmatpush1.msra.mxu0 %v2457
      %11388 = vmatprep.subr.mxu0 0.0
      %11389 = vmatpush1.msra.mxu0 %v2462
      %11390 = vmatprep.subr.mxu0 0.0
      %11391 = vmatpush1.msra.mxu0 %v2467
      %11392 = vmatprep.subr.mxu0 0.0
      %11393 = vmatpush1.msra.mxu0 0.0
      %11394 = vmatprep.subr.mxu0 0.0
      %11395 = vmatpush1.msra.mxu0 0.0
      %11396 = vmatprep.subr.mxu0 0.0
      %11397 = vmatpush1.msra.mxu0 0.0
      %11398 = vmatprep.subr.mxu0 0.0
      %11399 = vmatpush1.msra.mxu0 0.0
      %11400 = vmatprep.subr.mxu0 0.0
      %11401 = vmatpush1.msra.mxu0 0.0
      %11402 = vmatprep.subr.mxu0 0.0
      %11403 = vmatpush1.msra.mxu0 0.0
      %11404 = vmatprep.subr.mxu0 0.0
      %11405 = vmatpush1.msra.mxu0 0.0
      %11406 = vmatprep.subr.mxu0 0.0
      %11407 = vmatpush1.msra.mxu0 0.0
      %11408 = vmatprep.subr.mxu0 0.0
      %11409 = vmatpush1.msra.mxu0 0.0
      %11410 = vmatprep.subr.mxu0 0.0
      %11411 = vmatpush1.msra.mxu0 0.0
      %11412 = vmatprep.subr.mxu0 0.0
      %11413 = vmatpush1.msra.mxu0 0.0
      %11414 = vmatprep.subr.mxu0 0.0
      %11415 = vmatpush1.msra.mxu0 0.0
      %11416 = vmatprep.subr.mxu0 0.0
      %11417 = vmatpush1.msra.mxu0 0.0
      %11418 = vmatprep.subr.mxu0 0.0
      %11419 = vmatpush1.msra.mxu0 0.0
      %11420 = vmatprep.subr.mxu0 0.0
      %11421 = vmatpush1.msra.mxu0 0.0
      %11422 = vmatprep.subr.mxu0 0.0
      %11423 = vmatpush1.msra.mxu0 0.0
      %11424 = vmatprep.subr.mxu0 0.0
      %11425 = vmatpush1.msra.mxu0 0.0
      %11426 = vmatprep.subr.mxu0 0.0
      %11427 = vmatpush1.msra.mxu0 0.0
      %11428 = vmatprep.subr.mxu0 0.0
      %11429 = vmatpush1.msra.mxu0 0.0
      %11430 = vmatprep.subr.mxu0 0.0
      %11431 = vmatpush1.msra.mxu0 0.0
      %11432 = vmatprep.subr.mxu0 0.0
      %11433 = vmatpush1.msra.mxu0 0.0
      %11434 = vmatprep.subr.mxu0 0.0
      %11435 = vmatpush1.msra.mxu0 0.0
      %11436 = vmatprep.subr.mxu0 0.0
      %11437 = vmatpush1.msra.mxu0 0.0
      %11438 = vmatprep.subr.mxu0 0.0
      %11439 = vmatpush1.msra.mxu0 0.0
      %11440 = vmatprep.mubr.f32.mxu0 0.0
      %11441 = vmatmul.mubr.f32.gmra.mrb[0].mxu0 %v11353
      %v11442 = vpop.f32.mrb[0].mxu0
      %v11443 = vadd.f32 0.0, %v11442
      %v11444 = vpop.f32.mrb[0].mxu0
      %11445 = vmatprep.mubr.f32.mxu0 0.0
      %11446 = vmatmul.mubr.f32.gmra.mrb[0].mxu0 %v11356
      %v11447 = vpop.f32.mrb[0].mxu0
      %v11448 = vadd.f32 0.0, %v11447
      %v11449 = vpop.f32.mrb[0].mxu0
      %11450 = vmatprep.mubr.f32.mxu0 0.0
      %11451 = vmatmul.mubr.f32.gmra.mrb[0].mxu0 %v11359
      %v11452 = vpop.f32.mrb[0].mxu0
      %v11453 = vadd.f32 0.0, %v11452
      %v11454 = vpop.f32.mrb[0].mxu0
      %11455 = vmatprep.mubr.f32.mxu0 0.0
      %11456 = vmatmul.mubr.f32.gmra.mrb[0].mxu0 %v11362
      %v11457 = vpop.f32.mrb[0].mxu0
      %v11458 = vadd.f32 0.0, %v11457
      %v11459 = vpop.f32.mrb[0].mxu0
      %11460 = vmatprep.mubr.f32.mxu0 0.0
      %11461 = vmatmul.mubr.f32.gmra.mrb[0].mxu0 %v11365
      %v11462 = vpop.f32.mrb[0].mxu0
      %v11463 = vadd.f32 0.0, %v11462
      %v11464 = vpop.f32.mrb[0].mxu0
      %11465 = vmatprep.mubr.f32.mxu0 0.0
      %11466 = vmatmul.mubr.f32.gmra.mrb[0].mxu0 %v11368
      %v11467 = vpop.f32.mrb[0].mxu0
      %v11468 = vadd.f32 0.0, %v11467
      %v11469 = vpop.f32.mrb[0].mxu0
      %11470 = vmatprep.mubr.f32.mxu0 0.0
      %11471 = vmatmul.mubr.f32.gmra.mrb[0].mxu0 %v11371
      %v11472 = vpop.f32.mrb[0].mxu0
      %v11473 = vadd.f32 0.0, %v11472
      %v11474 = vpop.f32.mrb[0].mxu0
      %11475 = vmatprep.mubr.f32.mxu0 0.0
      %11476 = vmatmul.mubr.f32.gmra.mrb[0].mxu0 %v11374
      %v11477 = vpop.f32.mrb[0].mxu0
      %v11478 = vadd.f32 0.0, %v11477
      %v11479 = vpop.f32.mrb[0].mxu0
      %11480 = vdwg.mxu0
      %v11481 = vadd.f32 %v9420, %v11056
      %v11482 = vadd.f32 %v9421, %v11061
      %v11483 = vadd.f32 %v9422, %v11066
      %v11484 = vadd.f32 %v9423, %v11071
      %v11485 = vadd.f32 %v9424, %v11076
      %v11486 = vadd.f32 %v9425, %v11081
      %v11487 = vadd.f32 %v9426, %v11086
      %v11488 = vadd.f32 %v9427, %v11091
      %v11489 = vadd.f32 %v9428, %v11185
      %v11490 = vadd.f32 %v9429, %v11190
      %v11491 = vadd.f32 %v9430, %v11195
      %v11492 = vadd.f32 %v9431, %v11200
      %v11493 = vadd.f32 %v9432, %v11205
      %v11494 = vadd.f32 %v9433, %v11210
      %v11495 = vadd.f32 %v9434, %v11215
      %v11496 = vadd.f32 %v9435, %v11220
      %v11497 = vadd.f32 %v9436, %v11314
      %v11498 = vadd.f32 %v9437, %v11319
      %v11499 = vadd.f32 %v9438, %v11324
      %v11500 = vadd.f32 %v9439, %v11329
      %v11501 = vadd.f32 %v9440, %v11334
      %v11502 = vadd.f32 %v9441, %v11339
      %v11503 = vadd.f32 %v9442, %v11344
      %v11504 = vadd.f32 %v9443, %v11349
      %v11505 = vadd.f32 %v9444, %v11443
      %v11506 = vadd.f32 %v9445, %v11448
      %v11507 = vadd.f32 %v9446, %v11453
      %v11508 = vadd.f32 %v9447, %v11458
      %v11509 = vadd.f32 %v9448, %v11463
      %v11510 = vadd.f32 %v9449, %v11468
      %v11511 = vadd.f32 %v9450, %v11473
      %v11512 = vadd.f32 %v9451, %v11478
      %11513 = vmatprep.subr.mxu0 0.0
      %11514 = vmatpush1.msra.mxu0 %v3692
      %11515 = vmatprep.subr.mxu0 0.0
      %11516 = vmatpush1.msra.mxu0 %v3697
      %11517 = vmatprep.subr.mxu0 0.0
      %11518 = vmatpush1.msra.mxu0 %v3702
      %11519 = vmatprep.subr.mxu0 0.0
      %11520 = vmatpush1.msra.mxu0 %v3707
      %11521 = vmatprep.subr.mxu0 0.0
      %11522 = vmatpush1.msra.mxu0 %v3712
      %11523 = vmatprep.subr.mxu0 0.0
      %11524 = vmatpush1.msra.mxu0 %v3717
      %11525 = vmatprep.subr.mxu0 0.0
      %11526 = vmatpush1.msra.mxu0 %v3722
      %11527 = vmatprep.subr.mxu0 0.0
      %11528 = vmatpush1.msra.mxu0 %v3727
      %11529 = vmatprep.subr.mxu0 0.0
      %11530 = vmatpush1.msra.mxu0 0.0
      %11531 = vmatprep.subr.mxu0 0.0
      %11532 = vmatpush1.msra.mxu0 0.0
      %11533 = vmatprep.subr.mxu0 0.0
      %11534 = vmatpush1.msra.mxu0 0.0
      %11535 = vmatprep.subr.mxu0 0.0
      %11536 = vmatpush1.msra.mxu0 0.0
      %11537 = vmatprep.subr.mxu0 0.0
      %11538 = vmatpush1.msra.mxu0 0.0
      %11539 = vmatprep.subr.mxu0 0.0
      %11540 = vmatpush1.msra.mxu0 0.0
      %11541 = vmatprep.subr.mxu0 0.0
      %11542 = vmatpush1.msra.mxu0 0.0
      %11543 = vmatprep.subr.mxu0 0.0
      %11544 = vmatpush1.msra.mxu0 0.0
      %11545 = vmatprep.subr.mxu0 0.0
      %11546 = vmatpush1.msra.mxu0 0.0
      %11547 = vmatprep.subr.mxu0 0.0
      %11548 = vmatpush1.msra.mxu0 0.0
      %11549 = vmatprep.subr.mxu0 0.0
      %11550 = vmatpush1.msra.mxu0 0.0
      %11551 = vmatprep.subr.mxu0 0.0
      %11552 = vmatpush1.msra.mxu0 0.0
      %11553 = vmatprep.subr.mxu0 0.0
      %11554 = vmatpush1.msra.mxu0 0.0
      %11555 = vmatprep.subr.mxu0 0.0
      %11556 = vmatpush1.msra.mxu0 0.0
      %11557 = vmatprep.subr.mxu0 0.0
      %11558 = vmatpush1.msra.mxu0 0.0
      %11559 = vmatprep.subr.mxu0 0.0
      %11560 = vmatpush1.msra.mxu0 0.0
      %11561 = vmatprep.subr.mxu0 0.0
      %11562 = vmatpush1.msra.mxu0 0.0
      %11563 = vmatprep.subr.mxu0 0.0
      %11564 = vmatpush1.msra.mxu0 0.0
      %11565 = vmatprep.subr.mxu0 0.0
      %11566 = vmatpush1.msra.mxu0 0.0
      %11567 = vmatprep.subr.mxu0 0.0
      %11568 = vmatpush1.msra.mxu0 0.0
      %11569 = vmatprep.subr.mxu0 0.0
      %11570 = vmatpush1.msra.mxu0 0.0
      %11571 = vmatprep.subr.mxu0 0.0
      %11572 = vmatpush1.msra.mxu0 0.0
      %11573 = vmatprep.subr.mxu0 0.0
      %11574 = vmatpush1.msra.mxu0 0.0
      %11575 = vmatprep.subr.mxu0 0.0
      %11576 = vmatpush1.msra.mxu0 0.0
      %11577 = vmatprep.mubr.f32.mxu0 0.0
      %11578 = vmatmul.mubr.f32.gmra.mrb[0].mxu0 %v10966
      %v11579 = vpop.f32.mrb[0].mxu0
      %v11580 = vadd.f32 0.0, %v11579
      %v11581 = vpop.f32.mrb[0].mxu0
      %11582 = vmatprep.mubr.f32.mxu0 0.0
      %11583 = vmatmul.mubr.f32.gmra.mrb[0].mxu0 %v10969
      %v11584 = vpop.f32.mrb[0].mxu0
      %v11585 = vadd.f32 0.0, %v11584
      %v11586 = vpop.f32.mrb[0].mxu0
      %11587 = vmatprep.mubr.f32.mxu0 0.0
      %11588 = vmatmul.mubr.f32.gmra.mrb[0].mxu0 %v10972
      %v11589 = vpop.f32.mrb[0].mxu0
      %v11590 = vadd.f32 0.0, %v11589
      %v11591 = vpop.f32.mrb[0].mxu0
      %11592 = vmatprep.mubr.f32.mxu0 0.0
      %11593 = vmatmul.mubr.f32.gmra.mrb[0].mxu0 %v10975
      %v11594 = vpop.f32.mrb[0].mxu0
      %v11595 = vadd.f32 0.0, %v11594
      %v11596 = vpop.f32.mrb[0].mxu0
      %11597 = vmatprep.mubr.f32.mxu0 0.0
      %11598 = vmatmul.mubr.f32.gmra.mrb[0].mxu0 %v10978
      %v11599 = vpop.f32.mrb[0].mxu0
      %v11600 = vadd.f32 0.0, %v11599
      %v11601 = vpop.f32.mrb[0].mxu0
      %11602 = vmatprep.mubr.f32.mxu0 0.0
      %11603 = vmatmul.mubr.f32.gmra.mrb[0].mxu0 %v10981
      %v11604 = vpop.f32.mrb[0].mxu0
      %v11605 = vadd.f32 0.0, %v11604
      %v11606 = vpop.f32.mrb[0].mxu0
      %11607 = vmatprep.mubr.f32.mxu0 0.0
      %11608 = vmatmul.mubr.f32.gmra.mrb[0].mxu0 %v10984
      %v11609 = vpop.f32.mrb[0].mxu0
      %v11610 = vadd.f32 0.0, %v11609
      %v11611 = vpop.f32.mrb[0].mxu0
      %11612 = vmatprep.mubr.f32.mxu0 0.0
      %11613 = vmatmul.mubr.f32.gmra.mrb[0].mxu0 %v10987
      %v11614 = vpop.f32.mrb[0].mxu0
      %v11615 = vadd.f32 0.0, %v11614
      %v11616 = vpop.f32.mrb[0].mxu0
      %11617 = vdwg.mxu0
      %11618 = vmatprep.subr.mxu0 0.0
      %11619 = vmatpush1.msra.mxu0 %v3732
      %11620 = vmatprep.subr.mxu0 0.0
      %11621 = vmatpush1.msra.mxu0 %v3737
      %11622 = vmatprep.subr.mxu0 0.0
      %11623 = vmatpush1.msra.mxu0 %v3742
      %11624 = vmatprep.subr.mxu0 0.0
      %11625 = vmatpush1.msra.mxu0 %v3747
      %11626 = vmatprep.subr.mxu0 0.0
      %11627 = vmatpush1.msra.mxu0 %v3752
      %11628 = vmatprep.subr.mxu0 0.0
      %11629 = vmatpush1.msra.mxu0 %v3757
      %11630 = vmatprep.subr.mxu0 0.0
      %11631 = vmatpush1.msra.mxu0 %v3762
      %11632 = vmatprep.subr.mxu0 0.0
      %11633 = vmatpush1.msra.mxu0 %v3767
      %11634 = vmatprep.subr.mxu0 0.0
      %11635 = vmatpush1.msra.mxu0 0.0
      %11636 = vmatprep.subr.mxu0 0.0
      %11637 = vmatpush1.msra.mxu0 0.0
      %11638 = vmatprep.subr.mxu0 0.0
      %11639 = vmatpush1.msra.mxu0 0.0
      %11640 = vmatprep.subr.mxu0 0.0
      %11641 = vmatpush1.msra.mxu0 0.0
      %11642 = vmatprep.subr.mxu0 0.0
      %11643 = vmatpush1.msra.mxu0 0.0
      %11644 = vmatprep.subr.mxu0 0.0
      %11645 = vmatpush1.msra.mxu0 0.0
      %11646 = vmatprep.subr.mxu0 0.0
      %11647 = vmatpush1.msra.mxu0 0.0
      %11648 = vmatprep.subr.mxu0 0.0
      %11649 = vmatpush1.msra.mxu0 0.0
      %11650 = vmatprep.subr.mxu0 0.0
      %11651 = vmatpush1.msra.mxu0 0.0
      %11652 = vmatprep.subr.mxu0 0.0
      %11653 = vmatpush1.msra.mxu0 0.0
      %11654 = vmatprep.subr.mxu0 0.0
      %11655 = vmatpush1.msra.mxu0 0.0
      %11656 = vmatprep.subr.mxu0 0.0
      %11657 = vmatpush1.msra.mxu0 0.0
      %11658 = vmatprep.subr.mxu0 0.0
      %11659 = vmatpush1.msra.mxu0 0.0
      %11660 = vmatprep.subr.mxu0 0.0
      %11661 = vmatpush1.msra.mxu0 0.0
      %11662 = vmatprep.subr.mxu0 0.0
      %11663 = vmatpush1.msra.mxu0 0.0
      %11664 = vmatprep.subr.mxu0 0.0
      %11665 = vmatpush1.msra.mxu0 0.0
      %11666 = vmatprep.subr.mxu0 0.0
      %11667 = vmatpush1.msra.mxu0 0.0
      %11668 = vmatprep.subr.mxu0 0.0
      %11669 = vmatpush1.msra.mxu0 0.0
      %11670 = vmatprep.subr.mxu0 0.0
      %11671 = vmatpush1.msra.mxu0 0.0
      %11672 = vmatprep.subr.mxu0 0.0
      %11673 = vmatpush1.msra.mxu0 0.0
      %11674 = vmatprep.subr.mxu0 0.0
      %11675 = vmatpush1.msra.mxu0 0.0
      %11676 = vmatprep.subr.mxu0 0.0
      %11677 = vmatpush1.msra.mxu0 0.0
      %11678 = vmatprep.subr.mxu0 0.0
      %11679 = vmatpush1.msra.mxu0 0.0
      %11680 = vmatprep.subr.mxu0 0.0
      %11681 = vmatpush1.msra.mxu0 0.0
      %11682 = vmatprep.mubr.f32.mxu0 0.0
      %11683 = vmatmul.mubr.f32.gmra.mrb[0].mxu0 %v11095
      %v11684 = vpop.f32.mrb[0].mxu0
      %v11685 = vadd.f32 0.0, %v11684
      %v11686 = vpop.f32.mrb[0].mxu0
      %11687 = vmatprep.mubr.f32.mxu0 0.0
      %11688 = vmatmul.mubr.f32.gmra.mrb[0].mxu0 %v11098
      %v11689 = vpop.f32.mrb[0].mxu0
      %v11690 = vadd.f32 0.0, %v11689
      %v11691 = vpop.f32.mrb[0].mxu0
      %11692 = vmatprep.mubr.f32.mxu0 0.0
      %11693 = vmatmul.mubr.f32.gmra.mrb[0].mxu0 %v11101
      %v11694 = vpop.f32.mrb[0].mxu0
      %v11695 = vadd.f32 0.0, %v11694
      %v11696 = vpop.f32.mrb[0].mxu0
      %11697 = vmatprep.mubr.f32.mxu0 0.0
      %11698 = vmatmul.mubr.f32.gmra.mrb[0].mxu0 %v11104
      %v11699 = vpop.f32.mrb[0].mxu0
      %v11700 = vadd.f32 0.0, %v11699
      %v11701 = vpop.f32.mrb[0].mxu0
      %11702 = vmatprep.mubr.f32.mxu0 0.0
      %11703 = vmatmul.mubr.f32.gmra.mrb[0].mxu0 %v11107
      %v11704 = vpop.f32.mrb[0].mxu0
      %v11705 = vadd.f32 0.0, %v11704
      %v11706 = vpop.f32.mrb[0].mxu0
      %11707 = vmatprep.mubr.f32.mxu0 0.0
      %11708 = vmatmul.mubr.f32.gmra.mrb[0].mxu0 %v11110
      %v11709 = vpop.f32.mrb[0].mxu0
      %v11710 = vadd.f32 0.0, %v11709
      %v11711 = vpop.f32.mrb[0].mxu0
      %11712 = vmatprep.mubr.f32.mxu0 0.0
      %11713 = vmatmul.mubr.f32.gmra.mrb[0].mxu0 %v11113
      %v11714 = vpop.f32.mrb[0].mxu0
      %v11715 = vadd.f32 0.0, %v11714
      %v11716 = vpop.f32.mrb[0].mxu0
      %11717 = vmatprep.mubr.f32.mxu0 0.0
      %11718 = vmatmul.mubr.f32.gmra.mrb[0].mxu0 %v11116
      %v11719 = vpop.f32.mrb[0].mxu0
      %v11720 = vadd.f32 0.0, %v11719
      %v11721 = vpop.f32.mrb[0].mxu0
      %11722 = vdwg.mxu0
      %11723 = vmatprep.subr.mxu0 0.0
      %11724 = vmatpush1.msra.mxu0 %v3772
      %11725 = vmatprep.subr.mxu0 0.0
      %11726 = vmatpush1.msra.mxu0 %v3777
      %11727 = vmatprep.subr.mxu0 0.0
      %11728 = vmatpush1.msra.mxu0 %v3782
      %11729 = vmatprep.subr.mxu0 0.0
      %11730 = vmatpush1.msra.mxu0 %v3787
      %11731 = vmatprep.subr.mxu0 0.0
      %11732 = vmatpush1.msra.mxu0 %v3792
      %11733 = vmatprep.subr.mxu0 0.0
      %11734 = vmatpush1.msra.mxu0 %v3797
      %11735 = vmatprep.subr.mxu0 0.0
      %11736 = vmatpush1.msra.mxu0 %v3802
      %11737 = vmatprep.subr.mxu0 0.0
      %11738 = vmatpush1.msra.mxu0 %v3807
      %11739 = vmatprep.subr.mxu0 0.0
      %11740 = vmatpush1.msra.mxu0 0.0
      %11741 = vmatprep.subr.mxu0 0.0
      %11742 = vmatpush1.msra.mxu0 0.0
      %11743 = vmatprep.subr.mxu0 0.0
      %11744 = vmatpush1.msra.mxu0 0.0
      %11745 = vmatprep.subr.mxu0 0.0
      %11746 = vmatpush1.msra.mxu0 0.0
      %11747 = vmatprep.subr.mxu0 0.0
      %11748 = vmatpush1.msra.mxu0 0.0
      %11749 = vmatprep.subr.mxu0 0.0
      %11750 = vmatpush1.msra.mxu0 0.0
      %11751 = vmatprep.subr.mxu0 0.0
      %11752 = vmatpush1.msra.mxu0 0.0
      %11753 = vmatprep.subr.mxu0 0.0
      %11754 = vmatpush1.msra.mxu0 0.0
      %11755 = vmatprep.subr.mxu0 0.0
      %11756 = vmatpush1.msra.mxu0 0.0
      %11757 = vmatprep.subr.mxu0 0.0
      %11758 = vmatpush1.msra.mxu0 0.0
      %11759 = vmatprep.subr.mxu0 0.0
      %11760 = vmatpush1.msra.mxu0 0.0
      %11761 = vmatprep.subr.mxu0 0.0
      %11762 = vmatpush1.msra.mxu0 0.0
      %11763 = vmatprep.subr.mxu0 0.0
      %11764 = vmatpush1.msra.mxu0 0.0
      %11765 = vmatprep.subr.mxu0 0.0
      %11766 = vmatpush1.msra.mxu0 0.0
      %11767 = vmatprep.subr.mxu0 0.0
      %11768 = vmatpush1.msra.mxu0 0.0
      %11769 = vmatprep.subr.mxu0 0.0
      %11770 = vmatpush1.msra.mxu0 0.0
      %11771 = vmatprep.subr.mxu0 0.0
      %11772 = vmatpush1.msra.mxu0 0.0
      %11773 = vmatprep.subr.mxu0 0.0
      %11774 = vmatpush1.msra.mxu0 0.0
      %11775 = vmatprep.subr.mxu0 0.0
      %11776 = vmatpush1.msra.mxu0 0.0
      %11777 = vmatprep.subr.mxu0 0.0
      %11778 = vmatpush1.msra.mxu0 0.0
      %11779 = vmatprep.subr.mxu0 0.0
      %11780 = vmatpush1.msra.mxu0 0.0
      %11781 = vmatprep.subr.mxu0 0.0
      %11782 = vmatpush1.msra.mxu0 0.0
      %11783 = vmatprep.subr.mxu0 0.0
      %11784 = vmatpush1.msra.mxu0 0.0
      %11785 = vmatprep.subr.mxu0 0.0
      %11786 = vmatpush1.msra.mxu0 0.0
      %11787 = vmatprep.mubr.f32.mxu0 0.0
      %11788 = vmatmul.mubr.f32.gmra.mrb[0].mxu0 %v11224
      %v11789 = vpop.f32.mrb[0].mxu0
      %v11790 = vadd.f32 0.0, %v11789
      %v11791 = vpop.f32.mrb[0].mxu0
      %11792 = vmatprep.mubr.f32.mxu0 0.0
      %11793 = vmatmul.mubr.f32.gmra.mrb[0].mxu0 %v11227
      %v11794 = vpop.f32.mrb[0].mxu0
      %v11795 = vadd.f32 0.0, %v11794
      %v11796 = vpop.f32.mrb[0].mxu0
      %11797 = vmatprep.mubr.f32.mxu0 0.0
      %11798 = vmatmul.mubr.f32.gmra.mrb[0].mxu0 %v11230
      %v11799 = vpop.f32.mrb[0].mxu0
      %v11800 = vadd.f32 0.0, %v11799
      %v11801 = vpop.f32.mrb[0].mxu0
      %11802 = vmatprep.mubr.f32.mxu0 0.0
      %11803 = vmatmul.mubr.f32.gmra.mrb[0].mxu0 %v11233
      %v11804 = vpop.f32.mrb[0].mxu0
      %v11805 = vadd.f32 0.0, %v11804
      %v11806 = vpop.f32.mrb[0].mxu0
      %11807 = vmatprep.mubr.f32.mxu0 0.0
      %11808 = vmatmul.mubr.f32.gmra.mrb[0].mxu0 %v11236
      %v11809 = vpop.f32.mrb[0].mxu0
      %v11810 = vadd.f32 0.0, %v11809
      %v11811 = vpop.f32.mrb[0].mxu0
      %11812 = vmatprep.mubr.f32.mxu0 0.0
      %11813 = vmatmul.mubr.f32.gmra.mrb[0].mxu0 %v11239
      %v11814 = vpop.f32.mrb[0].mxu0
      %v11815 = vadd.f32 0.0, %v11814
      %v11816 = vpop.f32.mrb[0].mxu0
      %11817 = vmatprep.mubr.f32.mxu0 0.0
      %11818 = vmatmul.mubr.f32.gmra.mrb[0].mxu0 %v11242
      %v11819 = vpop.f32.mrb[0].mxu0
      %v11820 = vadd.f32 0.0, %v11819
      %v11821 = vpop.f32.mrb[0].mxu0
      %11822 = vmatprep.mubr.f32.mxu0 0.0
      %11823 = vmatmul.mubr.f32.gmra.mrb[0].mxu0 %v11245
      %v11824 = vpop.f32.mrb[0].mxu0
      %v11825 = vadd.f32 0.0, %v11824
      %v11826 = vpop.f32.mrb[0].mxu0
      %11827 = vdwg.mxu0
      %11828 = vmatprep.subr.mxu0 0.0
      %11829 = vmatpush1.msra.mxu0 %v3812
      %11830 = vmatprep.subr.mxu0 0.0
      %11831 = vmatpush1.msra.mxu0 %v3817
      %11832 = vmatprep.subr.mxu0 0.0
      %11833 = vmatpush1.msra.mxu0 %v3822
      %11834 = vmatprep.subr.mxu0 0.0
      %11835 = vmatpush1.msra.mxu0 %v3827
      %11836 = vmatprep.subr.mxu0 0.0
      %11837 = vmatpush1.msra.mxu0 %v3832
      %11838 = vmatprep.subr.mxu0 0.0
      %11839 = vmatpush1.msra.mxu0 %v3837
      %11840 = vmatprep.subr.mxu0 0.0
      %11841 = vmatpush1.msra.mxu0 %v3842
      %11842 = vmatprep.subr.mxu0 0.0
      %11843 = vmatpush1.msra.mxu0 %v3847
      %11844 = vmatprep.subr.mxu0 0.0
      %11845 = vmatpush1.msra.mxu0 0.0
      %11846 = vmatprep.subr.mxu0 0.0
      %11847 = vmatpush1.msra.mxu0 0.0
      %11848 = vmatprep.subr.mxu0 0.0
      %11849 = vmatpush1.msra.mxu0 0.0
      %11850 = vmatprep.subr.mxu0 0.0
      %11851 = vmatpush1.msra.mxu0 0.0
      %11852 = vmatprep.subr.mxu0 0.0
      %11853 = vmatpush1.msra.mxu0 0.0
      %11854 = vmatprep.subr.mxu0 0.0
      %11855 = vmatpush1.msra.mxu0 0.0
      %11856 = vmatprep.subr.mxu0 0.0
      %11857 = vmatpush1.msra.mxu0 0.0
      %11858 = vmatprep.subr.mxu0 0.0
      %11859 = vmatpush1.msra.mxu0 0.0
      %11860 = vmatprep.subr.mxu0 0.0
      %11861 = vmatpush1.msra.mxu0 0.0
      %11862 = vmatprep.subr.mxu0 0.0
      %11863 = vmatpush1.msra.mxu0 0.0
      %11864 = vmatprep.subr.mxu0 0.0
      %11865 = vmatpush1.msra.mxu0 0.0
      %11866 = vmatprep.subr.mxu0 0.0
      %11867 = vmatpush1.msra.mxu0 0.0
      %11868 = vmatprep.subr.mxu0 0.0
      %11869 = vmatpush1.msra.mxu0 0.0
      %11870 = vmatprep.subr.mxu0 0.0
      %11871 = vmatpush1.msra.mxu0 0.0
      %11872 = vmatprep.subr.mxu0 0.0
      %11873 = vmatpush1.msra.mxu0 0.0
      %11874 = vmatprep.subr.mxu0 0.0
      %11875 = vmatpush1.msra.mxu0 0.0
      %11876 = vmatprep.subr.mxu0 0.0
      %11877 = vmatpush1.msra.mxu0 0.0
      %11878 = vmatprep.subr.mxu0 0.0
      %11879 = vmatpush1.msra.mxu0 0.0
      %11880 = vmatprep.subr.mxu0 0.0
      %11881 = vmatpush1.msra.mxu0 0.0
      %11882 = vmatprep.subr.mxu0 0.0
      %11883 = vmatpush1.msra.mxu0 0.0
      %11884 = vmatprep.subr.mxu0 0.0
      %11885 = vmatpush1.msra.mxu0 0.0
      %11886 = vmatprep.subr.mxu0 0.0
      %11887 = vmatpush1.msra.mxu0 0.0
      %11888 = vmatprep.subr.mxu0 0.0
      %11889 = vmatpush1.msra.mxu0 0.0
      %11890 = vmatprep.subr.mxu0 0.0
      %11891 = vmatpush1.msra.mxu0 0.0
      %11892 = vmatprep.mubr.f32.mxu0 0.0
      %11893 = vmatmul.mubr.f32.gmra.mrb[0].mxu0 %v11353
      %v11894 = vpop.f32.mrb[0].mxu0
      %v11895 = vadd.f32 0.0, %v11894
      %v11896 = vpop.f32.mrb[0].mxu0
      %11897 = vmatprep.mubr.f32.mxu0 0.0
      %11898 = vmatmul.mubr.f32.gmra.mrb[0].mxu0 %v11356
      %v11899 = vpop.f32.mrb[0].mxu0
      %v11900 = vadd.f32 0.0, %v11899
      %v11901 = vpop.f32.mrb[0].mxu0
      %11902 = vmatprep.mubr.f32.mxu0 0.0
      %11903 = vmatmul.mubr.f32.gmra.mrb[0].mxu0 %v11359
      %v11904 = vpop.f32.mrb[0].mxu0
      %v11905 = vadd.f32 0.0, %v11904
      %v11906 = vpop.f32.mrb[0].mxu0
      %11907 = vmatprep.mubr.f32.mxu0 0.0
      %11908 = vmatmul.mubr.f32.gmra.mrb[0].mxu0 %v11362
      %v11909 = vpop.f32.mrb[0].mxu0
      %v11910 = vadd.f32 0.0, %v11909
      %v11911 = vpop.f32.mrb[0].mxu0
      %11912 = vmatprep.mubr.f32.mxu0 0.0
      %11913 = vmatmul.mubr.f32.gmra.mrb[0].mxu0 %v11365
      %v11914 = vpop.f32.mrb[0].mxu0
      %v11915 = vadd.f32 0.0, %v11914
      %v11916 = vpop.f32.mrb[0].mxu0
      %11917 = vmatprep.mubr.f32.mxu0 0.0
      %11918 = vmatmul.mubr.f32.gmra.mrb[0].mxu0 %v11368
      %v11919 = vpop.f32.mrb[0].mxu0
      %v11920 = vadd.f32 0.0, %v11919
      %v11921 = vpop.f32.mrb[0].mxu0
      %11922 = vmatprep.mubr.f32.mxu0 0.0
      %11923 = vmatmul.mubr.f32.gmra.mrb[0].mxu0 %v11371
      %v11924 = vpop.f32.mrb[0].mxu0
      %v11925 = vadd.f32 0.0, %v11924
      %v11926 = vpop.f32.mrb[0].mxu0
      %11927 = vmatprep.mubr.f32.mxu0 0.0
      %11928 = vmatmul.mubr.f32.gmra.mrb[0].mxu0 %v11374
      %v11929 = vpop.f32.mrb[0].mxu0
      %v11930 = vadd.f32 0.0, %v11929
      %v11931 = vpop.f32.mrb[0].mxu0
      %11932 = vdwg.mxu0
      %v11933 = vadd.f32 %v9872, %v11580
      %v11934 = vadd.f32 %v9873, %v11585
      %v11935 = vadd.f32 %v9874, %v11590
      %v11936 = vadd.f32 %v9875, %v11595
      %v11937 = vadd.f32 %v9876, %v11600
      %v11938 = vadd.f32 %v9877, %v11605
      %v11939 = vadd.f32 %v9878, %v11610
      %v11940 = vadd.f32 %v9879, %v11615
      %v11941 = vadd.f32 %v9880, %v11685
      %v11942 = vadd.f32 %v9881, %v11690
      %v11943 = vadd.f32 %v9882, %v11695
      %v11944 = vadd.f32 %v9883, %v11700
      %v11945 = vadd.f32 %v9884, %v11705
      %v11946 = vadd.f32 %v9885, %v11710
      %v11947 = vadd.f32 %v9886, %v11715
      %v11948 = vadd.f32 %v9887, %v11720
      %v11949 = vadd.f32 %v9888, %v11790
      %v11950 = vadd.f32 %v9889, %v11795
      %v11951 = vadd.f32 %v9890, %v11800
      %v11952 = vadd.f32 %v9891, %v11805
      %v11953 = vadd.f32 %v9892, %v11810
      %v11954 = vadd.f32 %v9893, %v11815
      %v11955 = vadd.f32 %v9894, %v11820
      %v11956 = vadd.f32 %v9895, %v11825
      %v11957 = vadd.f32 %v9896, %v11895
      %v11958 = vadd.f32 %v9897, %v11900
      %v11959 = vadd.f32 %v9898, %v11905
      %v11960 = vadd.f32 %v9899, %v11910
      %v11961 = vadd.f32 %v9900, %v11915
      %v11962 = vadd.f32 %v9901, %v11920
      %v11963 = vadd.f32 %v9902, %v11925
      %v11964 = vadd.f32 %v9903, %v11930
      %v11966 = vlaneseq
      %v11967 = vshrl.u32 %v11966, 7
      %v11968 = vsub.s32 0, %v11967
      %v11969 = vrot.slane %v1024, %v11968
      %v11971 = vadd.f32 %v11481, %v11969
      %v11972 = vadd.f32 %v11482, %v11969
      %v11973 = vadd.f32 %v11483, %v11969
      %v11974 = vadd.f32 %v11484, %v11969
      %v11975 = vadd.f32 %v11485, %v11969
      %v11976 = vadd.f32 %v11486, %v11969
      %v11977 = vadd.f32 %v11487, %v11969
      %v11978 = vadd.f32 %v11488, %v11969
      %v11979 = vadd.f32 %v11489, %v11969
      %v11980 = vadd.f32 %v11490, %v11969
      %v11981 = vadd.f32 %v11491, %v11969
      %v11982 = vadd.f32 %v11492, %v11969
      %v11983 = vadd.f32 %v11493, %v11969
      %v11984 = vadd.f32 %v11494, %v11969
      %v11985 = vadd.f32 %v11495, %v11969
      %v11986 = vadd.f32 %v11496, %v11969
      %v11987 = vadd.f32 %v11497, %v11969
      %v11988 = vadd.f32 %v11498, %v11969
      %v11989 = vadd.f32 %v11499, %v11969
      %v11990 = vadd.f32 %v11500, %v11969
      %v11991 = vadd.f32 %v11501, %v11969
      %v11992 = vadd.f32 %v11502, %v11969
      %v11993 = vadd.f32 %v11503, %v11969
      %v11994 = vadd.f32 %v11504, %v11969
      %v11995 = vadd.f32 %v11505, %v11969
      %v11996 = vadd.f32 %v11506, %v11969
      %v11997 = vadd.f32 %v11507, %v11969
      %v11998 = vadd.f32 %v11508, %v11969
      %v11999 = vadd.f32 %v11509, %v11969
      %v12000 = vadd.f32 %v11510, %v11969
      %v12001 = vadd.f32 %v11511, %v11969
      %v12002 = vadd.f32 %v11512, %v11969
      %v12003 = vadd.f32 %v11933, %v11969
      %v12004 = vadd.f32 %v11934, %v11969
      %v12005 = vadd.f32 %v11935, %v11969
      %v12006 = vadd.f32 %v11936, %v11969
      %v12007 = vadd.f32 %v11937, %v11969
      %v12008 = vadd.f32 %v11938, %v11969
      %v12009 = vadd.f32 %v11939, %v11969
      %v12010 = vadd.f32 %v11940, %v11969
      %v12011 = vadd.f32 %v11941, %v11969
      %v12012 = vadd.f32 %v11942, %v11969
      %v12013 = vadd.f32 %v11943, %v11969
      %v12014 = vadd.f32 %v11944, %v11969
      %v12015 = vadd.f32 %v11945, %v11969
      %v12016 = vadd.f32 %v11946, %v11969
      %v12017 = vadd.f32 %v11947, %v11969
      %v12018 = vadd.f32 %v11948, %v11969
      %v12019 = vadd.f32 %v11949, %v11969
      %v12020 = vadd.f32 %v11950, %v11969
      %v12021 = vadd.f32 %v11951, %v11969
      %v12022 = vadd.f32 %v11952, %v11969
      %v12023 = vadd.f32 %v11953, %v11969
      %v12024 = vadd.f32 %v11954, %v11969
      %v12025 = vadd.f32 %v11955, %v11969
      %v12026 = vadd.f32 %v11956, %v11969
      %v12027 = vadd.f32 %v11957, %v11969
      %v12028 = vadd.f32 %v11958, %v11969
      %v12029 = vadd.f32 %v11959, %v11969
      %v12030 = vadd.f32 %v11960, %v11969
      %v12031 = vadd.f32 %v11961, %v11969
      %v12032 = vadd.f32 %v11962, %v11969
      %v12033 = vadd.f32 %v11963, %v11969
      %v12034 = vadd.f32 %v11964, %v11969
      %12067 = vrot.lane.b32.xlu0 %v12003, 64
      %v12068 = vpop.permute.xlu0 %12067
      %12069 = vrot.lane.b32.xlu0 %v12004, 64
      %v12070 = vpop.permute.xlu0 %12069
      %12071 = vrot.lane.b32.xlu0 %v12005, 64
      %v12072 = vpop.permute.xlu0 %12071
      %12073 = vrot.lane.b32.xlu0 %v12006, 64
      %v12074 = vpop.permute.xlu0 %12073
      %12075 = vrot.lane.b32.xlu0 %v12007, 64
      %v12076 = vpop.permute.xlu0 %12075
      %12077 = vrot.lane.b32.xlu0 %v12008, 64
      %v12078 = vpop.permute.xlu0 %12077
      %12079 = vrot.lane.b32.xlu0 %v12009, 64
      %v12080 = vpop.permute.xlu0 %12079
      %12081 = vrot.lane.b32.xlu0 %v12010, 64
      %v12082 = vpop.permute.xlu0 %12081
      %12083 = vrot.lane.b32.xlu0 %v12011, 64
      %v12084 = vpop.permute.xlu0 %12083
      %12085 = vrot.lane.b32.xlu0 %v12012, 64
      %v12086 = vpop.permute.xlu0 %12085
      %12087 = vrot.lane.b32.xlu0 %v12013, 64
      %v12088 = vpop.permute.xlu0 %12087
      %12089 = vrot.lane.b32.xlu0 %v12014, 64
      %v12090 = vpop.permute.xlu0 %12089
      %12091 = vrot.lane.b32.xlu0 %v12015, 64
      %v12092 = vpop.permute.xlu0 %12091
      %12093 = vrot.lane.b32.xlu0 %v12016, 64
      %v12094 = vpop.permute.xlu0 %12093
      %12095 = vrot.lane.b32.xlu0 %v12017, 64
      %v12096 = vpop.permute.xlu0 %12095
      %12097 = vrot.lane.b32.xlu0 %v12018, 64
      %v12098 = vpop.permute.xlu0 %12097
      %12099 = vrot.lane.b32.xlu0 %v12019, 64
      %v12100 = vpop.permute.xlu0 %12099
      %12101 = vrot.lane.b32.xlu0 %v12020, 64
      %v12102 = vpop.permute.xlu0 %12101
      %12103 = vrot.lane.b32.xlu0 %v12021, 64
      %v12104 = vpop.permute.xlu0 %12103
      %12105 = vrot.lane.b32.xlu0 %v12022, 64
      %v12106 = vpop.permute.xlu0 %12105
      %12107 = vrot.lane.b32.xlu0 %v12023, 64
      %v12108 = vpop.permute.xlu0 %12107
      %12109 = vrot.lane.b32.xlu0 %v12024, 64
      %v12110 = vpop.permute.xlu0 %12109
      %12111 = vrot.lane.b32.xlu0 %v12025, 64
      %v12112 = vpop.permute.xlu0 %12111
      %12113 = vrot.lane.b32.xlu0 %v12026, 64
      %v12114 = vpop.permute.xlu0 %12113
      %12115 = vrot.lane.b32.xlu0 %v12027, 64
      %v12116 = vpop.permute.xlu0 %12115
      %12117 = vrot.lane.b32.xlu0 %v12028, 64
      %v12118 = vpop.permute.xlu0 %12117
      %12119 = vrot.lane.b32.xlu0 %v12029, 64
      %v12120 = vpop.permute.xlu0 %12119
      %12121 = vrot.lane.b32.xlu0 %v12030, 64
      %v12122 = vpop.permute.xlu0 %12121
      %12123 = vrot.lane.b32.xlu0 %v12031, 64
      %v12124 = vpop.permute.xlu0 %12123
      %12125 = vrot.lane.b32.xlu0 %v12032, 64
      %v12126 = vpop.permute.xlu0 %12125
      %12127 = vrot.lane.b32.xlu0 %v12033, 64
      %v12128 = vpop.permute.xlu0 %12127
      %12129 = vrot.lane.b32.xlu0 %v12034, 64
      %v12130 = vpop.permute.xlu0 %12129
      %v12163 = vsel %vm423, %v11971, %v12068
      %v12164 = vsel %vm423, %v11972, %v12070
      %v12165 = vsel %vm423, %v11973, %v12072
      %v12166 = vsel %vm423, %v11974, %v12074
      %v12167 = vsel %vm423, %v11975, %v12076
      %v12168 = vsel %vm423, %v11976, %v12078
      %v12169 = vsel %vm423, %v11977, %v12080
      %v12170 = vsel %vm423, %v11978, %v12082
      %v12171 = vsel %vm423, %v11979, %v12084
      %v12172 = vsel %vm423, %v11980, %v12086
      %v12173 = vsel %vm423, %v11981, %v12088
      %v12174 = vsel %vm423, %v11982, %v12090
      %v12175 = vsel %vm423, %v11983, %v12092
      %v12176 = vsel %vm423, %v11984, %v12094
      %v12177 = vsel %vm423, %v11985, %v12096
      %v12178 = vsel %vm423, %v11986, %v12098
      %v12179 = vsel %vm423, %v11987, %v12100
      %v12180 = vsel %vm423, %v11988, %v12102
      %v12181 = vsel %vm423, %v11989, %v12104
      %v12182 = vsel %vm423, %v11990, %v12106
      %v12183 = vsel %vm423, %v11991, %v12108
      %v12184 = vsel %vm423, %v11992, %v12110
      %v12185 = vsel %vm423, %v11993, %v12112
      %v12186 = vsel %vm423, %v11994, %v12114
      %v12187 = vsel %vm423, %v11995, %v12116
      %v12188 = vsel %vm423, %v11996, %v12118
      %v12189 = vsel %vm423, %v11997, %v12120
      %v12190 = vsel %vm423, %v11998, %v12122
      %v12191 = vsel %vm423, %v11999, %v12124
      %v12192 = vsel %vm423, %v12000, %v12126
      %v12193 = vsel %vm423, %v12001, %v12128
      %v12194 = vsel %vm423, %v12002, %v12130
      %12195 = vst [vmem:[%s298] sm:$0xff] %v12163
      %12196 = vst [vmem:[%s298 + $0x8] sm:$0xff] %v12164
      %12197 = vst [vmem:[%s298 + $0x10] sm:$0xff] %v12165
      %12198 = vst [vmem:[%s298 + $0x18] sm:$0xff] %v12166
      %12199 = vst [vmem:[%s298 + $0x20] sm:$0xff] %v12167
      %12200 = vst [vmem:[%s298 + $0x28] sm:$0xff] %v12168
      %12201 = vst [vmem:[%s298 + $0x30] sm:$0xff] %v12169
      %12202 = vst [vmem:[%s298 + $0x38] sm:$0xff] %v12170
      %12203 = vst [vmem:[%s298 + $0x40] sm:$0xff] %v12171
      %12204 = vst [vmem:[%s298 + $0x48] sm:$0xff] %v12172
      %12205 = vst [vmem:[%s298 + $0x50] sm:$0xff] %v12173
      %12206 = vst [vmem:[%s298 + $0x58] sm:$0xff] %v12174
      %12207 = vst [vmem:[%s298 + $0x60] sm:$0xff] %v12175
      %12208 = vst [vmem:[%s298 + $0x68] sm:$0xff] %v12176
      %12209 = vst [vmem:[%s298 + $0x70] sm:$0xff] %v12177
      %12210 = vst [vmem:[%s298 + $0x78] sm:$0xff] %v12178
      %12211 = vst [vmem:[%s298 + $0x80] sm:$0xff] %v12179
      %12212 = vst [vmem:[%s298 + $0x88] sm:$0xff] %v12180
      %12213 = vst [vmem:[%s298 + $0x90] sm:$0xff] %v12181
      %12214 = vst [vmem:[%s298 + $0x98] sm:$0xff] %v12182
      %12215 = vst [vmem:[%s298 + $0xa0] sm:$0xff] %v12183
      %12216 = vst [vmem:[%s298 + $0xa8] sm:$0xff] %v12184
      %12217 = vst [vmem:[%s298 + $0xb0] sm:$0xff] %v12185
      %12218 = vst [vmem:[%s298 + $0xb8] sm:$0xff] %v12186
      %12219 = vst [vmem:[%s298 + $0xc0] sm:$0xff] %v12187
      %12220 = vst [vmem:[%s298 + $0xc8] sm:$0xff] %v12188
      %12221 = vst [vmem:[%s298 + $0xd0] sm:$0xff] %v12189
      %12222 = vst [vmem:[%s298 + $0xd8] sm:$0xff] %v12190
      %12223 = vst [vmem:[%s298 + $0xe0] sm:$0xff] %v12191
      %12224 = vst [vmem:[%s298 + $0xe8] sm:$0xff] %v12192
      %12225 = vst [vmem:[%s298 + $0xf0] sm:$0xff] %v12193
      %12226 = vst [vmem:[%s298 + $0xf8] sm:$0xff] %v12194
      %p12227 = scmp.lt.s32.totalorder %s18, 1
      %s12228 = scalar_select %p12227, %s18, 1
      %s12229 = smul.addr %s12228, 32
      %s12230 = smul.addr %s12229, 8
      %s12231 = scalar_lea.vmem %s7, %s12230
      // Predicated region
      $region49: #{forward_pallas.1} parent=47 // pred_check
        %p12232 = pneg %p193
      $region50: #{forward_pallas.1} parent=47 // pred_check_branch
        %12234 = sbr.rel (%p12232) target = $region52
      $region51: #{forward_pallas.1} parent=47 // pred_region
        _
      $region52: #{forward_pallas.1} parent=47 // pred_fallthru
        _
    $region48: #{forward_pallas.1} parent=5 // pred_fallthru
      _
    %p12235 = scmp.le.s32.totalorder 2, %s13
    // Predicated region
    $region53: #{forward_pallas.1} parent=5 // pred_check
      %p12236 = pneg %p12235
    $region54: #{forward_pallas.1} parent=5 // pred_check_branch
      %12238 = sbr.rel (%p12236) target = $region56
    $region55: #{forward_pallas.1} parent=5 // pred_region
      %s12239 = ssub.s32 %s13, 2
      // Predicated region
      $region57: #{forward_pallas.1} parent=55 // pred_check
        %p12240 = pneg %p199
      $region58: #{forward_pallas.1} parent=55 // pred_check_branch
        %12242 = sbr.rel (%p12240) target = $region60
      $region59: #{forward_pallas.1} parent=55 // pred_region
        %p12243 = scmp.lt.s32.totalorder %s19, 1
        %s12244 = scalar_select %p12243, %s19, 1
        %s12245 = smul.addr %s12244, 32
        %s12246 = smul.addr %s12245, 8
        %s12247 = scalar_lea.vmem %s7, %s12246
      $region60: #{forward_pallas.1} parent=55 // pred_fallthru
        _
    $region56: #{forward_pallas.1} parent=5 // pred_fallthru
      _
  $region6: #{forward_pallas.1} parent=0 // loop_footer
    %s17 = sadd.s32 1, %s13
  $region7: #{forward_pallas.1} parent=0 // loop_footer_branch
    %12 = sbr.rel target = $region3
  $region8: #{forward_pallas.1} parent=0 // loop_exit
    _

</llo_original>
